<compile_context>
chip_gen: v7x
topology: tpu7x:2x2x1
jax: 0.10.0
libtpu: 0.0.40
codegen_flags: <defaults>
</compile_context>

<pallas_src>
import functools

import jax
import jax.numpy as jnp
from jax.experimental import pallas as pl
from jax.experimental.pallas import tpu as pltpu

N_LAYERS = 10
LANE = 128
SUBLANE = 8


def _round_up(n, m):
    return (n + m - 1) // m * m


def _cdiv(a, b):
    return -(-a // b)


def _tpu_generation():
    """Best-effort chip-generation query: (#TensorCores per chip, VMEM bytes)."""
    kind = ""
    try:
        kind = jax.devices()[0].device_kind.lower()
    except Exception:
        pass
    two_tc = any(tag in kind for tag in ("v4", "v5p", "v7"))
    vmem_cap = (64 << 20) if "v7" in kind else (128 << 20)
    return (2 if two_tc else 1), vmem_cap


def _sigmoid1(x):
    # Logistic function as ONE EUP transcendental (tanh) instead of exp+divide.
    return 0.5 * jnp.tanh(0.5 * x) + 0.5


# -----------------------------------------------------------------------------
# Kernel
# -----------------------------------------------------------------------------
def highway_kernel(x_ref, w0_ref, b0_ref, wcat_ref, bcat_ref, o_ref, *, packed):
    """One batch tile through the input projection + 10 fused highway layers.

    x_ref   : (TB, D_in)           f32   batch tile
    w0_ref  : (D_in, Dp)           bf16  lane-padded input projection
    b0_ref  : (1, Dp)              f32
    wcat_ref: (L, Dp, Wout)        bf16  Wout = Dp (packed) or 2*Dp (concat)
    bcat_ref: (L, 1, Wout)         f32
    o_ref   : (TB, Dp)             f32
    """
    dp = o_ref.shape[-1]
    wdt = w0_ref.dtype

    # Input projection + sigmoid (bf16 MXU operands, f32 accumulation).
    y = _sigmoid1(
        jnp.dot(x_ref[...].astype(wdt), w0_ref[...],
                preferred_element_type=jnp.float32) + b0_ref[...])

    # 10 highway layers, unrolled (static trip count).  One fused matmul per
    # layer produces both the plain (H) and gate (T) pre-activations.
    for i in range(N_LAYERS):
        z = _sigmoid1(
            jnp.dot(y.astype(wdt), wcat_ref[i],
                    preferred_element_type=jnp.float32) + bcat_ref[i])
        if packed:
            # Plain in lanes [0, dp//2), gate in lanes [dp//2, dp).  Rotate the
            # gate lanes down onto the valid feature lanes (XLU slot; padded
            # lanes produce garbage that zero-padded weight rows never read).
            h = z
            t = pltpu.roll(z, dp // 2, 1)
        else:
            h = z[:, :dp]
            t = z[:, dp:]
        y = y + t * (h - y)          # == h*t + (1 - t)*y, one fewer VPU mul

    # Dropout(p=0.3) in eval mode == identity.
    o_ref[...] = y.astype(o_ref.dtype)


# -----------------------------------------------------------------------------
# One-time weight packing (call at param-load time, NOT per forward)
# -----------------------------------------------------------------------------
def pack_params(w0, b0, pw, pb, gw, gb, weight_dtype=jnp.bfloat16):
    """Zero-pad feature dims to a multiple of 128, fuse each layer's
    plain/gate weights into a single output block, cast weights to the MXU
    input dtype.  Zero-padded weight rows guarantee padded/garbage lanes of y
    never pollute valid output lanes.  Returns (w0p, b0p, wcat, bcat)."""
    d_in, d_out = w0.shape
    dp = _round_up(d_out, LANE)
    packed = 2 * d_out <= dp               # both halves fit one 128-lane block
    gate_off = dp // 2 if packed else dp
    w_out = dp if packed else 2 * dp

    w0p = jnp.zeros((d_in, dp), jnp.float32).at[:, :d_out].set(w0)
    w0p = w0p.astype(weight_dtype)
    b0p = jnp.zeros((1, dp), jnp.float32).at[:, :d_out].set(b0)

    wcat = jnp.zeros((N_LAYERS, dp, w_out), jnp.float32)
    wcat = wcat.at[:, :d_out, :d_out].set(pw)
    wcat = wcat.at[:, :d_out, gate_off:gate_off + d_out].set(gw)
    wcat = wcat.astype(weight_dtype)

    bcat = jnp.zeros((N_LAYERS, 1, w_out), jnp.float32)
    bcat = bcat.at[:, :, :d_out].set(pb)
    bcat = bcat.at[:, :, gate_off:gate_off + d_out].set(gb)

    return w0p, b0p, wcat, bcat


# -----------------------------------------------------------------------------
# Forward wrapper
# -----------------------------------------------------------------------------
@functools.partial(jax.jit, static_argnames=("d_out", "max_tile_b"))
def highway_forward(x, w0p, b0p, wcat, bcat, *, d_out, max_tile_b=512):
    B, D_in = x.shape
    Dp = wcat.shape[1]
    Wout = wcat.shape[2]
    packed = (Wout == Dp)

    num_tc, vmem_cap = _tpu_generation()

    # ---- generation-aware batch tiling ------------------------------------
    # 2-TC chips: two equal, padding-free tiles (balanced megacore split).
    # 1-TC chips: one grid step when it fits (no per-step pipeline overhead).
    TB = min(max_tile_b, _round_up(_cdiv(B, num_tc), SUBLANE))
    Bp = _round_up(B, TB)
    xp = x if Bp == B else jnp.pad(x, ((0, Bp - B), (0, 0)))
    grid = (Bp // TB,)

    # ---- VMEM budget -------------------------------------------------------
    # Assume worst-case 2x buffering of the constant-index weight blocks
    # (they may still be allocated double-deep by the pipeliner).  Cap below
    # physical VMEM minus headroom (critical on v7x's 64 MiB).
    def _nbytes(a):
        return a.size * a.dtype.itemsize

    est = 2 * (_nbytes(w0p) + _nbytes(b0p) + _nbytes(wcat) + _nbytes(bcat))
    est += 2 * TB * (D_in + Dp) * 4            # double-buffered x-in / o-out
    est += 3 * TB * max(Wout, Dp) * 4          # in-kernel f32 temporaries
    est += 4 << 20                             # compiler-internal scratch
    vmem_limit = int(min(est, vmem_cap - (8 << 20))) if est > (16 << 20) else None
    # NOTE: weight specs below would ideally be pipeline_mode=pl.Buffered(1)
    # (constant index map -> no benefit from double buffering); left at the
    # default and accounted for (2x) in `est` instead.  See TODO(synk) above
    # for the layer-streaming fallback once weights outgrow v7x VMEM.

    grid_spec = pltpu.PrefetchScalarGridSpec(
        num_scalar_prefetch=0,
        grid=grid,
        in_specs=[
            pl.BlockSpec((TB, D_in), lambda i: (i, 0)),                # x: batch-tiled
            pl.BlockSpec((D_in, Dp), lambda i: (0, 0)),                # weights resident
            pl.BlockSpec((1, Dp), lambda i: (0, 0)),
            pl.BlockSpec((N_LAYERS, Dp, Wout), lambda i: (0, 0, 0)),
            pl.BlockSpec((N_LAYERS, 1, Wout), lambda i: (0, 0, 0)),
        ],
        out_specs=pl.BlockSpec((TB, Dp), lambda i: (i, 0)),
    )

    out = pl.pallas_call(
        functools.partial(highway_kernel, packed=packed),
        out_shape=jax.ShapeDtypeStruct((Bp, Dp), jnp.float32),
        grid_spec=grid_spec,
        compiler_params=pltpu.CompilerParams(
            dimension_semantics=("parallel",),     # megacore split on 2-TC chips
            vmem_limit_bytes=vmem_limit),
    )(xp, w0p, b0p, wcat, bcat)

    return out[:B, :d_out]


# -----------------------------------------------------------------------------
# Parameter init + pure-JAX reference
# -----------------------------------------------------------------------------
def init_params(key, d_in, d_out):
    """Deterministic init mimicking nn.Linear uniform(-1/sqrt(fan_in), +)."""
    keys = jax.random.split(key, 2 + 4 * N_LAYERS)

    def lin(k, fan_in, shape):
        bound = 1.0 / jnp.sqrt(fan_in)
        return jax.random.uniform(k, shape, jnp.float32, -bound, bound)

    # First linear: weight [in, out] (pre-transposed), bias [1, out].
    w0 = lin(keys[0], d_in, (d_in, d_out))
    b0 = lin(keys[1], d_in, (1, d_out))

    pw = jnp.stack([lin(keys[2 + 4 * i + 0], d_out, (d_out, d_out))
                    for i in range(N_LAYERS)])
    pb = jnp.stack([lin(keys[2 + 4 * i + 1], d_out, (1, d_out))
                    for i in range(N_LAYERS)])
    gw = jnp.stack([lin(keys[2 + 4 * i + 2], d_out, (d_out, d_out))
                    for i in range(N_LAYERS)])
    gb = jnp.stack([lin(keys[2 + 4 * i + 3], d_out, (1, d_out))
                    for i in range(N_LAYERS)])
    return w0, b0, pw, pb, gw, gb


def highway_reference(x, w0, b0, pw, pb, gw, gb, weight_dtype=jnp.float32):
    """Pure-JAX reference of the PyTorch forward (eval mode).

    weight_dtype=jnp.bfloat16 mirrors the kernel's bf16-input / f32-accumulate
    matmul math for a tight numerical check."""
    def mm(a, w):
        return jnp.dot(a.astype(weight_dtype), w.astype(weight_dtype),
                       preferred_element_type=jnp.float32)

    y = jax.nn.sigmoid(mm(x, w0) + b0)
    for i in range(N_LAYERS):
        h = jax.nn.sigmoid(mm(y, pw[i]) + pb[i])
        t = jax.nn.sigmoid(mm(y, gw[i]) + gb[i])
        y = h * t + (1.0 - t) * y
    return y


# -----------------------------------------------------------------------------
if __name__ == "__main__":
    # Config 1: default small model -> packed [plain|gate] fast path.
    B, D_in, D_out = 384, 16, 32
    k0, k1, k2, k3 = jax.random.split(jax.random.PRNGKey(0), 4)

    x = jax.random.normal(k0, (B, D_in), jnp.float32)
    params = init_params(k1, D_in, D_out)
    packed_params = pack_params(*params)           # one-time layout plumbing

    out = jax.block_until_ready(
        highway_forward(x, *packed_params, d_out=D_out))
    assert out.shape == (B, D_out)

    # Tight check against a reference mirroring the kernel's bf16 matmuls.
    ref_bf16 = highway_reference(x, *params, weight_dtype=jnp.bfloat16)
    assert jnp.allclose(out, ref_bf16, atol=3e-3, rtol=3e-3), \
        "mismatch vs bf16-mirrored reference (packed path)"

    # Semantic check against the full-f32 PyTorch-equivalent forward.
    ref_f32 = highway_reference(x, *params)
    assert jnp.allclose(out, ref_f32, atol=5e-2, rtol=0.0), \
        "mismatch vs f32 reference (packed path)"

    # Config 2: wider D_out -> exercises the unpacked [plain | gate] fallback.
    B2, D2_in, D2_out = 64, 16, 72
    x2 = jax.random.normal(k2, (B2, D2_in), jnp.float32)
    params2 = init_params(k3, D2_in, D2_out)
    packed_params2 = pack_params(*params2)

    out2 = jax.block_until_ready(
        highway_forward(x2, *packed_params2, d_out=D2_out))
    assert out2.shape == (B2, D2_out)
    ref2 = highway_reference(x2, *params2, weight_dtype=jnp.bfloat16)
    assert jnp.allclose(out2, ref2, atol=3e-3, rtol=3e-3), \
        "mismatch vs bf16-mirrored reference (concat path)"

    print("KERNEL_OK")
</pallas_src>

<mosaic_0001>
module attributes {stable_mosaic.version = 11 : i64} {
  func.func @highway_kernel(%arg0: i32, %arg1: memref<384x16xf32, #tpu.memory_space<vmem>>, %arg2: memref<16x128xbf16, #tpu.memory_space<vmem>>, %arg3: memref<1x128xf32, #tpu.memory_space<vmem>>, %arg4: memref<10x128x128xbf16, #tpu.memory_space<vmem>>, %arg5: memref<10x1x128xf32, #tpu.memory_space<vmem>>, %arg6: memref<384x128xf32, #tpu.memory_space<vmem>>) attributes {dimension_semantics = [#tpu.dimension_semantics<parallel>], iteration_bounds = array<i64: 1>, scalar_prefetch = 0 : i64, scratch_operands = 0 : i64, tpu.core_type = #tpu.core_type<tc>, window_params = [{transform_indices = @transform_0, window_bounds = array<i64: 384, 16>}, {pipeline_mode = #tpu.pipeline_mode<synchronous>, transform_indices = @transform_1, window_bounds = array<i64: 16, 128>}, {pipeline_mode = #tpu.pipeline_mode<synchronous>, transform_indices = @transform_2, window_bounds = array<i64: 1, 128>}, {pipeline_mode = #tpu.pipeline_mode<synchronous>, transform_indices = @transform_3, window_bounds = array<i64: 10, 128, 128>}, {pipeline_mode = #tpu.pipeline_mode<synchronous>, transform_indices = @transform_4, window_bounds = array<i64: 10, 1, 128>}, {transform_indices = @transform_5, window_bounds = array<i64: 384, 128>}]} {
    %c0 = arith.constant 0 : index
    %c0_0 = arith.constant 0 : index
    %0 = vector.load %arg1[%c0, %c0_0] : memref<384x16xf32, #tpu.memory_space<vmem>>, vector<384x16xf32>
    %1 = arith.truncf %0 : vector<384x16xf32> to vector<384x16xbf16>
    %c0_1 = arith.constant 0 : index
    %c0_2 = arith.constant 0 : index
    %2 = vector.load %arg2[%c0_1, %c0_2] : memref<16x128xbf16, #tpu.memory_space<vmem>>, vector<16x128xbf16>
    %cst = arith.constant dense<0.000000e+00> : vector<384x128xf32>
    %3 = tpu.matmul %1, %2, %cst {dimension_numbers = #tpu.dot_dimension_numbers<[1], [0], [0], [1], [0, 0, 1, 1], [], []>} : vector<384x16xbf16>, vector<16x128xbf16>, vector<384x128xf32> -> vector<384x128xf32>
    %c0_3 = arith.constant 0 : index
    %c0_4 = arith.constant 0 : index
    %4 = vector.load %arg3[%c0_3, %c0_4] : memref<1x128xf32, #tpu.memory_space<vmem>>, vector<1x128xf32>
    %5 = vector.broadcast %4 : vector<1x128xf32> to vector<384x128xf32>
    %6 = arith.addf %3, %5 : vector<384x128xf32>
    %cst_5 = arith.constant 5.000000e-01 : f32
    %7 = vector.broadcast %cst_5 : f32 to vector<384x128xf32>
    %8 = arith.mulf %7, %6 : vector<384x128xf32>
    %9 = math.tanh %8 : vector<384x128xf32>
    %cst_6 = arith.constant 5.000000e-01 : f32
    %10 = vector.broadcast %cst_6 : f32 to vector<384x128xf32>
    %11 = arith.mulf %10, %9 : vector<384x128xf32>
    %cst_7 = arith.constant 5.000000e-01 : f32
    %12 = vector.broadcast %cst_7 : f32 to vector<384x128xf32>
    %13 = arith.addf %11, %12 : vector<384x128xf32>
    %14 = arith.truncf %13 : vector<384x128xf32> to vector<384x128xbf16>
    %c0_8 = arith.constant 0 : index
    %c0_9 = arith.constant 0 : index
    %c0_10 = arith.constant 0 : index
    %15 = vector.load %arg4[%c0_8, %c0_9, %c0_10] : memref<10x128x128xbf16, #tpu.memory_space<vmem>>, vector<1x128x128xbf16>
    %16 = vector.shape_cast %15 : vector<1x128x128xbf16> to vector<128x128xbf16>
    %cst_11 = arith.constant dense<0.000000e+00> : vector<384x128xf32>
    %17 = tpu.matmul %14, %16, %cst_11 {dimension_numbers = #tpu.dot_dimension_numbers<[1], [0], [0], [1], [0, 0, 1, 1], [], []>} : vector<384x128xbf16>, vector<128x128xbf16>, vector<384x128xf32> -> vector<384x128xf32>
    %c0_12 = arith.constant 0 : index
    %c0_13 = arith.constant 0 : index
    %c0_14 = arith.constant 0 : index
    %18 = vector.load %arg5[%c0_12, %c0_13, %c0_14] : memref<10x1x128xf32, #tpu.memory_space<vmem>>, vector<1x1x128xf32>
    %19 = vector.shape_cast %18 : vector<1x1x128xf32> to vector<1x128xf32>
    %20 = vector.broadcast %19 : vector<1x128xf32> to vector<384x128xf32>
    %21 = arith.addf %17, %20 : vector<384x128xf32>
    %cst_15 = arith.constant 5.000000e-01 : f32
    %22 = vector.broadcast %cst_15 : f32 to vector<384x128xf32>
    %23 = arith.mulf %22, %21 : vector<384x128xf32>
    %24 = math.tanh %23 : vector<384x128xf32>
    %cst_16 = arith.constant 5.000000e-01 : f32
    %25 = vector.broadcast %cst_16 : f32 to vector<384x128xf32>
    %26 = arith.mulf %25, %24 : vector<384x128xf32>
    %cst_17 = arith.constant 5.000000e-01 : f32
    %27 = vector.broadcast %cst_17 : f32 to vector<384x128xf32>
    %28 = arith.addf %26, %27 : vector<384x128xf32>
    %c64_i32 = arith.constant 64 : i32
    %29 = tpu.dynamic_rotate %28 by %c64_i32 dim 1 : vector<384x128xf32>, i32 -> vector<384x128xf32>
    %30 = arith.subf %28, %13 : vector<384x128xf32>
    %31 = arith.mulf %29, %30 : vector<384x128xf32>
    %32 = arith.addf %13, %31 : vector<384x128xf32>
    %33 = arith.truncf %32 : vector<384x128xf32> to vector<384x128xbf16>
    %c1 = arith.constant 1 : index
    %c0_18 = arith.constant 0 : index
    %c0_19 = arith.constant 0 : index
    %34 = vector.load %arg4[%c1, %c0_18, %c0_19] : memref<10x128x128xbf16, #tpu.memory_space<vmem>>, vector<1x128x128xbf16>
    %35 = vector.shape_cast %34 : vector<1x128x128xbf16> to vector<128x128xbf16>
    %cst_20 = arith.constant dense<0.000000e+00> : vector<384x128xf32>
    %36 = tpu.matmul %33, %35, %cst_20 {dimension_numbers = #tpu.dot_dimension_numbers<[1], [0], [0], [1], [0, 0, 1, 1], [], []>} : vector<384x128xbf16>, vector<128x128xbf16>, vector<384x128xf32> -> vector<384x128xf32>
    %c1_21 = arith.constant 1 : index
    %c0_22 = arith.constant 0 : index
    %c0_23 = arith.constant 0 : index
    %37 = vector.load %arg5[%c1_21, %c0_22, %c0_23] : memref<10x1x128xf32, #tpu.memory_space<vmem>>, vector<1x1x128xf32>
    %38 = vector.shape_cast %37 : vector<1x1x128xf32> to vector<1x128xf32>
    %39 = vector.broadcast %38 : vector<1x128xf32> to vector<384x128xf32>
    %40 = arith.addf %36, %39 : vector<384x128xf32>
    %cst_24 = arith.constant 5.000000e-01 : f32
    %41 = vector.broadcast %cst_24 : f32 to vector<384x128xf32>
    %42 = arith.mulf %41, %40 : vector<384x128xf32>
    %43 = math.tanh %42 : vector<384x128xf32>
    %cst_25 = arith.constant 5.000000e-01 : f32
    %44 = vector.broadcast %cst_25 : f32 to vector<384x128xf32>
    %45 = arith.mulf %44, %43 : vector<384x128xf32>
    %cst_26 = arith.constant 5.000000e-01 : f32
    %46 = vector.broadcast %cst_26 : f32 to vector<384x128xf32>
    %47 = arith.addf %45, %46 : vector<384x128xf32>
    %c64_i32_27 = arith.constant 64 : i32
    %48 = tpu.dynamic_rotate %47 by %c64_i32_27 dim 1 : vector<384x128xf32>, i32 -> vector<384x128xf32>
    %49 = arith.subf %47, %32 : vector<384x128xf32>
    %50 = arith.mulf %48, %49 : vector<384x128xf32>
    %51 = arith.addf %32, %50 : vector<384x128xf32>
    %52 = arith.truncf %51 : vector<384x128xf32> to vector<384x128xbf16>
    %c2 = arith.constant 2 : index
    %c0_28 = arith.constant 0 : index
    %c0_29 = arith.constant 0 : index
    %53 = vector.load %arg4[%c2, %c0_28, %c0_29] : memref<10x128x128xbf16, #tpu.memory_space<vmem>>, vector<1x128x128xbf16>
    %54 = vector.shape_cast %53 : vector<1x128x128xbf16> to vector<128x128xbf16>
    %cst_30 = arith.constant dense<0.000000e+00> : vector<384x128xf32>
    %55 = tpu.matmul %52, %54, %cst_30 {dimension_numbers = #tpu.dot_dimension_numbers<[1], [0], [0], [1], [0, 0, 1, 1], [], []>} : vector<384x128xbf16>, vector<128x128xbf16>, vector<384x128xf32> -> vector<384x128xf32>
    %c2_31 = arith.constant 2 : index
    %c0_32 = arith.constant 0 : index
    %c0_33 = arith.constant 0 : index
    %56 = vector.load %arg5[%c2_31, %c0_32, %c0_33] : memref<10x1x128xf32, #tpu.memory_space<vmem>>, vector<1x1x128xf32>
    %57 = vector.shape_cast %56 : vector<1x1x128xf32> to vector<1x128xf32>
    %58 = vector.broadcast %57 : vector<1x128xf32> to vector<384x128xf32>
    %59 = arith.addf %55, %58 : vector<384x128xf32>
    %cst_34 = arith.constant 5.000000e-01 : f32
    %60 = vector.broadcast %cst_34 : f32 to vector<384x128xf32>
    %61 = arith.mulf %60, %59 : vector<384x128xf32>
    %62 = math.tanh %61 : vector<384x128xf32>
    %cst_35 = arith.constant 5.000000e-01 : f32
    %63 = vector.broadcast %cst_35 : f32 to vector<384x128xf32>
    %64 = arith.mulf %63, %62 : vector<384x128xf32>
    %cst_36 = arith.constant 5.000000e-01 : f32
    %65 = vector.broadcast %cst_36 : f32 to vector<384x128xf32>
    %66 = arith.addf %64, %65 : vector<384x128xf32>
    %c64_i32_37 = arith.constant 64 : i32
    %67 = tpu.dynamic_rotate %66 by %c64_i32_37 dim 1 : vector<384x128xf32>, i32 -> vector<384x128xf32>
    %68 = arith.subf %66, %51 : vector<384x128xf32>
    %69 = arith.mulf %67, %68 : vector<384x128xf32>
    %70 = arith.addf %51, %69 : vector<384x128xf32>
    %71 = arith.truncf %70 : vector<384x128xf32> to vector<384x128xbf16>
    %c3 = arith.constant 3 : index
    %c0_38 = arith.constant 0 : index
    %c0_39 = arith.constant 0 : index
    %72 = vector.load %arg4[%c3, %c0_38, %c0_39] : memref<10x128x128xbf16, #tpu.memory_space<vmem>>, vector<1x128x128xbf16>
    %73 = vector.shape_cast %72 : vector<1x128x128xbf16> to vector<128x128xbf16>
    %cst_40 = arith.constant dense<0.000000e+00> : vector<384x128xf32>
    %74 = tpu.matmul %71, %73, %cst_40 {dimension_numbers = #tpu.dot_dimension_numbers<[1], [0], [0], [1], [0, 0, 1, 1], [], []>} : vector<384x128xbf16>, vector<128x128xbf16>, vector<384x128xf32> -> vector<384x128xf32>
    %c3_41 = arith.constant 3 : index
    %c0_42 = arith.constant 0 : index
    %c0_43 = arith.constant 0 : index
    %75 = vector.load %arg5[%c3_41, %c0_42, %c0_43] : memref<10x1x128xf32, #tpu.memory_space<vmem>>, vector<1x1x128xf32>
    %76 = vector.shape_cast %75 : vector<1x1x128xf32> to vector<1x128xf32>
    %77 = vector.broadcast %76 : vector<1x128xf32> to vector<384x128xf32>
    %78 = arith.addf %74, %77 : vector<384x128xf32>
    %cst_44 = arith.constant 5.000000e-01 : f32
    %79 = vector.broadcast %cst_44 : f32 to vector<384x128xf32>
    %80 = arith.mulf %79, %78 : vector<384x128xf32>
    %81 = math.tanh %80 : vector<384x128xf32>
    %cst_45 = arith.constant 5.000000e-01 : f32
    %82 = vector.broadcast %cst_45 : f32 to vector<384x128xf32>
    %83 = arith.mulf %82, %81 : vector<384x128xf32>
    %cst_46 = arith.constant 5.000000e-01 : f32
    %84 = vector.broadcast %cst_46 : f32 to vector<384x128xf32>
    %85 = arith.addf %83, %84 : vector<384x128xf32>
    %c64_i32_47 = arith.constant 64 : i32
    %86 = tpu.dynamic_rotate %85 by %c64_i32_47 dim 1 : vector<384x128xf32>, i32 -> vector<384x128xf32>
    %87 = arith.subf %85, %70 : vector<384x128xf32>
    %88 = arith.mulf %86, %87 : vector<384x128xf32>
    %89 = arith.addf %70, %88 : vector<384x128xf32>
    %90 = arith.truncf %89 : vector<384x128xf32> to vector<384x128xbf16>
    %c4 = arith.constant 4 : index
    %c0_48 = arith.constant 0 : index
    %c0_49 = arith.constant 0 : index
    %91 = vector.load %arg4[%c4, %c0_48, %c0_49] : memref<10x128x128xbf16, #tpu.memory_space<vmem>>, vector<1x128x128xbf16>
    %92 = vector.shape_cast %91 : vector<1x128x128xbf16> to vector<128x128xbf16>
    %cst_50 = arith.constant dense<0.000000e+00> : vector<384x128xf32>
    %93 = tpu.matmul %90, %92, %cst_50 {dimension_numbers = #tpu.dot_dimension_numbers<[1], [0], [0], [1], [0, 0, 1, 1], [], []>} : vector<384x128xbf16>, vector<128x128xbf16>, vector<384x128xf32> -> vector<384x128xf32>
    %c4_51 = arith.constant 4 : index
    %c0_52 = arith.constant 0 : index
    %c0_53 = arith.constant 0 : index
    %94 = vector.load %arg5[%c4_51, %c0_52, %c0_53] : memref<10x1x128xf32, #tpu.memory_space<vmem>>, vector<1x1x128xf32>
    %95 = vector.shape_cast %94 : vector<1x1x128xf32> to vector<1x128xf32>
    %96 = vector.broadcast %95 : vector<1x128xf32> to vector<384x128xf32>
    %97 = arith.addf %93, %96 : vector<384x128xf32>
    %cst_54 = arith.constant 5.000000e-01 : f32
    %98 = vector.broadcast %cst_54 : f32 to vector<384x128xf32>
    %99 = arith.mulf %98, %97 : vector<384x128xf32>
    %100 = math.tanh %99 : vector<384x128xf32>
    %cst_55 = arith.constant 5.000000e-01 : f32
    %101 = vector.broadcast %cst_55 : f32 to vector<384x128xf32>
    %102 = arith.mulf %101, %100 : vector<384x128xf32>
    %cst_56 = arith.constant 5.000000e-01 : f32
    %103 = vector.broadcast %cst_56 : f32 to vector<384x128xf32>
    %104 = arith.addf %102, %103 : vector<384x128xf32>
    %c64_i32_57 = arith.constant 64 : i32
    %105 = tpu.dynamic_rotate %104 by %c64_i32_57 dim 1 : vector<384x128xf32>, i32 -> vector<384x128xf32>
    %106 = arith.subf %104, %89 : vector<384x128xf32>
    %107 = arith.mulf %105, %106 : vector<384x128xf32>
    %108 = arith.addf %89, %107 : vector<384x128xf32>
    %109 = arith.truncf %108 : vector<384x128xf32> to vector<384x128xbf16>
    %c5 = arith.constant 5 : index
    %c0_58 = arith.constant 0 : index
    %c0_59 = arith.constant 0 : index
    %110 = vector.load %arg4[%c5, %c0_58, %c0_59] : memref<10x128x128xbf16, #tpu.memory_space<vmem>>, vector<1x128x128xbf16>
    %111 = vector.shape_cast %110 : vector<1x128x128xbf16> to vector<128x128xbf16>
    %cst_60 = arith.constant dense<0.000000e+00> : vector<384x128xf32>
    %112 = tpu.matmul %109, %111, %cst_60 {dimension_numbers = #tpu.dot_dimension_numbers<[1], [0], [0], [1], [0, 0, 1, 1], [], []>} : vector<384x128xbf16>, vector<128x128xbf16>, vector<384x128xf32> -> vector<384x128xf32>
    %c5_61 = arith.constant 5 : index
    %c0_62 = arith.constant 0 : index
    %c0_63 = arith.constant 0 : index
    %113 = vector.load %arg5[%c5_61, %c0_62, %c0_63] : memref<10x1x128xf32, #tpu.memory_space<vmem>>, vector<1x1x128xf32>
    %114 = vector.shape_cast %113 : vector<1x1x128xf32> to vector<1x128xf32>
    %115 = vector.broadcast %114 : vector<1x128xf32> to vector<384x128xf32>
    %116 = arith.addf %112, %115 : vector<384x128xf32>
    %cst_64 = arith.constant 5.000000e-01 : f32
    %117 = vector.broadcast %cst_64 : f32 to vector<384x128xf32>
    %118 = arith.mulf %117, %116 : vector<384x128xf32>
    %119 = math.tanh %118 : vector<384x128xf32>
    %cst_65 = arith.constant 5.000000e-01 : f32
    %120 = vector.broadcast %cst_65 : f32 to vector<384x128xf32>
    %121 = arith.mulf %120, %119 : vector<384x128xf32>
    %cst_66 = arith.constant 5.000000e-01 : f32
    %122 = vector.broadcast %cst_66 : f32 to vector<384x128xf32>
    %123 = arith.addf %121, %122 : vector<384x128xf32>
    %c64_i32_67 = arith.constant 64 : i32
    %124 = tpu.dynamic_rotate %123 by %c64_i32_67 dim 1 : vector<384x128xf32>, i32 -> vector<384x128xf32>
    %125 = arith.subf %123, %108 : vector<384x128xf32>
    %126 = arith.mulf %124, %125 : vector<384x128xf32>
    %127 = arith.addf %108, %126 : vector<384x128xf32>
    %128 = arith.truncf %127 : vector<384x128xf32> to vector<384x128xbf16>
    %c6 = arith.constant 6 : index
    %c0_68 = arith.constant 0 : index
    %c0_69 = arith.constant 0 : index
    %129 = vector.load %arg4[%c6, %c0_68, %c0_69] : memref<10x128x128xbf16, #tpu.memory_space<vmem>>, vector<1x128x128xbf16>
    %130 = vector.shape_cast %129 : vector<1x128x128xbf16> to vector<128x128xbf16>
    %cst_70 = arith.constant dense<0.000000e+00> : vector<384x128xf32>
    %131 = tpu.matmul %128, %130, %cst_70 {dimension_numbers = #tpu.dot_dimension_numbers<[1], [0], [0], [1], [0, 0, 1, 1], [], []>} : vector<384x128xbf16>, vector<128x128xbf16>, vector<384x128xf32> -> vector<384x128xf32>
    %c6_71 = arith.constant 6 : index
    %c0_72 = arith.constant 0 : index
    %c0_73 = arith.constant 0 : index
    %132 = vector.load %arg5[%c6_71, %c0_72, %c0_73] : memref<10x1x128xf32, #tpu.memory_space<vmem>>, vector<1x1x128xf32>
    %133 = vector.shape_cast %132 : vector<1x1x128xf32> to vector<1x128xf32>
    %134 = vector.broadcast %133 : vector<1x128xf32> to vector<384x128xf32>
    %135 = arith.addf %131, %134 : vector<384x128xf32>
    %cst_74 = arith.constant 5.000000e-01 : f32
    %136 = vector.broadcast %cst_74 : f32 to vector<384x128xf32>
    %137 = arith.mulf %136, %135 : vector<384x128xf32>
    %138 = math.tanh %137 : vector<384x128xf32>
    %cst_75 = arith.constant 5.000000e-01 : f32
    %139 = vector.broadcast %cst_75 : f32 to vector<384x128xf32>
    %140 = arith.mulf %139, %138 : vector<384x128xf32>
    %cst_76 = arith.constant 5.000000e-01 : f32
    %141 = vector.broadcast %cst_76 : f32 to vector<384x128xf32>
    %142 = arith.addf %140, %141 : vector<384x128xf32>
    %c64_i32_77 = arith.constant 64 : i32
    %143 = tpu.dynamic_rotate %142 by %c64_i32_77 dim 1 : vector<384x128xf32>, i32 -> vector<384x128xf32>
    %144 = arith.subf %142, %127 : vector<384x128xf32>
    %145 = arith.mulf %143, %144 : vector<384x128xf32>
    %146 = arith.addf %127, %145 : vector<384x128xf32>
    %147 = arith.truncf %146 : vector<384x128xf32> to vector<384x128xbf16>
    %c7 = arith.constant 7 : index
    %c0_78 = arith.constant 0 : index
    %c0_79 = arith.constant 0 : index
    %148 = vector.load %arg4[%c7, %c0_78, %c0_79] : memref<10x128x128xbf16, #tpu.memory_space<vmem>>, vector<1x128x128xbf16>
    %149 = vector.shape_cast %148 : vector<1x128x128xbf16> to vector<128x128xbf16>
    %cst_80 = arith.constant dense<0.000000e+00> : vector<384x128xf32>
    %150 = tpu.matmul %147, %149, %cst_80 {dimension_numbers = #tpu.dot_dimension_numbers<[1], [0], [0], [1], [0, 0, 1, 1], [], []>} : vector<384x128xbf16>, vector<128x128xbf16>, vector<384x128xf32> -> vector<384x128xf32>
    %c7_81 = arith.constant 7 : index
    %c0_82 = arith.constant 0 : index
    %c0_83 = arith.constant 0 : index
    %151 = vector.load %arg5[%c7_81, %c0_82, %c0_83] : memref<10x1x128xf32, #tpu.memory_space<vmem>>, vector<1x1x128xf32>
    %152 = vector.shape_cast %151 : vector<1x1x128xf32> to vector<1x128xf32>
    %153 = vector.broadcast %152 : vector<1x128xf32> to vector<384x128xf32>
    %154 = arith.addf %150, %153 : vector<384x128xf32>
    %cst_84 = arith.constant 5.000000e-01 : f32
    %155 = vector.broadcast %cst_84 : f32 to vector<384x128xf32>
    %156 = arith.mulf %155, %154 : vector<384x128xf32>
    %157 = math.tanh %156 : vector<384x128xf32>
    %cst_85 = arith.constant 5.000000e-01 : f32
    %158 = vector.broadcast %cst_85 : f32 to vector<384x128xf32>
    %159 = arith.mulf %158, %157 : vector<384x128xf32>
    %cst_86 = arith.constant 5.000000e-01 : f32
    %160 = vector.broadcast %cst_86 : f32 to vector<384x128xf32>
    %161 = arith.addf %159, %160 : vector<384x128xf32>
    %c64_i32_87 = arith.constant 64 : i32
    %162 = tpu.dynamic_rotate %161 by %c64_i32_87 dim 1 : vector<384x128xf32>, i32 -> vector<384x128xf32>
    %163 = arith.subf %161, %146 : vector<384x128xf32>
    %164 = arith.mulf %162, %163 : vector<384x128xf32>
    %165 = arith.addf %146, %164 : vector<384x128xf32>
    %166 = arith.truncf %165 : vector<384x128xf32> to vector<384x128xbf16>
    %c8 = arith.constant 8 : index
    %c0_88 = arith.constant 0 : index
    %c0_89 = arith.constant 0 : index
    %167 = vector.load %arg4[%c8, %c0_88, %c0_89] : memref<10x128x128xbf16, #tpu.memory_space<vmem>>, vector<1x128x128xbf16>
    %168 = vector.shape_cast %167 : vector<1x128x128xbf16> to vector<128x128xbf16>
    %cst_90 = arith.constant dense<0.000000e+00> : vector<384x128xf32>
    %169 = tpu.matmul %166, %168, %cst_90 {dimension_numbers = #tpu.dot_dimension_numbers<[1], [0], [0], [1], [0, 0, 1, 1], [], []>} : vector<384x128xbf16>, vector<128x128xbf16>, vector<384x128xf32> -> vector<384x128xf32>
    %c8_91 = arith.constant 8 : index
    %c0_92 = arith.constant 0 : index
    %c0_93 = arith.constant 0 : index
    %170 = vector.load %arg5[%c8_91, %c0_92, %c0_93] : memref<10x1x128xf32, #tpu.memory_space<vmem>>, vector<1x1x128xf32>
    %171 = vector.shape_cast %170 : vector<1x1x128xf32> to vector<1x128xf32>
    %172 = vector.broadcast %171 : vector<1x128xf32> to vector<384x128xf32>
    %173 = arith.addf %169, %172 : vector<384x128xf32>
    %cst_94 = arith.constant 5.000000e-01 : f32
    %174 = vector.broadcast %cst_94 : f32 to vector<384x128xf32>
    %175 = arith.mulf %174, %173 : vector<384x128xf32>
    %176 = math.tanh %175 : vector<384x128xf32>
    %cst_95 = arith.constant 5.000000e-01 : f32
    %177 = vector.broadcast %cst_95 : f32 to vector<384x128xf32>
    %178 = arith.mulf %177, %176 : vector<384x128xf32>
    %cst_96 = arith.constant 5.000000e-01 : f32
    %179 = vector.broadcast %cst_96 : f32 to vector<384x128xf32>
    %180 = arith.addf %178, %179 : vector<384x128xf32>
    %c64_i32_97 = arith.constant 64 : i32
    %181 = tpu.dynamic_rotate %180 by %c64_i32_97 dim 1 : vector<384x128xf32>, i32 -> vector<384x128xf32>
    %182 = arith.subf %180, %165 : vector<384x128xf32>
    %183 = arith.mulf %181, %182 : vector<384x128xf32>
    %184 = arith.addf %165, %183 : vector<384x128xf32>
    %185 = arith.truncf %184 : vector<384x128xf32> to vector<384x128xbf16>
    %c9 = arith.constant 9 : index
    %c0_98 = arith.constant 0 : index
    %c0_99 = arith.constant 0 : index
    %186 = vector.load %arg4[%c9, %c0_98, %c0_99] : memref<10x128x128xbf16, #tpu.memory_space<vmem>>, vector<1x128x128xbf16>
    %187 = vector.shape_cast %186 : vector<1x128x128xbf16> to vector<128x128xbf16>
    %cst_100 = arith.constant dense<0.000000e+00> : vector<384x128xf32>
    %188 = tpu.matmul %185, %187, %cst_100 {dimension_numbers = #tpu.dot_dimension_numbers<[1], [0], [0], [1], [0, 0, 1, 1], [], []>} : vector<384x128xbf16>, vector<128x128xbf16>, vector<384x128xf32> -> vector<384x128xf32>
    %c9_101 = arith.constant 9 : index
    %c0_102 = arith.constant 0 : index
    %c0_103 = arith.constant 0 : index
    %189 = vector.load %arg5[%c9_101, %c0_102, %c0_103] : memref<10x1x128xf32, #tpu.memory_space<vmem>>, vector<1x1x128xf32>
    %190 = vector.shape_cast %189 : vector<1x1x128xf32> to vector<1x128xf32>
    %191 = vector.broadcast %190 : vector<1x128xf32> to vector<384x128xf32>
    %192 = arith.addf %188, %191 : vector<384x128xf32>
    %cst_104 = arith.constant 5.000000e-01 : f32
    %193 = vector.broadcast %cst_104 : f32 to vector<384x128xf32>
    %194 = arith.mulf %193, %192 : vector<384x128xf32>
    %195 = math.tanh %194 : vector<384x128xf32>
    %cst_105 = arith.constant 5.000000e-01 : f32
    %196 = vector.broadcast %cst_105 : f32 to vector<384x128xf32>
    %197 = arith.mulf %196, %195 : vector<384x128xf32>
    %cst_106 = arith.constant 5.000000e-01 : f32
    %198 = vector.broadcast %cst_106 : f32 to vector<384x128xf32>
    %199 = arith.addf %197, %198 : vector<384x128xf32>
    %c64_i32_107 = arith.constant 64 : i32
    %200 = tpu.dynamic_rotate %199 by %c64_i32_107 dim 1 : vector<384x128xf32>, i32 -> vector<384x128xf32>
    %201 = arith.subf %199, %184 : vector<384x128xf32>
    %202 = arith.mulf %200, %201 : vector<384x128xf32>
    %203 = arith.addf %184, %202 : vector<384x128xf32>
    %c0_108 = arith.constant 0 : index
    %c0_109 = arith.constant 0 : index
    %204 = vector.load %arg6[%c0_108, %c0_109] : memref<384x128xf32, #tpu.memory_space<vmem>>, vector<384x128xf32>
    tpu.vector_store %arg6[%c0_108, %c0_109], %203 {strides = array<i32>} : memref<384x128xf32, #tpu.memory_space<vmem>>, vector<384x128xf32>,
    return
  }
  func.func @transform_0(%arg0: i32) -> (i32, i32) {
    %c0_i32 = arith.constant 0 : i32
    %c0_i32_0 = arith.constant 0 : i32
    return %arg0, %c0_i32 : i32, i32
  }
  func.func @transform_1(%arg0: i32) -> (i32, i32) {
    %c0_i32 = arith.constant 0 : i32
    %c0_i32_0 = arith.constant 0 : i32
    %c0_i32_1 = arith.constant 0 : i32
    return %c0_i32, %c0_i32_0 : i32, i32
  }
  func.func @transform_2(%arg0: i32) -> (i32, i32) {
    %c0_i32 = arith.constant 0 : i32
    %c0_i32_0 = arith.constant 0 : i32
    %c0_i32_1 = arith.constant 0 : i32
    return %c0_i32, %c0_i32_0 : i32, i32
  }
  func.func @transform_3(%arg0: i32) -> (i32, i32, i32) {
    %c0_i32 = arith.constant 0 : i32
    %c0_i32_0 = arith.constant 0 : i32
    %c0_i32_1 = arith.constant 0 : i32
    %c0_i32_2 = arith.constant 0 : i32
    return %c0_i32, %c0_i32_0, %c0_i32_1 : i32, i32, i32
  }
  func.func @transform_4(%arg0: i32) -> (i32, i32, i32) {
    %c0_i32 = arith.constant 0 : i32
    %c0_i32_0 = arith.constant 0 : i32
    %c0_i32_1 = arith.constant 0 : i32
    %c0_i32_2 = arith.constant 0 : i32
    return %c0_i32, %c0_i32_0, %c0_i32_1 : i32, i32, i32
  }
  func.func @transform_5(%arg0: i32) -> (i32, i32) {
    %c0_i32 = arith.constant 0 : i32
    %c0_i32_0 = arith.constant 0 : i32
    return %arg0, %c0_i32 : i32, i32
  }
}

</mosaic_0001>

<llo_original>
// kernel: highway_forward.1
$region0: #{highway_forward.1}
  #allocation0 [shape = 'u32[]', space=smem, size = 0x4, offset = 0x4, fixed_abs, tag = 'smem constant byte address 0x4 - core index']
  #allocation1 [shape = 'u32[144,128]{1,0:T(1,128)}', space=vmem, size = 0x12000, scoped, tag = 'internal scratch']
  %s0 = inlined_call_operand.vmem [shape: f32[384,16], index: 0, kind: input, shape index: {}]
  %s1 = inlined_call_operand.vmem [shape: bf16[16,128], index: 1, kind: input, shape index: {}]
  %s2 = inlined_call_operand.vmem [shape: f32[1,128], index: 2, kind: input, shape index: {}]
  %s3 = inlined_call_operand.hbm [shape: bf16[10,128,128], index: 3, kind: input, shape index: {}]
  %s4 = inlined_call_operand.vmem [shape: f32[10,1,128], index: 4, kind: input, shape index: {}]
  %s5 = inlined_call_operand.vmem [shape: f32[384,128], index: 5, kind: output, shape index: {}]
  %s6 = sld [smem:[#allocation0]]
  $region34: #{highway_forward.1} parent=0
    _
  %s8 = ssub.s32 1, %s6
  %s9 = scalar_select 0, %s8, %s6
  $region1: #{highway_forward.1} parent=0
    #allocation2 [shape = 'u8[327680]{0}', space=vmem, size = 0x50000, scoped, tag = 'input window, operand 3, single buffered']
    #allocation3 [shape = 's32[1]{0}', space=sflag, size = 0x4, scoped, tag = 'scoped memory for highway_forward.1']
    %10 = vsyncpa [#allocation3], 0
    // Predicated region
    $region2: #{highway_forward.1} parent=1 // pred_check
      _
    $region3: #{highway_forward.1} parent=1 // pred_check_branch
      %12 = sbr.rel (0) target = $region5
    $region4: #{highway_forward.1} parent=1 // pred_region
      _
    $region5: #{highway_forward.1} parent=1 // pred_fallthru
      _
    // Predicated region
    $region6: #{highway_forward.1} parent=1 // pred_check
      _
    $region7: #{highway_forward.1} parent=1 // pred_check_branch
      %14 = sbr.rel (0) target = $region9
    $region8: #{highway_forward.1} parent=1 // pred_region
      _
    $region9: #{highway_forward.1} parent=1 // pred_fallthru
      _
    // Predicated region
    $region10: #{highway_forward.1} parent=1 // pred_check
      _
    $region11: #{highway_forward.1} parent=1 // pred_check_branch
      %16 = sbr.rel (0) target = $region13
    $region12: #{highway_forward.1} parent=1 // pred_region
      _
    $region13: #{highway_forward.1} parent=1 // pred_fallthru
      _
    // Predicated region
    $region14: #{highway_forward.1} parent=1 // pred_check
      _
    $region15: #{highway_forward.1} parent=1 // pred_check_branch
      %18 = sbr.rel (0) target = $region17
    $region16: #{highway_forward.1} parent=1 // pred_region
      %s20 = ssub.s32 10240, 10240
      %21 = vsyncadd [#allocation3], %s20
      %s22 = sshll.u32 [#allocation2], 4
      %s23 = int_to_ptr.vmem [resolvable:$true] %s22
      %28 = dma.hbm_to_vmem [thread:$0]  %s3, 10240, %s23, [#allocation3], 64, 64, 4
    $region17: #{highway_forward.1} parent=1 // pred_fallthru
      _
    // Predicated region
    $region18: #{highway_forward.1} parent=1 // pred_check
      _
    $region19: #{highway_forward.1} parent=1 // pred_check_branch
      %30 = sbr.rel (0) target = $region21
    $region20: #{highway_forward.1} parent=1 // pred_region
      _
    $region21: #{highway_forward.1} parent=1 // pred_fallthru
      _
    // Predicated region
    $region22: #{highway_forward.1} parent=1 // pred_check
      _
    $region23: #{highway_forward.1} parent=1 // pred_check_branch
      %32 = sbr.rel (0) target = $region25
    $region24: #{highway_forward.1} parent=1 // pred_region
      %33 = dma.done [#allocation3], 10240
    $region25: #{highway_forward.1} parent=1 // pred_fallthru
      _
    %v35 = vld [vmem:[%s0] sm:$0xff]
    %v36 = vld [vmem:[%s0 + $0x8] sm:$0xff]
    %v37 = vld [vmem:[%s0 + $0x10] sm:$0xff]
    %v38 = vld [vmem:[%s0 + $0x18] sm:$0xff]
    %v39 = vld [vmem:[%s0 + $0x20] sm:$0xff]
    %v40 = vld [vmem:[%s0 + $0x28] sm:$0xff]
    %v41 = vld [vmem:[%s0 + $0x30] sm:$0xff]
    %v42 = vld [vmem:[%s0 + $0x38] sm:$0xff]
    %v43 = vld [vmem:[%s0 + $0x40] sm:$0xff]
    %v44 = vld [vmem:[%s0 + $0x48] sm:$0xff]
    %v45 = vld [vmem:[%s0 + $0x50] sm:$0xff]
    %v46 = vld [vmem:[%s0 + $0x58] sm:$0xff]
    %v47 = vld [vmem:[%s0 + $0x60] sm:$0xff]
    %v48 = vld [vmem:[%s0 + $0x68] sm:$0xff]
    %v49 = vld [vmem:[%s0 + $0x70] sm:$0xff]
    %v50 = vld [vmem:[%s0 + $0x78] sm:$0xff]
    %v51 = vld [vmem:[%s0 + $0x80] sm:$0xff]
    %v52 = vld [vmem:[%s0 + $0x88] sm:$0xff]
    %v53 = vld [vmem:[%s0 + $0x90] sm:$0xff]
    %v54 = vld [vmem:[%s0 + $0x98] sm:$0xff]
    %v55 = vld [vmem:[%s0 + $0xa0] sm:$0xff]
    %v56 = vld [vmem:[%s0 + $0xa8] sm:$0xff]
    %v57 = vld [vmem:[%s0 + $0xb0] sm:$0xff]
    %v58 = vld [vmem:[%s0 + $0xb8] sm:$0xff]
    %v59 = vld [vmem:[%s0 + $0xc0] sm:$0xff]
    %v60 = vld [vmem:[%s0 + $0xc8] sm:$0xff]
    %v61 = vld [vmem:[%s0 + $0xd0] sm:$0xff]
    %v62 = vld [vmem:[%s0 + $0xd8] sm:$0xff]
    %v63 = vld [vmem:[%s0 + $0xe0] sm:$0xff]
    %v64 = vld [vmem:[%s0 + $0xe8] sm:$0xff]
    %v65 = vld [vmem:[%s0 + $0xf0] sm:$0xff]
    %v66 = vld [vmem:[%s0 + $0xf8] sm:$0xff]
    %v67 = vld [vmem:[%s0 + $0x100] sm:$0xff]
    %v68 = vld [vmem:[%s0 + $0x108] sm:$0xff]
    %v69 = vld [vmem:[%s0 + $0x110] sm:$0xff]
    %v70 = vld [vmem:[%s0 + $0x118] sm:$0xff]
    %v71 = vld [vmem:[%s0 + $0x120] sm:$0xff]
    %v72 = vld [vmem:[%s0 + $0x128] sm:$0xff]
    %v73 = vld [vmem:[%s0 + $0x130] sm:$0xff]
    %v74 = vld [vmem:[%s0 + $0x138] sm:$0xff]
    %v75 = vld [vmem:[%s0 + $0x140] sm:$0xff]
    %v76 = vld [vmem:[%s0 + $0x148] sm:$0xff]
    %v77 = vld [vmem:[%s0 + $0x150] sm:$0xff]
    %v78 = vld [vmem:[%s0 + $0x158] sm:$0xff]
    %v79 = vld [vmem:[%s0 + $0x160] sm:$0xff]
    %v80 = vld [vmem:[%s0 + $0x168] sm:$0xff]
    %v81 = vld [vmem:[%s0 + $0x170] sm:$0xff]
    %v82 = vld [vmem:[%s0 + $0x178] sm:$0xff]
    %v83 = vpack.c.bf16 %v36, %v35
    %v84 = vpack.c.bf16 %v38, %v37
    %v85 = vpack.c.bf16 %v40, %v39
    %v86 = vpack.c.bf16 %v42, %v41
    %v87 = vpack.c.bf16 %v44, %v43
    %v88 = vpack.c.bf16 %v46, %v45
    %v89 = vpack.c.bf16 %v48, %v47
    %v90 = vpack.c.bf16 %v50, %v49
    %v91 = vpack.c.bf16 %v52, %v51
    %v92 = vpack.c.bf16 %v54, %v53
    %v93 = vpack.c.bf16 %v56, %v55
    %v94 = vpack.c.bf16 %v58, %v57
    %v95 = vpack.c.bf16 %v60, %v59
    %v96 = vpack.c.bf16 %v62, %v61
    %v97 = vpack.c.bf16 %v64, %v63
    %v98 = vpack.c.bf16 %v66, %v65
    %v99 = vpack.c.bf16 %v68, %v67
    %v100 = vpack.c.bf16 %v70, %v69
    %v101 = vpack.c.bf16 %v72, %v71
    %v102 = vpack.c.bf16 %v74, %v73
    %v103 = vpack.c.bf16 %v76, %v75
    %v104 = vpack.c.bf16 %v78, %v77
    %v105 = vpack.c.bf16 %v80, %v79
    %v106 = vpack.c.bf16 %v82, %v81
    %v107 = vld [vmem:[%s1] sm:$0xf]
    %v108 = vld [vmem:[%s1 + $0x4] sm:$0xf]
    %v109 = vld [vmem:[%s2] sm:$0x1]
    %v111 = vlaneseq
    %v112 = vshrl.u32 %v111, 7
    %v113 = vsub.s32 0, %v112
    %v114 = vrot.slane %v109, %v113
    %v118 = vunpack.c.l.b16 %v107
    %v119 = vunpack.c.l.b16 %v108
    %v120 = vpack.c.b16 %v119, %v118
    %vm122 = vcmask 130048
    %v124 = vsel %vm122, %v83, 0
    %v127 = vsel %vm122, %v84, 0
    %v130 = vsel %vm122, %v85, 0
    %v133 = vsel %vm122, %v86, 0
    %v136 = vsel %vm122, %v87, 0
    %v139 = vsel %vm122, %v88, 0
    %v142 = vsel %vm122, %v89, 0
    %v145 = vsel %vm122, %v90, 0
    %v148 = vsel %vm122, %v91, 0
    %v151 = vsel %vm122, %v92, 0
    %v154 = vsel %vm122, %v93, 0
    %v157 = vsel %vm122, %v94, 0
    %v160 = vsel %vm122, %v95, 0
    %v163 = vsel %vm122, %v96, 0
    %v166 = vsel %vm122, %v97, 0
    %v169 = vsel %vm122, %v98, 0
    %v172 = vsel %vm122, %v99, 0
    %v175 = vsel %vm122, %v100, 0
    %v178 = vsel %vm122, %v101, 0
    %v181 = vsel %vm122, %v102, 0
    %v184 = vsel %vm122, %v103, 0
    %v187 = vsel %vm122, %v104, 0
    %v190 = vsel %vm122, %v105, 0
    %v193 = vsel %vm122, %v106, 0
    %195 = vmatprep.subr.bf16.mxu0 0
    %196 = vmatpush1.bf16.msra.mxu0 %v120
    %197 = vmatprep.subr.bf16.mxu0 0
    %198 = vmatpush1.bf16.msra.mxu0 0
    %199 = vmatprep.subr.bf16.mxu0 0
    %200 = vmatpush1.bf16.msra.mxu0 0
    %201 = vmatprep.subr.bf16.mxu0 0
    %202 = vmatpush1.bf16.msra.mxu0 0
    %203 = vmatprep.subr.bf16.mxu0 0
    %204 = vmatpush1.bf16.msra.mxu0 0
    %205 = vmatprep.subr.bf16.mxu0 0
    %206 = vmatpush1.bf16.msra.mxu0 0
    %207 = vmatprep.subr.bf16.mxu0 0
    %208 = vmatpush1.bf16.msra.mxu0 0
    %209 = vmatprep.subr.bf16.mxu0 0
    %210 = vmatpush1.bf16.msra.mxu0 0
    %211 = vmatprep.subr.bf16.mxu0 0
    %212 = vmatpush1.bf16.msra.mxu0 0
    %213 = vmatprep.subr.bf16.mxu0 0
    %214 = vmatpush1.bf16.msra.mxu0 0
    %215 = vmatprep.subr.bf16.mxu0 0
    %216 = vmatpush1.bf16.msra.mxu0 0
    %217 = vmatprep.subr.bf16.mxu0 0
    %218 = vmatpush1.bf16.msra.mxu0 0
    %219 = vmatprep.subr.bf16.mxu0 0
    %220 = vmatpush1.bf16.msra.mxu0 0
    %221 = vmatprep.subr.bf16.mxu0 0
    %222 = vmatpush1.bf16.msra.mxu0 0
    %223 = vmatprep.subr.bf16.mxu0 0
    %224 = vmatpush1.bf16.msra.mxu0 0
    %225 = vmatprep.subr.bf16.mxu0 0
    %226 = vmatpush1.bf16.msra.mxu0 0
    %227 = vmatprep.mubr.bf16.mxu0 0
    %228 = vmatmul.mubr.bf16.gmra.mrb[0].mxu0 %v124
    %v229 = vpop.f32.mrb[0].mxu0
    %v230 = vadd.f32 %v114, %v229
    %v231 = vpop.f32.mrb[0].mxu0
    %v232 = vpop.f32.mrb[0].mxu0
    %v233 = vadd.f32 %v114, %v232
    %v234 = vpop.f32.mrb[0].mxu0
    %235 = vmatprep.mubr.bf16.mxu0 0
    %236 = vmatmul.mubr.bf16.gmra.mrb[0].mxu0 %v127
    %v237 = vpop.f32.mrb[0].mxu0
    %v238 = vadd.f32 %v114, %v237
    %v239 = vpop.f32.mrb[0].mxu0
    %v240 = vpop.f32.mrb[0].mxu0
    %v241 = vadd.f32 %v114, %v240
    %v242 = vpop.f32.mrb[0].mxu0
    %243 = vmatprep.mubr.bf16.mxu0 0
    %244 = vmatmul.mubr.bf16.gmra.mrb[0].mxu0 %v130
    %v245 = vpop.f32.mrb[0].mxu0
    %v246 = vadd.f32 %v114, %v245
    %v247 = vpop.f32.mrb[0].mxu0
    %v248 = vpop.f32.mrb[0].mxu0
    %v249 = vadd.f32 %v114, %v248
    %v250 = vpop.f32.mrb[0].mxu0
    %251 = vmatprep.mubr.bf16.mxu0 0
    %252 = vmatmul.mubr.bf16.gmra.mrb[0].mxu0 %v133
    %v253 = vpop.f32.mrb[0].mxu0
    %v254 = vadd.f32 %v114, %v253
    %v255 = vpop.f32.mrb[0].mxu0
    %v256 = vpop.f32.mrb[0].mxu0
    %v257 = vadd.f32 %v114, %v256
    %v258 = vpop.f32.mrb[0].mxu0
    %259 = vmatprep.mubr.bf16.mxu0 0
    %260 = vmatmul.mubr.bf16.gmra.mrb[0].mxu0 %v136
    %v261 = vpop.f32.mrb[0].mxu0
    %v262 = vadd.f32 %v114, %v261
    %v263 = vpop.f32.mrb[0].mxu0
    %v264 = vpop.f32.mrb[0].mxu0
    %v265 = vadd.f32 %v114, %v264
    %v266 = vpop.f32.mrb[0].mxu0
    %267 = vmatprep.mubr.bf16.mxu0 0
    %268 = vmatmul.mubr.bf16.gmra.mrb[0].mxu0 %v139
    %v269 = vpop.f32.mrb[0].mxu0
    %v270 = vadd.f32 %v114, %v269
    %v271 = vpop.f32.mrb[0].mxu0
    %v272 = vpop.f32.mrb[0].mxu0
    %v273 = vadd.f32 %v114, %v272
    %v274 = vpop.f32.mrb[0].mxu0
    %275 = vmatprep.mubr.bf16.mxu0 0
    %276 = vmatmul.mubr.bf16.gmra.mrb[0].mxu0 %v142
    %v277 = vpop.f32.mrb[0].mxu0
    %v278 = vadd.f32 %v114, %v277
    %v279 = vpop.f32.mrb[0].mxu0
    %v280 = vpop.f32.mrb[0].mxu0
    %v281 = vadd.f32 %v114, %v280
    %v282 = vpop.f32.mrb[0].mxu0
    %283 = vmatprep.mubr.bf16.mxu0 0
    %284 = vmatmul.mubr.bf16.gmra.mrb[0].mxu0 %v145
    %v285 = vpop.f32.mrb[0].mxu0
    %v286 = vadd.f32 %v114, %v285
    %v287 = vpop.f32.mrb[0].mxu0
    %v288 = vpop.f32.mrb[0].mxu0
    %v289 = vadd.f32 %v114, %v288
    %v290 = vpop.f32.mrb[0].mxu0
    %291 = vmatprep.mubr.bf16.mxu0 0
    %292 = vmatmul.mubr.bf16.gmra.mrb[0].mxu0 %v148
    %v293 = vpop.f32.mrb[0].mxu0
    %v294 = vadd.f32 %v114, %v293
    %v295 = vpop.f32.mrb[0].mxu0
    %v296 = vpop.f32.mrb[0].mxu0
    %v297 = vadd.f32 %v114, %v296
    %v298 = vpop.f32.mrb[0].mxu0
    %299 = vmatprep.mubr.bf16.mxu0 0
    %300 = vmatmul.mubr.bf16.gmra.mrb[0].mxu0 %v151
    %v301 = vpop.f32.mrb[0].mxu0
    %v302 = vadd.f32 %v114, %v301
    %v303 = vpop.f32.mrb[0].mxu0
    %v304 = vpop.f32.mrb[0].mxu0
    %v305 = vadd.f32 %v114, %v304
    %v306 = vpop.f32.mrb[0].mxu0
    %307 = vmatprep.mubr.bf16.mxu0 0
    %308 = vmatmul.mubr.bf16.gmra.mrb[0].mxu0 %v154
    %v309 = vpop.f32.mrb[0].mxu0
    %v310 = vadd.f32 %v114, %v309
    %v311 = vpop.f32.mrb[0].mxu0
    %v312 = vpop.f32.mrb[0].mxu0
    %v313 = vadd.f32 %v114, %v312
    %v314 = vpop.f32.mrb[0].mxu0
    %315 = vmatprep.mubr.bf16.mxu0 0
    %316 = vmatmul.mubr.bf16.gmra.mrb[0].mxu0 %v157
    %v317 = vpop.f32.mrb[0].mxu0
    %v318 = vadd.f32 %v114, %v317
    %v319 = vpop.f32.mrb[0].mxu0
    %v320 = vpop.f32.mrb[0].mxu0
    %v321 = vadd.f32 %v114, %v320
    %v322 = vpop.f32.mrb[0].mxu0
    %323 = vmatprep.mubr.bf16.mxu0 0
    %324 = vmatmul.mubr.bf16.gmra.mrb[0].mxu0 %v160
    %v325 = vpop.f32.mrb[0].mxu0
    %v326 = vadd.f32 %v114, %v325
    %v327 = vpop.f32.mrb[0].mxu0
    %v328 = vpop.f32.mrb[0].mxu0
    %v329 = vadd.f32 %v114, %v328
    %v330 = vpop.f32.mrb[0].mxu0
    %331 = vmatprep.mubr.bf16.mxu0 0
    %332 = vmatmul.mubr.bf16.gmra.mrb[0].mxu0 %v163
    %v333 = vpop.f32.mrb[0].mxu0
    %v334 = vadd.f32 %v114, %v333
    %v335 = vpop.f32.mrb[0].mxu0
    %v336 = vpop.f32.mrb[0].mxu0
    %v337 = vadd.f32 %v114, %v336
    %v338 = vpop.f32.mrb[0].mxu0
    %339 = vmatprep.mubr.bf16.mxu0 0
    %340 = vmatmul.mubr.bf16.gmra.mrb[0].mxu0 %v166
    %v341 = vpop.f32.mrb[0].mxu0
    %v342 = vadd.f32 %v114, %v341
    %v343 = vpop.f32.mrb[0].mxu0
    %v344 = vpop.f32.mrb[0].mxu0
    %v345 = vadd.f32 %v114, %v344
    %v346 = vpop.f32.mrb[0].mxu0
    %347 = vmatprep.mubr.bf16.mxu0 0
    %348 = vmatmul.mubr.bf16.gmra.mrb[0].mxu0 %v169
    %v349 = vpop.f32.mrb[0].mxu0
    %v350 = vadd.f32 %v114, %v349
    %v351 = vpop.f32.mrb[0].mxu0
    %v352 = vpop.f32.mrb[0].mxu0
    %v353 = vadd.f32 %v114, %v352
    %v354 = vpop.f32.mrb[0].mxu0
    %355 = vmatprep.mubr.bf16.mxu0 0
    %356 = vmatmul.mubr.bf16.gmra.mrb[0].mxu0 %v172
    %v357 = vpop.f32.mrb[0].mxu0
    %v358 = vadd.f32 %v114, %v357
    %v359 = vpop.f32.mrb[0].mxu0
    %v360 = vpop.f32.mrb[0].mxu0
    %v361 = vadd.f32 %v114, %v360
    %v362 = vpop.f32.mrb[0].mxu0
    %363 = vmatprep.mubr.bf16.mxu0 0
    %364 = vmatmul.mubr.bf16.gmra.mrb[0].mxu0 %v175
    %v365 = vpop.f32.mrb[0].mxu0
    %v366 = vadd.f32 %v114, %v365
    %v367 = vpop.f32.mrb[0].mxu0
    %v368 = vpop.f32.mrb[0].mxu0
    %v369 = vadd.f32 %v114, %v368
    %v370 = vpop.f32.mrb[0].mxu0
    %371 = vmatprep.mubr.bf16.mxu0 0
    %372 = vmatmul.mubr.bf16.gmra.mrb[0].mxu0 %v178
    %v373 = vpop.f32.mrb[0].mxu0
    %v374 = vadd.f32 %v114, %v373
    %v375 = vpop.f32.mrb[0].mxu0
    %v376 = vpop.f32.mrb[0].mxu0
    %v377 = vadd.f32 %v114, %v376
    %v378 = vpop.f32.mrb[0].mxu0
    %379 = vmatprep.mubr.bf16.mxu0 0
    %380 = vmatmul.mubr.bf16.gmra.mrb[0].mxu0 %v181
    %v381 = vpop.f32.mrb[0].mxu0
    %v382 = vadd.f32 %v114, %v381
    %v383 = vpop.f32.mrb[0].mxu0
    %v384 = vpop.f32.mrb[0].mxu0
    %v385 = vadd.f32 %v114, %v384
    %v386 = vpop.f32.mrb[0].mxu0
    %387 = vmatprep.mubr.bf16.mxu0 0
    %388 = vmatmul.mubr.bf16.gmra.mrb[0].mxu0 %v184
    %v389 = vpop.f32.mrb[0].mxu0
    %v390 = vadd.f32 %v114, %v389
    %v391 = vpop.f32.mrb[0].mxu0
    %v392 = vpop.f32.mrb[0].mxu0
    %v393 = vadd.f32 %v114, %v392
    %v394 = vpop.f32.mrb[0].mxu0
    %395 = vmatprep.mubr.bf16.mxu0 0
    %396 = vmatmul.mubr.bf16.gmra.mrb[0].mxu0 %v187
    %v397 = vpop.f32.mrb[0].mxu0
    %v398 = vadd.f32 %v114, %v397
    %v399 = vpop.f32.mrb[0].mxu0
    %v400 = vpop.f32.mrb[0].mxu0
    %v401 = vadd.f32 %v114, %v400
    %v402 = vpop.f32.mrb[0].mxu0
    %403 = vmatprep.mubr.bf16.mxu0 0
    %404 = vmatmul.mubr.bf16.gmra.mrb[0].mxu0 %v190
    %v405 = vpop.f32.mrb[0].mxu0
    %v406 = vadd.f32 %v114, %v405
    %v407 = vpop.f32.mrb[0].mxu0
    %v408 = vpop.f32.mrb[0].mxu0
    %v409 = vadd.f32 %v114, %v408
    %v410 = vpop.f32.mrb[0].mxu0
    %411 = vmatprep.mubr.bf16.mxu0 0
    %412 = vmatmul.mubr.bf16.gmra.mrb[0].mxu0 %v193
    %v413 = vpop.f32.mrb[0].mxu0
    %v414 = vadd.f32 %v114, %v413
    %v415 = vpop.f32.mrb[0].mxu0
    %v416 = vpop.f32.mrb[0].mxu0
    %v417 = vadd.f32 %v114, %v416
    %v418 = vpop.f32.mrb[0].mxu0
    %419 = vdwg.mxu0
    %v420 = vmul.f32 %v230, 0.5
    %v421 = vmul.f32 %v233, 0.5
    %v422 = vmul.f32 %v238, 0.5
    %v423 = vmul.f32 %v241, 0.5
    %v424 = vmul.f32 %v246, 0.5
    %v425 = vmul.f32 %v249, 0.5
    %v426 = vmul.f32 %v254, 0.5
    %v427 = vmul.f32 %v257, 0.5
    %v428 = vmul.f32 %v262, 0.5
    %v429 = vmul.f32 %v265, 0.5
    %v430 = vmul.f32 %v270, 0.5
    %v431 = vmul.f32 %v273, 0.5
    %v432 = vmul.f32 %v278, 0.5
    %v433 = vmul.f32 %v281, 0.5
    %v434 = vmul.f32 %v286, 0.5
    %v435 = vmul.f32 %v289, 0.5
    %v436 = vmul.f32 %v294, 0.5
    %v437 = vmul.f32 %v297, 0.5
    %v438 = vmul.f32 %v302, 0.5
    %v439 = vmul.f32 %v305, 0.5
    %v440 = vmul.f32 %v310, 0.5
    %v441 = vmul.f32 %v313, 0.5
    %v442 = vmul.f32 %v318, 0.5
    %v443 = vmul.f32 %v321, 0.5
    %v444 = vmul.f32 %v326, 0.5
    %v445 = vmul.f32 %v329, 0.5
    %v446 = vmul.f32 %v334, 0.5
    %v447 = vmul.f32 %v337, 0.5
    %v448 = vmul.f32 %v342, 0.5
    %v449 = vmul.f32 %v345, 0.5
    %v450 = vmul.f32 %v350, 0.5
    %v451 = vmul.f32 %v353, 0.5
    %v452 = vmul.f32 %v358, 0.5
    %v453 = vmul.f32 %v361, 0.5
    %v454 = vmul.f32 %v366, 0.5
    %v455 = vmul.f32 %v369, 0.5
    %v456 = vmul.f32 %v374, 0.5
    %v457 = vmul.f32 %v377, 0.5
    %v458 = vmul.f32 %v382, 0.5
    %v459 = vmul.f32 %v385, 0.5
    %v460 = vmul.f32 %v390, 0.5
    %v461 = vmul.f32 %v393, 0.5
    %v462 = vmul.f32 %v398, 0.5
    %v463 = vmul.f32 %v401, 0.5
    %v464 = vmul.f32 %v406, 0.5
    %v465 = vmul.f32 %v409, 0.5
    %v466 = vmul.f32 %v414, 0.5
    %v467 = vmul.f32 %v417, 0.5
    %v468 = vtanh.pop %v420
    %v469 = vtanh.pop %v421
    %v470 = vtanh.pop %v422
    %v471 = vtanh.pop %v423
    %v472 = vtanh.pop %v424
    %v473 = vtanh.pop %v425
    %v474 = vtanh.pop %v426
    %v475 = vtanh.pop %v427
    %v476 = vtanh.pop %v428
    %v477 = vtanh.pop %v429
    %v478 = vtanh.pop %v430
    %v479 = vtanh.pop %v431
    %v480 = vtanh.pop %v432
    %v481 = vtanh.pop %v433
    %v482 = vtanh.pop %v434
    %v483 = vtanh.pop %v435
    %v484 = vtanh.pop %v436
    %v485 = vtanh.pop %v437
    %v486 = vtanh.pop %v438
    %v487 = vtanh.pop %v439
    %v488 = vtanh.pop %v440
    %v489 = vtanh.pop %v441
    %v490 = vtanh.pop %v442
    %v491 = vtanh.pop %v443
    %v492 = vtanh.pop %v444
    %v493 = vtanh.pop %v445
    %v494 = vtanh.pop %v446
    %v495 = vtanh.pop %v447
    %v496 = vtanh.pop %v448
    %v497 = vtanh.pop %v449
    %v498 = vtanh.pop %v450
    %v499 = vtanh.pop %v451
    %v500 = vtanh.pop %v452
    %v501 = vtanh.pop %v453
    %v502 = vtanh.pop %v454
    %v503 = vtanh.pop %v455
    %v504 = vtanh.pop %v456
    %v505 = vtanh.pop %v457
    %v506 = vtanh.pop %v458
    %v507 = vtanh.pop %v459
    %v508 = vtanh.pop %v460
    %v509 = vtanh.pop %v461
    %v510 = vtanh.pop %v462
    %v511 = vtanh.pop %v463
    %v512 = vtanh.pop %v464
    %v513 = vtanh.pop %v465
    %v514 = vtanh.pop %v466
    %v515 = vtanh.pop %v467
    %v516 = vmul.f32 %v468, 0.5
    %v517 = vmul.f32 %v469, 0.5
    %v518 = vmul.f32 %v470, 0.5
    %v519 = vmul.f32 %v471, 0.5
    %v520 = vmul.f32 %v472, 0.5
    %v521 = vmul.f32 %v473, 0.5
    %v522 = vmul.f32 %v474, 0.5
    %v523 = vmul.f32 %v475, 0.5
    %v524 = vmul.f32 %v476, 0.5
    %v525 = vmul.f32 %v477, 0.5
    %v526 = vmul.f32 %v478, 0.5
    %v527 = vmul.f32 %v479, 0.5
    %v528 = vmul.f32 %v480, 0.5
    %v529 = vmul.f32 %v481, 0.5
    %v530 = vmul.f32 %v482, 0.5
    %v531 = vmul.f32 %v483, 0.5
    %v532 = vmul.f32 %v484, 0.5
    %v533 = vmul.f32 %v485, 0.5
    %v534 = vmul.f32 %v486, 0.5
    %v535 = vmul.f32 %v487, 0.5
    %v536 = vmul.f32 %v488, 0.5
    %v537 = vmul.f32 %v489, 0.5
    %v538 = vmul.f32 %v490, 0.5
    %v539 = vmul.f32 %v491, 0.5
    %v540 = vmul.f32 %v492, 0.5
    %v541 = vmul.f32 %v493, 0.5
    %v542 = vmul.f32 %v494, 0.5
    %v543 = vmul.f32 %v495, 0.5
    %v544 = vmul.f32 %v496, 0.5
    %v545 = vmul.f32 %v497, 0.5
    %v546 = vmul.f32 %v498, 0.5
    %v547 = vmul.f32 %v499, 0.5
    %v548 = vmul.f32 %v500, 0.5
    %v549 = vmul.f32 %v501, 0.5
    %v550 = vmul.f32 %v502, 0.5
    %v551 = vmul.f32 %v503, 0.5
    %v552 = vmul.f32 %v504, 0.5
    %v553 = vmul.f32 %v505, 0.5
    %v554 = vmul.f32 %v506, 0.5
    %v555 = vmul.f32 %v507, 0.5
    %v556 = vmul.f32 %v508, 0.5
    %v557 = vmul.f32 %v509, 0.5
    %v558 = vmul.f32 %v510, 0.5
    %v559 = vmul.f32 %v511, 0.5
    %v560 = vmul.f32 %v512, 0.5
    %v561 = vmul.f32 %v513, 0.5
    %v562 = vmul.f32 %v514, 0.5
    %v563 = vmul.f32 %v515, 0.5
    %v564 = vadd.f32 %v516, 0.5
    %v565 = vadd.f32 %v517, 0.5
    %v566 = vadd.f32 %v518, 0.5
    %v567 = vadd.f32 %v519, 0.5
    %v568 = vadd.f32 %v520, 0.5
    %v569 = vadd.f32 %v521, 0.5
    %v570 = vadd.f32 %v522, 0.5
    %v571 = vadd.f32 %v523, 0.5
    %v572 = vadd.f32 %v524, 0.5
    %v573 = vadd.f32 %v525, 0.5
    %v574 = vadd.f32 %v526, 0.5
    %v575 = vadd.f32 %v527, 0.5
    %v576 = vadd.f32 %v528, 0.5
    %v577 = vadd.f32 %v529, 0.5
    %v578 = vadd.f32 %v530, 0.5
    %v579 = vadd.f32 %v531, 0.5
    %v580 = vadd.f32 %v532, 0.5
    %v581 = vadd.f32 %v533, 0.5
    %v582 = vadd.f32 %v534, 0.5
    %v583 = vadd.f32 %v535, 0.5
    %v584 = vadd.f32 %v536, 0.5
    %v585 = vadd.f32 %v537, 0.5
    %v586 = vadd.f32 %v538, 0.5
    %v587 = vadd.f32 %v539, 0.5
    %v588 = vadd.f32 %v540, 0.5
    %v589 = vadd.f32 %v541, 0.5
    %v590 = vadd.f32 %v542, 0.5
    %v591 = vadd.f32 %v543, 0.5
    %v592 = vadd.f32 %v544, 0.5
    %v593 = vadd.f32 %v545, 0.5
    %v594 = vadd.f32 %v546, 0.5
    %v595 = vadd.f32 %v547, 0.5
    %v596 = vadd.f32 %v548, 0.5
    %v597 = vadd.f32 %v549, 0.5
    %v598 = vadd.f32 %v550, 0.5
    %v599 = vadd.f32 %v551, 0.5
    %v600 = vadd.f32 %v552, 0.5
    %v601 = vadd.f32 %v553, 0.5
    %v602 = vadd.f32 %v554, 0.5
    %v603 = vadd.f32 %v555, 0.5
    %v604 = vadd.f32 %v556, 0.5
    %v605 = vadd.f32 %v557, 0.5
    %v606 = vadd.f32 %v558, 0.5
    %v607 = vadd.f32 %v559, 0.5
    %v608 = vadd.f32 %v560, 0.5
    %v609 = vadd.f32 %v561, 0.5
    %v610 = vadd.f32 %v562, 0.5
    %v611 = vadd.f32 %v563, 0.5
    %v612 = vpack.c.bf16 %v565, %v564
    %v613 = vpack.c.bf16 %v567, %v566
    %v614 = vpack.c.bf16 %v569, %v568
    %v615 = vpack.c.bf16 %v571, %v570
    %v616 = vpack.c.bf16 %v573, %v572
    %v617 = vpack.c.bf16 %v575, %v574
    %v618 = vpack.c.bf16 %v577, %v576
    %v619 = vpack.c.bf16 %v579, %v578
    %v620 = vpack.c.bf16 %v581, %v580
    %v621 = vpack.c.bf16 %v583, %v582
    %v622 = vpack.c.bf16 %v585, %v584
    %v623 = vpack.c.bf16 %v587, %v586
    %v624 = vpack.c.bf16 %v589, %v588
    %v625 = vpack.c.bf16 %v591, %v590
    %v626 = vpack.c.bf16 %v593, %v592
    %v627 = vpack.c.bf16 %v595, %v594
    %v628 = vpack.c.bf16 %v597, %v596
    %v629 = vpack.c.bf16 %v599, %v598
    %v630 = vpack.c.bf16 %v601, %v600
    %v631 = vpack.c.bf16 %v603, %v602
    %v632 = vpack.c.bf16 %v605, %v604
    %v633 = vpack.c.bf16 %v607, %v606
    %v634 = vpack.c.bf16 %v609, %v608
    %v635 = vpack.c.bf16 %v611, %v610
    %v636 = vld [vmem:[#allocation2] sm:$0xf]
    %v637 = vld [vmem:[#allocation2 + $0x4] sm:$0xf]
    %v638 = vld [vmem:[#allocation2 + $0x8] sm:$0xf]
    %v639 = vld [vmem:[#allocation2 + $0xc] sm:$0xf]
    %v640 = vld [vmem:[#allocation2 + $0x10] sm:$0xf]
    %v641 = vld [vmem:[#allocation2 + $0x14] sm:$0xf]
    %v642 = vld [vmem:[#allocation2 + $0x18] sm:$0xf]
    %v643 = vld [vmem:[#allocation2 + $0x1c] sm:$0xf]
    %v644 = vld [vmem:[#allocation2 + $0x20] sm:$0xf]
    %v645 = vld [vmem:[#allocation2 + $0x24] sm:$0xf]
    %v646 = vld [vmem:[#allocation2 + $0x28] sm:$0xf]
    %v647 = vld [vmem:[#allocation2 + $0x2c] sm:$0xf]
    %v648 = vld [vmem:[#allocation2 + $0x30] sm:$0xf]
    %v649 = vld [vmem:[#allocation2 + $0x34] sm:$0xf]
    %v650 = vld [vmem:[#allocation2 + $0x38] sm:$0xf]
    %v651 = vld [vmem:[#allocation2 + $0x3c] sm:$0xf]
    %v652 = vld [vmem:[%s4] sm:$0x1]
    %v654 = vlaneseq
    %v655 = vshrl.u32 %v654, 7
    %v656 = vsub.s32 0, %v655
    %v657 = vrot.slane %v652, %v656
    %v675 = vunpack.c.l.b16 %v636
    %v676 = vunpack.c.l.b16 %v637
    %v677 = vunpack.c.l.b16 %v638
    %v678 = vunpack.c.l.b16 %v639
    %v679 = vunpack.c.l.b16 %v640
    %v680 = vunpack.c.l.b16 %v641
    %v681 = vunpack.c.l.b16 %v642
    %v682 = vunpack.c.l.b16 %v643
    %v683 = vunpack.c.l.b16 %v644
    %v684 = vunpack.c.l.b16 %v645
    %v685 = vunpack.c.l.b16 %v646
    %v686 = vunpack.c.l.b16 %v647
    %v687 = vunpack.c.l.b16 %v648
    %v688 = vunpack.c.l.b16 %v649
    %v689 = vunpack.c.l.b16 %v650
    %v690 = vunpack.c.l.b16 %v651
    %v691 = vpack.c.b16 %v676, %v675
    %v692 = vpack.c.b16 %v678, %v677
    %v693 = vpack.c.b16 %v680, %v679
    %v694 = vpack.c.b16 %v682, %v681
    %v695 = vpack.c.b16 %v684, %v683
    %v696 = vpack.c.b16 %v686, %v685
    %v697 = vpack.c.b16 %v688, %v687
    %v698 = vpack.c.b16 %v690, %v689
    %707 = vmatprep.subr.bf16.mxu0 0
    %708 = vmatpush1.bf16.msra.mxu0 %v691
    %709 = vmatprep.subr.bf16.mxu0 0
    %710 = vmatpush1.bf16.msra.mxu0 %v692
    %711 = vmatprep.subr.bf16.mxu0 0
    %712 = vmatpush1.bf16.msra.mxu0 %v693
    %713 = vmatprep.subr.bf16.mxu0 0
    %714 = vmatpush1.bf16.msra.mxu0 %v694
    %715 = vmatprep.subr.bf16.mxu0 0
    %716 = vmatpush1.bf16.msra.mxu0 %v695
    %717 = vmatprep.subr.bf16.mxu0 0
    %718 = vmatpush1.bf16.msra.mxu0 %v696
    %719 = vmatprep.subr.bf16.mxu0 0
    %720 = vmatpush1.bf16.msra.mxu0 %v697
    %721 = vmatprep.subr.bf16.mxu0 0
    %722 = vmatpush1.bf16.msra.mxu0 %v698
    %723 = vmatprep.subr.bf16.mxu0 0
    %724 = vmatpush1.bf16.msra.mxu0 0
    %725 = vmatprep.subr.bf16.mxu0 0
    %726 = vmatpush1.bf16.msra.mxu0 0
    %727 = vmatprep.subr.bf16.mxu0 0
    %728 = vmatpush1.bf16.msra.mxu0 0
    %729 = vmatprep.subr.bf16.mxu0 0
    %730 = vmatpush1.bf16.msra.mxu0 0
    %731 = vmatprep.subr.bf16.mxu0 0
    %732 = vmatpush1.bf16.msra.mxu0 0
    %733 = vmatprep.subr.bf16.mxu0 0
    %734 = vmatpush1.bf16.msra.mxu0 0
    %735 = vmatprep.subr.bf16.mxu0 0
    %736 = vmatpush1.bf16.msra.mxu0 0
    %737 = vmatprep.subr.bf16.mxu0 0
    %738 = vmatpush1.bf16.msra.mxu0 0
    %739 = vmatprep.mubr.bf16.mxu0 0
    %740 = vmatmul.mubr.bf16.gmra.mrb[0].mxu0 %v612
    %v741 = vpop.f32.mrb[0].mxu0
    %v742 = vadd.f32 %v657, %v741
    %v743 = vpop.f32.mrb[0].mxu0
    %v744 = vpop.f32.mrb[0].mxu0
    %v745 = vadd.f32 %v657, %v744
    %v746 = vpop.f32.mrb[0].mxu0
    %747 = vmatprep.mubr.bf16.mxu0 0
    %748 = vmatmul.mubr.bf16.gmra.mrb[0].mxu0 %v613
    %v749 = vpop.f32.mrb[0].mxu0
    %v750 = vadd.f32 %v657, %v749
    %v751 = vpop.f32.mrb[0].mxu0
    %v752 = vpop.f32.mrb[0].mxu0
    %v753 = vadd.f32 %v657, %v752
    %v754 = vpop.f32.mrb[0].mxu0
    %755 = vmatprep.mubr.bf16.mxu0 0
    %756 = vmatmul.mubr.bf16.gmra.mrb[0].mxu0 %v614
    %v757 = vpop.f32.mrb[0].mxu0
    %v758 = vadd.f32 %v657, %v757
    %v759 = vpop.f32.mrb[0].mxu0
    %v760 = vpop.f32.mrb[0].mxu0
    %v761 = vadd.f32 %v657, %v760
    %v762 = vpop.f32.mrb[0].mxu0
    %763 = vmatprep.mubr.bf16.mxu0 0
    %764 = vmatmul.mubr.bf16.gmra.mrb[0].mxu0 %v615
    %v765 = vpop.f32.mrb[0].mxu0
    %v766 = vadd.f32 %v657, %v765
    %v767 = vpop.f32.mrb[0].mxu0
    %v768 = vpop.f32.mrb[0].mxu0
    %v769 = vadd.f32 %v657, %v768
    %v770 = vpop.f32.mrb[0].mxu0
    %771 = vmatprep.mubr.bf16.mxu0 0
    %772 = vmatmul.mubr.bf16.gmra.mrb[0].mxu0 %v616
    %v773 = vpop.f32.mrb[0].mxu0
    %v774 = vadd.f32 %v657, %v773
    %v775 = vpop.f32.mrb[0].mxu0
    %v776 = vpop.f32.mrb[0].mxu0
    %v777 = vadd.f32 %v657, %v776
    %v778 = vpop.f32.mrb[0].mxu0
    %779 = vmatprep.mubr.bf16.mxu0 0
    %780 = vmatmul.mubr.bf16.gmra.mrb[0].mxu0 %v617
    %v781 = vpop.f32.mrb[0].mxu0
    %v782 = vadd.f32 %v657, %v781
    %v783 = vpop.f32.mrb[0].mxu0
    %v784 = vpop.f32.mrb[0].mxu0
    %v785 = vadd.f32 %v657, %v784
    %v786 = vpop.f32.mrb[0].mxu0
    %787 = vmatprep.mubr.bf16.mxu0 0
    %788 = vmatmul.mubr.bf16.gmra.mrb[0].mxu0 %v618
    %v789 = vpop.f32.mrb[0].mxu0
    %v790 = vadd.f32 %v657, %v789
    %v791 = vpop.f32.mrb[0].mxu0
    %v792 = vpop.f32.mrb[0].mxu0
    %v793 = vadd.f32 %v657, %v792
    %v794 = vpop.f32.mrb[0].mxu0
    %795 = vmatprep.mubr.bf16.mxu0 0
    %796 = vmatmul.mubr.bf16.gmra.mrb[0].mxu0 %v619
    %v797 = vpop.f32.mrb[0].mxu0
    %v798 = vadd.f32 %v657, %v797
    %v799 = vpop.f32.mrb[0].mxu0
    %v800 = vpop.f32.mrb[0].mxu0
    %v801 = vadd.f32 %v657, %v800
    %v802 = vpop.f32.mrb[0].mxu0
    %803 = vmatprep.mubr.bf16.mxu0 0
    %804 = vmatmul.mubr.bf16.gmra.mrb[0].mxu0 %v620
    %v805 = vpop.f32.mrb[0].mxu0
    %v806 = vadd.f32 %v657, %v805
    %v807 = vpop.f32.mrb[0].mxu0
    %v808 = vpop.f32.mrb[0].mxu0
    %v809 = vadd.f32 %v657, %v808
    %v810 = vpop.f32.mrb[0].mxu0
    %811 = vmatprep.mubr.bf16.mxu0 0
    %812 = vmatmul.mubr.bf16.gmra.mrb[0].mxu0 %v621
    %v813 = vpop.f32.mrb[0].mxu0
    %v814 = vadd.f32 %v657, %v813
    %v815 = vpop.f32.mrb[0].mxu0
    %v816 = vpop.f32.mrb[0].mxu0
    %v817 = vadd.f32 %v657, %v816
    %v818 = vpop.f32.mrb[0].mxu0
    %819 = vmatprep.mubr.bf16.mxu0 0
    %820 = vmatmul.mubr.bf16.gmra.mrb[0].mxu0 %v622
    %v821 = vpop.f32.mrb[0].mxu0
    %v822 = vadd.f32 %v657, %v821
    %v823 = vpop.f32.mrb[0].mxu0
    %v824 = vpop.f32.mrb[0].mxu0
    %v825 = vadd.f32 %v657, %v824
    %v826 = vpop.f32.mrb[0].mxu0
    %827 = vmatprep.mubr.bf16.mxu0 0
    %828 = vmatmul.mubr.bf16.gmra.mrb[0].mxu0 %v623
    %v829 = vpop.f32.mrb[0].mxu0
    %v830 = vadd.f32 %v657, %v829
    %v831 = vpop.f32.mrb[0].mxu0
    %v832 = vpop.f32.mrb[0].mxu0
    %v833 = vadd.f32 %v657, %v832
    %v834 = vpop.f32.mrb[0].mxu0
    %835 = vmatprep.mubr.bf16.mxu0 0
    %836 = vmatmul.mubr.bf16.gmra.mrb[0].mxu0 %v624
    %v837 = vpop.f32.mrb[0].mxu0
    %v838 = vadd.f32 %v657, %v837
    %v839 = vpop.f32.mrb[0].mxu0
    %v840 = vpop.f32.mrb[0].mxu0
    %v841 = vadd.f32 %v657, %v840
    %v842 = vpop.f32.mrb[0].mxu0
    %843 = vmatprep.mubr.bf16.mxu0 0
    %844 = vmatmul.mubr.bf16.gmra.mrb[0].mxu0 %v625
    %v845 = vpop.f32.mrb[0].mxu0
    %v846 = vadd.f32 %v657, %v845
    %v847 = vpop.f32.mrb[0].mxu0
    %v848 = vpop.f32.mrb[0].mxu0
    %v849 = vadd.f32 %v657, %v848
    %v850 = vpop.f32.mrb[0].mxu0
    %851 = vmatprep.mubr.bf16.mxu0 0
    %852 = vmatmul.mubr.bf16.gmra.mrb[0].mxu0 %v626
    %v853 = vpop.f32.mrb[0].mxu0
    %v854 = vadd.f32 %v657, %v853
    %v855 = vpop.f32.mrb[0].mxu0
    %v856 = vpop.f32.mrb[0].mxu0
    %v857 = vadd.f32 %v657, %v856
    %v858 = vpop.f32.mrb[0].mxu0
    %859 = vmatprep.mubr.bf16.mxu0 0
    %860 = vmatmul.mubr.bf16.gmra.mrb[0].mxu0 %v627
    %v861 = vpop.f32.mrb[0].mxu0
    %v862 = vadd.f32 %v657, %v861
    %v863 = vpop.f32.mrb[0].mxu0
    %v864 = vpop.f32.mrb[0].mxu0
    %v865 = vadd.f32 %v657, %v864
    %v866 = vpop.f32.mrb[0].mxu0
    %867 = vmatprep.mubr.bf16.mxu0 0
    %868 = vmatmul.mubr.bf16.gmra.mrb[0].mxu0 %v628
    %v869 = vpop.f32.mrb[0].mxu0
    %v870 = vadd.f32 %v657, %v869
    %v871 = vpop.f32.mrb[0].mxu0
    %v872 = vpop.f32.mrb[0].mxu0
    %v873 = vadd.f32 %v657, %v872
    %v874 = vpop.f32.mrb[0].mxu0
    %875 = vmatprep.mubr.bf16.mxu0 0
    %876 = vmatmul.mubr.bf16.gmra.mrb[0].mxu0 %v629
    %v877 = vpop.f32.mrb[0].mxu0
    %v878 = vadd.f32 %v657, %v877
    %v879 = vpop.f32.mrb[0].mxu0
    %v880 = vpop.f32.mrb[0].mxu0
    %v881 = vadd.f32 %v657, %v880
    %v882 = vpop.f32.mrb[0].mxu0
    %883 = vmatprep.mubr.bf16.mxu0 0
    %884 = vmatmul.mubr.bf16.gmra.mrb[0].mxu0 %v630
    %v885 = vpop.f32.mrb[0].mxu0
    %v886 = vadd.f32 %v657, %v885
    %v887 = vpop.f32.mrb[0].mxu0
    %v888 = vpop.f32.mrb[0].mxu0
    %v889 = vadd.f32 %v657, %v888
    %v890 = vpop.f32.mrb[0].mxu0
    %891 = vmatprep.mubr.bf16.mxu0 0
    %892 = vmatmul.mubr.bf16.gmra.mrb[0].mxu0 %v631
    %v893 = vpop.f32.mrb[0].mxu0
    %v894 = vadd.f32 %v657, %v893
    %v895 = vpop.f32.mrb[0].mxu0
    %v896 = vpop.f32.mrb[0].mxu0
    %v897 = vadd.f32 %v657, %v896
    %v898 = vpop.f32.mrb[0].mxu0
    %899 = vmatprep.mubr.bf16.mxu0 0
    %900 = vmatmul.mubr.bf16.gmra.mrb[0].mxu0 %v632
    %v901 = vpop.f32.mrb[0].mxu0
    %v902 = vadd.f32 %v657, %v901
    %v903 = vpop.f32.mrb[0].mxu0
    %v904 = vpop.f32.mrb[0].mxu0
    %v905 = vadd.f32 %v657, %v904
    %v906 = vpop.f32.mrb[0].mxu0
    %907 = vmatprep.mubr.bf16.mxu0 0
    %908 = vmatmul.mubr.bf16.gmra.mrb[0].mxu0 %v633
    %v909 = vpop.f32.mrb[0].mxu0
    %v910 = vadd.f32 %v657, %v909
    %v911 = vpop.f32.mrb[0].mxu0
    %v912 = vpop.f32.mrb[0].mxu0
    %v913 = vadd.f32 %v657, %v912
    %v914 = vpop.f32.mrb[0].mxu0
    %915 = vmatprep.mubr.bf16.mxu0 0
    %916 = vmatmul.mubr.bf16.gmra.mrb[0].mxu0 %v634
    %v917 = vpop.f32.mrb[0].mxu0
    %v918 = vadd.f32 %v657, %v917
    %v919 = vpop.f32.mrb[0].mxu0
    %v920 = vpop.f32.mrb[0].mxu0
    %v921 = vadd.f32 %v657, %v920
    %v922 = vpop.f32.mrb[0].mxu0
    %923 = vmatprep.mubr.bf16.mxu0 0
    %924 = vmatmul.mubr.bf16.gmra.mrb[0].mxu0 %v635
    %v925 = vpop.f32.mrb[0].mxu0
    %v926 = vadd.f32 %v657, %v925
    %v927 = vpop.f32.mrb[0].mxu0
    %v928 = vpop.f32.mrb[0].mxu0
    %v929 = vadd.f32 %v657, %v928
    %v930 = vpop.f32.mrb[0].mxu0
    %931 = vdwg.mxu0
    %v932 = vmul.f32 %v742, 0.5
    %v933 = vmul.f32 %v745, 0.5
    %v934 = vmul.f32 %v750, 0.5
    %v935 = vmul.f32 %v753, 0.5
    %v936 = vmul.f32 %v758, 0.5
    %v937 = vmul.f32 %v761, 0.5
    %v938 = vmul.f32 %v766, 0.5
    %v939 = vmul.f32 %v769, 0.5
    %v940 = vmul.f32 %v774, 0.5
    %v941 = vmul.f32 %v777, 0.5
    %v942 = vmul.f32 %v782, 0.5
    %v943 = vmul.f32 %v785, 0.5
    %v944 = vmul.f32 %v790, 0.5
    %v945 = vmul.f32 %v793, 0.5
    %v946 = vmul.f32 %v798, 0.5
    %v947 = vmul.f32 %v801, 0.5
    %v948 = vmul.f32 %v806, 0.5
    %v949 = vmul.f32 %v809, 0.5
    %v950 = vmul.f32 %v814, 0.5
    %v951 = vmul.f32 %v817, 0.5
    %v952 = vmul.f32 %v822, 0.5
    %v953 = vmul.f32 %v825, 0.5
    %v954 = vmul.f32 %v830, 0.5
    %v955 = vmul.f32 %v833, 0.5
    %v956 = vmul.f32 %v838, 0.5
    %v957 = vmul.f32 %v841, 0.5
    %v958 = vmul.f32 %v846, 0.5
    %v959 = vmul.f32 %v849, 0.5
    %v960 = vmul.f32 %v854, 0.5
    %v961 = vmul.f32 %v857, 0.5
    %v962 = vmul.f32 %v862, 0.5
    %v963 = vmul.f32 %v865, 0.5
    %v964 = vmul.f32 %v870, 0.5
    %v965 = vmul.f32 %v873, 0.5
    %v966 = vmul.f32 %v878, 0.5
    %v967 = vmul.f32 %v881, 0.5
    %v968 = vmul.f32 %v886, 0.5
    %v969 = vmul.f32 %v889, 0.5
    %v970 = vmul.f32 %v894, 0.5
    %v971 = vmul.f32 %v897, 0.5
    %v972 = vmul.f32 %v902, 0.5
    %v973 = vmul.f32 %v905, 0.5
    %v974 = vmul.f32 %v910, 0.5
    %v975 = vmul.f32 %v913, 0.5
    %v976 = vmul.f32 %v918, 0.5
    %v977 = vmul.f32 %v921, 0.5
    %v978 = vmul.f32 %v926, 0.5
    %v979 = vmul.f32 %v929, 0.5
    %v980 = vtanh.pop %v932
    %v981 = vtanh.pop %v933
    %v982 = vtanh.pop %v934
    %v983 = vtanh.pop %v935
    %v984 = vtanh.pop %v936
    %v985 = vtanh.pop %v937
    %v986 = vtanh.pop %v938
    %v987 = vtanh.pop %v939
    %v988 = vtanh.pop %v940
    %v989 = vtanh.pop %v941
    %v990 = vtanh.pop %v942
    %v991 = vtanh.pop %v943
    %v992 = vtanh.pop %v944
    %v993 = vtanh.pop %v945
    %v994 = vtanh.pop %v946
    %v995 = vtanh.pop %v947
    %v996 = vtanh.pop %v948
    %v997 = vtanh.pop %v949
    %v998 = vtanh.pop %v950
    %v999 = vtanh.pop %v951
    %v1000 = vtanh.pop %v952
    %v1001 = vtanh.pop %v953
    %v1002 = vtanh.pop %v954
    %v1003 = vtanh.pop %v955
    %v1004 = vtanh.pop %v956
    %v1005 = vtanh.pop %v957
    %v1006 = vtanh.pop %v958
    %v1007 = vtanh.pop %v959
    %v1008 = vtanh.pop %v960
    %v1009 = vtanh.pop %v961
    %v1010 = vtanh.pop %v962
    %v1011 = vtanh.pop %v963
    %v1012 = vtanh.pop %v964
    %v1013 = vtanh.pop %v965
    %v1014 = vtanh.pop %v966
    %v1015 = vtanh.pop %v967
    %v1016 = vtanh.pop %v968
    %v1017 = vtanh.pop %v969
    %v1018 = vtanh.pop %v970
    %v1019 = vtanh.pop %v971
    %v1020 = vtanh.pop %v972
    %v1021 = vtanh.pop %v973
    %v1022 = vtanh.pop %v974
    %v1023 = vtanh.pop %v975
    %v1024 = vtanh.pop %v976
    %v1025 = vtanh.pop %v977
    %v1026 = vtanh.pop %v978
    %v1027 = vtanh.pop %v979
    %v1028 = vmul.f32 %v980, 0.5
    %v1029 = vmul.f32 %v981, 0.5
    %v1030 = vmul.f32 %v982, 0.5
    %v1031 = vmul.f32 %v983, 0.5
    %v1032 = vmul.f32 %v984, 0.5
    %v1033 = vmul.f32 %v985, 0.5
    %v1034 = vmul.f32 %v986, 0.5
    %v1035 = vmul.f32 %v987, 0.5
    %v1036 = vmul.f32 %v988, 0.5
    %v1037 = vmul.f32 %v989, 0.5
    %v1038 = vmul.f32 %v990, 0.5
    %v1039 = vmul.f32 %v991, 0.5
    %v1040 = vmul.f32 %v992, 0.5
    %v1041 = vmul.f32 %v993, 0.5
    %v1042 = vmul.f32 %v994, 0.5
    %v1043 = vmul.f32 %v995, 0.5
    %v1044 = vmul.f32 %v996, 0.5
    %v1045 = vmul.f32 %v997, 0.5
    %v1046 = vmul.f32 %v998, 0.5
    %v1047 = vmul.f32 %v999, 0.5
    %v1048 = vmul.f32 %v1000, 0.5
    %v1049 = vmul.f32 %v1001, 0.5
    %v1050 = vmul.f32 %v1002, 0.5
    %v1051 = vmul.f32 %v1003, 0.5
    %v1052 = vmul.f32 %v1004, 0.5
    %v1053 = vmul.f32 %v1005, 0.5
    %v1054 = vmul.f32 %v1006, 0.5
    %v1055 = vmul.f32 %v1007, 0.5
    %v1056 = vmul.f32 %v1008, 0.5
    %v1057 = vmul.f32 %v1009, 0.5
    %v1058 = vmul.f32 %v1010, 0.5
    %v1059 = vmul.f32 %v1011, 0.5
    %v1060 = vmul.f32 %v1012, 0.5
    %v1061 = vmul.f32 %v1013, 0.5
    %v1062 = vmul.f32 %v1014, 0.5
    %v1063 = vmul.f32 %v1015, 0.5
    %v1064 = vmul.f32 %v1016, 0.5
    %v1065 = vmul.f32 %v1017, 0.5
    %v1066 = vmul.f32 %v1018, 0.5
    %v1067 = vmul.f32 %v1019, 0.5
    %v1068 = vmul.f32 %v1020, 0.5
    %v1069 = vmul.f32 %v1021, 0.5
    %v1070 = vmul.f32 %v1022, 0.5
    %v1071 = vmul.f32 %v1023, 0.5
    %v1072 = vmul.f32 %v1024, 0.5
    %v1073 = vmul.f32 %v1025, 0.5
    %v1074 = vmul.f32 %v1026, 0.5
    %v1075 = vmul.f32 %v1027, 0.5
    %v1076 = vadd.f32 %v1028, 0.5
    %v1077 = vadd.f32 %v1029, 0.5
    %v1078 = vadd.f32 %v1030, 0.5
    %v1079 = vadd.f32 %v1031, 0.5
    %v1080 = vadd.f32 %v1032, 0.5
    %v1081 = vadd.f32 %v1033, 0.5
    %v1082 = vadd.f32 %v1034, 0.5
    %v1083 = vadd.f32 %v1035, 0.5
    %v1084 = vadd.f32 %v1036, 0.5
    %v1085 = vadd.f32 %v1037, 0.5
    %v1086 = vadd.f32 %v1038, 0.5
    %v1087 = vadd.f32 %v1039, 0.5
    %v1088 = vadd.f32 %v1040, 0.5
    %v1089 = vadd.f32 %v1041, 0.5
    %v1090 = vadd.f32 %v1042, 0.5
    %v1091 = vadd.f32 %v1043, 0.5
    %v1092 = vadd.f32 %v1044, 0.5
    %v1093 = vadd.f32 %v1045, 0.5
    %v1094 = vadd.f32 %v1046, 0.5
    %v1095 = vadd.f32 %v1047, 0.5
    %v1096 = vadd.f32 %v1048, 0.5
    %v1097 = vadd.f32 %v1049, 0.5
    %v1098 = vadd.f32 %v1050, 0.5
    %v1099 = vadd.f32 %v1051, 0.5
    %v1100 = vadd.f32 %v1052, 0.5
    %v1101 = vadd.f32 %v1053, 0.5
    %v1102 = vadd.f32 %v1054, 0.5
    %v1103 = vadd.f32 %v1055, 0.5
    %v1104 = vadd.f32 %v1056, 0.5
    %v1105 = vadd.f32 %v1057, 0.5
    %v1106 = vadd.f32 %v1058, 0.5
    %v1107 = vadd.f32 %v1059, 0.5
    %v1108 = vadd.f32 %v1060, 0.5
    %v1109 = vadd.f32 %v1061, 0.5
    %v1110 = vadd.f32 %v1062, 0.5
    %v1111 = vadd.f32 %v1063, 0.5
    %v1112 = vadd.f32 %v1064, 0.5
    %v1113 = vadd.f32 %v1065, 0.5
    %v1114 = vadd.f32 %v1066, 0.5
    %v1115 = vadd.f32 %v1067, 0.5
    %v1116 = vadd.f32 %v1068, 0.5
    %v1117 = vadd.f32 %v1069, 0.5
    %v1118 = vadd.f32 %v1070, 0.5
    %v1119 = vadd.f32 %v1071, 0.5
    %v1120 = vadd.f32 %v1072, 0.5
    %v1121 = vadd.f32 %v1073, 0.5
    %v1122 = vadd.f32 %v1074, 0.5
    %v1123 = vadd.f32 %v1075, 0.5
    %1124 = vrot.lane.b32.xlu0 %v1076, 64
    %v1125 = vpop.permute.xlu0 %1124
    %1126 = vrot.lane.b32.xlu0 %v1077, 64
    %v1127 = vpop.permute.xlu0 %1126
    %1128 = vrot.lane.b32.xlu0 %v1078, 64
    %v1129 = vpop.permute.xlu0 %1128
    %1130 = vrot.lane.b32.xlu0 %v1079, 64
    %v1131 = vpop.permute.xlu0 %1130
    %1132 = vrot.lane.b32.xlu0 %v1080, 64
    %v1133 = vpop.permute.xlu0 %1132
    %1134 = vrot.lane.b32.xlu0 %v1081, 64
    %v1135 = vpop.permute.xlu0 %1134
    %1136 = vrot.lane.b32.xlu0 %v1082, 64
    %v1137 = vpop.permute.xlu0 %1136
    %1138 = vrot.lane.b32.xlu0 %v1083, 64
    %v1139 = vpop.permute.xlu0 %1138
    %1140 = vrot.lane.b32.xlu0 %v1084, 64
    %v1141 = vpop.permute.xlu0 %1140
    %1142 = vrot.lane.b32.xlu0 %v1085, 64
    %v1143 = vpop.permute.xlu0 %1142
    %1144 = vrot.lane.b32.xlu0 %v1086, 64
    %v1145 = vpop.permute.xlu0 %1144
    %1146 = vrot.lane.b32.xlu0 %v1087, 64
    %v1147 = vpop.permute.xlu0 %1146
    %1148 = vrot.lane.b32.xlu0 %v1088, 64
    %v1149 = vpop.permute.xlu0 %1148
    %1150 = vrot.lane.b32.xlu0 %v1089, 64
    %v1151 = vpop.permute.xlu0 %1150
    %1152 = vrot.lane.b32.xlu0 %v1090, 64
    %v1153 = vpop.permute.xlu0 %1152
    %1154 = vrot.lane.b32.xlu0 %v1091, 64
    %v1155 = vpop.permute.xlu0 %1154
    %1156 = vrot.lane.b32.xlu0 %v1092, 64
    %v1157 = vpop.permute.xlu0 %1156
    %1158 = vrot.lane.b32.xlu0 %v1093, 64
    %v1159 = vpop.permute.xlu0 %1158
    %1160 = vrot.lane.b32.xlu0 %v1094, 64
    %v1161 = vpop.permute.xlu0 %1160
    %1162 = vrot.lane.b32.xlu0 %v1095, 64
    %v1163 = vpop.permute.xlu0 %1162
    %1164 = vrot.lane.b32.xlu0 %v1096, 64
    %v1165 = vpop.permute.xlu0 %1164
    %1166 = vrot.lane.b32.xlu0 %v1097, 64
    %v1167 = vpop.permute.xlu0 %1166
    %1168 = vrot.lane.b32.xlu0 %v1098, 64
    %v1169 = vpop.permute.xlu0 %1168
    %1170 = vrot.lane.b32.xlu0 %v1099, 64
    %v1171 = vpop.permute.xlu0 %1170
    %1172 = vrot.lane.b32.xlu0 %v1100, 64
    %v1173 = vpop.permute.xlu0 %1172
    %1174 = vrot.lane.b32.xlu0 %v1101, 64
    %v1175 = vpop.permute.xlu0 %1174
    %1176 = vrot.lane.b32.xlu0 %v1102, 64
    %v1177 = vpop.permute.xlu0 %1176
    %1178 = vrot.lane.b32.xlu0 %v1103, 64
    %v1179 = vpop.permute.xlu0 %1178
    %1180 = vrot.lane.b32.xlu0 %v1104, 64
    %v1181 = vpop.permute.xlu0 %1180
    %1182 = vrot.lane.b32.xlu0 %v1105, 64
    %v1183 = vpop.permute.xlu0 %1182
    %1184 = vrot.lane.b32.xlu0 %v1106, 64
    %v1185 = vpop.permute.xlu0 %1184
    %1186 = vrot.lane.b32.xlu0 %v1107, 64
    %v1187 = vpop.permute.xlu0 %1186
    %1188 = vrot.lane.b32.xlu0 %v1108, 64
    %v1189 = vpop.permute.xlu0 %1188
    %1190 = vrot.lane.b32.xlu0 %v1109, 64
    %v1191 = vpop.permute.xlu0 %1190
    %1192 = vrot.lane.b32.xlu0 %v1110, 64
    %v1193 = vpop.permute.xlu0 %1192
    %1194 = vrot.lane.b32.xlu0 %v1111, 64
    %v1195 = vpop.permute.xlu0 %1194
    %1196 = vrot.lane.b32.xlu0 %v1112, 64
    %v1197 = vpop.permute.xlu0 %1196
    %1198 = vrot.lane.b32.xlu0 %v1113, 64
    %v1199 = vpop.permute.xlu0 %1198
    %1200 = vrot.lane.b32.xlu0 %v1114, 64
    %v1201 = vpop.permute.xlu0 %1200
    %1202 = vrot.lane.b32.xlu0 %v1115, 64
    %v1203 = vpop.permute.xlu0 %1202
    %1204 = vrot.lane.b32.xlu0 %v1116, 64
    %v1205 = vpop.permute.xlu0 %1204
    %1206 = vrot.lane.b32.xlu0 %v1117, 64
    %v1207 = vpop.permute.xlu0 %1206
    %1208 = vrot.lane.b32.xlu0 %v1118, 64
    %v1209 = vpop.permute.xlu0 %1208
    %1210 = vrot.lane.b32.xlu0 %v1119, 64
    %v1211 = vpop.permute.xlu0 %1210
    %1212 = vrot.lane.b32.xlu0 %v1120, 64
    %v1213 = vpop.permute.xlu0 %1212
    %1214 = vrot.lane.b32.xlu0 %v1121, 64
    %v1215 = vpop.permute.xlu0 %1214
    %1216 = vrot.lane.b32.xlu0 %v1122, 64
    %v1217 = vpop.permute.xlu0 %1216
    %1218 = vrot.lane.b32.xlu0 %v1123, 64
    %v1219 = vpop.permute.xlu0 %1218
    %v1220 = vsub.f32 %v1076, %v564
    %v1221 = vsub.f32 %v1077, %v565
    %v1222 = vsub.f32 %v1078, %v566
    %v1223 = vsub.f32 %v1079, %v567
    %v1224 = vsub.f32 %v1080, %v568
    %v1225 = vsub.f32 %v1081, %v569
    %v1226 = vsub.f32 %v1082, %v570
    %v1227 = vsub.f32 %v1083, %v571
    %v1228 = vsub.f32 %v1084, %v572
    %v1229 = vsub.f32 %v1085, %v573
    %v1230 = vsub.f32 %v1086, %v574
    %v1231 = vsub.f32 %v1087, %v575
    %v1232 = vsub.f32 %v1088, %v576
    %v1233 = vsub.f32 %v1089, %v577
    %v1234 = vsub.f32 %v1090, %v578
    %v1235 = vsub.f32 %v1091, %v579
    %v1236 = vsub.f32 %v1092, %v580
    %v1237 = vsub.f32 %v1093, %v581
    %v1238 = vsub.f32 %v1094, %v582
    %v1239 = vsub.f32 %v1095, %v583
    %v1240 = vsub.f32 %v1096, %v584
    %v1241 = vsub.f32 %v1097, %v585
    %v1242 = vsub.f32 %v1098, %v586
    %v1243 = vsub.f32 %v1099, %v587
    %v1244 = vsub.f32 %v1100, %v588
    %v1245 = vsub.f32 %v1101, %v589
    %v1246 = vsub.f32 %v1102, %v590
    %v1247 = vsub.f32 %v1103, %v591
    %v1248 = vsub.f32 %v1104, %v592
    %v1249 = vsub.f32 %v1105, %v593
    %v1250 = vsub.f32 %v1106, %v594
    %v1251 = vsub.f32 %v1107, %v595
    %v1252 = vsub.f32 %v1108, %v596
    %v1253 = vsub.f32 %v1109, %v597
    %v1254 = vsub.f32 %v1110, %v598
    %v1255 = vsub.f32 %v1111, %v599
    %v1256 = vsub.f32 %v1112, %v600
    %v1257 = vsub.f32 %v1113, %v601
    %v1258 = vsub.f32 %v1114, %v602
    %v1259 = vsub.f32 %v1115, %v603
    %v1260 = vsub.f32 %v1116, %v604
    %v1261 = vsub.f32 %v1117, %v605
    %v1262 = vsub.f32 %v1118, %v606
    %v1263 = vsub.f32 %v1119, %v607
    %v1264 = vsub.f32 %v1120, %v608
    %v1265 = vsub.f32 %v1121, %v609
    %v1266 = vsub.f32 %v1122, %v610
    %v1267 = vsub.f32 %v1123, %v611
    %v1268 = vmul.f32 %v1125, %v1220
    %v1269 = vmul.f32 %v1127, %v1221
    %v1270 = vmul.f32 %v1129, %v1222
    %v1271 = vmul.f32 %v1131, %v1223
    %v1272 = vmul.f32 %v1133, %v1224
    %v1273 = vmul.f32 %v1135, %v1225
    %v1274 = vmul.f32 %v1137, %v1226
    %v1275 = vmul.f32 %v1139, %v1227
    %v1276 = vmul.f32 %v1141, %v1228
    %v1277 = vmul.f32 %v1143, %v1229
    %v1278 = vmul.f32 %v1145, %v1230
    %v1279 = vmul.f32 %v1147, %v1231
    %v1280 = vmul.f32 %v1149, %v1232
    %v1281 = vmul.f32 %v1151, %v1233
    %v1282 = vmul.f32 %v1153, %v1234
    %v1283 = vmul.f32 %v1155, %v1235
    %v1284 = vmul.f32 %v1157, %v1236
    %v1285 = vmul.f32 %v1159, %v1237
    %v1286 = vmul.f32 %v1161, %v1238
    %v1287 = vmul.f32 %v1163, %v1239
    %v1288 = vmul.f32 %v1165, %v1240
    %v1289 = vmul.f32 %v1167, %v1241
    %v1290 = vmul.f32 %v1169, %v1242
    %v1291 = vmul.f32 %v1171, %v1243
    %v1292 = vmul.f32 %v1173, %v1244
    %v1293 = vmul.f32 %v1175, %v1245
    %v1294 = vmul.f32 %v1177, %v1246
    %v1295 = vmul.f32 %v1179, %v1247
    %v1296 = vmul.f32 %v1181, %v1248
    %v1297 = vmul.f32 %v1183, %v1249
    %v1298 = vmul.f32 %v1185, %v1250
    %v1299 = vmul.f32 %v1187, %v1251
    %v1300 = vmul.f32 %v1189, %v1252
    %v1301 = vmul.f32 %v1191, %v1253
    %v1302 = vmul.f32 %v1193, %v1254
    %v1303 = vmul.f32 %v1195, %v1255
    %v1304 = vmul.f32 %v1197, %v1256
    %v1305 = vmul.f32 %v1199, %v1257
    %v1306 = vmul.f32 %v1201, %v1258
    %v1307 = vmul.f32 %v1203, %v1259
    %v1308 = vmul.f32 %v1205, %v1260
    %v1309 = vmul.f32 %v1207, %v1261
    %v1310 = vmul.f32 %v1209, %v1262
    %v1311 = vmul.f32 %v1211, %v1263
    %v1312 = vmul.f32 %v1213, %v1264
    %v1313 = vmul.f32 %v1215, %v1265
    %v1314 = vmul.f32 %v1217, %v1266
    %v1315 = vmul.f32 %v1219, %v1267
    %v1316 = vadd.f32 %v564, %v1268
    %v1317 = vadd.f32 %v565, %v1269
    %v1318 = vadd.f32 %v566, %v1270
    %v1319 = vadd.f32 %v567, %v1271
    %v1320 = vadd.f32 %v568, %v1272
    %v1321 = vadd.f32 %v569, %v1273
    %v1322 = vadd.f32 %v570, %v1274
    %v1323 = vadd.f32 %v571, %v1275
    %v1324 = vadd.f32 %v572, %v1276
    %v1325 = vadd.f32 %v573, %v1277
    %v1326 = vadd.f32 %v574, %v1278
    %v1327 = vadd.f32 %v575, %v1279
    %v1328 = vadd.f32 %v576, %v1280
    %v1329 = vadd.f32 %v577, %v1281
    %v1330 = vadd.f32 %v578, %v1282
    %v1331 = vadd.f32 %v579, %v1283
    %v1332 = vadd.f32 %v580, %v1284
    %v1333 = vadd.f32 %v581, %v1285
    %v1334 = vadd.f32 %v582, %v1286
    %v1335 = vadd.f32 %v583, %v1287
    %v1336 = vadd.f32 %v584, %v1288
    %v1337 = vadd.f32 %v585, %v1289
    %v1338 = vadd.f32 %v586, %v1290
    %v1339 = vadd.f32 %v587, %v1291
    %v1340 = vadd.f32 %v588, %v1292
    %v1341 = vadd.f32 %v589, %v1293
    %v1342 = vadd.f32 %v590, %v1294
    %v1343 = vadd.f32 %v591, %v1295
    %v1344 = vadd.f32 %v592, %v1296
    %v1345 = vadd.f32 %v593, %v1297
    %v1346 = vadd.f32 %v594, %v1298
    %v1347 = vadd.f32 %v595, %v1299
    %v1348 = vadd.f32 %v596, %v1300
    %v1349 = vadd.f32 %v597, %v1301
    %v1350 = vadd.f32 %v598, %v1302
    %v1351 = vadd.f32 %v599, %v1303
    %v1352 = vadd.f32 %v600, %v1304
    %v1353 = vadd.f32 %v601, %v1305
    %v1354 = vadd.f32 %v602, %v1306
    %v1355 = vadd.f32 %v603, %v1307
    %v1356 = vadd.f32 %v604, %v1308
    %v1357 = vadd.f32 %v605, %v1309
    %v1358 = vadd.f32 %v606, %v1310
    %v1359 = vadd.f32 %v607, %v1311
    %v1360 = vadd.f32 %v608, %v1312
    %v1361 = vadd.f32 %v609, %v1313
    %v1362 = vadd.f32 %v610, %v1314
    %v1363 = vadd.f32 %v611, %v1315
    %v1364 = vpack.c.bf16 %v1317, %v1316
    %v1365 = vpack.c.bf16 %v1319, %v1318
    %v1366 = vpack.c.bf16 %v1321, %v1320
    %v1367 = vpack.c.bf16 %v1323, %v1322
    %v1368 = vpack.c.bf16 %v1325, %v1324
    %v1369 = vpack.c.bf16 %v1327, %v1326
    %v1370 = vpack.c.bf16 %v1329, %v1328
    %v1371 = vpack.c.bf16 %v1331, %v1330
    %v1372 = vpack.c.bf16 %v1333, %v1332
    %v1373 = vpack.c.bf16 %v1335, %v1334
    %v1374 = vpack.c.bf16 %v1337, %v1336
    %v1375 = vpack.c.bf16 %v1339, %v1338
    %v1376 = vpack.c.bf16 %v1341, %v1340
    %v1377 = vpack.c.bf16 %v1343, %v1342
    %v1378 = vpack.c.bf16 %v1345, %v1344
    %v1379 = vpack.c.bf16 %v1347, %v1346
    %v1380 = vpack.c.bf16 %v1349, %v1348
    %v1381 = vpack.c.bf16 %v1351, %v1350
    %v1382 = vpack.c.bf16 %v1353, %v1352
    %v1383 = vpack.c.bf16 %v1355, %v1354
    %v1384 = vpack.c.bf16 %v1357, %v1356
    %v1385 = vpack.c.bf16 %v1359, %v1358
    %v1386 = vpack.c.bf16 %v1361, %v1360
    %v1387 = vpack.c.bf16 %v1363, %v1362
    %s1388 = scalar_lea.vmem [#allocation2], 64
    %v1389 = vld [vmem:[%s1388] sm:$0xf]
    %v1390 = vld [vmem:[%s1388 + $0x4] sm:$0xf]
    %v1391 = vld [vmem:[%s1388 + $0x8] sm:$0xf]
    %v1392 = vld [vmem:[%s1388 + $0xc] sm:$0xf]
    %v1393 = vld [vmem:[%s1388 + $0x10] sm:$0xf]
    %v1394 = vld [vmem:[%s1388 + $0x14] sm:$0xf]
    %v1395 = vld [vmem:[%s1388 + $0x18] sm:$0xf]
    %v1396 = vld [vmem:[%s1388 + $0x1c] sm:$0xf]
    %v1397 = vld [vmem:[%s1388 + $0x20] sm:$0xf]
    %v1398 = vld [vmem:[%s1388 + $0x24] sm:$0xf]
    %v1399 = vld [vmem:[%s1388 + $0x28] sm:$0xf]
    %v1400 = vld [vmem:[%s1388 + $0x2c] sm:$0xf]
    %v1401 = vld [vmem:[%s1388 + $0x30] sm:$0xf]
    %v1402 = vld [vmem:[%s1388 + $0x34] sm:$0xf]
    %v1403 = vld [vmem:[%s1388 + $0x38] sm:$0xf]
    %v1404 = vld [vmem:[%s1388 + $0x3c] sm:$0xf]
    %s1405 = scalar_lea.vmem %s4, 1
    %v1406 = vld [vmem:[%s1405] sm:$0x1]
    %v1408 = vlaneseq
    %v1409 = vshrl.u32 %v1408, 7
    %v1410 = vsub.s32 0, %v1409
    %v1411 = vrot.slane %v1406, %v1410
    %v1429 = vunpack.c.l.b16 %v1389
    %v1430 = vunpack.c.l.b16 %v1390
    %v1431 = vunpack.c.l.b16 %v1391
    %v1432 = vunpack.c.l.b16 %v1392
    %v1433 = vunpack.c.l.b16 %v1393
    %v1434 = vunpack.c.l.b16 %v1394
    %v1435 = vunpack.c.l.b16 %v1395
    %v1436 = vunpack.c.l.b16 %v1396
    %v1437 = vunpack.c.l.b16 %v1397
    %v1438 = vunpack.c.l.b16 %v1398
    %v1439 = vunpack.c.l.b16 %v1399
    %v1440 = vunpack.c.l.b16 %v1400
    %v1441 = vunpack.c.l.b16 %v1401
    %v1442 = vunpack.c.l.b16 %v1402
    %v1443 = vunpack.c.l.b16 %v1403
    %v1444 = vunpack.c.l.b16 %v1404
    %v1445 = vpack.c.b16 %v1430, %v1429
    %v1446 = vpack.c.b16 %v1432, %v1431
    %v1447 = vpack.c.b16 %v1434, %v1433
    %v1448 = vpack.c.b16 %v1436, %v1435
    %v1449 = vpack.c.b16 %v1438, %v1437
    %v1450 = vpack.c.b16 %v1440, %v1439
    %v1451 = vpack.c.b16 %v1442, %v1441
    %v1452 = vpack.c.b16 %v1444, %v1443
    %1461 = vmatprep.subr.bf16.mxu0 0
    %1462 = vmatpush1.bf16.msra.mxu0 %v1445
    %1463 = vmatprep.subr.bf16.mxu0 0
    %1464 = vmatpush1.bf16.msra.mxu0 %v1446
    %1465 = vmatprep.subr.bf16.mxu0 0
    %1466 = vmatpush1.bf16.msra.mxu0 %v1447
    %1467 = vmatprep.subr.bf16.mxu0 0
    %1468 = vmatpush1.bf16.msra.mxu0 %v1448
    %1469 = vmatprep.subr.bf16.mxu0 0
    %1470 = vmatpush1.bf16.msra.mxu0 %v1449
    %1471 = vmatprep.subr.bf16.mxu0 0
    %1472 = vmatpush1.bf16.msra.mxu0 %v1450
    %1473 = vmatprep.subr.bf16.mxu0 0
    %1474 = vmatpush1.bf16.msra.mxu0 %v1451
    %1475 = vmatprep.subr.bf16.mxu0 0
    %1476 = vmatpush1.bf16.msra.mxu0 %v1452
    %1477 = vmatprep.subr.bf16.mxu0 0
    %1478 = vmatpush1.bf16.msra.mxu0 0
    %1479 = vmatprep.subr.bf16.mxu0 0
    %1480 = vmatpush1.bf16.msra.mxu0 0
    %1481 = vmatprep.subr.bf16.mxu0 0
    %1482 = vmatpush1.bf16.msra.mxu0 0
    %1483 = vmatprep.subr.bf16.mxu0 0
    %1484 = vmatpush1.bf16.msra.mxu0 0
    %1485 = vmatprep.subr.bf16.mxu0 0
    %1486 = vmatpush1.bf16.msra.mxu0 0
    %1487 = vmatprep.subr.bf16.mxu0 0
    %1488 = vmatpush1.bf16.msra.mxu0 0
    %1489 = vmatprep.subr.bf16.mxu0 0
    %1490 = vmatpush1.bf16.msra.mxu0 0
    %1491 = vmatprep.subr.bf16.mxu0 0
    %1492 = vmatpush1.bf16.msra.mxu0 0
    %1493 = vmatprep.mubr.bf16.mxu0 0
    %1494 = vmatmul.mubr.bf16.gmra.mrb[0].mxu0 %v1364
    %v1495 = vpop.f32.mrb[0].mxu0
    %v1496 = vadd.f32 %v1411, %v1495
    %v1497 = vpop.f32.mrb[0].mxu0
    %v1498 = vpop.f32.mrb[0].mxu0
    %v1499 = vadd.f32 %v1411, %v1498
    %v1500 = vpop.f32.mrb[0].mxu0
    %1501 = vmatprep.mubr.bf16.mxu0 0
    %1502 = vmatmul.mubr.bf16.gmra.mrb[0].mxu0 %v1365
    %v1503 = vpop.f32.mrb[0].mxu0
    %v1504 = vadd.f32 %v1411, %v1503
    %v1505 = vpop.f32.mrb[0].mxu0
    %v1506 = vpop.f32.mrb[0].mxu0
    %v1507 = vadd.f32 %v1411, %v1506
    %v1508 = vpop.f32.mrb[0].mxu0
    %1509 = vmatprep.mubr.bf16.mxu0 0
    %1510 = vmatmul.mubr.bf16.gmra.mrb[0].mxu0 %v1366
    %v1511 = vpop.f32.mrb[0].mxu0
    %v1512 = vadd.f32 %v1411, %v1511
    %v1513 = vpop.f32.mrb[0].mxu0
    %v1514 = vpop.f32.mrb[0].mxu0
    %v1515 = vadd.f32 %v1411, %v1514
    %v1516 = vpop.f32.mrb[0].mxu0
    %1517 = vmatprep.mubr.bf16.mxu0 0
    %1518 = vmatmul.mubr.bf16.gmra.mrb[0].mxu0 %v1367
    %v1519 = vpop.f32.mrb[0].mxu0
    %v1520 = vadd.f32 %v1411, %v1519
    %v1521 = vpop.f32.mrb[0].mxu0
    %v1522 = vpop.f32.mrb[0].mxu0
    %v1523 = vadd.f32 %v1411, %v1522
    %v1524 = vpop.f32.mrb[0].mxu0
    %1525 = vmatprep.mubr.bf16.mxu0 0
    %1526 = vmatmul.mubr.bf16.gmra.mrb[0].mxu0 %v1368
    %v1527 = vpop.f32.mrb[0].mxu0
    %v1528 = vadd.f32 %v1411, %v1527
    %v1529 = vpop.f32.mrb[0].mxu0
    %v1530 = vpop.f32.mrb[0].mxu0
    %v1531 = vadd.f32 %v1411, %v1530
    %v1532 = vpop.f32.mrb[0].mxu0
    %1533 = vmatprep.mubr.bf16.mxu0 0
    %1534 = vmatmul.mubr.bf16.gmra.mrb[0].mxu0 %v1369
    %v1535 = vpop.f32.mrb[0].mxu0
    %v1536 = vadd.f32 %v1411, %v1535
    %v1537 = vpop.f32.mrb[0].mxu0
    %v1538 = vpop.f32.mrb[0].mxu0
    %v1539 = vadd.f32 %v1411, %v1538
    %v1540 = vpop.f32.mrb[0].mxu0
    %1541 = vmatprep.mubr.bf16.mxu0 0
    %1542 = vmatmul.mubr.bf16.gmra.mrb[0].mxu0 %v1370
    %v1543 = vpop.f32.mrb[0].mxu0
    %v1544 = vadd.f32 %v1411, %v1543
    %v1545 = vpop.f32.mrb[0].mxu0
    %v1546 = vpop.f32.mrb[0].mxu0
    %v1547 = vadd.f32 %v1411, %v1546
    %v1548 = vpop.f32.mrb[0].mxu0
    %1549 = vmatprep.mubr.bf16.mxu0 0
    %1550 = vmatmul.mubr.bf16.gmra.mrb[0].mxu0 %v1371
    %v1551 = vpop.f32.mrb[0].mxu0
    %v1552 = vadd.f32 %v1411, %v1551
    %v1553 = vpop.f32.mrb[0].mxu0
    %v1554 = vpop.f32.mrb[0].mxu0
    %v1555 = vadd.f32 %v1411, %v1554
    %v1556 = vpop.f32.mrb[0].mxu0
    %1557 = vmatprep.mubr.bf16.mxu0 0
    %1558 = vmatmul.mubr.bf16.gmra.mrb[0].mxu0 %v1372
    %v1559 = vpop.f32.mrb[0].mxu0
    %v1560 = vadd.f32 %v1411, %v1559
    %v1561 = vpop.f32.mrb[0].mxu0
    %v1562 = vpop.f32.mrb[0].mxu0
    %v1563 = vadd.f32 %v1411, %v1562
    %v1564 = vpop.f32.mrb[0].mxu0
    %1565 = vmatprep.mubr.bf16.mxu0 0
    %1566 = vmatmul.mubr.bf16.gmra.mrb[0].mxu0 %v1373
    %v1567 = vpop.f32.mrb[0].mxu0
    %v1568 = vadd.f32 %v1411, %v1567
    %v1569 = vpop.f32.mrb[0].mxu0
    %v1570 = vpop.f32.mrb[0].mxu0
    %v1571 = vadd.f32 %v1411, %v1570
    %v1572 = vpop.f32.mrb[0].mxu0
    %1573 = vmatprep.mubr.bf16.mxu0 0
    %1574 = vmatmul.mubr.bf16.gmra.mrb[0].mxu0 %v1374
    %v1575 = vpop.f32.mrb[0].mxu0
    %v1576 = vadd.f32 %v1411, %v1575
    %v1577 = vpop.f32.mrb[0].mxu0
    %v1578 = vpop.f32.mrb[0].mxu0
    %v1579 = vadd.f32 %v1411, %v1578
    %v1580 = vpop.f32.mrb[0].mxu0
    %1581 = vmatprep.mubr.bf16.mxu0 0
    %1582 = vmatmul.mubr.bf16.gmra.mrb[0].mxu0 %v1375
    %v1583 = vpop.f32.mrb[0].mxu0
    %v1584 = vadd.f32 %v1411, %v1583
    %v1585 = vpop.f32.mrb[0].mxu0
    %v1586 = vpop.f32.mrb[0].mxu0
    %v1587 = vadd.f32 %v1411, %v1586
    %v1588 = vpop.f32.mrb[0].mxu0
    %1589 = vmatprep.mubr.bf16.mxu0 0
    %1590 = vmatmul.mubr.bf16.gmra.mrb[0].mxu0 %v1376
    %v1591 = vpop.f32.mrb[0].mxu0
    %v1592 = vadd.f32 %v1411, %v1591
    %v1593 = vpop.f32.mrb[0].mxu0
    %v1594 = vpop.f32.mrb[0].mxu0
    %v1595 = vadd.f32 %v1411, %v1594
    %v1596 = vpop.f32.mrb[0].mxu0
    %1597 = vmatprep.mubr.bf16.mxu0 0
    %1598 = vmatmul.mubr.bf16.gmra.mrb[0].mxu0 %v1377
    %v1599 = vpop.f32.mrb[0].mxu0
    %v1600 = vadd.f32 %v1411, %v1599
    %v1601 = vpop.f32.mrb[0].mxu0
    %v1602 = vpop.f32.mrb[0].mxu0
    %v1603 = vadd.f32 %v1411, %v1602
    %v1604 = vpop.f32.mrb[0].mxu0
    %1605 = vmatprep.mubr.bf16.mxu0 0
    %1606 = vmatmul.mubr.bf16.gmra.mrb[0].mxu0 %v1378
    %v1607 = vpop.f32.mrb[0].mxu0
    %v1608 = vadd.f32 %v1411, %v1607
    %v1609 = vpop.f32.mrb[0].mxu0
    %v1610 = vpop.f32.mrb[0].mxu0
    %v1611 = vadd.f32 %v1411, %v1610
    %v1612 = vpop.f32.mrb[0].mxu0
    %1613 = vmatprep.mubr.bf16.mxu0 0
    %1614 = vmatmul.mubr.bf16.gmra.mrb[0].mxu0 %v1379
    %v1615 = vpop.f32.mrb[0].mxu0
    %v1616 = vadd.f32 %v1411, %v1615
    %v1617 = vpop.f32.mrb[0].mxu0
    %v1618 = vpop.f32.mrb[0].mxu0
    %v1619 = vadd.f32 %v1411, %v1618
    %v1620 = vpop.f32.mrb[0].mxu0
    %1621 = vmatprep.mubr.bf16.mxu0 0
    %1622 = vmatmul.mubr.bf16.gmra.mrb[0].mxu0 %v1380
    %v1623 = vpop.f32.mrb[0].mxu0
    %v1624 = vadd.f32 %v1411, %v1623
    %v1625 = vpop.f32.mrb[0].mxu0
    %v1626 = vpop.f32.mrb[0].mxu0
    %v1627 = vadd.f32 %v1411, %v1626
    %v1628 = vpop.f32.mrb[0].mxu0
    %1629 = vmatprep.mubr.bf16.mxu0 0
    %1630 = vmatmul.mubr.bf16.gmra.mrb[0].mxu0 %v1381
    %v1631 = vpop.f32.mrb[0].mxu0
    %v1632 = vadd.f32 %v1411, %v1631
    %v1633 = vpop.f32.mrb[0].mxu0
    %v1634 = vpop.f32.mrb[0].mxu0
    %v1635 = vadd.f32 %v1411, %v1634
    %v1636 = vpop.f32.mrb[0].mxu0
    %1637 = vmatprep.mubr.bf16.mxu0 0
    %1638 = vmatmul.mubr.bf16.gmra.mrb[0].mxu0 %v1382
    %v1639 = vpop.f32.mrb[0].mxu0
    %v1640 = vadd.f32 %v1411, %v1639
    %v1641 = vpop.f32.mrb[0].mxu0
    %v1642 = vpop.f32.mrb[0].mxu0
    %v1643 = vadd.f32 %v1411, %v1642
    %v1644 = vpop.f32.mrb[0].mxu0
    %1645 = vmatprep.mubr.bf16.mxu0 0
    %1646 = vmatmul.mubr.bf16.gmra.mrb[0].mxu0 %v1383
    %v1647 = vpop.f32.mrb[0].mxu0
    %v1648 = vadd.f32 %v1411, %v1647
    %v1649 = vpop.f32.mrb[0].mxu0
    %v1650 = vpop.f32.mrb[0].mxu0
    %v1651 = vadd.f32 %v1411, %v1650
    %v1652 = vpop.f32.mrb[0].mxu0
    %1653 = vmatprep.mubr.bf16.mxu0 0
    %1654 = vmatmul.mubr.bf16.gmra.mrb[0].mxu0 %v1384
    %v1655 = vpop.f32.mrb[0].mxu0
    %v1656 = vadd.f32 %v1411, %v1655
    %v1657 = vpop.f32.mrb[0].mxu0
    %v1658 = vpop.f32.mrb[0].mxu0
    %v1659 = vadd.f32 %v1411, %v1658
    %v1660 = vpop.f32.mrb[0].mxu0
    %1661 = vmatprep.mubr.bf16.mxu0 0
    %1662 = vmatmul.mubr.bf16.gmra.mrb[0].mxu0 %v1385
    %v1663 = vpop.f32.mrb[0].mxu0
    %v1664 = vadd.f32 %v1411, %v1663
    %v1665 = vpop.f32.mrb[0].mxu0
    %v1666 = vpop.f32.mrb[0].mxu0
    %v1667 = vadd.f32 %v1411, %v1666
    %v1668 = vpop.f32.mrb[0].mxu0
    %1669 = vmatprep.mubr.bf16.mxu0 0
    %1670 = vmatmul.mubr.bf16.gmra.mrb[0].mxu0 %v1386
    %v1671 = vpop.f32.mrb[0].mxu0
    %v1672 = vadd.f32 %v1411, %v1671
    %v1673 = vpop.f32.mrb[0].mxu0
    %v1674 = vpop.f32.mrb[0].mxu0
    %v1675 = vadd.f32 %v1411, %v1674
    %v1676 = vpop.f32.mrb[0].mxu0
    %1677 = vmatprep.mubr.bf16.mxu0 0
    %1678 = vmatmul.mubr.bf16.gmra.mrb[0].mxu0 %v1387
    %v1679 = vpop.f32.mrb[0].mxu0
    %v1680 = vadd.f32 %v1411, %v1679
    %v1681 = vpop.f32.mrb[0].mxu0
    %v1682 = vpop.f32.mrb[0].mxu0
    %v1683 = vadd.f32 %v1411, %v1682
    %v1684 = vpop.f32.mrb[0].mxu0
    %1685 = vdwg.mxu0
    %v1686 = vmul.f32 %v1496, 0.5
    %v1687 = vmul.f32 %v1499, 0.5
    %v1688 = vmul.f32 %v1504, 0.5
    %v1689 = vmul.f32 %v1507, 0.5
    %v1690 = vmul.f32 %v1512, 0.5
    %v1691 = vmul.f32 %v1515, 0.5
    %v1692 = vmul.f32 %v1520, 0.5
    %v1693 = vmul.f32 %v1523, 0.5
    %v1694 = vmul.f32 %v1528, 0.5
    %v1695 = vmul.f32 %v1531, 0.5
    %v1696 = vmul.f32 %v1536, 0.5
    %v1697 = vmul.f32 %v1539, 0.5
    %v1698 = vmul.f32 %v1544, 0.5
    %v1699 = vmul.f32 %v1547, 0.5
    %v1700 = vmul.f32 %v1552, 0.5
    %v1701 = vmul.f32 %v1555, 0.5
    %v1702 = vmul.f32 %v1560, 0.5
    %v1703 = vmul.f32 %v1563, 0.5
    %v1704 = vmul.f32 %v1568, 0.5
    %v1705 = vmul.f32 %v1571, 0.5
    %v1706 = vmul.f32 %v1576, 0.5
    %v1707 = vmul.f32 %v1579, 0.5
    %v1708 = vmul.f32 %v1584, 0.5
    %v1709 = vmul.f32 %v1587, 0.5
    %v1710 = vmul.f32 %v1592, 0.5
    %v1711 = vmul.f32 %v1595, 0.5
    %v1712 = vmul.f32 %v1600, 0.5
    %v1713 = vmul.f32 %v1603, 0.5
    %v1714 = vmul.f32 %v1608, 0.5
    %v1715 = vmul.f32 %v1611, 0.5
    %v1716 = vmul.f32 %v1616, 0.5
    %v1717 = vmul.f32 %v1619, 0.5
    %v1718 = vmul.f32 %v1624, 0.5
    %v1719 = vmul.f32 %v1627, 0.5
    %v1720 = vmul.f32 %v1632, 0.5
    %v1721 = vmul.f32 %v1635, 0.5
    %v1722 = vmul.f32 %v1640, 0.5
    %v1723 = vmul.f32 %v1643, 0.5
    %v1724 = vmul.f32 %v1648, 0.5
    %v1725 = vmul.f32 %v1651, 0.5
    %v1726 = vmul.f32 %v1656, 0.5
    %v1727 = vmul.f32 %v1659, 0.5
    %v1728 = vmul.f32 %v1664, 0.5
    %v1729 = vmul.f32 %v1667, 0.5
    %v1730 = vmul.f32 %v1672, 0.5
    %v1731 = vmul.f32 %v1675, 0.5
    %v1732 = vmul.f32 %v1680, 0.5
    %v1733 = vmul.f32 %v1683, 0.5
    %v1734 = vtanh.pop %v1686
    %v1735 = vtanh.pop %v1687
    %v1736 = vtanh.pop %v1688
    %v1737 = vtanh.pop %v1689
    %v1738 = vtanh.pop %v1690
    %v1739 = vtanh.pop %v1691
    %v1740 = vtanh.pop %v1692
    %v1741 = vtanh.pop %v1693
    %v1742 = vtanh.pop %v1694
    %v1743 = vtanh.pop %v1695
    %v1744 = vtanh.pop %v1696
    %v1745 = vtanh.pop %v1697
    %v1746 = vtanh.pop %v1698
    %v1747 = vtanh.pop %v1699
    %v1748 = vtanh.pop %v1700
    %v1749 = vtanh.pop %v1701
    %v1750 = vtanh.pop %v1702
    %v1751 = vtanh.pop %v1703
    %v1752 = vtanh.pop %v1704
    %v1753 = vtanh.pop %v1705
    %v1754 = vtanh.pop %v1706
    %v1755 = vtanh.pop %v1707
    %v1756 = vtanh.pop %v1708
    %v1757 = vtanh.pop %v1709
    %v1758 = vtanh.pop %v1710
    %v1759 = vtanh.pop %v1711
    %v1760 = vtanh.pop %v1712
    %v1761 = vtanh.pop %v1713
    %v1762 = vtanh.pop %v1714
    %v1763 = vtanh.pop %v1715
    %v1764 = vtanh.pop %v1716
    %v1765 = vtanh.pop %v1717
    %v1766 = vtanh.pop %v1718
    %v1767 = vtanh.pop %v1719
    %v1768 = vtanh.pop %v1720
    %v1769 = vtanh.pop %v1721
    %v1770 = vtanh.pop %v1722
    %v1771 = vtanh.pop %v1723
    %v1772 = vtanh.pop %v1724
    %v1773 = vtanh.pop %v1725
    %v1774 = vtanh.pop %v1726
    %v1775 = vtanh.pop %v1727
    %v1776 = vtanh.pop %v1728
    %v1777 = vtanh.pop %v1729
    %v1778 = vtanh.pop %v1730
    %v1779 = vtanh.pop %v1731
    %v1780 = vtanh.pop %v1732
    %v1781 = vtanh.pop %v1733
    %v1782 = vmul.f32 %v1734, 0.5
    %v1783 = vmul.f32 %v1735, 0.5
    %v1784 = vmul.f32 %v1736, 0.5
    %v1785 = vmul.f32 %v1737, 0.5
    %v1786 = vmul.f32 %v1738, 0.5
    %v1787 = vmul.f32 %v1739, 0.5
    %v1788 = vmul.f32 %v1740, 0.5
    %v1789 = vmul.f32 %v1741, 0.5
    %v1790 = vmul.f32 %v1742, 0.5
    %v1791 = vmul.f32 %v1743, 0.5
    %v1792 = vmul.f32 %v1744, 0.5
    %v1793 = vmul.f32 %v1745, 0.5
    %v1794 = vmul.f32 %v1746, 0.5
    %v1795 = vmul.f32 %v1747, 0.5
    %v1796 = vmul.f32 %v1748, 0.5
    %v1797 = vmul.f32 %v1749, 0.5
    %v1798 = vmul.f32 %v1750, 0.5
    %v1799 = vmul.f32 %v1751, 0.5
    %v1800 = vmul.f32 %v1752, 0.5
    %v1801 = vmul.f32 %v1753, 0.5
    %v1802 = vmul.f32 %v1754, 0.5
    %v1803 = vmul.f32 %v1755, 0.5
    %v1804 = vmul.f32 %v1756, 0.5
    %v1805 = vmul.f32 %v1757, 0.5
    %v1806 = vmul.f32 %v1758, 0.5
    %v1807 = vmul.f32 %v1759, 0.5
    %v1808 = vmul.f32 %v1760, 0.5
    %v1809 = vmul.f32 %v1761, 0.5
    %v1810 = vmul.f32 %v1762, 0.5
    %v1811 = vmul.f32 %v1763, 0.5
    %v1812 = vmul.f32 %v1764, 0.5
    %v1813 = vmul.f32 %v1765, 0.5
    %v1814 = vmul.f32 %v1766, 0.5
    %v1815 = vmul.f32 %v1767, 0.5
    %v1816 = vmul.f32 %v1768, 0.5
    %v1817 = vmul.f32 %v1769, 0.5
    %v1818 = vmul.f32 %v1770, 0.5
    %v1819 = vmul.f32 %v1771, 0.5
    %v1820 = vmul.f32 %v1772, 0.5
    %v1821 = vmul.f32 %v1773, 0.5
    %v1822 = vmul.f32 %v1774, 0.5
    %v1823 = vmul.f32 %v1775, 0.5
    %v1824 = vmul.f32 %v1776, 0.5
    %v1825 = vmul.f32 %v1777, 0.5
    %v1826 = vmul.f32 %v1778, 0.5
    %v1827 = vmul.f32 %v1779, 0.5
    %v1828 = vmul.f32 %v1780, 0.5
    %v1829 = vmul.f32 %v1781, 0.5
    %v1830 = vadd.f32 %v1782, 0.5
    %v1831 = vadd.f32 %v1783, 0.5
    %v1832 = vadd.f32 %v1784, 0.5
    %v1833 = vadd.f32 %v1785, 0.5
    %v1834 = vadd.f32 %v1786, 0.5
    %v1835 = vadd.f32 %v1787, 0.5
    %v1836 = vadd.f32 %v1788, 0.5
    %v1837 = vadd.f32 %v1789, 0.5
    %v1838 = vadd.f32 %v1790, 0.5
    %v1839 = vadd.f32 %v1791, 0.5
    %v1840 = vadd.f32 %v1792, 0.5
    %v1841 = vadd.f32 %v1793, 0.5
    %v1842 = vadd.f32 %v1794, 0.5
    %v1843 = vadd.f32 %v1795, 0.5
    %v1844 = vadd.f32 %v1796, 0.5
    %v1845 = vadd.f32 %v1797, 0.5
    %v1846 = vadd.f32 %v1798, 0.5
    %v1847 = vadd.f32 %v1799, 0.5
    %v1848 = vadd.f32 %v1800, 0.5
    %v1849 = vadd.f32 %v1801, 0.5
    %v1850 = vadd.f32 %v1802, 0.5
    %v1851 = vadd.f32 %v1803, 0.5
    %v1852 = vadd.f32 %v1804, 0.5
    %v1853 = vadd.f32 %v1805, 0.5
    %v1854 = vadd.f32 %v1806, 0.5
    %v1855 = vadd.f32 %v1807, 0.5
    %v1856 = vadd.f32 %v1808, 0.5
    %v1857 = vadd.f32 %v1809, 0.5
    %v1858 = vadd.f32 %v1810, 0.5
    %v1859 = vadd.f32 %v1811, 0.5
    %v1860 = vadd.f32 %v1812, 0.5
    %v1861 = vadd.f32 %v1813, 0.5
    %v1862 = vadd.f32 %v1814, 0.5
    %v1863 = vadd.f32 %v1815, 0.5
    %v1864 = vadd.f32 %v1816, 0.5
    %v1865 = vadd.f32 %v1817, 0.5
    %v1866 = vadd.f32 %v1818, 0.5
    %v1867 = vadd.f32 %v1819, 0.5
    %v1868 = vadd.f32 %v1820, 0.5
    %v1869 = vadd.f32 %v1821, 0.5
    %v1870 = vadd.f32 %v1822, 0.5
    %v1871 = vadd.f32 %v1823, 0.5
    %v1872 = vadd.f32 %v1824, 0.5
    %v1873 = vadd.f32 %v1825, 0.5
    %v1874 = vadd.f32 %v1826, 0.5
    %v1875 = vadd.f32 %v1827, 0.5
    %v1876 = vadd.f32 %v1828, 0.5
    %v1877 = vadd.f32 %v1829, 0.5
    %1878 = vrot.lane.b32.xlu0 %v1830, 64
    %v1879 = vpop.permute.xlu0 %1878
    %1880 = vrot.lane.b32.xlu0 %v1831, 64
    %v1881 = vpop.permute.xlu0 %1880
    %1882 = vrot.lane.b32.xlu0 %v1832, 64
    %v1883 = vpop.permute.xlu0 %1882
    %1884 = vrot.lane.b32.xlu0 %v1833, 64
    %v1885 = vpop.permute.xlu0 %1884
    %1886 = vrot.lane.b32.xlu0 %v1834, 64
    %v1887 = vpop.permute.xlu0 %1886
    %1888 = vrot.lane.b32.xlu0 %v1835, 64
    %v1889 = vpop.permute.xlu0 %1888
    %1890 = vrot.lane.b32.xlu0 %v1836, 64
    %v1891 = vpop.permute.xlu0 %1890
    %1892 = vrot.lane.b32.xlu0 %v1837, 64
    %v1893 = vpop.permute.xlu0 %1892
    %1894 = vrot.lane.b32.xlu0 %v1838, 64
    %v1895 = vpop.permute.xlu0 %1894
    %1896 = vrot.lane.b32.xlu0 %v1839, 64
    %v1897 = vpop.permute.xlu0 %1896
    %1898 = vrot.lane.b32.xlu0 %v1840, 64
    %v1899 = vpop.permute.xlu0 %1898
    %1900 = vrot.lane.b32.xlu0 %v1841, 64
    %v1901 = vpop.permute.xlu0 %1900
    %1902 = vrot.lane.b32.xlu0 %v1842, 64
    %v1903 = vpop.permute.xlu0 %1902
    %1904 = vrot.lane.b32.xlu0 %v1843, 64
    %v1905 = vpop.permute.xlu0 %1904
    %1906 = vrot.lane.b32.xlu0 %v1844, 64
    %v1907 = vpop.permute.xlu0 %1906
    %1908 = vrot.lane.b32.xlu0 %v1845, 64
    %v1909 = vpop.permute.xlu0 %1908
    %1910 = vrot.lane.b32.xlu0 %v1846, 64
    %v1911 = vpop.permute.xlu0 %1910
    %1912 = vrot.lane.b32.xlu0 %v1847, 64
    %v1913 = vpop.permute.xlu0 %1912
    %1914 = vrot.lane.b32.xlu0 %v1848, 64
    %v1915 = vpop.permute.xlu0 %1914
    %1916 = vrot.lane.b32.xlu0 %v1849, 64
    %v1917 = vpop.permute.xlu0 %1916
    %1918 = vrot.lane.b32.xlu0 %v1850, 64
    %v1919 = vpop.permute.xlu0 %1918
    %1920 = vrot.lane.b32.xlu0 %v1851, 64
    %v1921 = vpop.permute.xlu0 %1920
    %1922 = vrot.lane.b32.xlu0 %v1852, 64
    %v1923 = vpop.permute.xlu0 %1922
    %1924 = vrot.lane.b32.xlu0 %v1853, 64
    %v1925 = vpop.permute.xlu0 %1924
    %1926 = vrot.lane.b32.xlu0 %v1854, 64
    %v1927 = vpop.permute.xlu0 %1926
    %1928 = vrot.lane.b32.xlu0 %v1855, 64
    %v1929 = vpop.permute.xlu0 %1928
    %1930 = vrot.lane.b32.xlu0 %v1856, 64
    %v1931 = vpop.permute.xlu0 %1930
    %1932 = vrot.lane.b32.xlu0 %v1857, 64
    %v1933 = vpop.permute.xlu0 %1932
    %1934 = vrot.lane.b32.xlu0 %v1858, 64
    %v1935 = vpop.permute.xlu0 %1934
    %1936 = vrot.lane.b32.xlu0 %v1859, 64
    %v1937 = vpop.permute.xlu0 %1936
    %1938 = vrot.lane.b32.xlu0 %v1860, 64
    %v1939 = vpop.permute.xlu0 %1938
    %1940 = vrot.lane.b32.xlu0 %v1861, 64
    %v1941 = vpop.permute.xlu0 %1940
    %1942 = vrot.lane.b32.xlu0 %v1862, 64
    %v1943 = vpop.permute.xlu0 %1942
    %1944 = vrot.lane.b32.xlu0 %v1863, 64
    %v1945 = vpop.permute.xlu0 %1944
    %1946 = vrot.lane.b32.xlu0 %v1864, 64
    %v1947 = vpop.permute.xlu0 %1946
    %1948 = vrot.lane.b32.xlu0 %v1865, 64
    %v1949 = vpop.permute.xlu0 %1948
    %1950 = vrot.lane.b32.xlu0 %v1866, 64
    %v1951 = vpop.permute.xlu0 %1950
    %1952 = vrot.lane.b32.xlu0 %v1867, 64
    %v1953 = vpop.permute.xlu0 %1952
    %1954 = vrot.lane.b32.xlu0 %v1868, 64
    %v1955 = vpop.permute.xlu0 %1954
    %1956 = vrot.lane.b32.xlu0 %v1869, 64
    %v1957 = vpop.permute.xlu0 %1956
    %1958 = vrot.lane.b32.xlu0 %v1870, 64
    %v1959 = vpop.permute.xlu0 %1958
    %1960 = vrot.lane.b32.xlu0 %v1871, 64
    %v1961 = vpop.permute.xlu0 %1960
    %1962 = vrot.lane.b32.xlu0 %v1872, 64
    %v1963 = vpop.permute.xlu0 %1962
    %1964 = vrot.lane.b32.xlu0 %v1873, 64
    %v1965 = vpop.permute.xlu0 %1964
    %1966 = vrot.lane.b32.xlu0 %v1874, 64
    %v1967 = vpop.permute.xlu0 %1966
    %1968 = vrot.lane.b32.xlu0 %v1875, 64
    %v1969 = vpop.permute.xlu0 %1968
    %1970 = vrot.lane.b32.xlu0 %v1876, 64
    %v1971 = vpop.permute.xlu0 %1970
    %1972 = vrot.lane.b32.xlu0 %v1877, 64
    %v1973 = vpop.permute.xlu0 %1972
    %v1974 = vsub.f32 %v1830, %v1316
    %v1975 = vsub.f32 %v1831, %v1317
    %v1976 = vsub.f32 %v1832, %v1318
    %v1977 = vsub.f32 %v1833, %v1319
    %v1978 = vsub.f32 %v1834, %v1320
    %v1979 = vsub.f32 %v1835, %v1321
    %v1980 = vsub.f32 %v1836, %v1322
    %v1981 = vsub.f32 %v1837, %v1323
    %v1982 = vsub.f32 %v1838, %v1324
    %v1983 = vsub.f32 %v1839, %v1325
    %v1984 = vsub.f32 %v1840, %v1326
    %v1985 = vsub.f32 %v1841, %v1327
    %v1986 = vsub.f32 %v1842, %v1328
    %v1987 = vsub.f32 %v1843, %v1329
    %v1988 = vsub.f32 %v1844, %v1330
    %v1989 = vsub.f32 %v1845, %v1331
    %v1990 = vsub.f32 %v1846, %v1332
    %v1991 = vsub.f32 %v1847, %v1333
    %v1992 = vsub.f32 %v1848, %v1334
    %v1993 = vsub.f32 %v1849, %v1335
    %v1994 = vsub.f32 %v1850, %v1336
    %v1995 = vsub.f32 %v1851, %v1337
    %v1996 = vsub.f32 %v1852, %v1338
    %v1997 = vsub.f32 %v1853, %v1339
    %v1998 = vsub.f32 %v1854, %v1340
    %v1999 = vsub.f32 %v1855, %v1341
    %v2000 = vsub.f32 %v1856, %v1342
    %v2001 = vsub.f32 %v1857, %v1343
    %v2002 = vsub.f32 %v1858, %v1344
    %v2003 = vsub.f32 %v1859, %v1345
    %v2004 = vsub.f32 %v1860, %v1346
    %v2005 = vsub.f32 %v1861, %v1347
    %v2006 = vsub.f32 %v1862, %v1348
    %v2007 = vsub.f32 %v1863, %v1349
    %v2008 = vsub.f32 %v1864, %v1350
    %v2009 = vsub.f32 %v1865, %v1351
    %v2010 = vsub.f32 %v1866, %v1352
    %v2011 = vsub.f32 %v1867, %v1353
    %v2012 = vsub.f32 %v1868, %v1354
    %v2013 = vsub.f32 %v1869, %v1355
    %v2014 = vsub.f32 %v1870, %v1356
    %v2015 = vsub.f32 %v1871, %v1357
    %v2016 = vsub.f32 %v1872, %v1358
    %v2017 = vsub.f32 %v1873, %v1359
    %v2018 = vsub.f32 %v1874, %v1360
    %v2019 = vsub.f32 %v1875, %v1361
    %v2020 = vsub.f32 %v1876, %v1362
    %v2021 = vsub.f32 %v1877, %v1363
    %v2022 = vmul.f32 %v1879, %v1974
    %v2023 = vmul.f32 %v1881, %v1975
    %v2024 = vmul.f32 %v1883, %v1976
    %v2025 = vmul.f32 %v1885, %v1977
    %v2026 = vmul.f32 %v1887, %v1978
    %v2027 = vmul.f32 %v1889, %v1979
    %v2028 = vmul.f32 %v1891, %v1980
    %v2029 = vmul.f32 %v1893, %v1981
    %v2030 = vmul.f32 %v1895, %v1982
    %v2031 = vmul.f32 %v1897, %v1983
    %v2032 = vmul.f32 %v1899, %v1984
    %v2033 = vmul.f32 %v1901, %v1985
    %v2034 = vmul.f32 %v1903, %v1986
    %v2035 = vmul.f32 %v1905, %v1987
    %v2036 = vmul.f32 %v1907, %v1988
    %v2037 = vmul.f32 %v1909, %v1989
    %v2038 = vmul.f32 %v1911, %v1990
    %v2039 = vmul.f32 %v1913, %v1991
    %v2040 = vmul.f32 %v1915, %v1992
    %v2041 = vmul.f32 %v1917, %v1993
    %v2042 = vmul.f32 %v1919, %v1994
    %v2043 = vmul.f32 %v1921, %v1995
    %v2044 = vmul.f32 %v1923, %v1996
    %v2045 = vmul.f32 %v1925, %v1997
    %v2046 = vmul.f32 %v1927, %v1998
    %v2047 = vmul.f32 %v1929, %v1999
    %v2048 = vmul.f32 %v1931, %v2000
    %v2049 = vmul.f32 %v1933, %v2001
    %v2050 = vmul.f32 %v1935, %v2002
    %v2051 = vmul.f32 %v1937, %v2003
    %v2052 = vmul.f32 %v1939, %v2004
    %v2053 = vmul.f32 %v1941, %v2005
    %v2054 = vmul.f32 %v1943, %v2006
    %v2055 = vmul.f32 %v1945, %v2007
    %v2056 = vmul.f32 %v1947, %v2008
    %v2057 = vmul.f32 %v1949, %v2009
    %v2058 = vmul.f32 %v1951, %v2010
    %v2059 = vmul.f32 %v1953, %v2011
    %v2060 = vmul.f32 %v1955, %v2012
    %v2061 = vmul.f32 %v1957, %v2013
    %v2062 = vmul.f32 %v1959, %v2014
    %v2063 = vmul.f32 %v1961, %v2015
    %v2064 = vmul.f32 %v1963, %v2016
    %v2065 = vmul.f32 %v1965, %v2017
    %v2066 = vmul.f32 %v1967, %v2018
    %v2067 = vmul.f32 %v1969, %v2019
    %v2068 = vmul.f32 %v1971, %v2020
    %v2069 = vmul.f32 %v1973, %v2021
    %v2070 = vadd.f32 %v1316, %v2022
    %v2071 = vadd.f32 %v1317, %v2023
    %v2072 = vadd.f32 %v1318, %v2024
    %v2073 = vadd.f32 %v1319, %v2025
    %v2074 = vadd.f32 %v1320, %v2026
    %v2075 = vadd.f32 %v1321, %v2027
    %v2076 = vadd.f32 %v1322, %v2028
    %v2077 = vadd.f32 %v1323, %v2029
    %v2078 = vadd.f32 %v1324, %v2030
    %v2079 = vadd.f32 %v1325, %v2031
    %v2080 = vadd.f32 %v1326, %v2032
    %v2081 = vadd.f32 %v1327, %v2033
    %v2082 = vadd.f32 %v1328, %v2034
    %v2083 = vadd.f32 %v1329, %v2035
    %v2084 = vadd.f32 %v1330, %v2036
    %v2085 = vadd.f32 %v1331, %v2037
    %v2086 = vadd.f32 %v1332, %v2038
    %v2087 = vadd.f32 %v1333, %v2039
    %v2088 = vadd.f32 %v1334, %v2040
    %v2089 = vadd.f32 %v1335, %v2041
    %v2090 = vadd.f32 %v1336, %v2042
    %v2091 = vadd.f32 %v1337, %v2043
    %v2092 = vadd.f32 %v1338, %v2044
    %v2093 = vadd.f32 %v1339, %v2045
    %v2094 = vadd.f32 %v1340, %v2046
    %v2095 = vadd.f32 %v1341, %v2047
    %v2096 = vadd.f32 %v1342, %v2048
    %v2097 = vadd.f32 %v1343, %v2049
    %v2098 = vadd.f32 %v1344, %v2050
    %v2099 = vadd.f32 %v1345, %v2051
    %v2100 = vadd.f32 %v1346, %v2052
    %v2101 = vadd.f32 %v1347, %v2053
    %v2102 = vadd.f32 %v1348, %v2054
    %v2103 = vadd.f32 %v1349, %v2055
    %v2104 = vadd.f32 %v1350, %v2056
    %v2105 = vadd.f32 %v1351, %v2057
    %v2106 = vadd.f32 %v1352, %v2058
    %v2107 = vadd.f32 %v1353, %v2059
    %v2108 = vadd.f32 %v1354, %v2060
    %v2109 = vadd.f32 %v1355, %v2061
    %v2110 = vadd.f32 %v1356, %v2062
    %v2111 = vadd.f32 %v1357, %v2063
    %v2112 = vadd.f32 %v1358, %v2064
    %v2113 = vadd.f32 %v1359, %v2065
    %v2114 = vadd.f32 %v1360, %v2066
    %v2115 = vadd.f32 %v1361, %v2067
    %v2116 = vadd.f32 %v1362, %v2068
    %v2117 = vadd.f32 %v1363, %v2069
    %v2118 = vpack.c.bf16 %v2071, %v2070
    %v2119 = vpack.c.bf16 %v2073, %v2072
    %v2120 = vpack.c.bf16 %v2075, %v2074
    %v2121 = vpack.c.bf16 %v2077, %v2076
    %v2122 = vpack.c.bf16 %v2079, %v2078
    %v2123 = vpack.c.bf16 %v2081, %v2080
    %v2124 = vpack.c.bf16 %v2083, %v2082
    %v2125 = vpack.c.bf16 %v2085, %v2084
    %v2126 = vpack.c.bf16 %v2087, %v2086
    %v2127 = vpack.c.bf16 %v2089, %v2088
    %v2128 = vpack.c.bf16 %v2091, %v2090
    %v2129 = vpack.c.bf16 %v2093, %v2092
    %v2130 = vpack.c.bf16 %v2095, %v2094
    %v2131 = vpack.c.bf16 %v2097, %v2096
    %v2132 = vpack.c.bf16 %v2099, %v2098
    %v2133 = vpack.c.bf16 %v2101, %v2100
    %v2134 = vpack.c.bf16 %v2103, %v2102
    %v2135 = vpack.c.bf16 %v2105, %v2104
    %v2136 = vpack.c.bf16 %v2107, %v2106
    %v2137 = vpack.c.bf16 %v2109, %v2108
    %v2138 = vpack.c.bf16 %v2111, %v2110
    %v2139 = vpack.c.bf16 %v2113, %v2112
    %v2140 = vpack.c.bf16 %v2115, %v2114
    %v2141 = vpack.c.bf16 %v2117, %v2116
    %s2142 = scalar_lea.vmem [#allocation2], 128
    %v2143 = vld [vmem:[%s2142] sm:$0xf]
    %v2144 = vld [vmem:[%s2142 + $0x4] sm:$0xf]
    %v2145 = vld [vmem:[%s2142 + $0x8] sm:$0xf]
    %v2146 = vld [vmem:[%s2142 + $0xc] sm:$0xf]
    %v2147 = vld [vmem:[%s2142 + $0x10] sm:$0xf]
    %v2148 = vld [vmem:[%s2142 + $0x14] sm:$0xf]
    %v2149 = vld [vmem:[%s2142 + $0x18] sm:$0xf]
    %v2150 = vld [vmem:[%s2142 + $0x1c] sm:$0xf]
    %v2151 = vld [vmem:[%s2142 + $0x20] sm:$0xf]
    %v2152 = vld [vmem:[%s2142 + $0x24] sm:$0xf]
    %v2153 = vld [vmem:[%s2142 + $0x28] sm:$0xf]
    %v2154 = vld [vmem:[%s2142 + $0x2c] sm:$0xf]
    %v2155 = vld [vmem:[%s2142 + $0x30] sm:$0xf]
    %v2156 = vld [vmem:[%s2142 + $0x34] sm:$0xf]
    %v2157 = vld [vmem:[%s2142 + $0x38] sm:$0xf]
    %v2158 = vld [vmem:[%s2142 + $0x3c] sm:$0xf]
    %s2159 = scalar_lea.vmem %s4, 2
    %v2160 = vld [vmem:[%s2159] sm:$0x1]
    %v2162 = vlaneseq
    %v2163 = vshrl.u32 %v2162, 7
    %v2164 = vsub.s32 0, %v2163
    %v2165 = vrot.slane %v2160, %v2164
    %v2183 = vunpack.c.l.b16 %v2143
    %v2184 = vunpack.c.l.b16 %v2144
    %v2185 = vunpack.c.l.b16 %v2145
    %v2186 = vunpack.c.l.b16 %v2146
    %v2187 = vunpack.c.l.b16 %v2147
    %v2188 = vunpack.c.l.b16 %v2148
    %v2189 = vunpack.c.l.b16 %v2149
    %v2190 = vunpack.c.l.b16 %v2150
    %v2191 = vunpack.c.l.b16 %v2151
    %v2192 = vunpack.c.l.b16 %v2152
    %v2193 = vunpack.c.l.b16 %v2153
    %v2194 = vunpack.c.l.b16 %v2154
    %v2195 = vunpack.c.l.b16 %v2155
    %v2196 = vunpack.c.l.b16 %v2156
    %v2197 = vunpack.c.l.b16 %v2157
    %v2198 = vunpack.c.l.b16 %v2158
    %v2199 = vpack.c.b16 %v2184, %v2183
    %v2200 = vpack.c.b16 %v2186, %v2185
    %v2201 = vpack.c.b16 %v2188, %v2187
    %v2202 = vpack.c.b16 %v2190, %v2189
    %v2203 = vpack.c.b16 %v2192, %v2191
    %v2204 = vpack.c.b16 %v2194, %v2193
    %v2205 = vpack.c.b16 %v2196, %v2195
    %v2206 = vpack.c.b16 %v2198, %v2197
    %2215 = vmatprep.subr.bf16.mxu0 0
    %2216 = vmatpush1.bf16.msra.mxu0 %v2199
    %2217 = vmatprep.subr.bf16.mxu0 0
    %2218 = vmatpush1.bf16.msra.mxu0 %v2200
    %2219 = vmatprep.subr.bf16.mxu0 0
    %2220 = vmatpush1.bf16.msra.mxu0 %v2201
    %2221 = vmatprep.subr.bf16.mxu0 0
    %2222 = vmatpush1.bf16.msra.mxu0 %v2202
    %2223 = vmatprep.subr.bf16.mxu0 0
    %2224 = vmatpush1.bf16.msra.mxu0 %v2203
    %2225 = vmatprep.subr.bf16.mxu0 0
    %2226 = vmatpush1.bf16.msra.mxu0 %v2204
    %2227 = vmatprep.subr.bf16.mxu0 0
    %2228 = vmatpush1.bf16.msra.mxu0 %v2205
    %2229 = vmatprep.subr.bf16.mxu0 0
    %2230 = vmatpush1.bf16.msra.mxu0 %v2206
    %2231 = vmatprep.subr.bf16.mxu0 0
    %2232 = vmatpush1.bf16.msra.mxu0 0
    %2233 = vmatprep.subr.bf16.mxu0 0
    %2234 = vmatpush1.bf16.msra.mxu0 0
    %2235 = vmatprep.subr.bf16.mxu0 0
    %2236 = vmatpush1.bf16.msra.mxu0 0
    %2237 = vmatprep.subr.bf16.mxu0 0
    %2238 = vmatpush1.bf16.msra.mxu0 0
    %2239 = vmatprep.subr.bf16.mxu0 0
    %2240 = vmatpush1.bf16.msra.mxu0 0
    %2241 = vmatprep.subr.bf16.mxu0 0
    %2242 = vmatpush1.bf16.msra.mxu0 0
    %2243 = vmatprep.subr.bf16.mxu0 0
    %2244 = vmatpush1.bf16.msra.mxu0 0
    %2245 = vmatprep.subr.bf16.mxu0 0
    %2246 = vmatpush1.bf16.msra.mxu0 0
    %2247 = vmatprep.mubr.bf16.mxu0 0
    %2248 = vmatmul.mubr.bf16.gmra.mrb[0].mxu0 %v2118
    %v2249 = vpop.f32.mrb[0].mxu0
    %v2250 = vadd.f32 %v2165, %v2249
    %v2251 = vpop.f32.mrb[0].mxu0
    %v2252 = vpop.f32.mrb[0].mxu0
    %v2253 = vadd.f32 %v2165, %v2252
    %v2254 = vpop.f32.mrb[0].mxu0
    %2255 = vmatprep.mubr.bf16.mxu0 0
    %2256 = vmatmul.mubr.bf16.gmra.mrb[0].mxu0 %v2119
    %v2257 = vpop.f32.mrb[0].mxu0
    %v2258 = vadd.f32 %v2165, %v2257
    %v2259 = vpop.f32.mrb[0].mxu0
    %v2260 = vpop.f32.mrb[0].mxu0
    %v2261 = vadd.f32 %v2165, %v2260
    %v2262 = vpop.f32.mrb[0].mxu0
    %2263 = vmatprep.mubr.bf16.mxu0 0
    %2264 = vmatmul.mubr.bf16.gmra.mrb[0].mxu0 %v2120
    %v2265 = vpop.f32.mrb[0].mxu0
    %v2266 = vadd.f32 %v2165, %v2265
    %v2267 = vpop.f32.mrb[0].mxu0
    %v2268 = vpop.f32.mrb[0].mxu0
    %v2269 = vadd.f32 %v2165, %v2268
    %v2270 = vpop.f32.mrb[0].mxu0
    %2271 = vmatprep.mubr.bf16.mxu0 0
    %2272 = vmatmul.mubr.bf16.gmra.mrb[0].mxu0 %v2121
    %v2273 = vpop.f32.mrb[0].mxu0
    %v2274 = vadd.f32 %v2165, %v2273
    %v2275 = vpop.f32.mrb[0].mxu0
    %v2276 = vpop.f32.mrb[0].mxu0
    %v2277 = vadd.f32 %v2165, %v2276
    %v2278 = vpop.f32.mrb[0].mxu0
    %2279 = vmatprep.mubr.bf16.mxu0 0
    %2280 = vmatmul.mubr.bf16.gmra.mrb[0].mxu0 %v2122
    %v2281 = vpop.f32.mrb[0].mxu0
    %v2282 = vadd.f32 %v2165, %v2281
    %v2283 = vpop.f32.mrb[0].mxu0
    %v2284 = vpop.f32.mrb[0].mxu0
    %v2285 = vadd.f32 %v2165, %v2284
    %v2286 = vpop.f32.mrb[0].mxu0
    %2287 = vmatprep.mubr.bf16.mxu0 0
    %2288 = vmatmul.mubr.bf16.gmra.mrb[0].mxu0 %v2123
    %v2289 = vpop.f32.mrb[0].mxu0
    %v2290 = vadd.f32 %v2165, %v2289
    %v2291 = vpop.f32.mrb[0].mxu0
    %v2292 = vpop.f32.mrb[0].mxu0
    %v2293 = vadd.f32 %v2165, %v2292
    %v2294 = vpop.f32.mrb[0].mxu0
    %2295 = vmatprep.mubr.bf16.mxu0 0
    %2296 = vmatmul.mubr.bf16.gmra.mrb[0].mxu0 %v2124
    %v2297 = vpop.f32.mrb[0].mxu0
    %v2298 = vadd.f32 %v2165, %v2297
    %v2299 = vpop.f32.mrb[0].mxu0
    %v2300 = vpop.f32.mrb[0].mxu0
    %v2301 = vadd.f32 %v2165, %v2300
    %v2302 = vpop.f32.mrb[0].mxu0
    %2303 = vmatprep.mubr.bf16.mxu0 0
    %2304 = vmatmul.mubr.bf16.gmra.mrb[0].mxu0 %v2125
    %v2305 = vpop.f32.mrb[0].mxu0
    %v2306 = vadd.f32 %v2165, %v2305
    %v2307 = vpop.f32.mrb[0].mxu0
    %v2308 = vpop.f32.mrb[0].mxu0
    %v2309 = vadd.f32 %v2165, %v2308
    %v2310 = vpop.f32.mrb[0].mxu0
    %2311 = vmatprep.mubr.bf16.mxu0 0
    %2312 = vmatmul.mubr.bf16.gmra.mrb[0].mxu0 %v2126
    %v2313 = vpop.f32.mrb[0].mxu0
    %v2314 = vadd.f32 %v2165, %v2313
    %v2315 = vpop.f32.mrb[0].mxu0
    %v2316 = vpop.f32.mrb[0].mxu0
    %v2317 = vadd.f32 %v2165, %v2316
    %v2318 = vpop.f32.mrb[0].mxu0
    %2319 = vmatprep.mubr.bf16.mxu0 0
    %2320 = vmatmul.mubr.bf16.gmra.mrb[0].mxu0 %v2127
    %v2321 = vpop.f32.mrb[0].mxu0
    %v2322 = vadd.f32 %v2165, %v2321
    %v2323 = vpop.f32.mrb[0].mxu0
    %v2324 = vpop.f32.mrb[0].mxu0
    %v2325 = vadd.f32 %v2165, %v2324
    %v2326 = vpop.f32.mrb[0].mxu0
    %2327 = vmatprep.mubr.bf16.mxu0 0
    %2328 = vmatmul.mubr.bf16.gmra.mrb[0].mxu0 %v2128
    %v2329 = vpop.f32.mrb[0].mxu0
    %v2330 = vadd.f32 %v2165, %v2329
    %v2331 = vpop.f32.mrb[0].mxu0
    %v2332 = vpop.f32.mrb[0].mxu0
    %v2333 = vadd.f32 %v2165, %v2332
    %v2334 = vpop.f32.mrb[0].mxu0
    %2335 = vmatprep.mubr.bf16.mxu0 0
    %2336 = vmatmul.mubr.bf16.gmra.mrb[0].mxu0 %v2129
    %v2337 = vpop.f32.mrb[0].mxu0
    %v2338 = vadd.f32 %v2165, %v2337
    %v2339 = vpop.f32.mrb[0].mxu0
    %v2340 = vpop.f32.mrb[0].mxu0
    %v2341 = vadd.f32 %v2165, %v2340
    %v2342 = vpop.f32.mrb[0].mxu0
    %2343 = vmatprep.mubr.bf16.mxu0 0
    %2344 = vmatmul.mubr.bf16.gmra.mrb[0].mxu0 %v2130
    %v2345 = vpop.f32.mrb[0].mxu0
    %v2346 = vadd.f32 %v2165, %v2345
    %v2347 = vpop.f32.mrb[0].mxu0
    %v2348 = vpop.f32.mrb[0].mxu0
    %v2349 = vadd.f32 %v2165, %v2348
    %v2350 = vpop.f32.mrb[0].mxu0
    %2351 = vmatprep.mubr.bf16.mxu0 0
    %2352 = vmatmul.mubr.bf16.gmra.mrb[0].mxu0 %v2131
    %v2353 = vpop.f32.mrb[0].mxu0
    %v2354 = vadd.f32 %v2165, %v2353
    %v2355 = vpop.f32.mrb[0].mxu0
    %v2356 = vpop.f32.mrb[0].mxu0
    %v2357 = vadd.f32 %v2165, %v2356
    %v2358 = vpop.f32.mrb[0].mxu0
    %2359 = vmatprep.mubr.bf16.mxu0 0
    %2360 = vmatmul.mubr.bf16.gmra.mrb[0].mxu0 %v2132
    %v2361 = vpop.f32.mrb[0].mxu0
    %v2362 = vadd.f32 %v2165, %v2361
    %v2363 = vpop.f32.mrb[0].mxu0
    %v2364 = vpop.f32.mrb[0].mxu0
    %v2365 = vadd.f32 %v2165, %v2364
    %v2366 = vpop.f32.mrb[0].mxu0
    %2367 = vmatprep.mubr.bf16.mxu0 0
    %2368 = vmatmul.mubr.bf16.gmra.mrb[0].mxu0 %v2133
    %v2369 = vpop.f32.mrb[0].mxu0
    %v2370 = vadd.f32 %v2165, %v2369
    %v2371 = vpop.f32.mrb[0].mxu0
    %v2372 = vpop.f32.mrb[0].mxu0
    %v2373 = vadd.f32 %v2165, %v2372
    %v2374 = vpop.f32.mrb[0].mxu0
    %2375 = vmatprep.mubr.bf16.mxu0 0
    %2376 = vmatmul.mubr.bf16.gmra.mrb[0].mxu0 %v2134
    %v2377 = vpop.f32.mrb[0].mxu0
    %v2378 = vadd.f32 %v2165, %v2377
    %v2379 = vpop.f32.mrb[0].mxu0
    %v2380 = vpop.f32.mrb[0].mxu0
    %v2381 = vadd.f32 %v2165, %v2380
    %v2382 = vpop.f32.mrb[0].mxu0
    %2383 = vmatprep.mubr.bf16.mxu0 0
    %2384 = vmatmul.mubr.bf16.gmra.mrb[0].mxu0 %v2135
    %v2385 = vpop.f32.mrb[0].mxu0
    %v2386 = vadd.f32 %v2165, %v2385
    %v2387 = vpop.f32.mrb[0].mxu0
    %v2388 = vpop.f32.mrb[0].mxu0
    %v2389 = vadd.f32 %v2165, %v2388
    %v2390 = vpop.f32.mrb[0].mxu0
    %2391 = vmatprep.mubr.bf16.mxu0 0
    %2392 = vmatmul.mubr.bf16.gmra.mrb[0].mxu0 %v2136
    %v2393 = vpop.f32.mrb[0].mxu0
    %v2394 = vadd.f32 %v2165, %v2393
    %v2395 = vpop.f32.mrb[0].mxu0
    %v2396 = vpop.f32.mrb[0].mxu0
    %v2397 = vadd.f32 %v2165, %v2396
    %v2398 = vpop.f32.mrb[0].mxu0
    %2399 = vmatprep.mubr.bf16.mxu0 0
    %2400 = vmatmul.mubr.bf16.gmra.mrb[0].mxu0 %v2137
    %v2401 = vpop.f32.mrb[0].mxu0
    %v2402 = vadd.f32 %v2165, %v2401
    %v2403 = vpop.f32.mrb[0].mxu0
    %v2404 = vpop.f32.mrb[0].mxu0
    %v2405 = vadd.f32 %v2165, %v2404
    %v2406 = vpop.f32.mrb[0].mxu0
    %2407 = vmatprep.mubr.bf16.mxu0 0
    %2408 = vmatmul.mubr.bf16.gmra.mrb[0].mxu0 %v2138
    %v2409 = vpop.f32.mrb[0].mxu0
    %v2410 = vadd.f32 %v2165, %v2409
    %v2411 = vpop.f32.mrb[0].mxu0
    %v2412 = vpop.f32.mrb[0].mxu0
    %v2413 = vadd.f32 %v2165, %v2412
    %v2414 = vpop.f32.mrb[0].mxu0
    %2415 = vmatprep.mubr.bf16.mxu0 0
    %2416 = vmatmul.mubr.bf16.gmra.mrb[0].mxu0 %v2139
    %v2417 = vpop.f32.mrb[0].mxu0
    %v2418 = vadd.f32 %v2165, %v2417
    %v2419 = vpop.f32.mrb[0].mxu0
    %v2420 = vpop.f32.mrb[0].mxu0
    %v2421 = vadd.f32 %v2165, %v2420
    %v2422 = vpop.f32.mrb[0].mxu0
    %2423 = vmatprep.mubr.bf16.mxu0 0
    %2424 = vmatmul.mubr.bf16.gmra.mrb[0].mxu0 %v2140
    %v2425 = vpop.f32.mrb[0].mxu0
    %v2426 = vadd.f32 %v2165, %v2425
    %v2427 = vpop.f32.mrb[0].mxu0
    %v2428 = vpop.f32.mrb[0].mxu0
    %v2429 = vadd.f32 %v2165, %v2428
    %v2430 = vpop.f32.mrb[0].mxu0
    %2431 = vmatprep.mubr.bf16.mxu0 0
    %2432 = vmatmul.mubr.bf16.gmra.mrb[0].mxu0 %v2141
    %v2433 = vpop.f32.mrb[0].mxu0
    %v2434 = vadd.f32 %v2165, %v2433
    %v2435 = vpop.f32.mrb[0].mxu0
    %v2436 = vpop.f32.mrb[0].mxu0
    %v2437 = vadd.f32 %v2165, %v2436
    %v2438 = vpop.f32.mrb[0].mxu0
    %2439 = vdwg.mxu0
    %v2440 = vmul.f32 %v2250, 0.5
    %v2441 = vmul.f32 %v2253, 0.5
    %v2442 = vmul.f32 %v2258, 0.5
    %v2443 = vmul.f32 %v2261, 0.5
    %v2444 = vmul.f32 %v2266, 0.5
    %v2445 = vmul.f32 %v2269, 0.5
    %v2446 = vmul.f32 %v2274, 0.5
    %v2447 = vmul.f32 %v2277, 0.5
    %v2448 = vmul.f32 %v2282, 0.5
    %v2449 = vmul.f32 %v2285, 0.5
    %v2450 = vmul.f32 %v2290, 0.5
    %v2451 = vmul.f32 %v2293, 0.5
    %v2452 = vmul.f32 %v2298, 0.5
    %v2453 = vmul.f32 %v2301, 0.5
    %v2454 = vmul.f32 %v2306, 0.5
    %v2455 = vmul.f32 %v2309, 0.5
    %v2456 = vmul.f32 %v2314, 0.5
    %v2457 = vmul.f32 %v2317, 0.5
    %v2458 = vmul.f32 %v2322, 0.5
    %v2459 = vmul.f32 %v2325, 0.5
    %v2460 = vmul.f32 %v2330, 0.5
    %v2461 = vmul.f32 %v2333, 0.5
    %v2462 = vmul.f32 %v2338, 0.5
    %v2463 = vmul.f32 %v2341, 0.5
    %v2464 = vmul.f32 %v2346, 0.5
    %v2465 = vmul.f32 %v2349, 0.5
    %v2466 = vmul.f32 %v2354, 0.5
    %v2467 = vmul.f32 %v2357, 0.5
    %v2468 = vmul.f32 %v2362, 0.5
    %v2469 = vmul.f32 %v2365, 0.5
    %v2470 = vmul.f32 %v2370, 0.5
    %v2471 = vmul.f32 %v2373, 0.5
    %v2472 = vmul.f32 %v2378, 0.5
    %v2473 = vmul.f32 %v2381, 0.5
    %v2474 = vmul.f32 %v2386, 0.5
    %v2475 = vmul.f32 %v2389, 0.5
    %v2476 = vmul.f32 %v2394, 0.5
    %v2477 = vmul.f32 %v2397, 0.5
    %v2478 = vmul.f32 %v2402, 0.5
    %v2479 = vmul.f32 %v2405, 0.5
    %v2480 = vmul.f32 %v2410, 0.5
    %v2481 = vmul.f32 %v2413, 0.5
    %v2482 = vmul.f32 %v2418, 0.5
    %v2483 = vmul.f32 %v2421, 0.5
    %v2484 = vmul.f32 %v2426, 0.5
    %v2485 = vmul.f32 %v2429, 0.5
    %v2486 = vmul.f32 %v2434, 0.5
    %v2487 = vmul.f32 %v2437, 0.5
    %v2488 = vtanh.pop %v2440
    %v2489 = vtanh.pop %v2441
    %v2490 = vtanh.pop %v2442
    %v2491 = vtanh.pop %v2443
    %v2492 = vtanh.pop %v2444
    %v2493 = vtanh.pop %v2445
    %v2494 = vtanh.pop %v2446
    %v2495 = vtanh.pop %v2447
    %v2496 = vtanh.pop %v2448
    %v2497 = vtanh.pop %v2449
    %v2498 = vtanh.pop %v2450
    %v2499 = vtanh.pop %v2451
    %v2500 = vtanh.pop %v2452
    %v2501 = vtanh.pop %v2453
    %v2502 = vtanh.pop %v2454
    %v2503 = vtanh.pop %v2455
    %v2504 = vtanh.pop %v2456
    %v2505 = vtanh.pop %v2457
    %v2506 = vtanh.pop %v2458
    %v2507 = vtanh.pop %v2459
    %v2508 = vtanh.pop %v2460
    %v2509 = vtanh.pop %v2461
    %v2510 = vtanh.pop %v2462
    %v2511 = vtanh.pop %v2463
    %v2512 = vtanh.pop %v2464
    %v2513 = vtanh.pop %v2465
    %v2514 = vtanh.pop %v2466
    %v2515 = vtanh.pop %v2467
    %v2516 = vtanh.pop %v2468
    %v2517 = vtanh.pop %v2469
    %v2518 = vtanh.pop %v2470
    %v2519 = vtanh.pop %v2471
    %v2520 = vtanh.pop %v2472
    %v2521 = vtanh.pop %v2473
    %v2522 = vtanh.pop %v2474
    %v2523 = vtanh.pop %v2475
    %v2524 = vtanh.pop %v2476
    %v2525 = vtanh.pop %v2477
    %v2526 = vtanh.pop %v2478
    %v2527 = vtanh.pop %v2479
    %v2528 = vtanh.pop %v2480
    %v2529 = vtanh.pop %v2481
    %v2530 = vtanh.pop %v2482
    %v2531 = vtanh.pop %v2483
    %v2532 = vtanh.pop %v2484
    %v2533 = vtanh.pop %v2485
    %v2534 = vtanh.pop %v2486
    %v2535 = vtanh.pop %v2487
    %v2536 = vmul.f32 %v2488, 0.5
    %v2537 = vmul.f32 %v2489, 0.5
    %v2538 = vmul.f32 %v2490, 0.5
    %v2539 = vmul.f32 %v2491, 0.5
    %v2540 = vmul.f32 %v2492, 0.5
    %v2541 = vmul.f32 %v2493, 0.5
    %v2542 = vmul.f32 %v2494, 0.5
    %v2543 = vmul.f32 %v2495, 0.5
    %v2544 = vmul.f32 %v2496, 0.5
    %v2545 = vmul.f32 %v2497, 0.5
    %v2546 = vmul.f32 %v2498, 0.5
    %v2547 = vmul.f32 %v2499, 0.5
    %v2548 = vmul.f32 %v2500, 0.5
    %v2549 = vmul.f32 %v2501, 0.5
    %v2550 = vmul.f32 %v2502, 0.5
    %v2551 = vmul.f32 %v2503, 0.5
    %v2552 = vmul.f32 %v2504, 0.5
    %v2553 = vmul.f32 %v2505, 0.5
    %v2554 = vmul.f32 %v2506, 0.5
    %v2555 = vmul.f32 %v2507, 0.5
    %v2556 = vmul.f32 %v2508, 0.5
    %v2557 = vmul.f32 %v2509, 0.5
    %v2558 = vmul.f32 %v2510, 0.5
    %v2559 = vmul.f32 %v2511, 0.5
    %v2560 = vmul.f32 %v2512, 0.5
    %v2561 = vmul.f32 %v2513, 0.5
    %v2562 = vmul.f32 %v2514, 0.5
    %v2563 = vmul.f32 %v2515, 0.5
    %v2564 = vmul.f32 %v2516, 0.5
    %v2565 = vmul.f32 %v2517, 0.5
    %v2566 = vmul.f32 %v2518, 0.5
    %v2567 = vmul.f32 %v2519, 0.5
    %v2568 = vmul.f32 %v2520, 0.5
    %v2569 = vmul.f32 %v2521, 0.5
    %v2570 = vmul.f32 %v2522, 0.5
    %v2571 = vmul.f32 %v2523, 0.5
    %v2572 = vmul.f32 %v2524, 0.5
    %v2573 = vmul.f32 %v2525, 0.5
    %v2574 = vmul.f32 %v2526, 0.5
    %v2575 = vmul.f32 %v2527, 0.5
    %v2576 = vmul.f32 %v2528, 0.5
    %v2577 = vmul.f32 %v2529, 0.5
    %v2578 = vmul.f32 %v2530, 0.5
    %v2579 = vmul.f32 %v2531, 0.5
    %v2580 = vmul.f32 %v2532, 0.5
    %v2581 = vmul.f32 %v2533, 0.5
    %v2582 = vmul.f32 %v2534, 0.5
    %v2583 = vmul.f32 %v2535, 0.5
    %v2584 = vadd.f32 %v2536, 0.5
    %v2585 = vadd.f32 %v2537, 0.5
    %v2586 = vadd.f32 %v2538, 0.5
    %v2587 = vadd.f32 %v2539, 0.5
    %v2588 = vadd.f32 %v2540, 0.5
    %v2589 = vadd.f32 %v2541, 0.5
    %v2590 = vadd.f32 %v2542, 0.5
    %v2591 = vadd.f32 %v2543, 0.5
    %v2592 = vadd.f32 %v2544, 0.5
    %v2593 = vadd.f32 %v2545, 0.5
    %v2594 = vadd.f32 %v2546, 0.5
    %v2595 = vadd.f32 %v2547, 0.5
    %v2596 = vadd.f32 %v2548, 0.5
    %v2597 = vadd.f32 %v2549, 0.5
    %v2598 = vadd.f32 %v2550, 0.5
    %v2599 = vadd.f32 %v2551, 0.5
    %v2600 = vadd.f32 %v2552, 0.5
    %v2601 = vadd.f32 %v2553, 0.5
    %v2602 = vadd.f32 %v2554, 0.5
    %v2603 = vadd.f32 %v2555, 0.5
    %v2604 = vadd.f32 %v2556, 0.5
    %v2605 = vadd.f32 %v2557, 0.5
    %v2606 = vadd.f32 %v2558, 0.5
    %v2607 = vadd.f32 %v2559, 0.5
    %v2608 = vadd.f32 %v2560, 0.5
    %v2609 = vadd.f32 %v2561, 0.5
    %v2610 = vadd.f32 %v2562, 0.5
    %v2611 = vadd.f32 %v2563, 0.5
    %v2612 = vadd.f32 %v2564, 0.5
    %v2613 = vadd.f32 %v2565, 0.5
    %v2614 = vadd.f32 %v2566, 0.5
    %v2615 = vadd.f32 %v2567, 0.5
    %v2616 = vadd.f32 %v2568, 0.5
    %v2617 = vadd.f32 %v2569, 0.5
    %v2618 = vadd.f32 %v2570, 0.5
    %v2619 = vadd.f32 %v2571, 0.5
    %v2620 = vadd.f32 %v2572, 0.5
    %v2621 = vadd.f32 %v2573, 0.5
    %v2622 = vadd.f32 %v2574, 0.5
    %v2623 = vadd.f32 %v2575, 0.5
    %v2624 = vadd.f32 %v2576, 0.5
    %v2625 = vadd.f32 %v2577, 0.5
    %v2626 = vadd.f32 %v2578, 0.5
    %v2627 = vadd.f32 %v2579, 0.5
    %v2628 = vadd.f32 %v2580, 0.5
    %v2629 = vadd.f32 %v2581, 0.5
    %v2630 = vadd.f32 %v2582, 0.5
    %v2631 = vadd.f32 %v2583, 0.5
    %2632 = vrot.lane.b32.xlu0 %v2584, 64
    %v2633 = vpop.permute.xlu0 %2632
    %2634 = vrot.lane.b32.xlu0 %v2585, 64
    %v2635 = vpop.permute.xlu0 %2634
    %2636 = vrot.lane.b32.xlu0 %v2586, 64
    %v2637 = vpop.permute.xlu0 %2636
    %2638 = vrot.lane.b32.xlu0 %v2587, 64
    %v2639 = vpop.permute.xlu0 %2638
    %2640 = vrot.lane.b32.xlu0 %v2588, 64
    %v2641 = vpop.permute.xlu0 %2640
    %2642 = vrot.lane.b32.xlu0 %v2589, 64
    %v2643 = vpop.permute.xlu0 %2642
    %2644 = vrot.lane.b32.xlu0 %v2590, 64
    %v2645 = vpop.permute.xlu0 %2644
    %2646 = vrot.lane.b32.xlu0 %v2591, 64
    %v2647 = vpop.permute.xlu0 %2646
    %2648 = vrot.lane.b32.xlu0 %v2592, 64
    %v2649 = vpop.permute.xlu0 %2648
    %2650 = vrot.lane.b32.xlu0 %v2593, 64
    %v2651 = vpop.permute.xlu0 %2650
    %2652 = vrot.lane.b32.xlu0 %v2594, 64
    %v2653 = vpop.permute.xlu0 %2652
    %2654 = vrot.lane.b32.xlu0 %v2595, 64
    %v2655 = vpop.permute.xlu0 %2654
    %2656 = vrot.lane.b32.xlu0 %v2596, 64
    %v2657 = vpop.permute.xlu0 %2656
    %2658 = vrot.lane.b32.xlu0 %v2597, 64
    %v2659 = vpop.permute.xlu0 %2658
    %2660 = vrot.lane.b32.xlu0 %v2598, 64
    %v2661 = vpop.permute.xlu0 %2660
    %2662 = vrot.lane.b32.xlu0 %v2599, 64
    %v2663 = vpop.permute.xlu0 %2662
    %2664 = vrot.lane.b32.xlu0 %v2600, 64
    %v2665 = vpop.permute.xlu0 %2664
    %2666 = vrot.lane.b32.xlu0 %v2601, 64
    %v2667 = vpop.permute.xlu0 %2666
    %2668 = vrot.lane.b32.xlu0 %v2602, 64
    %v2669 = vpop.permute.xlu0 %2668
    %2670 = vrot.lane.b32.xlu0 %v2603, 64
    %v2671 = vpop.permute.xlu0 %2670
    %2672 = vrot.lane.b32.xlu0 %v2604, 64
    %v2673 = vpop.permute.xlu0 %2672
    %2674 = vrot.lane.b32.xlu0 %v2605, 64
    %v2675 = vpop.permute.xlu0 %2674
    %2676 = vrot.lane.b32.xlu0 %v2606, 64
    %v2677 = vpop.permute.xlu0 %2676
    %2678 = vrot.lane.b32.xlu0 %v2607, 64
    %v2679 = vpop.permute.xlu0 %2678
    %2680 = vrot.lane.b32.xlu0 %v2608, 64
    %v2681 = vpop.permute.xlu0 %2680
    %2682 = vrot.lane.b32.xlu0 %v2609, 64
    %v2683 = vpop.permute.xlu0 %2682
    %2684 = vrot.lane.b32.xlu0 %v2610, 64
    %v2685 = vpop.permute.xlu0 %2684
    %2686 = vrot.lane.b32.xlu0 %v2611, 64
    %v2687 = vpop.permute.xlu0 %2686
    %2688 = vrot.lane.b32.xlu0 %v2612, 64
    %v2689 = vpop.permute.xlu0 %2688
    %2690 = vrot.lane.b32.xlu0 %v2613, 64
    %v2691 = vpop.permute.xlu0 %2690
    %2692 = vrot.lane.b32.xlu0 %v2614, 64
    %v2693 = vpop.permute.xlu0 %2692
    %2694 = vrot.lane.b32.xlu0 %v2615, 64
    %v2695 = vpop.permute.xlu0 %2694
    %2696 = vrot.lane.b32.xlu0 %v2616, 64
    %v2697 = vpop.permute.xlu0 %2696
    %2698 = vrot.lane.b32.xlu0 %v2617, 64
    %v2699 = vpop.permute.xlu0 %2698
    %2700 = vrot.lane.b32.xlu0 %v2618, 64
    %v2701 = vpop.permute.xlu0 %2700
    %2702 = vrot.lane.b32.xlu0 %v2619, 64
    %v2703 = vpop.permute.xlu0 %2702
    %2704 = vrot.lane.b32.xlu0 %v2620, 64
    %v2705 = vpop.permute.xlu0 %2704
    %2706 = vrot.lane.b32.xlu0 %v2621, 64
    %v2707 = vpop.permute.xlu0 %2706
    %2708 = vrot.lane.b32.xlu0 %v2622, 64
    %v2709 = vpop.permute.xlu0 %2708
    %2710 = vrot.lane.b32.xlu0 %v2623, 64
    %v2711 = vpop.permute.xlu0 %2710
    %2712 = vrot.lane.b32.xlu0 %v2624, 64
    %v2713 = vpop.permute.xlu0 %2712
    %2714 = vrot.lane.b32.xlu0 %v2625, 64
    %v2715 = vpop.permute.xlu0 %2714
    %2716 = vrot.lane.b32.xlu0 %v2626, 64
    %v2717 = vpop.permute.xlu0 %2716
    %2718 = vrot.lane.b32.xlu0 %v2627, 64
    %v2719 = vpop.permute.xlu0 %2718
    %2720 = vrot.lane.b32.xlu0 %v2628, 64
    %v2721 = vpop.permute.xlu0 %2720
    %2722 = vrot.lane.b32.xlu0 %v2629, 64
    %v2723 = vpop.permute.xlu0 %2722
    %2724 = vrot.lane.b32.xlu0 %v2630, 64
    %v2725 = vpop.permute.xlu0 %2724
    %2726 = vrot.lane.b32.xlu0 %v2631, 64
    %v2727 = vpop.permute.xlu0 %2726
    %v2728 = vsub.f32 %v2584, %v2070
    %v2729 = vsub.f32 %v2585, %v2071
    %v2730 = vsub.f32 %v2586, %v2072
    %v2731 = vsub.f32 %v2587, %v2073
    %v2732 = vsub.f32 %v2588, %v2074
    %v2733 = vsub.f32 %v2589, %v2075
    %v2734 = vsub.f32 %v2590, %v2076
    %v2735 = vsub.f32 %v2591, %v2077
    %v2736 = vsub.f32 %v2592, %v2078
    %v2737 = vsub.f32 %v2593, %v2079
    %v2738 = vsub.f32 %v2594, %v2080
    %v2739 = vsub.f32 %v2595, %v2081
    %v2740 = vsub.f32 %v2596, %v2082
    %v2741 = vsub.f32 %v2597, %v2083
    %v2742 = vsub.f32 %v2598, %v2084
    %v2743 = vsub.f32 %v2599, %v2085
    %v2744 = vsub.f32 %v2600, %v2086
    %v2745 = vsub.f32 %v2601, %v2087
    %v2746 = vsub.f32 %v2602, %v2088
    %v2747 = vsub.f32 %v2603, %v2089
    %v2748 = vsub.f32 %v2604, %v2090
    %v2749 = vsub.f32 %v2605, %v2091
    %v2750 = vsub.f32 %v2606, %v2092
    %v2751 = vsub.f32 %v2607, %v2093
    %v2752 = vsub.f32 %v2608, %v2094
    %v2753 = vsub.f32 %v2609, %v2095
    %v2754 = vsub.f32 %v2610, %v2096
    %v2755 = vsub.f32 %v2611, %v2097
    %v2756 = vsub.f32 %v2612, %v2098
    %v2757 = vsub.f32 %v2613, %v2099
    %v2758 = vsub.f32 %v2614, %v2100
    %v2759 = vsub.f32 %v2615, %v2101
    %v2760 = vsub.f32 %v2616, %v2102
    %v2761 = vsub.f32 %v2617, %v2103
    %v2762 = vsub.f32 %v2618, %v2104
    %v2763 = vsub.f32 %v2619, %v2105
    %v2764 = vsub.f32 %v2620, %v2106
    %v2765 = vsub.f32 %v2621, %v2107
    %v2766 = vsub.f32 %v2622, %v2108
    %v2767 = vsub.f32 %v2623, %v2109
    %v2768 = vsub.f32 %v2624, %v2110
    %v2769 = vsub.f32 %v2625, %v2111
    %v2770 = vsub.f32 %v2626, %v2112
    %v2771 = vsub.f32 %v2627, %v2113
    %v2772 = vsub.f32 %v2628, %v2114
    %v2773 = vsub.f32 %v2629, %v2115
    %v2774 = vsub.f32 %v2630, %v2116
    %v2775 = vsub.f32 %v2631, %v2117
    %v2776 = vmul.f32 %v2633, %v2728
    %v2777 = vmul.f32 %v2635, %v2729
    %v2778 = vmul.f32 %v2637, %v2730
    %v2779 = vmul.f32 %v2639, %v2731
    %v2780 = vmul.f32 %v2641, %v2732
    %v2781 = vmul.f32 %v2643, %v2733
    %v2782 = vmul.f32 %v2645, %v2734
    %v2783 = vmul.f32 %v2647, %v2735
    %v2784 = vmul.f32 %v2649, %v2736
    %v2785 = vmul.f32 %v2651, %v2737
    %v2786 = vmul.f32 %v2653, %v2738
    %v2787 = vmul.f32 %v2655, %v2739
    %v2788 = vmul.f32 %v2657, %v2740
    %v2789 = vmul.f32 %v2659, %v2741
    %v2790 = vmul.f32 %v2661, %v2742
    %v2791 = vmul.f32 %v2663, %v2743
    %v2792 = vmul.f32 %v2665, %v2744
    %v2793 = vmul.f32 %v2667, %v2745
    %v2794 = vmul.f32 %v2669, %v2746
    %v2795 = vmul.f32 %v2671, %v2747
    %v2796 = vmul.f32 %v2673, %v2748
    %v2797 = vmul.f32 %v2675, %v2749
    %v2798 = vmul.f32 %v2677, %v2750
    %v2799 = vmul.f32 %v2679, %v2751
    %v2800 = vmul.f32 %v2681, %v2752
    %v2801 = vmul.f32 %v2683, %v2753
    %v2802 = vmul.f32 %v2685, %v2754
    %v2803 = vmul.f32 %v2687, %v2755
    %v2804 = vmul.f32 %v2689, %v2756
    %v2805 = vmul.f32 %v2691, %v2757
    %v2806 = vmul.f32 %v2693, %v2758
    %v2807 = vmul.f32 %v2695, %v2759
    %v2808 = vmul.f32 %v2697, %v2760
    %v2809 = vmul.f32 %v2699, %v2761
    %v2810 = vmul.f32 %v2701, %v2762
    %v2811 = vmul.f32 %v2703, %v2763
    %v2812 = vmul.f32 %v2705, %v2764
    %v2813 = vmul.f32 %v2707, %v2765
    %v2814 = vmul.f32 %v2709, %v2766
    %v2815 = vmul.f32 %v2711, %v2767
    %v2816 = vmul.f32 %v2713, %v2768
    %v2817 = vmul.f32 %v2715, %v2769
    %v2818 = vmul.f32 %v2717, %v2770
    %v2819 = vmul.f32 %v2719, %v2771
    %v2820 = vmul.f32 %v2721, %v2772
    %v2821 = vmul.f32 %v2723, %v2773
    %v2822 = vmul.f32 %v2725, %v2774
    %v2823 = vmul.f32 %v2727, %v2775
    %v2824 = vadd.f32 %v2070, %v2776
    %v2825 = vadd.f32 %v2071, %v2777
    %v2826 = vadd.f32 %v2072, %v2778
    %v2827 = vadd.f32 %v2073, %v2779
    %v2828 = vadd.f32 %v2074, %v2780
    %v2829 = vadd.f32 %v2075, %v2781
    %v2830 = vadd.f32 %v2076, %v2782
    %v2831 = vadd.f32 %v2077, %v2783
    %v2832 = vadd.f32 %v2078, %v2784
    %v2833 = vadd.f32 %v2079, %v2785
    %v2834 = vadd.f32 %v2080, %v2786
    %v2835 = vadd.f32 %v2081, %v2787
    %v2836 = vadd.f32 %v2082, %v2788
    %v2837 = vadd.f32 %v2083, %v2789
    %v2838 = vadd.f32 %v2084, %v2790
    %v2839 = vadd.f32 %v2085, %v2791
    %v2840 = vadd.f32 %v2086, %v2792
    %v2841 = vadd.f32 %v2087, %v2793
    %v2842 = vadd.f32 %v2088, %v2794
    %v2843 = vadd.f32 %v2089, %v2795
    %v2844 = vadd.f32 %v2090, %v2796
    %v2845 = vadd.f32 %v2091, %v2797
    %v2846 = vadd.f32 %v2092, %v2798
    %v2847 = vadd.f32 %v2093, %v2799
    %v2848 = vadd.f32 %v2094, %v2800
    %v2849 = vadd.f32 %v2095, %v2801
    %v2850 = vadd.f32 %v2096, %v2802
    %v2851 = vadd.f32 %v2097, %v2803
    %v2852 = vadd.f32 %v2098, %v2804
    %v2853 = vadd.f32 %v2099, %v2805
    %v2854 = vadd.f32 %v2100, %v2806
    %v2855 = vadd.f32 %v2101, %v2807
    %v2856 = vadd.f32 %v2102, %v2808
    %v2857 = vadd.f32 %v2103, %v2809
    %v2858 = vadd.f32 %v2104, %v2810
    %v2859 = vadd.f32 %v2105, %v2811
    %v2860 = vadd.f32 %v2106, %v2812
    %v2861 = vadd.f32 %v2107, %v2813
    %v2862 = vadd.f32 %v2108, %v2814
    %v2863 = vadd.f32 %v2109, %v2815
    %v2864 = vadd.f32 %v2110, %v2816
    %v2865 = vadd.f32 %v2111, %v2817
    %v2866 = vadd.f32 %v2112, %v2818
    %v2867 = vadd.f32 %v2113, %v2819
    %v2868 = vadd.f32 %v2114, %v2820
    %v2869 = vadd.f32 %v2115, %v2821
    %v2870 = vadd.f32 %v2116, %v2822
    %v2871 = vadd.f32 %v2117, %v2823
    %v2872 = vpack.c.bf16 %v2825, %v2824
    %v2873 = vpack.c.bf16 %v2827, %v2826
    %v2874 = vpack.c.bf16 %v2829, %v2828
    %v2875 = vpack.c.bf16 %v2831, %v2830
    %v2876 = vpack.c.bf16 %v2833, %v2832
    %v2877 = vpack.c.bf16 %v2835, %v2834
    %v2878 = vpack.c.bf16 %v2837, %v2836
    %v2879 = vpack.c.bf16 %v2839, %v2838
    %v2880 = vpack.c.bf16 %v2841, %v2840
    %v2881 = vpack.c.bf16 %v2843, %v2842
    %v2882 = vpack.c.bf16 %v2845, %v2844
    %v2883 = vpack.c.bf16 %v2847, %v2846
    %v2884 = vpack.c.bf16 %v2849, %v2848
    %v2885 = vpack.c.bf16 %v2851, %v2850
    %v2886 = vpack.c.bf16 %v2853, %v2852
    %v2887 = vpack.c.bf16 %v2855, %v2854
    %v2888 = vpack.c.bf16 %v2857, %v2856
    %v2889 = vpack.c.bf16 %v2859, %v2858
    %v2890 = vpack.c.bf16 %v2861, %v2860
    %v2891 = vpack.c.bf16 %v2863, %v2862
    %v2892 = vpack.c.bf16 %v2865, %v2864
    %v2893 = vpack.c.bf16 %v2867, %v2866
    %v2894 = vpack.c.bf16 %v2869, %v2868
    %v2895 = vpack.c.bf16 %v2871, %v2870
    %s2896 = scalar_lea.vmem [#allocation2], 192
    %v2897 = vld [vmem:[%s2896] sm:$0xf]
    %v2898 = vld [vmem:[%s2896 + $0x4] sm:$0xf]
    %v2899 = vld [vmem:[%s2896 + $0x8] sm:$0xf]
    %v2900 = vld [vmem:[%s2896 + $0xc] sm:$0xf]
    %v2901 = vld [vmem:[%s2896 + $0x10] sm:$0xf]
    %v2902 = vld [vmem:[%s2896 + $0x14] sm:$0xf]
    %v2903 = vld [vmem:[%s2896 + $0x18] sm:$0xf]
    %v2904 = vld [vmem:[%s2896 + $0x1c] sm:$0xf]
    %v2905 = vld [vmem:[%s2896 + $0x20] sm:$0xf]
    %v2906 = vld [vmem:[%s2896 + $0x24] sm:$0xf]
    %v2907 = vld [vmem:[%s2896 + $0x28] sm:$0xf]
    %v2908 = vld [vmem:[%s2896 + $0x2c] sm:$0xf]
    %v2909 = vld [vmem:[%s2896 + $0x30] sm:$0xf]
    %v2910 = vld [vmem:[%s2896 + $0x34] sm:$0xf]
    %v2911 = vld [vmem:[%s2896 + $0x38] sm:$0xf]
    %v2912 = vld [vmem:[%s2896 + $0x3c] sm:$0xf]
    %s2913 = scalar_lea.vmem %s4, 3
    %v2914 = vld [vmem:[%s2913] sm:$0x1]
    %v2916 = vlaneseq
    %v2917 = vshrl.u32 %v2916, 7
    %v2918 = vsub.s32 0, %v2917
    %v2919 = vrot.slane %v2914, %v2918
    %v2937 = vunpack.c.l.b16 %v2897
    %v2938 = vunpack.c.l.b16 %v2898
    %v2939 = vunpack.c.l.b16 %v2899
    %v2940 = vunpack.c.l.b16 %v2900
    %v2941 = vunpack.c.l.b16 %v2901
    %v2942 = vunpack.c.l.b16 %v2902
    %v2943 = vunpack.c.l.b16 %v2903
    %v2944 = vunpack.c.l.b16 %v2904
    %v2945 = vunpack.c.l.b16 %v2905
    %v2946 = vunpack.c.l.b16 %v2906
    %v2947 = vunpack.c.l.b16 %v2907
    %v2948 = vunpack.c.l.b16 %v2908
    %v2949 = vunpack.c.l.b16 %v2909
    %v2950 = vunpack.c.l.b16 %v2910
    %v2951 = vunpack.c.l.b16 %v2911
    %v2952 = vunpack.c.l.b16 %v2912
    %v2953 = vpack.c.b16 %v2938, %v2937
    %v2954 = vpack.c.b16 %v2940, %v2939
    %v2955 = vpack.c.b16 %v2942, %v2941
    %v2956 = vpack.c.b16 %v2944, %v2943
    %v2957 = vpack.c.b16 %v2946, %v2945
    %v2958 = vpack.c.b16 %v2948, %v2947
    %v2959 = vpack.c.b16 %v2950, %v2949
    %v2960 = vpack.c.b16 %v2952, %v2951
    %2969 = vmatprep.subr.bf16.mxu0 0
    %2970 = vmatpush1.bf16.msra.mxu0 %v2953
    %2971 = vmatprep.subr.bf16.mxu0 0
    %2972 = vmatpush1.bf16.msra.mxu0 %v2954
    %2973 = vmatprep.subr.bf16.mxu0 0
    %2974 = vmatpush1.bf16.msra.mxu0 %v2955
    %2975 = vmatprep.subr.bf16.mxu0 0
    %2976 = vmatpush1.bf16.msra.mxu0 %v2956
    %2977 = vmatprep.subr.bf16.mxu0 0
    %2978 = vmatpush1.bf16.msra.mxu0 %v2957
    %2979 = vmatprep.subr.bf16.mxu0 0
    %2980 = vmatpush1.bf16.msra.mxu0 %v2958
    %2981 = vmatprep.subr.bf16.mxu0 0
    %2982 = vmatpush1.bf16.msra.mxu0 %v2959
    %2983 = vmatprep.subr.bf16.mxu0 0
    %2984 = vmatpush1.bf16.msra.mxu0 %v2960
    %2985 = vmatprep.subr.bf16.mxu0 0
    %2986 = vmatpush1.bf16.msra.mxu0 0
    %2987 = vmatprep.subr.bf16.mxu0 0
    %2988 = vmatpush1.bf16.msra.mxu0 0
    %2989 = vmatprep.subr.bf16.mxu0 0
    %2990 = vmatpush1.bf16.msra.mxu0 0
    %2991 = vmatprep.subr.bf16.mxu0 0
    %2992 = vmatpush1.bf16.msra.mxu0 0
    %2993 = vmatprep.subr.bf16.mxu0 0
    %2994 = vmatpush1.bf16.msra.mxu0 0
    %2995 = vmatprep.subr.bf16.mxu0 0
    %2996 = vmatpush1.bf16.msra.mxu0 0
    %2997 = vmatprep.subr.bf16.mxu0 0
    %2998 = vmatpush1.bf16.msra.mxu0 0
    %2999 = vmatprep.subr.bf16.mxu0 0
    %3000 = vmatpush1.bf16.msra.mxu0 0
    %3001 = vmatprep.mubr.bf16.mxu0 0
    %3002 = vmatmul.mubr.bf16.gmra.mrb[0].mxu0 %v2872
    %v3003 = vpop.f32.mrb[0].mxu0
    %v3004 = vadd.f32 %v2919, %v3003
    %v3005 = vpop.f32.mrb[0].mxu0
    %v3006 = vpop.f32.mrb[0].mxu0
    %v3007 = vadd.f32 %v2919, %v3006
    %v3008 = vpop.f32.mrb[0].mxu0
    %3009 = vmatprep.mubr.bf16.mxu0 0
    %3010 = vmatmul.mubr.bf16.gmra.mrb[0].mxu0 %v2873
    %v3011 = vpop.f32.mrb[0].mxu0
    %v3012 = vadd.f32 %v2919, %v3011
    %v3013 = vpop.f32.mrb[0].mxu0
    %v3014 = vpop.f32.mrb[0].mxu0
    %v3015 = vadd.f32 %v2919, %v3014
    %v3016 = vpop.f32.mrb[0].mxu0
    %3017 = vmatprep.mubr.bf16.mxu0 0
    %3018 = vmatmul.mubr.bf16.gmra.mrb[0].mxu0 %v2874
    %v3019 = vpop.f32.mrb[0].mxu0
    %v3020 = vadd.f32 %v2919, %v3019
    %v3021 = vpop.f32.mrb[0].mxu0
    %v3022 = vpop.f32.mrb[0].mxu0
    %v3023 = vadd.f32 %v2919, %v3022
    %v3024 = vpop.f32.mrb[0].mxu0
    %3025 = vmatprep.mubr.bf16.mxu0 0
    %3026 = vmatmul.mubr.bf16.gmra.mrb[0].mxu0 %v2875
    %v3027 = vpop.f32.mrb[0].mxu0
    %v3028 = vadd.f32 %v2919, %v3027
    %v3029 = vpop.f32.mrb[0].mxu0
    %v3030 = vpop.f32.mrb[0].mxu0
    %v3031 = vadd.f32 %v2919, %v3030
    %v3032 = vpop.f32.mrb[0].mxu0
    %3033 = vmatprep.mubr.bf16.mxu0 0
    %3034 = vmatmul.mubr.bf16.gmra.mrb[0].mxu0 %v2876
    %v3035 = vpop.f32.mrb[0].mxu0
    %v3036 = vadd.f32 %v2919, %v3035
    %v3037 = vpop.f32.mrb[0].mxu0
    %v3038 = vpop.f32.mrb[0].mxu0
    %v3039 = vadd.f32 %v2919, %v3038
    %v3040 = vpop.f32.mrb[0].mxu0
    %3041 = vmatprep.mubr.bf16.mxu0 0
    %3042 = vmatmul.mubr.bf16.gmra.mrb[0].mxu0 %v2877
    %v3043 = vpop.f32.mrb[0].mxu0
    %v3044 = vadd.f32 %v2919, %v3043
    %v3045 = vpop.f32.mrb[0].mxu0
    %v3046 = vpop.f32.mrb[0].mxu0
    %v3047 = vadd.f32 %v2919, %v3046
    %v3048 = vpop.f32.mrb[0].mxu0
    %3049 = vmatprep.mubr.bf16.mxu0 0
    %3050 = vmatmul.mubr.bf16.gmra.mrb[0].mxu0 %v2878
    %v3051 = vpop.f32.mrb[0].mxu0
    %v3052 = vadd.f32 %v2919, %v3051
    %v3053 = vpop.f32.mrb[0].mxu0
    %v3054 = vpop.f32.mrb[0].mxu0
    %v3055 = vadd.f32 %v2919, %v3054
    %v3056 = vpop.f32.mrb[0].mxu0
    %3057 = vmatprep.mubr.bf16.mxu0 0
    %3058 = vmatmul.mubr.bf16.gmra.mrb[0].mxu0 %v2879
    %v3059 = vpop.f32.mrb[0].mxu0
    %v3060 = vadd.f32 %v2919, %v3059
    %v3061 = vpop.f32.mrb[0].mxu0
    %v3062 = vpop.f32.mrb[0].mxu0
    %v3063 = vadd.f32 %v2919, %v3062
    %v3064 = vpop.f32.mrb[0].mxu0
    %3065 = vmatprep.mubr.bf16.mxu0 0
    %3066 = vmatmul.mubr.bf16.gmra.mrb[0].mxu0 %v2880
    %v3067 = vpop.f32.mrb[0].mxu0
    %v3068 = vadd.f32 %v2919, %v3067
    %v3069 = vpop.f32.mrb[0].mxu0
    %v3070 = vpop.f32.mrb[0].mxu0
    %v3071 = vadd.f32 %v2919, %v3070
    %v3072 = vpop.f32.mrb[0].mxu0
    %3073 = vmatprep.mubr.bf16.mxu0 0
    %3074 = vmatmul.mubr.bf16.gmra.mrb[0].mxu0 %v2881
    %v3075 = vpop.f32.mrb[0].mxu0
    %v3076 = vadd.f32 %v2919, %v3075
    %v3077 = vpop.f32.mrb[0].mxu0
    %v3078 = vpop.f32.mrb[0].mxu0
    %v3079 = vadd.f32 %v2919, %v3078
    %v3080 = vpop.f32.mrb[0].mxu0
    %3081 = vmatprep.mubr.bf16.mxu0 0
    %3082 = vmatmul.mubr.bf16.gmra.mrb[0].mxu0 %v2882
    %v3083 = vpop.f32.mrb[0].mxu0
    %v3084 = vadd.f32 %v2919, %v3083
    %v3085 = vpop.f32.mrb[0].mxu0
    %v3086 = vpop.f32.mrb[0].mxu0
    %v3087 = vadd.f32 %v2919, %v3086
    %v3088 = vpop.f32.mrb[0].mxu0
    %3089 = vmatprep.mubr.bf16.mxu0 0
    %3090 = vmatmul.mubr.bf16.gmra.mrb[0].mxu0 %v2883
    %v3091 = vpop.f32.mrb[0].mxu0
    %v3092 = vadd.f32 %v2919, %v3091
    %v3093 = vpop.f32.mrb[0].mxu0
    %v3094 = vpop.f32.mrb[0].mxu0
    %v3095 = vadd.f32 %v2919, %v3094
    %v3096 = vpop.f32.mrb[0].mxu0
    %3097 = vmatprep.mubr.bf16.mxu0 0
    %3098 = vmatmul.mubr.bf16.gmra.mrb[0].mxu0 %v2884
    %v3099 = vpop.f32.mrb[0].mxu0
    %v3100 = vadd.f32 %v2919, %v3099
    %v3101 = vpop.f32.mrb[0].mxu0
    %v3102 = vpop.f32.mrb[0].mxu0
    %v3103 = vadd.f32 %v2919, %v3102
    %v3104 = vpop.f32.mrb[0].mxu0
    %3105 = vmatprep.mubr.bf16.mxu0 0
    %3106 = vmatmul.mubr.bf16.gmra.mrb[0].mxu0 %v2885
    %v3107 = vpop.f32.mrb[0].mxu0
    %v3108 = vadd.f32 %v2919, %v3107
    %v3109 = vpop.f32.mrb[0].mxu0
    %v3110 = vpop.f32.mrb[0].mxu0
    %v3111 = vadd.f32 %v2919, %v3110
    %v3112 = vpop.f32.mrb[0].mxu0
    %3113 = vmatprep.mubr.bf16.mxu0 0
    %3114 = vmatmul.mubr.bf16.gmra.mrb[0].mxu0 %v2886
    %v3115 = vpop.f32.mrb[0].mxu0
    %v3116 = vadd.f32 %v2919, %v3115
    %v3117 = vpop.f32.mrb[0].mxu0
    %v3118 = vpop.f32.mrb[0].mxu0
    %v3119 = vadd.f32 %v2919, %v3118
    %v3120 = vpop.f32.mrb[0].mxu0
    %3121 = vmatprep.mubr.bf16.mxu0 0
    %3122 = vmatmul.mubr.bf16.gmra.mrb[0].mxu0 %v2887
    %v3123 = vpop.f32.mrb[0].mxu0
    %v3124 = vadd.f32 %v2919, %v3123
    %v3125 = vpop.f32.mrb[0].mxu0
    %v3126 = vpop.f32.mrb[0].mxu0
    %v3127 = vadd.f32 %v2919, %v3126
    %v3128 = vpop.f32.mrb[0].mxu0
    %3129 = vmatprep.mubr.bf16.mxu0 0
    %3130 = vmatmul.mubr.bf16.gmra.mrb[0].mxu0 %v2888
    %v3131 = vpop.f32.mrb[0].mxu0
    %v3132 = vadd.f32 %v2919, %v3131
    %v3133 = vpop.f32.mrb[0].mxu0
    %v3134 = vpop.f32.mrb[0].mxu0
    %v3135 = vadd.f32 %v2919, %v3134
    %v3136 = vpop.f32.mrb[0].mxu0
    %3137 = vmatprep.mubr.bf16.mxu0 0
    %3138 = vmatmul.mubr.bf16.gmra.mrb[0].mxu0 %v2889
    %v3139 = vpop.f32.mrb[0].mxu0
    %v3140 = vadd.f32 %v2919, %v3139
    %v3141 = vpop.f32.mrb[0].mxu0
    %v3142 = vpop.f32.mrb[0].mxu0
    %v3143 = vadd.f32 %v2919, %v3142
    %v3144 = vpop.f32.mrb[0].mxu0
    %3145 = vmatprep.mubr.bf16.mxu0 0
    %3146 = vmatmul.mubr.bf16.gmra.mrb[0].mxu0 %v2890
    %v3147 = vpop.f32.mrb[0].mxu0
    %v3148 = vadd.f32 %v2919, %v3147
    %v3149 = vpop.f32.mrb[0].mxu0
    %v3150 = vpop.f32.mrb[0].mxu0
    %v3151 = vadd.f32 %v2919, %v3150
    %v3152 = vpop.f32.mrb[0].mxu0
    %3153 = vmatprep.mubr.bf16.mxu0 0
    %3154 = vmatmul.mubr.bf16.gmra.mrb[0].mxu0 %v2891
    %v3155 = vpop.f32.mrb[0].mxu0
    %v3156 = vadd.f32 %v2919, %v3155
    %v3157 = vpop.f32.mrb[0].mxu0
    %v3158 = vpop.f32.mrb[0].mxu0
    %v3159 = vadd.f32 %v2919, %v3158
    %v3160 = vpop.f32.mrb[0].mxu0
    %3161 = vmatprep.mubr.bf16.mxu0 0
    %3162 = vmatmul.mubr.bf16.gmra.mrb[0].mxu0 %v2892
    %v3163 = vpop.f32.mrb[0].mxu0
    %v3164 = vadd.f32 %v2919, %v3163
    %v3165 = vpop.f32.mrb[0].mxu0
    %v3166 = vpop.f32.mrb[0].mxu0
    %v3167 = vadd.f32 %v2919, %v3166
    %v3168 = vpop.f32.mrb[0].mxu0
    %3169 = vmatprep.mubr.bf16.mxu0 0
    %3170 = vmatmul.mubr.bf16.gmra.mrb[0].mxu0 %v2893
    %v3171 = vpop.f32.mrb[0].mxu0
    %v3172 = vadd.f32 %v2919, %v3171
    %v3173 = vpop.f32.mrb[0].mxu0
    %v3174 = vpop.f32.mrb[0].mxu0
    %v3175 = vadd.f32 %v2919, %v3174
    %v3176 = vpop.f32.mrb[0].mxu0
    %3177 = vmatprep.mubr.bf16.mxu0 0
    %3178 = vmatmul.mubr.bf16.gmra.mrb[0].mxu0 %v2894
    %v3179 = vpop.f32.mrb[0].mxu0
    %v3180 = vadd.f32 %v2919, %v3179
    %v3181 = vpop.f32.mrb[0].mxu0
    %v3182 = vpop.f32.mrb[0].mxu0
    %v3183 = vadd.f32 %v2919, %v3182
    %v3184 = vpop.f32.mrb[0].mxu0
    %3185 = vmatprep.mubr.bf16.mxu0 0
    %3186 = vmatmul.mubr.bf16.gmra.mrb[0].mxu0 %v2895
    %v3187 = vpop.f32.mrb[0].mxu0
    %v3188 = vadd.f32 %v2919, %v3187
    %v3189 = vpop.f32.mrb[0].mxu0
    %v3190 = vpop.f32.mrb[0].mxu0
    %v3191 = vadd.f32 %v2919, %v3190
    %v3192 = vpop.f32.mrb[0].mxu0
    %3193 = vdwg.mxu0
    %v3194 = vmul.f32 %v3004, 0.5
    %v3195 = vmul.f32 %v3007, 0.5
    %v3196 = vmul.f32 %v3012, 0.5
    %v3197 = vmul.f32 %v3015, 0.5
    %v3198 = vmul.f32 %v3020, 0.5
    %v3199 = vmul.f32 %v3023, 0.5
    %v3200 = vmul.f32 %v3028, 0.5
    %v3201 = vmul.f32 %v3031, 0.5
    %v3202 = vmul.f32 %v3036, 0.5
    %v3203 = vmul.f32 %v3039, 0.5
    %v3204 = vmul.f32 %v3044, 0.5
    %v3205 = vmul.f32 %v3047, 0.5
    %v3206 = vmul.f32 %v3052, 0.5
    %v3207 = vmul.f32 %v3055, 0.5
    %v3208 = vmul.f32 %v3060, 0.5
    %v3209 = vmul.f32 %v3063, 0.5
    %v3210 = vmul.f32 %v3068, 0.5
    %v3211 = vmul.f32 %v3071, 0.5
    %v3212 = vmul.f32 %v3076, 0.5
    %v3213 = vmul.f32 %v3079, 0.5
    %v3214 = vmul.f32 %v3084, 0.5
    %v3215 = vmul.f32 %v3087, 0.5
    %v3216 = vmul.f32 %v3092, 0.5
    %v3217 = vmul.f32 %v3095, 0.5
    %v3218 = vmul.f32 %v3100, 0.5
    %v3219 = vmul.f32 %v3103, 0.5
    %v3220 = vmul.f32 %v3108, 0.5
    %v3221 = vmul.f32 %v3111, 0.5
    %v3222 = vmul.f32 %v3116, 0.5
    %v3223 = vmul.f32 %v3119, 0.5
    %v3224 = vmul.f32 %v3124, 0.5
    %v3225 = vmul.f32 %v3127, 0.5
    %v3226 = vmul.f32 %v3132, 0.5
    %v3227 = vmul.f32 %v3135, 0.5
    %v3228 = vmul.f32 %v3140, 0.5
    %v3229 = vmul.f32 %v3143, 0.5
    %v3230 = vmul.f32 %v3148, 0.5
    %v3231 = vmul.f32 %v3151, 0.5
    %v3232 = vmul.f32 %v3156, 0.5
    %v3233 = vmul.f32 %v3159, 0.5
    %v3234 = vmul.f32 %v3164, 0.5
    %v3235 = vmul.f32 %v3167, 0.5
    %v3236 = vmul.f32 %v3172, 0.5
    %v3237 = vmul.f32 %v3175, 0.5
    %v3238 = vmul.f32 %v3180, 0.5
    %v3239 = vmul.f32 %v3183, 0.5
    %v3240 = vmul.f32 %v3188, 0.5
    %v3241 = vmul.f32 %v3191, 0.5
    %v3242 = vtanh.pop %v3194
    %v3243 = vtanh.pop %v3195
    %v3244 = vtanh.pop %v3196
    %v3245 = vtanh.pop %v3197
    %v3246 = vtanh.pop %v3198
    %v3247 = vtanh.pop %v3199
    %v3248 = vtanh.pop %v3200
    %v3249 = vtanh.pop %v3201
    %v3250 = vtanh.pop %v3202
    %v3251 = vtanh.pop %v3203
    %v3252 = vtanh.pop %v3204
    %v3253 = vtanh.pop %v3205
    %v3254 = vtanh.pop %v3206
    %v3255 = vtanh.pop %v3207
    %v3256 = vtanh.pop %v3208
    %v3257 = vtanh.pop %v3209
    %v3258 = vtanh.pop %v3210
    %v3259 = vtanh.pop %v3211
    %v3260 = vtanh.pop %v3212
    %v3261 = vtanh.pop %v3213
    %v3262 = vtanh.pop %v3214
    %v3263 = vtanh.pop %v3215
    %v3264 = vtanh.pop %v3216
    %v3265 = vtanh.pop %v3217
    %v3266 = vtanh.pop %v3218
    %v3267 = vtanh.pop %v3219
    %v3268 = vtanh.pop %v3220
    %v3269 = vtanh.pop %v3221
    %v3270 = vtanh.pop %v3222
    %v3271 = vtanh.pop %v3223
    %v3272 = vtanh.pop %v3224
    %v3273 = vtanh.pop %v3225
    %v3274 = vtanh.pop %v3226
    %v3275 = vtanh.pop %v3227
    %v3276 = vtanh.pop %v3228
    %v3277 = vtanh.pop %v3229
    %v3278 = vtanh.pop %v3230
    %v3279 = vtanh.pop %v3231
    %v3280 = vtanh.pop %v3232
    %v3281 = vtanh.pop %v3233
    %v3282 = vtanh.pop %v3234
    %v3283 = vtanh.pop %v3235
    %v3284 = vtanh.pop %v3236
    %v3285 = vtanh.pop %v3237
    %v3286 = vtanh.pop %v3238
    %v3287 = vtanh.pop %v3239
    %v3288 = vtanh.pop %v3240
    %v3289 = vtanh.pop %v3241
    %v3290 = vmul.f32 %v3242, 0.5
    %v3291 = vmul.f32 %v3243, 0.5
    %v3292 = vmul.f32 %v3244, 0.5
    %v3293 = vmul.f32 %v3245, 0.5
    %v3294 = vmul.f32 %v3246, 0.5
    %v3295 = vmul.f32 %v3247, 0.5
    %v3296 = vmul.f32 %v3248, 0.5
    %v3297 = vmul.f32 %v3249, 0.5
    %v3298 = vmul.f32 %v3250, 0.5
    %v3299 = vmul.f32 %v3251, 0.5
    %v3300 = vmul.f32 %v3252, 0.5
    %v3301 = vmul.f32 %v3253, 0.5
    %v3302 = vmul.f32 %v3254, 0.5
    %v3303 = vmul.f32 %v3255, 0.5
    %v3304 = vmul.f32 %v3256, 0.5
    %v3305 = vmul.f32 %v3257, 0.5
    %v3306 = vmul.f32 %v3258, 0.5
    %v3307 = vmul.f32 %v3259, 0.5
    %v3308 = vmul.f32 %v3260, 0.5
    %v3309 = vmul.f32 %v3261, 0.5
    %v3310 = vmul.f32 %v3262, 0.5
    %v3311 = vmul.f32 %v3263, 0.5
    %v3312 = vmul.f32 %v3264, 0.5
    %v3313 = vmul.f32 %v3265, 0.5
    %v3314 = vmul.f32 %v3266, 0.5
    %v3315 = vmul.f32 %v3267, 0.5
    %v3316 = vmul.f32 %v3268, 0.5
    %v3317 = vmul.f32 %v3269, 0.5
    %v3318 = vmul.f32 %v3270, 0.5
    %v3319 = vmul.f32 %v3271, 0.5
    %v3320 = vmul.f32 %v3272, 0.5
    %v3321 = vmul.f32 %v3273, 0.5
    %v3322 = vmul.f32 %v3274, 0.5
    %v3323 = vmul.f32 %v3275, 0.5
    %v3324 = vmul.f32 %v3276, 0.5
    %v3325 = vmul.f32 %v3277, 0.5
    %v3326 = vmul.f32 %v3278, 0.5
    %v3327 = vmul.f32 %v3279, 0.5
    %v3328 = vmul.f32 %v3280, 0.5
    %v3329 = vmul.f32 %v3281, 0.5
    %v3330 = vmul.f32 %v3282, 0.5
    %v3331 = vmul.f32 %v3283, 0.5
    %v3332 = vmul.f32 %v3284, 0.5
    %v3333 = vmul.f32 %v3285, 0.5
    %v3334 = vmul.f32 %v3286, 0.5
    %v3335 = vmul.f32 %v3287, 0.5
    %v3336 = vmul.f32 %v3288, 0.5
    %v3337 = vmul.f32 %v3289, 0.5
    %v3338 = vadd.f32 %v3290, 0.5
    %v3339 = vadd.f32 %v3291, 0.5
    %v3340 = vadd.f32 %v3292, 0.5
    %v3341 = vadd.f32 %v3293, 0.5
    %v3342 = vadd.f32 %v3294, 0.5
    %v3343 = vadd.f32 %v3295, 0.5
    %v3344 = vadd.f32 %v3296, 0.5
    %v3345 = vadd.f32 %v3297, 0.5
    %v3346 = vadd.f32 %v3298, 0.5
    %v3347 = vadd.f32 %v3299, 0.5
    %v3348 = vadd.f32 %v3300, 0.5
    %v3349 = vadd.f32 %v3301, 0.5
    %v3350 = vadd.f32 %v3302, 0.5
    %v3351 = vadd.f32 %v3303, 0.5
    %v3352 = vadd.f32 %v3304, 0.5
    %v3353 = vadd.f32 %v3305, 0.5
    %v3354 = vadd.f32 %v3306, 0.5
    %v3355 = vadd.f32 %v3307, 0.5
    %v3356 = vadd.f32 %v3308, 0.5
    %v3357 = vadd.f32 %v3309, 0.5
    %v3358 = vadd.f32 %v3310, 0.5
    %v3359 = vadd.f32 %v3311, 0.5
    %v3360 = vadd.f32 %v3312, 0.5
    %v3361 = vadd.f32 %v3313, 0.5
    %v3362 = vadd.f32 %v3314, 0.5
    %v3363 = vadd.f32 %v3315, 0.5
    %v3364 = vadd.f32 %v3316, 0.5
    %v3365 = vadd.f32 %v3317, 0.5
    %v3366 = vadd.f32 %v3318, 0.5
    %v3367 = vadd.f32 %v3319, 0.5
    %v3368 = vadd.f32 %v3320, 0.5
    %v3369 = vadd.f32 %v3321, 0.5
    %v3370 = vadd.f32 %v3322, 0.5
    %v3371 = vadd.f32 %v3323, 0.5
    %v3372 = vadd.f32 %v3324, 0.5
    %v3373 = vadd.f32 %v3325, 0.5
    %v3374 = vadd.f32 %v3326, 0.5
    %v3375 = vadd.f32 %v3327, 0.5
    %v3376 = vadd.f32 %v3328, 0.5
    %v3377 = vadd.f32 %v3329, 0.5
    %v3378 = vadd.f32 %v3330, 0.5
    %v3379 = vadd.f32 %v3331, 0.5
    %v3380 = vadd.f32 %v3332, 0.5
    %v3381 = vadd.f32 %v3333, 0.5
    %v3382 = vadd.f32 %v3334, 0.5
    %v3383 = vadd.f32 %v3335, 0.5
    %v3384 = vadd.f32 %v3336, 0.5
    %v3385 = vadd.f32 %v3337, 0.5
    %3386 = vrot.lane.b32.xlu0 %v3338, 64
    %v3387 = vpop.permute.xlu0 %3386
    %3388 = vrot.lane.b32.xlu0 %v3339, 64
    %v3389 = vpop.permute.xlu0 %3388
    %3390 = vrot.lane.b32.xlu0 %v3340, 64
    %v3391 = vpop.permute.xlu0 %3390
    %3392 = vrot.lane.b32.xlu0 %v3341, 64
    %v3393 = vpop.permute.xlu0 %3392
    %3394 = vrot.lane.b32.xlu0 %v3342, 64
    %v3395 = vpop.permute.xlu0 %3394
    %3396 = vrot.lane.b32.xlu0 %v3343, 64
    %v3397 = vpop.permute.xlu0 %3396
    %3398 = vrot.lane.b32.xlu0 %v3344, 64
    %v3399 = vpop.permute.xlu0 %3398
    %3400 = vrot.lane.b32.xlu0 %v3345, 64
    %v3401 = vpop.permute.xlu0 %3400
    %3402 = vrot.lane.b32.xlu0 %v3346, 64
    %v3403 = vpop.permute.xlu0 %3402
    %3404 = vrot.lane.b32.xlu0 %v3347, 64
    %v3405 = vpop.permute.xlu0 %3404
    %3406 = vrot.lane.b32.xlu0 %v3348, 64
    %v3407 = vpop.permute.xlu0 %3406
    %3408 = vrot.lane.b32.xlu0 %v3349, 64
    %v3409 = vpop.permute.xlu0 %3408
    %3410 = vrot.lane.b32.xlu0 %v3350, 64
    %v3411 = vpop.permute.xlu0 %3410
    %3412 = vrot.lane.b32.xlu0 %v3351, 64
    %v3413 = vpop.permute.xlu0 %3412
    %3414 = vrot.lane.b32.xlu0 %v3352, 64
    %v3415 = vpop.permute.xlu0 %3414
    %3416 = vrot.lane.b32.xlu0 %v3353, 64
    %v3417 = vpop.permute.xlu0 %3416
    %3418 = vrot.lane.b32.xlu0 %v3354, 64
    %v3419 = vpop.permute.xlu0 %3418
    %3420 = vrot.lane.b32.xlu0 %v3355, 64
    %v3421 = vpop.permute.xlu0 %3420
    %3422 = vrot.lane.b32.xlu0 %v3356, 64
    %v3423 = vpop.permute.xlu0 %3422
    %3424 = vrot.lane.b32.xlu0 %v3357, 64
    %v3425 = vpop.permute.xlu0 %3424
    %3426 = vrot.lane.b32.xlu0 %v3358, 64
    %v3427 = vpop.permute.xlu0 %3426
    %3428 = vrot.lane.b32.xlu0 %v3359, 64
    %v3429 = vpop.permute.xlu0 %3428
    %3430 = vrot.lane.b32.xlu0 %v3360, 64
    %v3431 = vpop.permute.xlu0 %3430
    %3432 = vrot.lane.b32.xlu0 %v3361, 64
    %v3433 = vpop.permute.xlu0 %3432
    %3434 = vrot.lane.b32.xlu0 %v3362, 64
    %v3435 = vpop.permute.xlu0 %3434
    %3436 = vrot.lane.b32.xlu0 %v3363, 64
    %v3437 = vpop.permute.xlu0 %3436
    %3438 = vrot.lane.b32.xlu0 %v3364, 64
    %v3439 = vpop.permute.xlu0 %3438
    %3440 = vrot.lane.b32.xlu0 %v3365, 64
    %v3441 = vpop.permute.xlu0 %3440
    %3442 = vrot.lane.b32.xlu0 %v3366, 64
    %v3443 = vpop.permute.xlu0 %3442
    %3444 = vrot.lane.b32.xlu0 %v3367, 64
    %v3445 = vpop.permute.xlu0 %3444
    %3446 = vrot.lane.b32.xlu0 %v3368, 64
    %v3447 = vpop.permute.xlu0 %3446
    %3448 = vrot.lane.b32.xlu0 %v3369, 64
    %v3449 = vpop.permute.xlu0 %3448
    %3450 = vrot.lane.b32.xlu0 %v3370, 64
    %v3451 = vpop.permute.xlu0 %3450
    %3452 = vrot.lane.b32.xlu0 %v3371, 64
    %v3453 = vpop.permute.xlu0 %3452
    %3454 = vrot.lane.b32.xlu0 %v3372, 64
    %v3455 = vpop.permute.xlu0 %3454
    %3456 = vrot.lane.b32.xlu0 %v3373, 64
    %v3457 = vpop.permute.xlu0 %3456
    %3458 = vrot.lane.b32.xlu0 %v3374, 64
    %v3459 = vpop.permute.xlu0 %3458
    %3460 = vrot.lane.b32.xlu0 %v3375, 64
    %v3461 = vpop.permute.xlu0 %3460
    %3462 = vrot.lane.b32.xlu0 %v3376, 64
    %v3463 = vpop.permute.xlu0 %3462
    %3464 = vrot.lane.b32.xlu0 %v3377, 64
    %v3465 = vpop.permute.xlu0 %3464
    %3466 = vrot.lane.b32.xlu0 %v3378, 64
    %v3467 = vpop.permute.xlu0 %3466
    %3468 = vrot.lane.b32.xlu0 %v3379, 64
    %v3469 = vpop.permute.xlu0 %3468
    %3470 = vrot.lane.b32.xlu0 %v3380, 64
    %v3471 = vpop.permute.xlu0 %3470
    %3472 = vrot.lane.b32.xlu0 %v3381, 64
    %v3473 = vpop.permute.xlu0 %3472
    %3474 = vrot.lane.b32.xlu0 %v3382, 64
    %v3475 = vpop.permute.xlu0 %3474
    %3476 = vrot.lane.b32.xlu0 %v3383, 64
    %v3477 = vpop.permute.xlu0 %3476
    %3478 = vrot.lane.b32.xlu0 %v3384, 64
    %v3479 = vpop.permute.xlu0 %3478
    %3480 = vrot.lane.b32.xlu0 %v3385, 64
    %v3481 = vpop.permute.xlu0 %3480
    %v3482 = vsub.f32 %v3338, %v2824
    %v3483 = vsub.f32 %v3339, %v2825
    %v3484 = vsub.f32 %v3340, %v2826
    %v3485 = vsub.f32 %v3341, %v2827
    %v3486 = vsub.f32 %v3342, %v2828
    %v3487 = vsub.f32 %v3343, %v2829
    %v3488 = vsub.f32 %v3344, %v2830
    %v3489 = vsub.f32 %v3345, %v2831
    %v3490 = vsub.f32 %v3346, %v2832
    %v3491 = vsub.f32 %v3347, %v2833
    %v3492 = vsub.f32 %v3348, %v2834
    %v3493 = vsub.f32 %v3349, %v2835
    %v3494 = vsub.f32 %v3350, %v2836
    %v3495 = vsub.f32 %v3351, %v2837
    %v3496 = vsub.f32 %v3352, %v2838
    %v3497 = vsub.f32 %v3353, %v2839
    %v3498 = vsub.f32 %v3354, %v2840
    %v3499 = vsub.f32 %v3355, %v2841
    %v3500 = vsub.f32 %v3356, %v2842
    %v3501 = vsub.f32 %v3357, %v2843
    %v3502 = vsub.f32 %v3358, %v2844
    %v3503 = vsub.f32 %v3359, %v2845
    %v3504 = vsub.f32 %v3360, %v2846
    %v3505 = vsub.f32 %v3361, %v2847
    %v3506 = vsub.f32 %v3362, %v2848
    %v3507 = vsub.f32 %v3363, %v2849
    %v3508 = vsub.f32 %v3364, %v2850
    %v3509 = vsub.f32 %v3365, %v2851
    %v3510 = vsub.f32 %v3366, %v2852
    %v3511 = vsub.f32 %v3367, %v2853
    %v3512 = vsub.f32 %v3368, %v2854
    %v3513 = vsub.f32 %v3369, %v2855
    %v3514 = vsub.f32 %v3370, %v2856
    %v3515 = vsub.f32 %v3371, %v2857
    %v3516 = vsub.f32 %v3372, %v2858
    %v3517 = vsub.f32 %v3373, %v2859
    %v3518 = vsub.f32 %v3374, %v2860
    %v3519 = vsub.f32 %v3375, %v2861
    %v3520 = vsub.f32 %v3376, %v2862
    %v3521 = vsub.f32 %v3377, %v2863
    %v3522 = vsub.f32 %v3378, %v2864
    %v3523 = vsub.f32 %v3379, %v2865
    %v3524 = vsub.f32 %v3380, %v2866
    %v3525 = vsub.f32 %v3381, %v2867
    %v3526 = vsub.f32 %v3382, %v2868
    %v3527 = vsub.f32 %v3383, %v2869
    %v3528 = vsub.f32 %v3384, %v2870
    %v3529 = vsub.f32 %v3385, %v2871
    %v3530 = vmul.f32 %v3387, %v3482
    %v3531 = vmul.f32 %v3389, %v3483
    %v3532 = vmul.f32 %v3391, %v3484
    %v3533 = vmul.f32 %v3393, %v3485
    %v3534 = vmul.f32 %v3395, %v3486
    %v3535 = vmul.f32 %v3397, %v3487
    %v3536 = vmul.f32 %v3399, %v3488
    %v3537 = vmul.f32 %v3401, %v3489
    %v3538 = vmul.f32 %v3403, %v3490
    %v3539 = vmul.f32 %v3405, %v3491
    %v3540 = vmul.f32 %v3407, %v3492
    %v3541 = vmul.f32 %v3409, %v3493
    %v3542 = vmul.f32 %v3411, %v3494
    %v3543 = vmul.f32 %v3413, %v3495
    %v3544 = vmul.f32 %v3415, %v3496
    %v3545 = vmul.f32 %v3417, %v3497
    %v3546 = vmul.f32 %v3419, %v3498
    %v3547 = vmul.f32 %v3421, %v3499
    %v3548 = vmul.f32 %v3423, %v3500
    %v3549 = vmul.f32 %v3425, %v3501
    %v3550 = vmul.f32 %v3427, %v3502
    %v3551 = vmul.f32 %v3429, %v3503
    %v3552 = vmul.f32 %v3431, %v3504
    %v3553 = vmul.f32 %v3433, %v3505
    %v3554 = vmul.f32 %v3435, %v3506
    %v3555 = vmul.f32 %v3437, %v3507
    %v3556 = vmul.f32 %v3439, %v3508
    %v3557 = vmul.f32 %v3441, %v3509
    %v3558 = vmul.f32 %v3443, %v3510
    %v3559 = vmul.f32 %v3445, %v3511
    %v3560 = vmul.f32 %v3447, %v3512
    %v3561 = vmul.f32 %v3449, %v3513
    %v3562 = vmul.f32 %v3451, %v3514
    %v3563 = vmul.f32 %v3453, %v3515
    %v3564 = vmul.f32 %v3455, %v3516
    %v3565 = vmul.f32 %v3457, %v3517
    %v3566 = vmul.f32 %v3459, %v3518
    %v3567 = vmul.f32 %v3461, %v3519
    %v3568 = vmul.f32 %v3463, %v3520
    %v3569 = vmul.f32 %v3465, %v3521
    %v3570 = vmul.f32 %v3467, %v3522
    %v3571 = vmul.f32 %v3469, %v3523
    %v3572 = vmul.f32 %v3471, %v3524
    %v3573 = vmul.f32 %v3473, %v3525
    %v3574 = vmul.f32 %v3475, %v3526
    %v3575 = vmul.f32 %v3477, %v3527
    %v3576 = vmul.f32 %v3479, %v3528
    %v3577 = vmul.f32 %v3481, %v3529
    %v3578 = vadd.f32 %v2824, %v3530
    %v3579 = vadd.f32 %v2825, %v3531
    %v3580 = vadd.f32 %v2826, %v3532
    %v3581 = vadd.f32 %v2827, %v3533
    %v3582 = vadd.f32 %v2828, %v3534
    %v3583 = vadd.f32 %v2829, %v3535
    %v3584 = vadd.f32 %v2830, %v3536
    %v3585 = vadd.f32 %v2831, %v3537
    %v3586 = vadd.f32 %v2832, %v3538
    %v3587 = vadd.f32 %v2833, %v3539
    %v3588 = vadd.f32 %v2834, %v3540
    %v3589 = vadd.f32 %v2835, %v3541
    %v3590 = vadd.f32 %v2836, %v3542
    %v3591 = vadd.f32 %v2837, %v3543
    %v3592 = vadd.f32 %v2838, %v3544
    %v3593 = vadd.f32 %v2839, %v3545
    %v3594 = vadd.f32 %v2840, %v3546
    %v3595 = vadd.f32 %v2841, %v3547
    %v3596 = vadd.f32 %v2842, %v3548
    %v3597 = vadd.f32 %v2843, %v3549
    %v3598 = vadd.f32 %v2844, %v3550
    %v3599 = vadd.f32 %v2845, %v3551
    %v3600 = vadd.f32 %v2846, %v3552
    %v3601 = vadd.f32 %v2847, %v3553
    %v3602 = vadd.f32 %v2848, %v3554
    %v3603 = vadd.f32 %v2849, %v3555
    %v3604 = vadd.f32 %v2850, %v3556
    %v3605 = vadd.f32 %v2851, %v3557
    %v3606 = vadd.f32 %v2852, %v3558
    %v3607 = vadd.f32 %v2853, %v3559
    %v3608 = vadd.f32 %v2854, %v3560
    %v3609 = vadd.f32 %v2855, %v3561
    %v3610 = vadd.f32 %v2856, %v3562
    %v3611 = vadd.f32 %v2857, %v3563
    %v3612 = vadd.f32 %v2858, %v3564
    %v3613 = vadd.f32 %v2859, %v3565
    %v3614 = vadd.f32 %v2860, %v3566
    %v3615 = vadd.f32 %v2861, %v3567
    %v3616 = vadd.f32 %v2862, %v3568
    %v3617 = vadd.f32 %v2863, %v3569
    %v3618 = vadd.f32 %v2864, %v3570
    %v3619 = vadd.f32 %v2865, %v3571
    %v3620 = vadd.f32 %v2866, %v3572
    %v3621 = vadd.f32 %v2867, %v3573
    %v3622 = vadd.f32 %v2868, %v3574
    %v3623 = vadd.f32 %v2869, %v3575
    %v3624 = vadd.f32 %v2870, %v3576
    %v3625 = vadd.f32 %v2871, %v3577
    %v3626 = vpack.c.bf16 %v3579, %v3578
    %v3627 = vpack.c.bf16 %v3581, %v3580
    %v3628 = vpack.c.bf16 %v3583, %v3582
    %v3629 = vpack.c.bf16 %v3585, %v3584
    %v3630 = vpack.c.bf16 %v3587, %v3586
    %v3631 = vpack.c.bf16 %v3589, %v3588
    %v3632 = vpack.c.bf16 %v3591, %v3590
    %v3633 = vpack.c.bf16 %v3593, %v3592
    %v3634 = vpack.c.bf16 %v3595, %v3594
    %v3635 = vpack.c.bf16 %v3597, %v3596
    %v3636 = vpack.c.bf16 %v3599, %v3598
    %v3637 = vpack.c.bf16 %v3601, %v3600
    %v3638 = vpack.c.bf16 %v3603, %v3602
    %v3639 = vpack.c.bf16 %v3605, %v3604
    %v3640 = vpack.c.bf16 %v3607, %v3606
    %v3641 = vpack.c.bf16 %v3609, %v3608
    %v3642 = vpack.c.bf16 %v3611, %v3610
    %v3643 = vpack.c.bf16 %v3613, %v3612
    %v3644 = vpack.c.bf16 %v3615, %v3614
    %v3645 = vpack.c.bf16 %v3617, %v3616
    %v3646 = vpack.c.bf16 %v3619, %v3618
    %v3647 = vpack.c.bf16 %v3621, %v3620
    %v3648 = vpack.c.bf16 %v3623, %v3622
    %v3649 = vpack.c.bf16 %v3625, %v3624
    %s3650 = scalar_lea.vmem [#allocation2], 256
    %v3651 = vld [vmem:[%s3650] sm:$0xf]
    %v3652 = vld [vmem:[%s3650 + $0x4] sm:$0xf]
    %v3653 = vld [vmem:[%s3650 + $0x8] sm:$0xf]
    %v3654 = vld [vmem:[%s3650 + $0xc] sm:$0xf]
    %v3655 = vld [vmem:[%s3650 + $0x10] sm:$0xf]
    %v3656 = vld [vmem:[%s3650 + $0x14] sm:$0xf]
    %v3657 = vld [vmem:[%s3650 + $0x18] sm:$0xf]
    %v3658 = vld [vmem:[%s3650 + $0x1c] sm:$0xf]
    %v3659 = vld [vmem:[%s3650 + $0x20] sm:$0xf]
    %v3660 = vld [vmem:[%s3650 + $0x24] sm:$0xf]
    %v3661 = vld [vmem:[%s3650 + $0x28] sm:$0xf]
    %v3662 = vld [vmem:[%s3650 + $0x2c] sm:$0xf]
    %v3663 = vld [vmem:[%s3650 + $0x30] sm:$0xf]
    %v3664 = vld [vmem:[%s3650 + $0x34] sm:$0xf]
    %v3665 = vld [vmem:[%s3650 + $0x38] sm:$0xf]
    %v3666 = vld [vmem:[%s3650 + $0x3c] sm:$0xf]
    %s3667 = scalar_lea.vmem %s4, 4
    %v3668 = vld [vmem:[%s3667] sm:$0x1]
    %v3670 = vlaneseq
    %v3671 = vshrl.u32 %v3670, 7
    %v3672 = vsub.s32 0, %v3671
    %v3673 = vrot.slane %v3668, %v3672
    %v3691 = vunpack.c.l.b16 %v3651
    %v3692 = vunpack.c.l.b16 %v3652
    %v3693 = vunpack.c.l.b16 %v3653
    %v3694 = vunpack.c.l.b16 %v3654
    %v3695 = vunpack.c.l.b16 %v3655
    %v3696 = vunpack.c.l.b16 %v3656
    %v3697 = vunpack.c.l.b16 %v3657
    %v3698 = vunpack.c.l.b16 %v3658
    %v3699 = vunpack.c.l.b16 %v3659
    %v3700 = vunpack.c.l.b16 %v3660
    %v3701 = vunpack.c.l.b16 %v3661
    %v3702 = vunpack.c.l.b16 %v3662
    %v3703 = vunpack.c.l.b16 %v3663
    %v3704 = vunpack.c.l.b16 %v3664
    %v3705 = vunpack.c.l.b16 %v3665
    %v3706 = vunpack.c.l.b16 %v3666
    %v3707 = vpack.c.b16 %v3692, %v3691
    %v3708 = vpack.c.b16 %v3694, %v3693
    %v3709 = vpack.c.b16 %v3696, %v3695
    %v3710 = vpack.c.b16 %v3698, %v3697
    %v3711 = vpack.c.b16 %v3700, %v3699
    %v3712 = vpack.c.b16 %v3702, %v3701
    %v3713 = vpack.c.b16 %v3704, %v3703
    %v3714 = vpack.c.b16 %v3706, %v3705
    %3723 = vmatprep.subr.bf16.mxu0 0
    %3724 = vmatpush1.bf16.msra.mxu0 %v3707
    %3725 = vmatprep.subr.bf16.mxu0 0
    %3726 = vmatpush1.bf16.msra.mxu0 %v3708
    %3727 = vmatprep.subr.bf16.mxu0 0
    %3728 = vmatpush1.bf16.msra.mxu0 %v3709
    %3729 = vmatprep.subr.bf16.mxu0 0
    %3730 = vmatpush1.bf16.msra.mxu0 %v3710
    %3731 = vmatprep.subr.bf16.mxu0 0
    %3732 = vmatpush1.bf16.msra.mxu0 %v3711
    %3733 = vmatprep.subr.bf16.mxu0 0
    %3734 = vmatpush1.bf16.msra.mxu0 %v3712
    %3735 = vmatprep.subr.bf16.mxu0 0
    %3736 = vmatpush1.bf16.msra.mxu0 %v3713
    %3737 = vmatprep.subr.bf16.mxu0 0
    %3738 = vmatpush1.bf16.msra.mxu0 %v3714
    %3739 = vmatprep.subr.bf16.mxu0 0
    %3740 = vmatpush1.bf16.msra.mxu0 0
    %3741 = vmatprep.subr.bf16.mxu0 0
    %3742 = vmatpush1.bf16.msra.mxu0 0
    %3743 = vmatprep.subr.bf16.mxu0 0
    %3744 = vmatpush1.bf16.msra.mxu0 0
    %3745 = vmatprep.subr.bf16.mxu0 0
    %3746 = vmatpush1.bf16.msra.mxu0 0
    %3747 = vmatprep.subr.bf16.mxu0 0
    %3748 = vmatpush1.bf16.msra.mxu0 0
    %3749 = vmatprep.subr.bf16.mxu0 0
    %3750 = vmatpush1.bf16.msra.mxu0 0
    %3751 = vmatprep.subr.bf16.mxu0 0
    %3752 = vmatpush1.bf16.msra.mxu0 0
    %3753 = vmatprep.subr.bf16.mxu0 0
    %3754 = vmatpush1.bf16.msra.mxu0 0
    %3755 = vmatprep.mubr.bf16.mxu0 0
    %3756 = vmatmul.mubr.bf16.gmra.mrb[0].mxu0 %v3626
    %v3757 = vpop.f32.mrb[0].mxu0
    %v3758 = vadd.f32 %v3673, %v3757
    %v3759 = vpop.f32.mrb[0].mxu0
    %v3760 = vpop.f32.mrb[0].mxu0
    %v3761 = vadd.f32 %v3673, %v3760
    %v3762 = vpop.f32.mrb[0].mxu0
    %3763 = vmatprep.mubr.bf16.mxu0 0
    %3764 = vmatmul.mubr.bf16.gmra.mrb[0].mxu0 %v3627
    %v3765 = vpop.f32.mrb[0].mxu0
    %v3766 = vadd.f32 %v3673, %v3765
    %v3767 = vpop.f32.mrb[0].mxu0
    %v3768 = vpop.f32.mrb[0].mxu0
    %v3769 = vadd.f32 %v3673, %v3768
    %v3770 = vpop.f32.mrb[0].mxu0
    %3771 = vmatprep.mubr.bf16.mxu0 0
    %3772 = vmatmul.mubr.bf16.gmra.mrb[0].mxu0 %v3628
    %v3773 = vpop.f32.mrb[0].mxu0
    %v3774 = vadd.f32 %v3673, %v3773
    %v3775 = vpop.f32.mrb[0].mxu0
    %v3776 = vpop.f32.mrb[0].mxu0
    %v3777 = vadd.f32 %v3673, %v3776
    %v3778 = vpop.f32.mrb[0].mxu0
    %3779 = vmatprep.mubr.bf16.mxu0 0
    %3780 = vmatmul.mubr.bf16.gmra.mrb[0].mxu0 %v3629
    %v3781 = vpop.f32.mrb[0].mxu0
    %v3782 = vadd.f32 %v3673, %v3781
    %v3783 = vpop.f32.mrb[0].mxu0
    %v3784 = vpop.f32.mrb[0].mxu0
    %v3785 = vadd.f32 %v3673, %v3784
    %v3786 = vpop.f32.mrb[0].mxu0
    %3787 = vmatprep.mubr.bf16.mxu0 0
    %3788 = vmatmul.mubr.bf16.gmra.mrb[0].mxu0 %v3630
    %v3789 = vpop.f32.mrb[0].mxu0
    %v3790 = vadd.f32 %v3673, %v3789
    %v3791 = vpop.f32.mrb[0].mxu0
    %v3792 = vpop.f32.mrb[0].mxu0
    %v3793 = vadd.f32 %v3673, %v3792
    %v3794 = vpop.f32.mrb[0].mxu0
    %3795 = vmatprep.mubr.bf16.mxu0 0
    %3796 = vmatmul.mubr.bf16.gmra.mrb[0].mxu0 %v3631
    %v3797 = vpop.f32.mrb[0].mxu0
    %v3798 = vadd.f32 %v3673, %v3797
    %v3799 = vpop.f32.mrb[0].mxu0
    %v3800 = vpop.f32.mrb[0].mxu0
    %v3801 = vadd.f32 %v3673, %v3800
    %v3802 = vpop.f32.mrb[0].mxu0
    %3803 = vmatprep.mubr.bf16.mxu0 0
    %3804 = vmatmul.mubr.bf16.gmra.mrb[0].mxu0 %v3632
    %v3805 = vpop.f32.mrb[0].mxu0
    %v3806 = vadd.f32 %v3673, %v3805
    %v3807 = vpop.f32.mrb[0].mxu0
    %v3808 = vpop.f32.mrb[0].mxu0
    %v3809 = vadd.f32 %v3673, %v3808
    %v3810 = vpop.f32.mrb[0].mxu0
    %3811 = vmatprep.mubr.bf16.mxu0 0
    %3812 = vmatmul.mubr.bf16.gmra.mrb[0].mxu0 %v3633
    %v3813 = vpop.f32.mrb[0].mxu0
    %v3814 = vadd.f32 %v3673, %v3813
    %v3815 = vpop.f32.mrb[0].mxu0
    %v3816 = vpop.f32.mrb[0].mxu0
    %v3817 = vadd.f32 %v3673, %v3816
    %v3818 = vpop.f32.mrb[0].mxu0
    %3819 = vmatprep.mubr.bf16.mxu0 0
    %3820 = vmatmul.mubr.bf16.gmra.mrb[0].mxu0 %v3634
    %v3821 = vpop.f32.mrb[0].mxu0
    %v3822 = vadd.f32 %v3673, %v3821
    %v3823 = vpop.f32.mrb[0].mxu0
    %v3824 = vpop.f32.mrb[0].mxu0
    %v3825 = vadd.f32 %v3673, %v3824
    %v3826 = vpop.f32.mrb[0].mxu0
    %3827 = vmatprep.mubr.bf16.mxu0 0
    %3828 = vmatmul.mubr.bf16.gmra.mrb[0].mxu0 %v3635
    %v3829 = vpop.f32.mrb[0].mxu0
    %v3830 = vadd.f32 %v3673, %v3829
    %v3831 = vpop.f32.mrb[0].mxu0
    %v3832 = vpop.f32.mrb[0].mxu0
    %v3833 = vadd.f32 %v3673, %v3832
    %v3834 = vpop.f32.mrb[0].mxu0
    %3835 = vmatprep.mubr.bf16.mxu0 0
    %3836 = vmatmul.mubr.bf16.gmra.mrb[0].mxu0 %v3636
    %v3837 = vpop.f32.mrb[0].mxu0
    %v3838 = vadd.f32 %v3673, %v3837
    %v3839 = vpop.f32.mrb[0].mxu0
    %v3840 = vpop.f32.mrb[0].mxu0
    %v3841 = vadd.f32 %v3673, %v3840
    %v3842 = vpop.f32.mrb[0].mxu0
    %3843 = vmatprep.mubr.bf16.mxu0 0
    %3844 = vmatmul.mubr.bf16.gmra.mrb[0].mxu0 %v3637
    %v3845 = vpop.f32.mrb[0].mxu0
    %v3846 = vadd.f32 %v3673, %v3845
    %v3847 = vpop.f32.mrb[0].mxu0
    %v3848 = vpop.f32.mrb[0].mxu0
    %v3849 = vadd.f32 %v3673, %v3848
    %v3850 = vpop.f32.mrb[0].mxu0
    %3851 = vmatprep.mubr.bf16.mxu0 0
    %3852 = vmatmul.mubr.bf16.gmra.mrb[0].mxu0 %v3638
    %v3853 = vpop.f32.mrb[0].mxu0
    %v3854 = vadd.f32 %v3673, %v3853
    %v3855 = vpop.f32.mrb[0].mxu0
    %v3856 = vpop.f32.mrb[0].mxu0
    %v3857 = vadd.f32 %v3673, %v3856
    %v3858 = vpop.f32.mrb[0].mxu0
    %3859 = vmatprep.mubr.bf16.mxu0 0
    %3860 = vmatmul.mubr.bf16.gmra.mrb[0].mxu0 %v3639
    %v3861 = vpop.f32.mrb[0].mxu0
    %v3862 = vadd.f32 %v3673, %v3861
    %v3863 = vpop.f32.mrb[0].mxu0
    %v3864 = vpop.f32.mrb[0].mxu0
    %v3865 = vadd.f32 %v3673, %v3864
    %v3866 = vpop.f32.mrb[0].mxu0
    %3867 = vmatprep.mubr.bf16.mxu0 0
    %3868 = vmatmul.mubr.bf16.gmra.mrb[0].mxu0 %v3640
    %v3869 = vpop.f32.mrb[0].mxu0
    %v3870 = vadd.f32 %v3673, %v3869
    %v3871 = vpop.f32.mrb[0].mxu0
    %v3872 = vpop.f32.mrb[0].mxu0
    %v3873 = vadd.f32 %v3673, %v3872
    %v3874 = vpop.f32.mrb[0].mxu0
    %3875 = vmatprep.mubr.bf16.mxu0 0
    %3876 = vmatmul.mubr.bf16.gmra.mrb[0].mxu0 %v3641
    %v3877 = vpop.f32.mrb[0].mxu0
    %v3878 = vadd.f32 %v3673, %v3877
    %v3879 = vpop.f32.mrb[0].mxu0
    %v3880 = vpop.f32.mrb[0].mxu0
    %v3881 = vadd.f32 %v3673, %v3880
    %v3882 = vpop.f32.mrb[0].mxu0
    %3883 = vmatprep.mubr.bf16.mxu0 0
    %3884 = vmatmul.mubr.bf16.gmra.mrb[0].mxu0 %v3642
    %v3885 = vpop.f32.mrb[0].mxu0
    %v3886 = vadd.f32 %v3673, %v3885
    %v3887 = vpop.f32.mrb[0].mxu0
    %v3888 = vpop.f32.mrb[0].mxu0
    %v3889 = vadd.f32 %v3673, %v3888
    %v3890 = vpop.f32.mrb[0].mxu0
    %3891 = vmatprep.mubr.bf16.mxu0 0
    %3892 = vmatmul.mubr.bf16.gmra.mrb[0].mxu0 %v3643
    %v3893 = vpop.f32.mrb[0].mxu0
    %v3894 = vadd.f32 %v3673, %v3893
    %v3895 = vpop.f32.mrb[0].mxu0
    %v3896 = vpop.f32.mrb[0].mxu0
    %v3897 = vadd.f32 %v3673, %v3896
    %v3898 = vpop.f32.mrb[0].mxu0
    %3899 = vmatprep.mubr.bf16.mxu0 0
    %3900 = vmatmul.mubr.bf16.gmra.mrb[0].mxu0 %v3644
    %v3901 = vpop.f32.mrb[0].mxu0
    %v3902 = vadd.f32 %v3673, %v3901
    %v3903 = vpop.f32.mrb[0].mxu0
    %v3904 = vpop.f32.mrb[0].mxu0
    %v3905 = vadd.f32 %v3673, %v3904
    %v3906 = vpop.f32.mrb[0].mxu0
    %3907 = vmatprep.mubr.bf16.mxu0 0
    %3908 = vmatmul.mubr.bf16.gmra.mrb[0].mxu0 %v3645
    %v3909 = vpop.f32.mrb[0].mxu0
    %v3910 = vadd.f32 %v3673, %v3909
    %v3911 = vpop.f32.mrb[0].mxu0
    %v3912 = vpop.f32.mrb[0].mxu0
    %v3913 = vadd.f32 %v3673, %v3912
    %v3914 = vpop.f32.mrb[0].mxu0
    %3915 = vmatprep.mubr.bf16.mxu0 0
    %3916 = vmatmul.mubr.bf16.gmra.mrb[0].mxu0 %v3646
    %v3917 = vpop.f32.mrb[0].mxu0
    %v3918 = vadd.f32 %v3673, %v3917
    %v3919 = vpop.f32.mrb[0].mxu0
    %v3920 = vpop.f32.mrb[0].mxu0
    %v3921 = vadd.f32 %v3673, %v3920
    %v3922 = vpop.f32.mrb[0].mxu0
    %3923 = vmatprep.mubr.bf16.mxu0 0
    %3924 = vmatmul.mubr.bf16.gmra.mrb[0].mxu0 %v3647
    %v3925 = vpop.f32.mrb[0].mxu0
    %v3926 = vadd.f32 %v3673, %v3925
    %v3927 = vpop.f32.mrb[0].mxu0
    %v3928 = vpop.f32.mrb[0].mxu0
    %v3929 = vadd.f32 %v3673, %v3928
    %v3930 = vpop.f32.mrb[0].mxu0
    %3931 = vmatprep.mubr.bf16.mxu0 0
    %3932 = vmatmul.mubr.bf16.gmra.mrb[0].mxu0 %v3648
    %v3933 = vpop.f32.mrb[0].mxu0
    %v3934 = vadd.f32 %v3673, %v3933
    %v3935 = vpop.f32.mrb[0].mxu0
    %v3936 = vpop.f32.mrb[0].mxu0
    %v3937 = vadd.f32 %v3673, %v3936
    %v3938 = vpop.f32.mrb[0].mxu0
    %3939 = vmatprep.mubr.bf16.mxu0 0
    %3940 = vmatmul.mubr.bf16.gmra.mrb[0].mxu0 %v3649
    %v3941 = vpop.f32.mrb[0].mxu0
    %v3942 = vadd.f32 %v3673, %v3941
    %v3943 = vpop.f32.mrb[0].mxu0
    %v3944 = vpop.f32.mrb[0].mxu0
    %v3945 = vadd.f32 %v3673, %v3944
    %v3946 = vpop.f32.mrb[0].mxu0
    %3947 = vdwg.mxu0
    %v3948 = vmul.f32 %v3758, 0.5
    %v3949 = vmul.f32 %v3761, 0.5
    %v3950 = vmul.f32 %v3766, 0.5
    %v3951 = vmul.f32 %v3769, 0.5
    %v3952 = vmul.f32 %v3774, 0.5
    %v3953 = vmul.f32 %v3777, 0.5
    %v3954 = vmul.f32 %v3782, 0.5
    %v3955 = vmul.f32 %v3785, 0.5
    %v3956 = vmul.f32 %v3790, 0.5
    %v3957 = vmul.f32 %v3793, 0.5
    %v3958 = vmul.f32 %v3798, 0.5
    %v3959 = vmul.f32 %v3801, 0.5
    %v3960 = vmul.f32 %v3806, 0.5
    %v3961 = vmul.f32 %v3809, 0.5
    %v3962 = vmul.f32 %v3814, 0.5
    %v3963 = vmul.f32 %v3817, 0.5
    %v3964 = vmul.f32 %v3822, 0.5
    %v3965 = vmul.f32 %v3825, 0.5
    %v3966 = vmul.f32 %v3830, 0.5
    %v3967 = vmul.f32 %v3833, 0.5
    %v3968 = vmul.f32 %v3838, 0.5
    %v3969 = vmul.f32 %v3841, 0.5
    %v3970 = vmul.f32 %v3846, 0.5
    %v3971 = vmul.f32 %v3849, 0.5
    %v3972 = vmul.f32 %v3854, 0.5
    %v3973 = vmul.f32 %v3857, 0.5
    %v3974 = vmul.f32 %v3862, 0.5
    %v3975 = vmul.f32 %v3865, 0.5
    %v3976 = vmul.f32 %v3870, 0.5
    %v3977 = vmul.f32 %v3873, 0.5
    %v3978 = vmul.f32 %v3878, 0.5
    %v3979 = vmul.f32 %v3881, 0.5
    %v3980 = vmul.f32 %v3886, 0.5
    %v3981 = vmul.f32 %v3889, 0.5
    %v3982 = vmul.f32 %v3894, 0.5
    %v3983 = vmul.f32 %v3897, 0.5
    %v3984 = vmul.f32 %v3902, 0.5
    %v3985 = vmul.f32 %v3905, 0.5
    %v3986 = vmul.f32 %v3910, 0.5
    %v3987 = vmul.f32 %v3913, 0.5
    %v3988 = vmul.f32 %v3918, 0.5
    %v3989 = vmul.f32 %v3921, 0.5
    %v3990 = vmul.f32 %v3926, 0.5
    %v3991 = vmul.f32 %v3929, 0.5
    %v3992 = vmul.f32 %v3934, 0.5
    %v3993 = vmul.f32 %v3937, 0.5
    %v3994 = vmul.f32 %v3942, 0.5
    %v3995 = vmul.f32 %v3945, 0.5
    %v3996 = vtanh.pop %v3948
    %v3997 = vtanh.pop %v3949
    %v3998 = vtanh.pop %v3950
    %v3999 = vtanh.pop %v3951
    %v4000 = vtanh.pop %v3952
    %v4001 = vtanh.pop %v3953
    %v4002 = vtanh.pop %v3954
    %v4003 = vtanh.pop %v3955
    %v4004 = vtanh.pop %v3956
    %v4005 = vtanh.pop %v3957
    %v4006 = vtanh.pop %v3958
    %v4007 = vtanh.pop %v3959
    %v4008 = vtanh.pop %v3960
    %v4009 = vtanh.pop %v3961
    %v4010 = vtanh.pop %v3962
    %v4011 = vtanh.pop %v3963
    %v4012 = vtanh.pop %v3964
    %v4013 = vtanh.pop %v3965
    %v4014 = vtanh.pop %v3966
    %v4015 = vtanh.pop %v3967
    %v4016 = vtanh.pop %v3968
    %v4017 = vtanh.pop %v3969
    %v4018 = vtanh.pop %v3970
    %v4019 = vtanh.pop %v3971
    %v4020 = vtanh.pop %v3972
    %v4021 = vtanh.pop %v3973
    %v4022 = vtanh.pop %v3974
    %v4023 = vtanh.pop %v3975
    %v4024 = vtanh.pop %v3976
    %v4025 = vtanh.pop %v3977
    %v4026 = vtanh.pop %v3978
    %v4027 = vtanh.pop %v3979
    %v4028 = vtanh.pop %v3980
    %v4029 = vtanh.pop %v3981
    %v4030 = vtanh.pop %v3982
    %v4031 = vtanh.pop %v3983
    %v4032 = vtanh.pop %v3984
    %v4033 = vtanh.pop %v3985
    %v4034 = vtanh.pop %v3986
    %v4035 = vtanh.pop %v3987
    %v4036 = vtanh.pop %v3988
    %v4037 = vtanh.pop %v3989
    %v4038 = vtanh.pop %v3990
    %v4039 = vtanh.pop %v3991
    %v4040 = vtanh.pop %v3992
    %v4041 = vtanh.pop %v3993
    %v4042 = vtanh.pop %v3994
    %v4043 = vtanh.pop %v3995
    %v4044 = vmul.f32 %v3996, 0.5
    %v4045 = vmul.f32 %v3997, 0.5
    %v4046 = vmul.f32 %v3998, 0.5
    %v4047 = vmul.f32 %v3999, 0.5
    %v4048 = vmul.f32 %v4000, 0.5
    %v4049 = vmul.f32 %v4001, 0.5
    %v4050 = vmul.f32 %v4002, 0.5
    %v4051 = vmul.f32 %v4003, 0.5
    %v4052 = vmul.f32 %v4004, 0.5
    %v4053 = vmul.f32 %v4005, 0.5
    %v4054 = vmul.f32 %v4006, 0.5
    %v4055 = vmul.f32 %v4007, 0.5
    %v4056 = vmul.f32 %v4008, 0.5
    %v4057 = vmul.f32 %v4009, 0.5
    %v4058 = vmul.f32 %v4010, 0.5
    %v4059 = vmul.f32 %v4011, 0.5
    %v4060 = vmul.f32 %v4012, 0.5
    %v4061 = vmul.f32 %v4013, 0.5
    %v4062 = vmul.f32 %v4014, 0.5
    %v4063 = vmul.f32 %v4015, 0.5
    %v4064 = vmul.f32 %v4016, 0.5
    %v4065 = vmul.f32 %v4017, 0.5
    %v4066 = vmul.f32 %v4018, 0.5
    %v4067 = vmul.f32 %v4019, 0.5
    %v4068 = vmul.f32 %v4020, 0.5
    %v4069 = vmul.f32 %v4021, 0.5
    %v4070 = vmul.f32 %v4022, 0.5
    %v4071 = vmul.f32 %v4023, 0.5
    %v4072 = vmul.f32 %v4024, 0.5
    %v4073 = vmul.f32 %v4025, 0.5
    %v4074 = vmul.f32 %v4026, 0.5
    %v4075 = vmul.f32 %v4027, 0.5
    %v4076 = vmul.f32 %v4028, 0.5
    %v4077 = vmul.f32 %v4029, 0.5
    %v4078 = vmul.f32 %v4030, 0.5
    %v4079 = vmul.f32 %v4031, 0.5
    %v4080 = vmul.f32 %v4032, 0.5
    %v4081 = vmul.f32 %v4033, 0.5
    %v4082 = vmul.f32 %v4034, 0.5
    %v4083 = vmul.f32 %v4035, 0.5
    %v4084 = vmul.f32 %v4036, 0.5
    %v4085 = vmul.f32 %v4037, 0.5
    %v4086 = vmul.f32 %v4038, 0.5
    %v4087 = vmul.f32 %v4039, 0.5
    %v4088 = vmul.f32 %v4040, 0.5
    %v4089 = vmul.f32 %v4041, 0.5
    %v4090 = vmul.f32 %v4042, 0.5
    %v4091 = vmul.f32 %v4043, 0.5
    %v4092 = vadd.f32 %v4044, 0.5
    %v4093 = vadd.f32 %v4045, 0.5
    %v4094 = vadd.f32 %v4046, 0.5
    %v4095 = vadd.f32 %v4047, 0.5
    %v4096 = vadd.f32 %v4048, 0.5
    %v4097 = vadd.f32 %v4049, 0.5
    %v4098 = vadd.f32 %v4050, 0.5
    %v4099 = vadd.f32 %v4051, 0.5
    %v4100 = vadd.f32 %v4052, 0.5
    %v4101 = vadd.f32 %v4053, 0.5
    %v4102 = vadd.f32 %v4054, 0.5
    %v4103 = vadd.f32 %v4055, 0.5
    %v4104 = vadd.f32 %v4056, 0.5
    %v4105 = vadd.f32 %v4057, 0.5
    %v4106 = vadd.f32 %v4058, 0.5
    %v4107 = vadd.f32 %v4059, 0.5
    %v4108 = vadd.f32 %v4060, 0.5
    %v4109 = vadd.f32 %v4061, 0.5
    %v4110 = vadd.f32 %v4062, 0.5
    %v4111 = vadd.f32 %v4063, 0.5
    %v4112 = vadd.f32 %v4064, 0.5
    %v4113 = vadd.f32 %v4065, 0.5
    %v4114 = vadd.f32 %v4066, 0.5
    %v4115 = vadd.f32 %v4067, 0.5
    %v4116 = vadd.f32 %v4068, 0.5
    %v4117 = vadd.f32 %v4069, 0.5
    %v4118 = vadd.f32 %v4070, 0.5
    %v4119 = vadd.f32 %v4071, 0.5
    %v4120 = vadd.f32 %v4072, 0.5
    %v4121 = vadd.f32 %v4073, 0.5
    %v4122 = vadd.f32 %v4074, 0.5
    %v4123 = vadd.f32 %v4075, 0.5
    %v4124 = vadd.f32 %v4076, 0.5
    %v4125 = vadd.f32 %v4077, 0.5
    %v4126 = vadd.f32 %v4078, 0.5
    %v4127 = vadd.f32 %v4079, 0.5
    %v4128 = vadd.f32 %v4080, 0.5
    %v4129 = vadd.f32 %v4081, 0.5
    %v4130 = vadd.f32 %v4082, 0.5
    %v4131 = vadd.f32 %v4083, 0.5
    %v4132 = vadd.f32 %v4084, 0.5
    %v4133 = vadd.f32 %v4085, 0.5
    %v4134 = vadd.f32 %v4086, 0.5
    %v4135 = vadd.f32 %v4087, 0.5
    %v4136 = vadd.f32 %v4088, 0.5
    %v4137 = vadd.f32 %v4089, 0.5
    %v4138 = vadd.f32 %v4090, 0.5
    %v4139 = vadd.f32 %v4091, 0.5
    %4140 = vrot.lane.b32.xlu0 %v4092, 64
    %v4141 = vpop.permute.xlu0 %4140
    %4142 = vrot.lane.b32.xlu0 %v4093, 64
    %v4143 = vpop.permute.xlu0 %4142
    %4144 = vrot.lane.b32.xlu0 %v4094, 64
    %v4145 = vpop.permute.xlu0 %4144
    %4146 = vrot.lane.b32.xlu0 %v4095, 64
    %v4147 = vpop.permute.xlu0 %4146
    %4148 = vrot.lane.b32.xlu0 %v4096, 64
    %v4149 = vpop.permute.xlu0 %4148
    %4150 = vrot.lane.b32.xlu0 %v4097, 64
    %v4151 = vpop.permute.xlu0 %4150
    %4152 = vrot.lane.b32.xlu0 %v4098, 64
    %v4153 = vpop.permute.xlu0 %4152
    %4154 = vrot.lane.b32.xlu0 %v4099, 64
    %v4155 = vpop.permute.xlu0 %4154
    %4156 = vrot.lane.b32.xlu0 %v4100, 64
    %v4157 = vpop.permute.xlu0 %4156
    %4158 = vrot.lane.b32.xlu0 %v4101, 64
    %v4159 = vpop.permute.xlu0 %4158
    %4160 = vrot.lane.b32.xlu0 %v4102, 64
    %v4161 = vpop.permute.xlu0 %4160
    %4162 = vrot.lane.b32.xlu0 %v4103, 64
    %v4163 = vpop.permute.xlu0 %4162
    %4164 = vrot.lane.b32.xlu0 %v4104, 64
    %v4165 = vpop.permute.xlu0 %4164
    %4166 = vrot.lane.b32.xlu0 %v4105, 64
    %v4167 = vpop.permute.xlu0 %4166
    %4168 = vrot.lane.b32.xlu0 %v4106, 64
    %v4169 = vpop.permute.xlu0 %4168
    %4170 = vrot.lane.b32.xlu0 %v4107, 64
    %v4171 = vpop.permute.xlu0 %4170
    %4172 = vrot.lane.b32.xlu0 %v4108, 64
    %v4173 = vpop.permute.xlu0 %4172
    %4174 = vrot.lane.b32.xlu0 %v4109, 64
    %v4175 = vpop.permute.xlu0 %4174
    %4176 = vrot.lane.b32.xlu0 %v4110, 64
    %v4177 = vpop.permute.xlu0 %4176
    %4178 = vrot.lane.b32.xlu0 %v4111, 64
    %v4179 = vpop.permute.xlu0 %4178
    %4180 = vrot.lane.b32.xlu0 %v4112, 64
    %v4181 = vpop.permute.xlu0 %4180
    %4182 = vrot.lane.b32.xlu0 %v4113, 64
    %v4183 = vpop.permute.xlu0 %4182
    %4184 = vrot.lane.b32.xlu0 %v4114, 64
    %v4185 = vpop.permute.xlu0 %4184
    %4186 = vrot.lane.b32.xlu0 %v4115, 64
    %v4187 = vpop.permute.xlu0 %4186
    %4188 = vrot.lane.b32.xlu0 %v4116, 64
    %v4189 = vpop.permute.xlu0 %4188
    %4190 = vrot.lane.b32.xlu0 %v4117, 64
    %v4191 = vpop.permute.xlu0 %4190
    %4192 = vrot.lane.b32.xlu0 %v4118, 64
    %v4193 = vpop.permute.xlu0 %4192
    %4194 = vrot.lane.b32.xlu0 %v4119, 64
    %v4195 = vpop.permute.xlu0 %4194
    %4196 = vrot.lane.b32.xlu0 %v4120, 64
    %v4197 = vpop.permute.xlu0 %4196
    %4198 = vrot.lane.b32.xlu0 %v4121, 64
    %v4199 = vpop.permute.xlu0 %4198
    %4200 = vrot.lane.b32.xlu0 %v4122, 64
    %v4201 = vpop.permute.xlu0 %4200
    %4202 = vrot.lane.b32.xlu0 %v4123, 64
    %v4203 = vpop.permute.xlu0 %4202
    %4204 = vrot.lane.b32.xlu0 %v4124, 64
    %v4205 = vpop.permute.xlu0 %4204
    %4206 = vrot.lane.b32.xlu0 %v4125, 64
    %v4207 = vpop.permute.xlu0 %4206
    %4208 = vrot.lane.b32.xlu0 %v4126, 64
    %v4209 = vpop.permute.xlu0 %4208
    %4210 = vrot.lane.b32.xlu0 %v4127, 64
    %v4211 = vpop.permute.xlu0 %4210
    %4212 = vrot.lane.b32.xlu0 %v4128, 64
    %v4213 = vpop.permute.xlu0 %4212
    %4214 = vrot.lane.b32.xlu0 %v4129, 64
    %v4215 = vpop.permute.xlu0 %4214
    %4216 = vrot.lane.b32.xlu0 %v4130, 64
    %v4217 = vpop.permute.xlu0 %4216
    %4218 = vrot.lane.b32.xlu0 %v4131, 64
    %v4219 = vpop.permute.xlu0 %4218
    %4220 = vrot.lane.b32.xlu0 %v4132, 64
    %v4221 = vpop.permute.xlu0 %4220
    %4222 = vrot.lane.b32.xlu0 %v4133, 64
    %v4223 = vpop.permute.xlu0 %4222
    %4224 = vrot.lane.b32.xlu0 %v4134, 64
    %v4225 = vpop.permute.xlu0 %4224
    %4226 = vrot.lane.b32.xlu0 %v4135, 64
    %v4227 = vpop.permute.xlu0 %4226
    %4228 = vrot.lane.b32.xlu0 %v4136, 64
    %v4229 = vpop.permute.xlu0 %4228
    %4230 = vrot.lane.b32.xlu0 %v4137, 64
    %v4231 = vpop.permute.xlu0 %4230
    %4232 = vrot.lane.b32.xlu0 %v4138, 64
    %v4233 = vpop.permute.xlu0 %4232
    %4234 = vrot.lane.b32.xlu0 %v4139, 64
    %v4235 = vpop.permute.xlu0 %4234
    %v4236 = vsub.f32 %v4092, %v3578
    %v4237 = vsub.f32 %v4093, %v3579
    %v4238 = vsub.f32 %v4094, %v3580
    %v4239 = vsub.f32 %v4095, %v3581
    %v4240 = vsub.f32 %v4096, %v3582
    %v4241 = vsub.f32 %v4097, %v3583
    %v4242 = vsub.f32 %v4098, %v3584
    %v4243 = vsub.f32 %v4099, %v3585
    %v4244 = vsub.f32 %v4100, %v3586
    %v4245 = vsub.f32 %v4101, %v3587
    %v4246 = vsub.f32 %v4102, %v3588
    %v4247 = vsub.f32 %v4103, %v3589
    %v4248 = vsub.f32 %v4104, %v3590
    %v4249 = vsub.f32 %v4105, %v3591
    %v4250 = vsub.f32 %v4106, %v3592
    %v4251 = vsub.f32 %v4107, %v3593
    %v4252 = vsub.f32 %v4108, %v3594
    %v4253 = vsub.f32 %v4109, %v3595
    %v4254 = vsub.f32 %v4110, %v3596
    %v4255 = vsub.f32 %v4111, %v3597
    %v4256 = vsub.f32 %v4112, %v3598
    %v4257 = vsub.f32 %v4113, %v3599
    %v4258 = vsub.f32 %v4114, %v3600
    %v4259 = vsub.f32 %v4115, %v3601
    %v4260 = vsub.f32 %v4116, %v3602
    %v4261 = vsub.f32 %v4117, %v3603
    %v4262 = vsub.f32 %v4118, %v3604
    %v4263 = vsub.f32 %v4119, %v3605
    %v4264 = vsub.f32 %v4120, %v3606
    %v4265 = vsub.f32 %v4121, %v3607
    %v4266 = vsub.f32 %v4122, %v3608
    %v4267 = vsub.f32 %v4123, %v3609
    %v4268 = vsub.f32 %v4124, %v3610
    %v4269 = vsub.f32 %v4125, %v3611
    %v4270 = vsub.f32 %v4126, %v3612
    %v4271 = vsub.f32 %v4127, %v3613
    %v4272 = vsub.f32 %v4128, %v3614
    %v4273 = vsub.f32 %v4129, %v3615
    %v4274 = vsub.f32 %v4130, %v3616
    %v4275 = vsub.f32 %v4131, %v3617
    %v4276 = vsub.f32 %v4132, %v3618
    %v4277 = vsub.f32 %v4133, %v3619
    %v4278 = vsub.f32 %v4134, %v3620
    %v4279 = vsub.f32 %v4135, %v3621
    %v4280 = vsub.f32 %v4136, %v3622
    %v4281 = vsub.f32 %v4137, %v3623
    %v4282 = vsub.f32 %v4138, %v3624
    %v4283 = vsub.f32 %v4139, %v3625
    %v4284 = vmul.f32 %v4141, %v4236
    %v4285 = vmul.f32 %v4143, %v4237
    %v4286 = vmul.f32 %v4145, %v4238
    %v4287 = vmul.f32 %v4147, %v4239
    %v4288 = vmul.f32 %v4149, %v4240
    %v4289 = vmul.f32 %v4151, %v4241
    %v4290 = vmul.f32 %v4153, %v4242
    %v4291 = vmul.f32 %v4155, %v4243
    %v4292 = vmul.f32 %v4157, %v4244
    %v4293 = vmul.f32 %v4159, %v4245
    %v4294 = vmul.f32 %v4161, %v4246
    %v4295 = vmul.f32 %v4163, %v4247
    %v4296 = vmul.f32 %v4165, %v4248
    %v4297 = vmul.f32 %v4167, %v4249
    %v4298 = vmul.f32 %v4169, %v4250
    %v4299 = vmul.f32 %v4171, %v4251
    %v4300 = vmul.f32 %v4173, %v4252
    %v4301 = vmul.f32 %v4175, %v4253
    %v4302 = vmul.f32 %v4177, %v4254
    %v4303 = vmul.f32 %v4179, %v4255
    %v4304 = vmul.f32 %v4181, %v4256
    %v4305 = vmul.f32 %v4183, %v4257
    %v4306 = vmul.f32 %v4185, %v4258
    %v4307 = vmul.f32 %v4187, %v4259
    %v4308 = vmul.f32 %v4189, %v4260
    %v4309 = vmul.f32 %v4191, %v4261
    %v4310 = vmul.f32 %v4193, %v4262
    %v4311 = vmul.f32 %v4195, %v4263
    %v4312 = vmul.f32 %v4197, %v4264
    %v4313 = vmul.f32 %v4199, %v4265
    %v4314 = vmul.f32 %v4201, %v4266
    %v4315 = vmul.f32 %v4203, %v4267
    %v4316 = vmul.f32 %v4205, %v4268
    %v4317 = vmul.f32 %v4207, %v4269
    %v4318 = vmul.f32 %v4209, %v4270
    %v4319 = vmul.f32 %v4211, %v4271
    %v4320 = vmul.f32 %v4213, %v4272
    %v4321 = vmul.f32 %v4215, %v4273
    %v4322 = vmul.f32 %v4217, %v4274
    %v4323 = vmul.f32 %v4219, %v4275
    %v4324 = vmul.f32 %v4221, %v4276
    %v4325 = vmul.f32 %v4223, %v4277
    %v4326 = vmul.f32 %v4225, %v4278
    %v4327 = vmul.f32 %v4227, %v4279
    %v4328 = vmul.f32 %v4229, %v4280
    %v4329 = vmul.f32 %v4231, %v4281
    %v4330 = vmul.f32 %v4233, %v4282
    %v4331 = vmul.f32 %v4235, %v4283
    %v4332 = vadd.f32 %v3578, %v4284
    %v4333 = vadd.f32 %v3579, %v4285
    %v4334 = vadd.f32 %v3580, %v4286
    %v4335 = vadd.f32 %v3581, %v4287
    %v4336 = vadd.f32 %v3582, %v4288
    %v4337 = vadd.f32 %v3583, %v4289
    %v4338 = vadd.f32 %v3584, %v4290
    %v4339 = vadd.f32 %v3585, %v4291
    %v4340 = vadd.f32 %v3586, %v4292
    %v4341 = vadd.f32 %v3587, %v4293
    %v4342 = vadd.f32 %v3588, %v4294
    %v4343 = vadd.f32 %v3589, %v4295
    %v4344 = vadd.f32 %v3590, %v4296
    %v4345 = vadd.f32 %v3591, %v4297
    %v4346 = vadd.f32 %v3592, %v4298
    %v4347 = vadd.f32 %v3593, %v4299
    %v4348 = vadd.f32 %v3594, %v4300
    %v4349 = vadd.f32 %v3595, %v4301
    %v4350 = vadd.f32 %v3596, %v4302
    %v4351 = vadd.f32 %v3597, %v4303
    %v4352 = vadd.f32 %v3598, %v4304
    %v4353 = vadd.f32 %v3599, %v4305
    %v4354 = vadd.f32 %v3600, %v4306
    %v4355 = vadd.f32 %v3601, %v4307
    %v4356 = vadd.f32 %v3602, %v4308
    %v4357 = vadd.f32 %v3603, %v4309
    %v4358 = vadd.f32 %v3604, %v4310
    %v4359 = vadd.f32 %v3605, %v4311
    %v4360 = vadd.f32 %v3606, %v4312
    %v4361 = vadd.f32 %v3607, %v4313
    %v4362 = vadd.f32 %v3608, %v4314
    %v4363 = vadd.f32 %v3609, %v4315
    %v4364 = vadd.f32 %v3610, %v4316
    %v4365 = vadd.f32 %v3611, %v4317
    %v4366 = vadd.f32 %v3612, %v4318
    %v4367 = vadd.f32 %v3613, %v4319
    %v4368 = vadd.f32 %v3614, %v4320
    %v4369 = vadd.f32 %v3615, %v4321
    %v4370 = vadd.f32 %v3616, %v4322
    %v4371 = vadd.f32 %v3617, %v4323
    %v4372 = vadd.f32 %v3618, %v4324
    %v4373 = vadd.f32 %v3619, %v4325
    %v4374 = vadd.f32 %v3620, %v4326
    %v4375 = vadd.f32 %v3621, %v4327
    %v4376 = vadd.f32 %v3622, %v4328
    %v4377 = vadd.f32 %v3623, %v4329
    %v4378 = vadd.f32 %v3624, %v4330
    %v4379 = vadd.f32 %v3625, %v4331
    %v4380 = vpack.c.bf16 %v4333, %v4332
    %v4381 = vpack.c.bf16 %v4335, %v4334
    %v4382 = vpack.c.bf16 %v4337, %v4336
    %v4383 = vpack.c.bf16 %v4339, %v4338
    %v4384 = vpack.c.bf16 %v4341, %v4340
    %v4385 = vpack.c.bf16 %v4343, %v4342
    %v4386 = vpack.c.bf16 %v4345, %v4344
    %v4387 = vpack.c.bf16 %v4347, %v4346
    %v4388 = vpack.c.bf16 %v4349, %v4348
    %v4389 = vpack.c.bf16 %v4351, %v4350
    %v4390 = vpack.c.bf16 %v4353, %v4352
    %v4391 = vpack.c.bf16 %v4355, %v4354
    %v4392 = vpack.c.bf16 %v4357, %v4356
    %v4393 = vpack.c.bf16 %v4359, %v4358
    %v4394 = vpack.c.bf16 %v4361, %v4360
    %v4395 = vpack.c.bf16 %v4363, %v4362
    %v4396 = vpack.c.bf16 %v4365, %v4364
    %v4397 = vpack.c.bf16 %v4367, %v4366
    %v4398 = vpack.c.bf16 %v4369, %v4368
    %v4399 = vpack.c.bf16 %v4371, %v4370
    %v4400 = vpack.c.bf16 %v4373, %v4372
    %v4401 = vpack.c.bf16 %v4375, %v4374
    %v4402 = vpack.c.bf16 %v4377, %v4376
    %v4403 = vpack.c.bf16 %v4379, %v4378
    %s4404 = scalar_lea.vmem [#allocation2], 320
    %v4405 = vld [vmem:[%s4404] sm:$0xf]
    %v4406 = vld [vmem:[%s4404 + $0x4] sm:$0xf]
    %v4407 = vld [vmem:[%s4404 + $0x8] sm:$0xf]
    %v4408 = vld [vmem:[%s4404 + $0xc] sm:$0xf]
    %v4409 = vld [vmem:[%s4404 + $0x10] sm:$0xf]
    %v4410 = vld [vmem:[%s4404 + $0x14] sm:$0xf]
    %v4411 = vld [vmem:[%s4404 + $0x18] sm:$0xf]
    %v4412 = vld [vmem:[%s4404 + $0x1c] sm:$0xf]
    %v4413 = vld [vmem:[%s4404 + $0x20] sm:$0xf]
    %v4414 = vld [vmem:[%s4404 + $0x24] sm:$0xf]
    %v4415 = vld [vmem:[%s4404 + $0x28] sm:$0xf]
    %v4416 = vld [vmem:[%s4404 + $0x2c] sm:$0xf]
    %v4417 = vld [vmem:[%s4404 + $0x30] sm:$0xf]
    %v4418 = vld [vmem:[%s4404 + $0x34] sm:$0xf]
    %v4419 = vld [vmem:[%s4404 + $0x38] sm:$0xf]
    %v4420 = vld [vmem:[%s4404 + $0x3c] sm:$0xf]
    %s4421 = scalar_lea.vmem %s4, 5
    %v4422 = vld [vmem:[%s4421] sm:$0x1]
    %v4424 = vlaneseq
    %v4425 = vshrl.u32 %v4424, 7
    %v4426 = vsub.s32 0, %v4425
    %v4427 = vrot.slane %v4422, %v4426
    %v4445 = vunpack.c.l.b16 %v4405
    %v4446 = vunpack.c.l.b16 %v4406
    %v4447 = vunpack.c.l.b16 %v4407
    %v4448 = vunpack.c.l.b16 %v4408
    %v4449 = vunpack.c.l.b16 %v4409
    %v4450 = vunpack.c.l.b16 %v4410
    %v4451 = vunpack.c.l.b16 %v4411
    %v4452 = vunpack.c.l.b16 %v4412
    %v4453 = vunpack.c.l.b16 %v4413
    %v4454 = vunpack.c.l.b16 %v4414
    %v4455 = vunpack.c.l.b16 %v4415
    %v4456 = vunpack.c.l.b16 %v4416
    %v4457 = vunpack.c.l.b16 %v4417
    %v4458 = vunpack.c.l.b16 %v4418
    %v4459 = vunpack.c.l.b16 %v4419
    %v4460 = vunpack.c.l.b16 %v4420
    %v4461 = vpack.c.b16 %v4446, %v4445
    %v4462 = vpack.c.b16 %v4448, %v4447
    %v4463 = vpack.c.b16 %v4450, %v4449
    %v4464 = vpack.c.b16 %v4452, %v4451
    %v4465 = vpack.c.b16 %v4454, %v4453
    %v4466 = vpack.c.b16 %v4456, %v4455
    %v4467 = vpack.c.b16 %v4458, %v4457
    %v4468 = vpack.c.b16 %v4460, %v4459
    %4477 = vmatprep.subr.bf16.mxu0 0
    %4478 = vmatpush1.bf16.msra.mxu0 %v4461
    %4479 = vmatprep.subr.bf16.mxu0 0
    %4480 = vmatpush1.bf16.msra.mxu0 %v4462
    %4481 = vmatprep.subr.bf16.mxu0 0
    %4482 = vmatpush1.bf16.msra.mxu0 %v4463
    %4483 = vmatprep.subr.bf16.mxu0 0
    %4484 = vmatpush1.bf16.msra.mxu0 %v4464
    %4485 = vmatprep.subr.bf16.mxu0 0
    %4486 = vmatpush1.bf16.msra.mxu0 %v4465
    %4487 = vmatprep.subr.bf16.mxu0 0
    %4488 = vmatpush1.bf16.msra.mxu0 %v4466
    %4489 = vmatprep.subr.bf16.mxu0 0
    %4490 = vmatpush1.bf16.msra.mxu0 %v4467
    %4491 = vmatprep.subr.bf16.mxu0 0
    %4492 = vmatpush1.bf16.msra.mxu0 %v4468
    %4493 = vmatprep.subr.bf16.mxu0 0
    %4494 = vmatpush1.bf16.msra.mxu0 0
    %4495 = vmatprep.subr.bf16.mxu0 0
    %4496 = vmatpush1.bf16.msra.mxu0 0
    %4497 = vmatprep.subr.bf16.mxu0 0
    %4498 = vmatpush1.bf16.msra.mxu0 0
    %4499 = vmatprep.subr.bf16.mxu0 0
    %4500 = vmatpush1.bf16.msra.mxu0 0
    %4501 = vmatprep.subr.bf16.mxu0 0
    %4502 = vmatpush1.bf16.msra.mxu0 0
    %4503 = vmatprep.subr.bf16.mxu0 0
    %4504 = vmatpush1.bf16.msra.mxu0 0
    %4505 = vmatprep.subr.bf16.mxu0 0
    %4506 = vmatpush1.bf16.msra.mxu0 0
    %4507 = vmatprep.subr.bf16.mxu0 0
    %4508 = vmatpush1.bf16.msra.mxu0 0
    %4509 = vmatprep.mubr.bf16.mxu0 0
    %4510 = vmatmul.mubr.bf16.gmra.mrb[0].mxu0 %v4380
    %v4511 = vpop.f32.mrb[0].mxu0
    %v4512 = vadd.f32 %v4427, %v4511
    %v4513 = vpop.f32.mrb[0].mxu0
    %v4514 = vpop.f32.mrb[0].mxu0
    %v4515 = vadd.f32 %v4427, %v4514
    %v4516 = vpop.f32.mrb[0].mxu0
    %4517 = vmatprep.mubr.bf16.mxu0 0
    %4518 = vmatmul.mubr.bf16.gmra.mrb[0].mxu0 %v4381
    %v4519 = vpop.f32.mrb[0].mxu0
    %v4520 = vadd.f32 %v4427, %v4519
    %v4521 = vpop.f32.mrb[0].mxu0
    %v4522 = vpop.f32.mrb[0].mxu0
    %v4523 = vadd.f32 %v4427, %v4522
    %v4524 = vpop.f32.mrb[0].mxu0
    %4525 = vmatprep.mubr.bf16.mxu0 0
    %4526 = vmatmul.mubr.bf16.gmra.mrb[0].mxu0 %v4382
    %v4527 = vpop.f32.mrb[0].mxu0
    %v4528 = vadd.f32 %v4427, %v4527
    %v4529 = vpop.f32.mrb[0].mxu0
    %v4530 = vpop.f32.mrb[0].mxu0
    %v4531 = vadd.f32 %v4427, %v4530
    %v4532 = vpop.f32.mrb[0].mxu0
    %4533 = vmatprep.mubr.bf16.mxu0 0
    %4534 = vmatmul.mubr.bf16.gmra.mrb[0].mxu0 %v4383
    %v4535 = vpop.f32.mrb[0].mxu0
    %v4536 = vadd.f32 %v4427, %v4535
    %v4537 = vpop.f32.mrb[0].mxu0
    %v4538 = vpop.f32.mrb[0].mxu0
    %v4539 = vadd.f32 %v4427, %v4538
    %v4540 = vpop.f32.mrb[0].mxu0
    %4541 = vmatprep.mubr.bf16.mxu0 0
    %4542 = vmatmul.mubr.bf16.gmra.mrb[0].mxu0 %v4384
    %v4543 = vpop.f32.mrb[0].mxu0
    %v4544 = vadd.f32 %v4427, %v4543
    %v4545 = vpop.f32.mrb[0].mxu0
    %v4546 = vpop.f32.mrb[0].mxu0
    %v4547 = vadd.f32 %v4427, %v4546
    %v4548 = vpop.f32.mrb[0].mxu0
    %4549 = vmatprep.mubr.bf16.mxu0 0
    %4550 = vmatmul.mubr.bf16.gmra.mrb[0].mxu0 %v4385
    %v4551 = vpop.f32.mrb[0].mxu0
    %v4552 = vadd.f32 %v4427, %v4551
    %v4553 = vpop.f32.mrb[0].mxu0
    %v4554 = vpop.f32.mrb[0].mxu0
    %v4555 = vadd.f32 %v4427, %v4554
    %v4556 = vpop.f32.mrb[0].mxu0
    %4557 = vmatprep.mubr.bf16.mxu0 0
    %4558 = vmatmul.mubr.bf16.gmra.mrb[0].mxu0 %v4386
    %v4559 = vpop.f32.mrb[0].mxu0
    %v4560 = vadd.f32 %v4427, %v4559
    %v4561 = vpop.f32.mrb[0].mxu0
    %v4562 = vpop.f32.mrb[0].mxu0
    %v4563 = vadd.f32 %v4427, %v4562
    %v4564 = vpop.f32.mrb[0].mxu0
    %4565 = vmatprep.mubr.bf16.mxu0 0
    %4566 = vmatmul.mubr.bf16.gmra.mrb[0].mxu0 %v4387
    %v4567 = vpop.f32.mrb[0].mxu0
    %v4568 = vadd.f32 %v4427, %v4567
    %v4569 = vpop.f32.mrb[0].mxu0
    %v4570 = vpop.f32.mrb[0].mxu0
    %v4571 = vadd.f32 %v4427, %v4570
    %v4572 = vpop.f32.mrb[0].mxu0
    %4573 = vmatprep.mubr.bf16.mxu0 0
    %4574 = vmatmul.mubr.bf16.gmra.mrb[0].mxu0 %v4388
    %v4575 = vpop.f32.mrb[0].mxu0
    %v4576 = vadd.f32 %v4427, %v4575
    %v4577 = vpop.f32.mrb[0].mxu0
    %v4578 = vpop.f32.mrb[0].mxu0
    %v4579 = vadd.f32 %v4427, %v4578
    %v4580 = vpop.f32.mrb[0].mxu0
    %4581 = vmatprep.mubr.bf16.mxu0 0
    %4582 = vmatmul.mubr.bf16.gmra.mrb[0].mxu0 %v4389
    %v4583 = vpop.f32.mrb[0].mxu0
    %v4584 = vadd.f32 %v4427, %v4583
    %v4585 = vpop.f32.mrb[0].mxu0
    %v4586 = vpop.f32.mrb[0].mxu0
    %v4587 = vadd.f32 %v4427, %v4586
    %v4588 = vpop.f32.mrb[0].mxu0
    %4589 = vmatprep.mubr.bf16.mxu0 0
    %4590 = vmatmul.mubr.bf16.gmra.mrb[0].mxu0 %v4390
    %v4591 = vpop.f32.mrb[0].mxu0
    %v4592 = vadd.f32 %v4427, %v4591
    %v4593 = vpop.f32.mrb[0].mxu0
    %v4594 = vpop.f32.mrb[0].mxu0
    %v4595 = vadd.f32 %v4427, %v4594
    %v4596 = vpop.f32.mrb[0].mxu0
    %4597 = vmatprep.mubr.bf16.mxu0 0
    %4598 = vmatmul.mubr.bf16.gmra.mrb[0].mxu0 %v4391
    %v4599 = vpop.f32.mrb[0].mxu0
    %v4600 = vadd.f32 %v4427, %v4599
    %v4601 = vpop.f32.mrb[0].mxu0
    %v4602 = vpop.f32.mrb[0].mxu0
    %v4603 = vadd.f32 %v4427, %v4602
    %v4604 = vpop.f32.mrb[0].mxu0
    %4605 = vmatprep.mubr.bf16.mxu0 0
    %4606 = vmatmul.mubr.bf16.gmra.mrb[0].mxu0 %v4392
    %v4607 = vpop.f32.mrb[0].mxu0
    %v4608 = vadd.f32 %v4427, %v4607
    %v4609 = vpop.f32.mrb[0].mxu0
    %v4610 = vpop.f32.mrb[0].mxu0
    %v4611 = vadd.f32 %v4427, %v4610
    %v4612 = vpop.f32.mrb[0].mxu0
    %4613 = vmatprep.mubr.bf16.mxu0 0
    %4614 = vmatmul.mubr.bf16.gmra.mrb[0].mxu0 %v4393
    %v4615 = vpop.f32.mrb[0].mxu0
    %v4616 = vadd.f32 %v4427, %v4615
    %v4617 = vpop.f32.mrb[0].mxu0
    %v4618 = vpop.f32.mrb[0].mxu0
    %v4619 = vadd.f32 %v4427, %v4618
    %v4620 = vpop.f32.mrb[0].mxu0
    %4621 = vmatprep.mubr.bf16.mxu0 0
    %4622 = vmatmul.mubr.bf16.gmra.mrb[0].mxu0 %v4394
    %v4623 = vpop.f32.mrb[0].mxu0
    %v4624 = vadd.f32 %v4427, %v4623
    %v4625 = vpop.f32.mrb[0].mxu0
    %v4626 = vpop.f32.mrb[0].mxu0
    %v4627 = vadd.f32 %v4427, %v4626
    %v4628 = vpop.f32.mrb[0].mxu0
    %4629 = vmatprep.mubr.bf16.mxu0 0
    %4630 = vmatmul.mubr.bf16.gmra.mrb[0].mxu0 %v4395
    %v4631 = vpop.f32.mrb[0].mxu0
    %v4632 = vadd.f32 %v4427, %v4631
    %v4633 = vpop.f32.mrb[0].mxu0
    %v4634 = vpop.f32.mrb[0].mxu0
    %v4635 = vadd.f32 %v4427, %v4634
    %v4636 = vpop.f32.mrb[0].mxu0
    %4637 = vmatprep.mubr.bf16.mxu0 0
    %4638 = vmatmul.mubr.bf16.gmra.mrb[0].mxu0 %v4396
    %v4639 = vpop.f32.mrb[0].mxu0
    %v4640 = vadd.f32 %v4427, %v4639
    %v4641 = vpop.f32.mrb[0].mxu0
    %v4642 = vpop.f32.mrb[0].mxu0
    %v4643 = vadd.f32 %v4427, %v4642
    %v4644 = vpop.f32.mrb[0].mxu0
    %4645 = vmatprep.mubr.bf16.mxu0 0
    %4646 = vmatmul.mubr.bf16.gmra.mrb[0].mxu0 %v4397
    %v4647 = vpop.f32.mrb[0].mxu0
    %v4648 = vadd.f32 %v4427, %v4647
    %v4649 = vpop.f32.mrb[0].mxu0
    %v4650 = vpop.f32.mrb[0].mxu0
    %v4651 = vadd.f32 %v4427, %v4650
    %v4652 = vpop.f32.mrb[0].mxu0
    %4653 = vmatprep.mubr.bf16.mxu0 0
    %4654 = vmatmul.mubr.bf16.gmra.mrb[0].mxu0 %v4398
    %v4655 = vpop.f32.mrb[0].mxu0
    %v4656 = vadd.f32 %v4427, %v4655
    %v4657 = vpop.f32.mrb[0].mxu0
    %v4658 = vpop.f32.mrb[0].mxu0
    %v4659 = vadd.f32 %v4427, %v4658
    %v4660 = vpop.f32.mrb[0].mxu0
    %4661 = vmatprep.mubr.bf16.mxu0 0
    %4662 = vmatmul.mubr.bf16.gmra.mrb[0].mxu0 %v4399
    %v4663 = vpop.f32.mrb[0].mxu0
    %v4664 = vadd.f32 %v4427, %v4663
    %v4665 = vpop.f32.mrb[0].mxu0
    %v4666 = vpop.f32.mrb[0].mxu0
    %v4667 = vadd.f32 %v4427, %v4666
    %v4668 = vpop.f32.mrb[0].mxu0
    %4669 = vmatprep.mubr.bf16.mxu0 0
    %4670 = vmatmul.mubr.bf16.gmra.mrb[0].mxu0 %v4400
    %v4671 = vpop.f32.mrb[0].mxu0
    %v4672 = vadd.f32 %v4427, %v4671
    %v4673 = vpop.f32.mrb[0].mxu0
    %v4674 = vpop.f32.mrb[0].mxu0
    %v4675 = vadd.f32 %v4427, %v4674
    %v4676 = vpop.f32.mrb[0].mxu0
    %4677 = vmatprep.mubr.bf16.mxu0 0
    %4678 = vmatmul.mubr.bf16.gmra.mrb[0].mxu0 %v4401
    %v4679 = vpop.f32.mrb[0].mxu0
    %v4680 = vadd.f32 %v4427, %v4679
    %v4681 = vpop.f32.mrb[0].mxu0
    %v4682 = vpop.f32.mrb[0].mxu0
    %v4683 = vadd.f32 %v4427, %v4682
    %v4684 = vpop.f32.mrb[0].mxu0
    %4685 = vmatprep.mubr.bf16.mxu0 0
    %4686 = vmatmul.mubr.bf16.gmra.mrb[0].mxu0 %v4402
    %v4687 = vpop.f32.mrb[0].mxu0
    %v4688 = vadd.f32 %v4427, %v4687
    %v4689 = vpop.f32.mrb[0].mxu0
    %v4690 = vpop.f32.mrb[0].mxu0
    %v4691 = vadd.f32 %v4427, %v4690
    %v4692 = vpop.f32.mrb[0].mxu0
    %4693 = vmatprep.mubr.bf16.mxu0 0
    %4694 = vmatmul.mubr.bf16.gmra.mrb[0].mxu0 %v4403
    %v4695 = vpop.f32.mrb[0].mxu0
    %v4696 = vadd.f32 %v4427, %v4695
    %v4697 = vpop.f32.mrb[0].mxu0
    %v4698 = vpop.f32.mrb[0].mxu0
    %v4699 = vadd.f32 %v4427, %v4698
    %v4700 = vpop.f32.mrb[0].mxu0
    %4701 = vdwg.mxu0
    %v4702 = vmul.f32 %v4512, 0.5
    %v4703 = vmul.f32 %v4515, 0.5
    %v4704 = vmul.f32 %v4520, 0.5
    %v4705 = vmul.f32 %v4523, 0.5
    %v4706 = vmul.f32 %v4528, 0.5
    %v4707 = vmul.f32 %v4531, 0.5
    %v4708 = vmul.f32 %v4536, 0.5
    %v4709 = vmul.f32 %v4539, 0.5
    %v4710 = vmul.f32 %v4544, 0.5
    %v4711 = vmul.f32 %v4547, 0.5
    %v4712 = vmul.f32 %v4552, 0.5
    %v4713 = vmul.f32 %v4555, 0.5
    %v4714 = vmul.f32 %v4560, 0.5
    %v4715 = vmul.f32 %v4563, 0.5
    %v4716 = vmul.f32 %v4568, 0.5
    %v4717 = vmul.f32 %v4571, 0.5
    %v4718 = vmul.f32 %v4576, 0.5
    %v4719 = vmul.f32 %v4579, 0.5
    %v4720 = vmul.f32 %v4584, 0.5
    %v4721 = vmul.f32 %v4587, 0.5
    %v4722 = vmul.f32 %v4592, 0.5
    %v4723 = vmul.f32 %v4595, 0.5
    %v4724 = vmul.f32 %v4600, 0.5
    %v4725 = vmul.f32 %v4603, 0.5
    %v4726 = vmul.f32 %v4608, 0.5
    %v4727 = vmul.f32 %v4611, 0.5
    %v4728 = vmul.f32 %v4616, 0.5
    %v4729 = vmul.f32 %v4619, 0.5
    %v4730 = vmul.f32 %v4624, 0.5
    %v4731 = vmul.f32 %v4627, 0.5
    %v4732 = vmul.f32 %v4632, 0.5
    %v4733 = vmul.f32 %v4635, 0.5
    %v4734 = vmul.f32 %v4640, 0.5
    %v4735 = vmul.f32 %v4643, 0.5
    %v4736 = vmul.f32 %v4648, 0.5
    %v4737 = vmul.f32 %v4651, 0.5
    %v4738 = vmul.f32 %v4656, 0.5
    %v4739 = vmul.f32 %v4659, 0.5
    %v4740 = vmul.f32 %v4664, 0.5
    %v4741 = vmul.f32 %v4667, 0.5
    %v4742 = vmul.f32 %v4672, 0.5
    %v4743 = vmul.f32 %v4675, 0.5
    %v4744 = vmul.f32 %v4680, 0.5
    %v4745 = vmul.f32 %v4683, 0.5
    %v4746 = vmul.f32 %v4688, 0.5
    %v4747 = vmul.f32 %v4691, 0.5
    %v4748 = vmul.f32 %v4696, 0.5
    %v4749 = vmul.f32 %v4699, 0.5
    %v4750 = vtanh.pop %v4702
    %v4751 = vtanh.pop %v4703
    %v4752 = vtanh.pop %v4704
    %v4753 = vtanh.pop %v4705
    %v4754 = vtanh.pop %v4706
    %v4755 = vtanh.pop %v4707
    %v4756 = vtanh.pop %v4708
    %v4757 = vtanh.pop %v4709
    %v4758 = vtanh.pop %v4710
    %v4759 = vtanh.pop %v4711
    %v4760 = vtanh.pop %v4712
    %v4761 = vtanh.pop %v4713
    %v4762 = vtanh.pop %v4714
    %v4763 = vtanh.pop %v4715
    %v4764 = vtanh.pop %v4716
    %v4765 = vtanh.pop %v4717
    %v4766 = vtanh.pop %v4718
    %v4767 = vtanh.pop %v4719
    %v4768 = vtanh.pop %v4720
    %v4769 = vtanh.pop %v4721
    %v4770 = vtanh.pop %v4722
    %v4771 = vtanh.pop %v4723
    %v4772 = vtanh.pop %v4724
    %v4773 = vtanh.pop %v4725
    %v4774 = vtanh.pop %v4726
    %v4775 = vtanh.pop %v4727
    %v4776 = vtanh.pop %v4728
    %v4777 = vtanh.pop %v4729
    %v4778 = vtanh.pop %v4730
    %v4779 = vtanh.pop %v4731
    %v4780 = vtanh.pop %v4732
    %v4781 = vtanh.pop %v4733
    %v4782 = vtanh.pop %v4734
    %v4783 = vtanh.pop %v4735
    %v4784 = vtanh.pop %v4736
    %v4785 = vtanh.pop %v4737
    %v4786 = vtanh.pop %v4738
    %v4787 = vtanh.pop %v4739
    %v4788 = vtanh.pop %v4740
    %v4789 = vtanh.pop %v4741
    %v4790 = vtanh.pop %v4742
    %v4791 = vtanh.pop %v4743
    %v4792 = vtanh.pop %v4744
    %v4793 = vtanh.pop %v4745
    %v4794 = vtanh.pop %v4746
    %v4795 = vtanh.pop %v4747
    %v4796 = vtanh.pop %v4748
    %v4797 = vtanh.pop %v4749
    %v4798 = vmul.f32 %v4750, 0.5
    %v4799 = vmul.f32 %v4751, 0.5
    %v4800 = vmul.f32 %v4752, 0.5
    %v4801 = vmul.f32 %v4753, 0.5
    %v4802 = vmul.f32 %v4754, 0.5
    %v4803 = vmul.f32 %v4755, 0.5
    %v4804 = vmul.f32 %v4756, 0.5
    %v4805 = vmul.f32 %v4757, 0.5
    %v4806 = vmul.f32 %v4758, 0.5
    %v4807 = vmul.f32 %v4759, 0.5
    %v4808 = vmul.f32 %v4760, 0.5
    %v4809 = vmul.f32 %v4761, 0.5
    %v4810 = vmul.f32 %v4762, 0.5
    %v4811 = vmul.f32 %v4763, 0.5
    %v4812 = vmul.f32 %v4764, 0.5
    %v4813 = vmul.f32 %v4765, 0.5
    %v4814 = vmul.f32 %v4766, 0.5
    %v4815 = vmul.f32 %v4767, 0.5
    %v4816 = vmul.f32 %v4768, 0.5
    %v4817 = vmul.f32 %v4769, 0.5
    %v4818 = vmul.f32 %v4770, 0.5
    %v4819 = vmul.f32 %v4771, 0.5
    %v4820 = vmul.f32 %v4772, 0.5
    %v4821 = vmul.f32 %v4773, 0.5
    %v4822 = vmul.f32 %v4774, 0.5
    %v4823 = vmul.f32 %v4775, 0.5
    %v4824 = vmul.f32 %v4776, 0.5
    %v4825 = vmul.f32 %v4777, 0.5
    %v4826 = vmul.f32 %v4778, 0.5
    %v4827 = vmul.f32 %v4779, 0.5
    %v4828 = vmul.f32 %v4780, 0.5
    %v4829 = vmul.f32 %v4781, 0.5
    %v4830 = vmul.f32 %v4782, 0.5
    %v4831 = vmul.f32 %v4783, 0.5
    %v4832 = vmul.f32 %v4784, 0.5
    %v4833 = vmul.f32 %v4785, 0.5
    %v4834 = vmul.f32 %v4786, 0.5
    %v4835 = vmul.f32 %v4787, 0.5
    %v4836 = vmul.f32 %v4788, 0.5
    %v4837 = vmul.f32 %v4789, 0.5
    %v4838 = vmul.f32 %v4790, 0.5
    %v4839 = vmul.f32 %v4791, 0.5
    %v4840 = vmul.f32 %v4792, 0.5
    %v4841 = vmul.f32 %v4793, 0.5
    %v4842 = vmul.f32 %v4794, 0.5
    %v4843 = vmul.f32 %v4795, 0.5
    %v4844 = vmul.f32 %v4796, 0.5
    %v4845 = vmul.f32 %v4797, 0.5
    %v4846 = vadd.f32 %v4798, 0.5
    %v4847 = vadd.f32 %v4799, 0.5
    %v4848 = vadd.f32 %v4800, 0.5
    %v4849 = vadd.f32 %v4801, 0.5
    %v4850 = vadd.f32 %v4802, 0.5
    %v4851 = vadd.f32 %v4803, 0.5
    %v4852 = vadd.f32 %v4804, 0.5
    %v4853 = vadd.f32 %v4805, 0.5
    %v4854 = vadd.f32 %v4806, 0.5
    %v4855 = vadd.f32 %v4807, 0.5
    %v4856 = vadd.f32 %v4808, 0.5
    %v4857 = vadd.f32 %v4809, 0.5
    %v4858 = vadd.f32 %v4810, 0.5
    %v4859 = vadd.f32 %v4811, 0.5
    %v4860 = vadd.f32 %v4812, 0.5
    %v4861 = vadd.f32 %v4813, 0.5
    %v4862 = vadd.f32 %v4814, 0.5
    %v4863 = vadd.f32 %v4815, 0.5
    %v4864 = vadd.f32 %v4816, 0.5
    %v4865 = vadd.f32 %v4817, 0.5
    %v4866 = vadd.f32 %v4818, 0.5
    %v4867 = vadd.f32 %v4819, 0.5
    %v4868 = vadd.f32 %v4820, 0.5
    %v4869 = vadd.f32 %v4821, 0.5
    %v4870 = vadd.f32 %v4822, 0.5
    %v4871 = vadd.f32 %v4823, 0.5
    %v4872 = vadd.f32 %v4824, 0.5
    %v4873 = vadd.f32 %v4825, 0.5
    %v4874 = vadd.f32 %v4826, 0.5
    %v4875 = vadd.f32 %v4827, 0.5
    %v4876 = vadd.f32 %v4828, 0.5
    %v4877 = vadd.f32 %v4829, 0.5
    %v4878 = vadd.f32 %v4830, 0.5
    %v4879 = vadd.f32 %v4831, 0.5
    %v4880 = vadd.f32 %v4832, 0.5
    %v4881 = vadd.f32 %v4833, 0.5
    %v4882 = vadd.f32 %v4834, 0.5
    %v4883 = vadd.f32 %v4835, 0.5
    %v4884 = vadd.f32 %v4836, 0.5
    %v4885 = vadd.f32 %v4837, 0.5
    %v4886 = vadd.f32 %v4838, 0.5
    %v4887 = vadd.f32 %v4839, 0.5
    %v4888 = vadd.f32 %v4840, 0.5
    %v4889 = vadd.f32 %v4841, 0.5
    %v4890 = vadd.f32 %v4842, 0.5
    %v4891 = vadd.f32 %v4843, 0.5
    %v4892 = vadd.f32 %v4844, 0.5
    %v4893 = vadd.f32 %v4845, 0.5
    %4894 = vrot.lane.b32.xlu0 %v4846, 64
    %v4895 = vpop.permute.xlu0 %4894
    %4896 = vrot.lane.b32.xlu0 %v4847, 64
    %v4897 = vpop.permute.xlu0 %4896
    %4898 = vrot.lane.b32.xlu0 %v4848, 64
    %v4899 = vpop.permute.xlu0 %4898
    %4900 = vrot.lane.b32.xlu0 %v4849, 64
    %v4901 = vpop.permute.xlu0 %4900
    %4902 = vrot.lane.b32.xlu0 %v4850, 64
    %v4903 = vpop.permute.xlu0 %4902
    %4904 = vrot.lane.b32.xlu0 %v4851, 64
    %v4905 = vpop.permute.xlu0 %4904
    %4906 = vrot.lane.b32.xlu0 %v4852, 64
    %v4907 = vpop.permute.xlu0 %4906
    %4908 = vrot.lane.b32.xlu0 %v4853, 64
    %v4909 = vpop.permute.xlu0 %4908
    %4910 = vrot.lane.b32.xlu0 %v4854, 64
    %v4911 = vpop.permute.xlu0 %4910
    %4912 = vrot.lane.b32.xlu0 %v4855, 64
    %v4913 = vpop.permute.xlu0 %4912
    %4914 = vrot.lane.b32.xlu0 %v4856, 64
    %v4915 = vpop.permute.xlu0 %4914
    %4916 = vrot.lane.b32.xlu0 %v4857, 64
    %v4917 = vpop.permute.xlu0 %4916
    %4918 = vrot.lane.b32.xlu0 %v4858, 64
    %v4919 = vpop.permute.xlu0 %4918
    %4920 = vrot.lane.b32.xlu0 %v4859, 64
    %v4921 = vpop.permute.xlu0 %4920
    %4922 = vrot.lane.b32.xlu0 %v4860, 64
    %v4923 = vpop.permute.xlu0 %4922
    %4924 = vrot.lane.b32.xlu0 %v4861, 64
    %v4925 = vpop.permute.xlu0 %4924
    %4926 = vrot.lane.b32.xlu0 %v4862, 64
    %v4927 = vpop.permute.xlu0 %4926
    %4928 = vrot.lane.b32.xlu0 %v4863, 64
    %v4929 = vpop.permute.xlu0 %4928
    %4930 = vrot.lane.b32.xlu0 %v4864, 64
    %v4931 = vpop.permute.xlu0 %4930
    %4932 = vrot.lane.b32.xlu0 %v4865, 64
    %v4933 = vpop.permute.xlu0 %4932
    %4934 = vrot.lane.b32.xlu0 %v4866, 64
    %v4935 = vpop.permute.xlu0 %4934
    %4936 = vrot.lane.b32.xlu0 %v4867, 64
    %v4937 = vpop.permute.xlu0 %4936
    %4938 = vrot.lane.b32.xlu0 %v4868, 64
    %v4939 = vpop.permute.xlu0 %4938
    %4940 = vrot.lane.b32.xlu0 %v4869, 64
    %v4941 = vpop.permute.xlu0 %4940
    %4942 = vrot.lane.b32.xlu0 %v4870, 64
    %v4943 = vpop.permute.xlu0 %4942
    %4944 = vrot.lane.b32.xlu0 %v4871, 64
    %v4945 = vpop.permute.xlu0 %4944
    %4946 = vrot.lane.b32.xlu0 %v4872, 64
    %v4947 = vpop.permute.xlu0 %4946
    %4948 = vrot.lane.b32.xlu0 %v4873, 64
    %v4949 = vpop.permute.xlu0 %4948
    %4950 = vrot.lane.b32.xlu0 %v4874, 64
    %v4951 = vpop.permute.xlu0 %4950
    %4952 = vrot.lane.b32.xlu0 %v4875, 64
    %v4953 = vpop.permute.xlu0 %4952
    %4954 = vrot.lane.b32.xlu0 %v4876, 64
    %v4955 = vpop.permute.xlu0 %4954
    %4956 = vrot.lane.b32.xlu0 %v4877, 64
    %v4957 = vpop.permute.xlu0 %4956
    %4958 = vrot.lane.b32.xlu0 %v4878, 64
    %v4959 = vpop.permute.xlu0 %4958
    %4960 = vrot.lane.b32.xlu0 %v4879, 64
    %v4961 = vpop.permute.xlu0 %4960
    %4962 = vrot.lane.b32.xlu0 %v4880, 64
    %v4963 = vpop.permute.xlu0 %4962
    %4964 = vrot.lane.b32.xlu0 %v4881, 64
    %v4965 = vpop.permute.xlu0 %4964
    %4966 = vrot.lane.b32.xlu0 %v4882, 64
    %v4967 = vpop.permute.xlu0 %4966
    %4968 = vrot.lane.b32.xlu0 %v4883, 64
    %v4969 = vpop.permute.xlu0 %4968
    %4970 = vrot.lane.b32.xlu0 %v4884, 64
    %v4971 = vpop.permute.xlu0 %4970
    %4972 = vrot.lane.b32.xlu0 %v4885, 64
    %v4973 = vpop.permute.xlu0 %4972
    %4974 = vrot.lane.b32.xlu0 %v4886, 64
    %v4975 = vpop.permute.xlu0 %4974
    %4976 = vrot.lane.b32.xlu0 %v4887, 64
    %v4977 = vpop.permute.xlu0 %4976
    %4978 = vrot.lane.b32.xlu0 %v4888, 64
    %v4979 = vpop.permute.xlu0 %4978
    %4980 = vrot.lane.b32.xlu0 %v4889, 64
    %v4981 = vpop.permute.xlu0 %4980
    %4982 = vrot.lane.b32.xlu0 %v4890, 64
    %v4983 = vpop.permute.xlu0 %4982
    %4984 = vrot.lane.b32.xlu0 %v4891, 64
    %v4985 = vpop.permute.xlu0 %4984
    %4986 = vrot.lane.b32.xlu0 %v4892, 64
    %v4987 = vpop.permute.xlu0 %4986
    %4988 = vrot.lane.b32.xlu0 %v4893, 64
    %v4989 = vpop.permute.xlu0 %4988
    %v4990 = vsub.f32 %v4846, %v4332
    %v4991 = vsub.f32 %v4847, %v4333
    %v4992 = vsub.f32 %v4848, %v4334
    %v4993 = vsub.f32 %v4849, %v4335
    %v4994 = vsub.f32 %v4850, %v4336
    %v4995 = vsub.f32 %v4851, %v4337
    %v4996 = vsub.f32 %v4852, %v4338
    %v4997 = vsub.f32 %v4853, %v4339
    %v4998 = vsub.f32 %v4854, %v4340
    %v4999 = vsub.f32 %v4855, %v4341
    %v5000 = vsub.f32 %v4856, %v4342
    %v5001 = vsub.f32 %v4857, %v4343
    %v5002 = vsub.f32 %v4858, %v4344
    %v5003 = vsub.f32 %v4859, %v4345
    %v5004 = vsub.f32 %v4860, %v4346
    %v5005 = vsub.f32 %v4861, %v4347
    %v5006 = vsub.f32 %v4862, %v4348
    %v5007 = vsub.f32 %v4863, %v4349
    %v5008 = vsub.f32 %v4864, %v4350
    %v5009 = vsub.f32 %v4865, %v4351
    %v5010 = vsub.f32 %v4866, %v4352
    %v5011 = vsub.f32 %v4867, %v4353
    %v5012 = vsub.f32 %v4868, %v4354
    %v5013 = vsub.f32 %v4869, %v4355
    %v5014 = vsub.f32 %v4870, %v4356
    %v5015 = vsub.f32 %v4871, %v4357
    %v5016 = vsub.f32 %v4872, %v4358
    %v5017 = vsub.f32 %v4873, %v4359
    %v5018 = vsub.f32 %v4874, %v4360
    %v5019 = vsub.f32 %v4875, %v4361
    %v5020 = vsub.f32 %v4876, %v4362
    %v5021 = vsub.f32 %v4877, %v4363
    %v5022 = vsub.f32 %v4878, %v4364
    %v5023 = vsub.f32 %v4879, %v4365
    %v5024 = vsub.f32 %v4880, %v4366
    %v5025 = vsub.f32 %v4881, %v4367
    %v5026 = vsub.f32 %v4882, %v4368
    %v5027 = vsub.f32 %v4883, %v4369
    %v5028 = vsub.f32 %v4884, %v4370
    %v5029 = vsub.f32 %v4885, %v4371
    %v5030 = vsub.f32 %v4886, %v4372
    %v5031 = vsub.f32 %v4887, %v4373
    %v5032 = vsub.f32 %v4888, %v4374
    %v5033 = vsub.f32 %v4889, %v4375
    %v5034 = vsub.f32 %v4890, %v4376
    %v5035 = vsub.f32 %v4891, %v4377
    %v5036 = vsub.f32 %v4892, %v4378
    %v5037 = vsub.f32 %v4893, %v4379
    %v5038 = vmul.f32 %v4895, %v4990
    %v5039 = vmul.f32 %v4897, %v4991
    %v5040 = vmul.f32 %v4899, %v4992
    %v5041 = vmul.f32 %v4901, %v4993
    %v5042 = vmul.f32 %v4903, %v4994
    %v5043 = vmul.f32 %v4905, %v4995
    %v5044 = vmul.f32 %v4907, %v4996
    %v5045 = vmul.f32 %v4909, %v4997
    %v5046 = vmul.f32 %v4911, %v4998
    %v5047 = vmul.f32 %v4913, %v4999
    %v5048 = vmul.f32 %v4915, %v5000
    %v5049 = vmul.f32 %v4917, %v5001
    %v5050 = vmul.f32 %v4919, %v5002
    %v5051 = vmul.f32 %v4921, %v5003
    %v5052 = vmul.f32 %v4923, %v5004
    %v5053 = vmul.f32 %v4925, %v5005
    %v5054 = vmul.f32 %v4927, %v5006
    %v5055 = vmul.f32 %v4929, %v5007
    %v5056 = vmul.f32 %v4931, %v5008
    %v5057 = vmul.f32 %v4933, %v5009
    %v5058 = vmul.f32 %v4935, %v5010
    %v5059 = vmul.f32 %v4937, %v5011
    %v5060 = vmul.f32 %v4939, %v5012
    %v5061 = vmul.f32 %v4941, %v5013
    %v5062 = vmul.f32 %v4943, %v5014
    %v5063 = vmul.f32 %v4945, %v5015
    %v5064 = vmul.f32 %v4947, %v5016
    %v5065 = vmul.f32 %v4949, %v5017
    %v5066 = vmul.f32 %v4951, %v5018
    %v5067 = vmul.f32 %v4953, %v5019
    %v5068 = vmul.f32 %v4955, %v5020
    %v5069 = vmul.f32 %v4957, %v5021
    %v5070 = vmul.f32 %v4959, %v5022
    %v5071 = vmul.f32 %v4961, %v5023
    %v5072 = vmul.f32 %v4963, %v5024
    %v5073 = vmul.f32 %v4965, %v5025
    %v5074 = vmul.f32 %v4967, %v5026
    %v5075 = vmul.f32 %v4969, %v5027
    %v5076 = vmul.f32 %v4971, %v5028
    %v5077 = vmul.f32 %v4973, %v5029
    %v5078 = vmul.f32 %v4975, %v5030
    %v5079 = vmul.f32 %v4977, %v5031
    %v5080 = vmul.f32 %v4979, %v5032
    %v5081 = vmul.f32 %v4981, %v5033
    %v5082 = vmul.f32 %v4983, %v5034
    %v5083 = vmul.f32 %v4985, %v5035
    %v5084 = vmul.f32 %v4987, %v5036
    %v5085 = vmul.f32 %v4989, %v5037
    %v5086 = vadd.f32 %v4332, %v5038
    %v5087 = vadd.f32 %v4333, %v5039
    %v5088 = vadd.f32 %v4334, %v5040
    %v5089 = vadd.f32 %v4335, %v5041
    %v5090 = vadd.f32 %v4336, %v5042
    %v5091 = vadd.f32 %v4337, %v5043
    %v5092 = vadd.f32 %v4338, %v5044
    %v5093 = vadd.f32 %v4339, %v5045
    %v5094 = vadd.f32 %v4340, %v5046
    %v5095 = vadd.f32 %v4341, %v5047
    %v5096 = vadd.f32 %v4342, %v5048
    %v5097 = vadd.f32 %v4343, %v5049
    %v5098 = vadd.f32 %v4344, %v5050
    %v5099 = vadd.f32 %v4345, %v5051
    %v5100 = vadd.f32 %v4346, %v5052
    %v5101 = vadd.f32 %v4347, %v5053
    %v5102 = vadd.f32 %v4348, %v5054
    %v5103 = vadd.f32 %v4349, %v5055
    %v5104 = vadd.f32 %v4350, %v5056
    %v5105 = vadd.f32 %v4351, %v5057
    %v5106 = vadd.f32 %v4352, %v5058
    %v5107 = vadd.f32 %v4353, %v5059
    %v5108 = vadd.f32 %v4354, %v5060
    %v5109 = vadd.f32 %v4355, %v5061
    %v5110 = vadd.f32 %v4356, %v5062
    %v5111 = vadd.f32 %v4357, %v5063
    %v5112 = vadd.f32 %v4358, %v5064
    %v5113 = vadd.f32 %v4359, %v5065
    %v5114 = vadd.f32 %v4360, %v5066
    %v5115 = vadd.f32 %v4361, %v5067
    %v5116 = vadd.f32 %v4362, %v5068
    %v5117 = vadd.f32 %v4363, %v5069
    %v5118 = vadd.f32 %v4364, %v5070
    %v5119 = vadd.f32 %v4365, %v5071
    %v5120 = vadd.f32 %v4366, %v5072
    %v5121 = vadd.f32 %v4367, %v5073
    %v5122 = vadd.f32 %v4368, %v5074
    %v5123 = vadd.f32 %v4369, %v5075
    %v5124 = vadd.f32 %v4370, %v5076
    %v5125 = vadd.f32 %v4371, %v5077
    %v5126 = vadd.f32 %v4372, %v5078
    %v5127 = vadd.f32 %v4373, %v5079
    %v5128 = vadd.f32 %v4374, %v5080
    %v5129 = vadd.f32 %v4375, %v5081
    %v5130 = vadd.f32 %v4376, %v5082
    %v5131 = vadd.f32 %v4377, %v5083
    %v5132 = vadd.f32 %v4378, %v5084
    %v5133 = vadd.f32 %v4379, %v5085
    %v5134 = vpack.c.bf16 %v5087, %v5086
    %v5135 = vpack.c.bf16 %v5089, %v5088
    %v5136 = vpack.c.bf16 %v5091, %v5090
    %v5137 = vpack.c.bf16 %v5093, %v5092
    %v5138 = vpack.c.bf16 %v5095, %v5094
    %v5139 = vpack.c.bf16 %v5097, %v5096
    %v5140 = vpack.c.bf16 %v5099, %v5098
    %v5141 = vpack.c.bf16 %v5101, %v5100
    %v5142 = vpack.c.bf16 %v5103, %v5102
    %v5143 = vpack.c.bf16 %v5105, %v5104
    %v5144 = vpack.c.bf16 %v5107, %v5106
    %v5145 = vpack.c.bf16 %v5109, %v5108
    %v5146 = vpack.c.bf16 %v5111, %v5110
    %v5147 = vpack.c.bf16 %v5113, %v5112
    %v5148 = vpack.c.bf16 %v5115, %v5114
    %v5149 = vpack.c.bf16 %v5117, %v5116
    %v5150 = vpack.c.bf16 %v5119, %v5118
    %v5151 = vpack.c.bf16 %v5121, %v5120
    %v5152 = vpack.c.bf16 %v5123, %v5122
    %v5153 = vpack.c.bf16 %v5125, %v5124
    %v5154 = vpack.c.bf16 %v5127, %v5126
    %v5155 = vpack.c.bf16 %v5129, %v5128
    %v5156 = vpack.c.bf16 %v5131, %v5130
    %v5157 = vpack.c.bf16 %v5133, %v5132
    %s5158 = scalar_lea.vmem [#allocation2], 384
    %v5159 = vld [vmem:[%s5158] sm:$0xf]
    %v5160 = vld [vmem:[%s5158 + $0x4] sm:$0xf]
    %v5161 = vld [vmem:[%s5158 + $0x8] sm:$0xf]
    %v5162 = vld [vmem:[%s5158 + $0xc] sm:$0xf]
    %v5163 = vld [vmem:[%s5158 + $0x10] sm:$0xf]
    %v5164 = vld [vmem:[%s5158 + $0x14] sm:$0xf]
    %v5165 = vld [vmem:[%s5158 + $0x18] sm:$0xf]
    %v5166 = vld [vmem:[%s5158 + $0x1c] sm:$0xf]
    %v5167 = vld [vmem:[%s5158 + $0x20] sm:$0xf]
    %v5168 = vld [vmem:[%s5158 + $0x24] sm:$0xf]
    %v5169 = vld [vmem:[%s5158 + $0x28] sm:$0xf]
    %v5170 = vld [vmem:[%s5158 + $0x2c] sm:$0xf]
    %v5171 = vld [vmem:[%s5158 + $0x30] sm:$0xf]
    %v5172 = vld [vmem:[%s5158 + $0x34] sm:$0xf]
    %v5173 = vld [vmem:[%s5158 + $0x38] sm:$0xf]
    %v5174 = vld [vmem:[%s5158 + $0x3c] sm:$0xf]
    %s5175 = scalar_lea.vmem %s4, 6
    %v5176 = vld [vmem:[%s5175] sm:$0x1]
    %v5178 = vlaneseq
    %v5179 = vshrl.u32 %v5178, 7
    %v5180 = vsub.s32 0, %v5179
    %v5181 = vrot.slane %v5176, %v5180
    %v5199 = vunpack.c.l.b16 %v5159
    %v5200 = vunpack.c.l.b16 %v5160
    %v5201 = vunpack.c.l.b16 %v5161
    %v5202 = vunpack.c.l.b16 %v5162
    %v5203 = vunpack.c.l.b16 %v5163
    %v5204 = vunpack.c.l.b16 %v5164
    %v5205 = vunpack.c.l.b16 %v5165
    %v5206 = vunpack.c.l.b16 %v5166
    %v5207 = vunpack.c.l.b16 %v5167
    %v5208 = vunpack.c.l.b16 %v5168
    %v5209 = vunpack.c.l.b16 %v5169
    %v5210 = vunpack.c.l.b16 %v5170
    %v5211 = vunpack.c.l.b16 %v5171
    %v5212 = vunpack.c.l.b16 %v5172
    %v5213 = vunpack.c.l.b16 %v5173
    %v5214 = vunpack.c.l.b16 %v5174
    %v5215 = vpack.c.b16 %v5200, %v5199
    %v5216 = vpack.c.b16 %v5202, %v5201
    %v5217 = vpack.c.b16 %v5204, %v5203
    %v5218 = vpack.c.b16 %v5206, %v5205
    %v5219 = vpack.c.b16 %v5208, %v5207
    %v5220 = vpack.c.b16 %v5210, %v5209
    %v5221 = vpack.c.b16 %v5212, %v5211
    %v5222 = vpack.c.b16 %v5214, %v5213
    %5231 = vmatprep.subr.bf16.mxu0 0
    %5232 = vmatpush1.bf16.msra.mxu0 %v5215
    %5233 = vmatprep.subr.bf16.mxu0 0
    %5234 = vmatpush1.bf16.msra.mxu0 %v5216
    %5235 = vmatprep.subr.bf16.mxu0 0
    %5236 = vmatpush1.bf16.msra.mxu0 %v5217
    %5237 = vmatprep.subr.bf16.mxu0 0
    %5238 = vmatpush1.bf16.msra.mxu0 %v5218
    %5239 = vmatprep.subr.bf16.mxu0 0
    %5240 = vmatpush1.bf16.msra.mxu0 %v5219
    %5241 = vmatprep.subr.bf16.mxu0 0
    %5242 = vmatpush1.bf16.msra.mxu0 %v5220
    %5243 = vmatprep.subr.bf16.mxu0 0
    %5244 = vmatpush1.bf16.msra.mxu0 %v5221
    %5245 = vmatprep.subr.bf16.mxu0 0
    %5246 = vmatpush1.bf16.msra.mxu0 %v5222
    %5247 = vmatprep.subr.bf16.mxu0 0
    %5248 = vmatpush1.bf16.msra.mxu0 0
    %5249 = vmatprep.subr.bf16.mxu0 0
    %5250 = vmatpush1.bf16.msra.mxu0 0
    %5251 = vmatprep.subr.bf16.mxu0 0
    %5252 = vmatpush1.bf16.msra.mxu0 0
    %5253 = vmatprep.subr.bf16.mxu0 0
    %5254 = vmatpush1.bf16.msra.mxu0 0
    %5255 = vmatprep.subr.bf16.mxu0 0
    %5256 = vmatpush1.bf16.msra.mxu0 0
    %5257 = vmatprep.subr.bf16.mxu0 0
    %5258 = vmatpush1.bf16.msra.mxu0 0
    %5259 = vmatprep.subr.bf16.mxu0 0
    %5260 = vmatpush1.bf16.msra.mxu0 0
    %5261 = vmatprep.subr.bf16.mxu0 0
    %5262 = vmatpush1.bf16.msra.mxu0 0
    %5263 = vmatprep.mubr.bf16.mxu0 0
    %5264 = vmatmul.mubr.bf16.gmra.mrb[0].mxu0 %v5134
    %v5265 = vpop.f32.mrb[0].mxu0
    %v5266 = vadd.f32 %v5181, %v5265
    %v5267 = vpop.f32.mrb[0].mxu0
    %v5268 = vpop.f32.mrb[0].mxu0
    %v5269 = vadd.f32 %v5181, %v5268
    %v5270 = vpop.f32.mrb[0].mxu0
    %5271 = vmatprep.mubr.bf16.mxu0 0
    %5272 = vmatmul.mubr.bf16.gmra.mrb[0].mxu0 %v5135
    %v5273 = vpop.f32.mrb[0].mxu0
    %v5274 = vadd.f32 %v5181, %v5273
    %v5275 = vpop.f32.mrb[0].mxu0
    %v5276 = vpop.f32.mrb[0].mxu0
    %v5277 = vadd.f32 %v5181, %v5276
    %v5278 = vpop.f32.mrb[0].mxu0
    %5279 = vmatprep.mubr.bf16.mxu0 0
    %5280 = vmatmul.mubr.bf16.gmra.mrb[0].mxu0 %v5136
    %v5281 = vpop.f32.mrb[0].mxu0
    %v5282 = vadd.f32 %v5181, %v5281
    %v5283 = vpop.f32.mrb[0].mxu0
    %v5284 = vpop.f32.mrb[0].mxu0
    %v5285 = vadd.f32 %v5181, %v5284
    %v5286 = vpop.f32.mrb[0].mxu0
    %5287 = vmatprep.mubr.bf16.mxu0 0
    %5288 = vmatmul.mubr.bf16.gmra.mrb[0].mxu0 %v5137
    %v5289 = vpop.f32.mrb[0].mxu0
    %v5290 = vadd.f32 %v5181, %v5289
    %v5291 = vpop.f32.mrb[0].mxu0
    %v5292 = vpop.f32.mrb[0].mxu0
    %v5293 = vadd.f32 %v5181, %v5292
    %v5294 = vpop.f32.mrb[0].mxu0
    %5295 = vmatprep.mubr.bf16.mxu0 0
    %5296 = vmatmul.mubr.bf16.gmra.mrb[0].mxu0 %v5138
    %v5297 = vpop.f32.mrb[0].mxu0
    %v5298 = vadd.f32 %v5181, %v5297
    %v5299 = vpop.f32.mrb[0].mxu0
    %v5300 = vpop.f32.mrb[0].mxu0
    %v5301 = vadd.f32 %v5181, %v5300
    %v5302 = vpop.f32.mrb[0].mxu0
    %5303 = vmatprep.mubr.bf16.mxu0 0
    %5304 = vmatmul.mubr.bf16.gmra.mrb[0].mxu0 %v5139
    %v5305 = vpop.f32.mrb[0].mxu0
    %v5306 = vadd.f32 %v5181, %v5305
    %v5307 = vpop.f32.mrb[0].mxu0
    %v5308 = vpop.f32.mrb[0].mxu0
    %v5309 = vadd.f32 %v5181, %v5308
    %v5310 = vpop.f32.mrb[0].mxu0
    %5311 = vmatprep.mubr.bf16.mxu0 0
    %5312 = vmatmul.mubr.bf16.gmra.mrb[0].mxu0 %v5140
    %v5313 = vpop.f32.mrb[0].mxu0
    %v5314 = vadd.f32 %v5181, %v5313
    %v5315 = vpop.f32.mrb[0].mxu0
    %v5316 = vpop.f32.mrb[0].mxu0
    %v5317 = vadd.f32 %v5181, %v5316
    %v5318 = vpop.f32.mrb[0].mxu0
    %5319 = vmatprep.mubr.bf16.mxu0 0
    %5320 = vmatmul.mubr.bf16.gmra.mrb[0].mxu0 %v5141
    %v5321 = vpop.f32.mrb[0].mxu0
    %v5322 = vadd.f32 %v5181, %v5321
    %v5323 = vpop.f32.mrb[0].mxu0
    %v5324 = vpop.f32.mrb[0].mxu0
    %v5325 = vadd.f32 %v5181, %v5324
    %v5326 = vpop.f32.mrb[0].mxu0
    %5327 = vmatprep.mubr.bf16.mxu0 0
    %5328 = vmatmul.mubr.bf16.gmra.mrb[0].mxu0 %v5142
    %v5329 = vpop.f32.mrb[0].mxu0
    %v5330 = vadd.f32 %v5181, %v5329
    %v5331 = vpop.f32.mrb[0].mxu0
    %v5332 = vpop.f32.mrb[0].mxu0
    %v5333 = vadd.f32 %v5181, %v5332
    %v5334 = vpop.f32.mrb[0].mxu0
    %5335 = vmatprep.mubr.bf16.mxu0 0
    %5336 = vmatmul.mubr.bf16.gmra.mrb[0].mxu0 %v5143
    %v5337 = vpop.f32.mrb[0].mxu0
    %v5338 = vadd.f32 %v5181, %v5337
    %v5339 = vpop.f32.mrb[0].mxu0
    %v5340 = vpop.f32.mrb[0].mxu0
    %v5341 = vadd.f32 %v5181, %v5340
    %v5342 = vpop.f32.mrb[0].mxu0
    %5343 = vmatprep.mubr.bf16.mxu0 0
    %5344 = vmatmul.mubr.bf16.gmra.mrb[0].mxu0 %v5144
    %v5345 = vpop.f32.mrb[0].mxu0
    %v5346 = vadd.f32 %v5181, %v5345
    %v5347 = vpop.f32.mrb[0].mxu0
    %v5348 = vpop.f32.mrb[0].mxu0
    %v5349 = vadd.f32 %v5181, %v5348
    %v5350 = vpop.f32.mrb[0].mxu0
    %5351 = vmatprep.mubr.bf16.mxu0 0
    %5352 = vmatmul.mubr.bf16.gmra.mrb[0].mxu0 %v5145
    %v5353 = vpop.f32.mrb[0].mxu0
    %v5354 = vadd.f32 %v5181, %v5353
    %v5355 = vpop.f32.mrb[0].mxu0
    %v5356 = vpop.f32.mrb[0].mxu0
    %v5357 = vadd.f32 %v5181, %v5356
    %v5358 = vpop.f32.mrb[0].mxu0
    %5359 = vmatprep.mubr.bf16.mxu0 0
    %5360 = vmatmul.mubr.bf16.gmra.mrb[0].mxu0 %v5146
    %v5361 = vpop.f32.mrb[0].mxu0
    %v5362 = vadd.f32 %v5181, %v5361
    %v5363 = vpop.f32.mrb[0].mxu0
    %v5364 = vpop.f32.mrb[0].mxu0
    %v5365 = vadd.f32 %v5181, %v5364
    %v5366 = vpop.f32.mrb[0].mxu0
    %5367 = vmatprep.mubr.bf16.mxu0 0
    %5368 = vmatmul.mubr.bf16.gmra.mrb[0].mxu0 %v5147
    %v5369 = vpop.f32.mrb[0].mxu0
    %v5370 = vadd.f32 %v5181, %v5369
    %v5371 = vpop.f32.mrb[0].mxu0
    %v5372 = vpop.f32.mrb[0].mxu0
    %v5373 = vadd.f32 %v5181, %v5372
    %v5374 = vpop.f32.mrb[0].mxu0
    %5375 = vmatprep.mubr.bf16.mxu0 0
    %5376 = vmatmul.mubr.bf16.gmra.mrb[0].mxu0 %v5148
    %v5377 = vpop.f32.mrb[0].mxu0
    %v5378 = vadd.f32 %v5181, %v5377
    %v5379 = vpop.f32.mrb[0].mxu0
    %v5380 = vpop.f32.mrb[0].mxu0
    %v5381 = vadd.f32 %v5181, %v5380
    %v5382 = vpop.f32.mrb[0].mxu0
    %5383 = vmatprep.mubr.bf16.mxu0 0
    %5384 = vmatmul.mubr.bf16.gmra.mrb[0].mxu0 %v5149
    %v5385 = vpop.f32.mrb[0].mxu0
    %v5386 = vadd.f32 %v5181, %v5385
    %v5387 = vpop.f32.mrb[0].mxu0
    %v5388 = vpop.f32.mrb[0].mxu0
    %v5389 = vadd.f32 %v5181, %v5388
    %v5390 = vpop.f32.mrb[0].mxu0
    %5391 = vmatprep.mubr.bf16.mxu0 0
    %5392 = vmatmul.mubr.bf16.gmra.mrb[0].mxu0 %v5150
    %v5393 = vpop.f32.mrb[0].mxu0
    %v5394 = vadd.f32 %v5181, %v5393
    %v5395 = vpop.f32.mrb[0].mxu0
    %v5396 = vpop.f32.mrb[0].mxu0
    %v5397 = vadd.f32 %v5181, %v5396
    %v5398 = vpop.f32.mrb[0].mxu0
    %5399 = vmatprep.mubr.bf16.mxu0 0
    %5400 = vmatmul.mubr.bf16.gmra.mrb[0].mxu0 %v5151
    %v5401 = vpop.f32.mrb[0].mxu0
    %v5402 = vadd.f32 %v5181, %v5401
    %v5403 = vpop.f32.mrb[0].mxu0
    %v5404 = vpop.f32.mrb[0].mxu0
    %v5405 = vadd.f32 %v5181, %v5404
    %v5406 = vpop.f32.mrb[0].mxu0
    %5407 = vmatprep.mubr.bf16.mxu0 0
    %5408 = vmatmul.mubr.bf16.gmra.mrb[0].mxu0 %v5152
    %v5409 = vpop.f32.mrb[0].mxu0
    %v5410 = vadd.f32 %v5181, %v5409
    %v5411 = vpop.f32.mrb[0].mxu0
    %v5412 = vpop.f32.mrb[0].mxu0
    %v5413 = vadd.f32 %v5181, %v5412
    %v5414 = vpop.f32.mrb[0].mxu0
    %5415 = vmatprep.mubr.bf16.mxu0 0
    %5416 = vmatmul.mubr.bf16.gmra.mrb[0].mxu0 %v5153
    %v5417 = vpop.f32.mrb[0].mxu0
    %v5418 = vadd.f32 %v5181, %v5417
    %v5419 = vpop.f32.mrb[0].mxu0
    %v5420 = vpop.f32.mrb[0].mxu0
    %v5421 = vadd.f32 %v5181, %v5420
    %v5422 = vpop.f32.mrb[0].mxu0
    %5423 = vmatprep.mubr.bf16.mxu0 0
    %5424 = vmatmul.mubr.bf16.gmra.mrb[0].mxu0 %v5154
    %v5425 = vpop.f32.mrb[0].mxu0
    %v5426 = vadd.f32 %v5181, %v5425
    %v5427 = vpop.f32.mrb[0].mxu0
    %v5428 = vpop.f32.mrb[0].mxu0
    %v5429 = vadd.f32 %v5181, %v5428
    %v5430 = vpop.f32.mrb[0].mxu0
    %5431 = vmatprep.mubr.bf16.mxu0 0
    %5432 = vmatmul.mubr.bf16.gmra.mrb[0].mxu0 %v5155
    %v5433 = vpop.f32.mrb[0].mxu0
    %v5434 = vadd.f32 %v5181, %v5433
    %v5435 = vpop.f32.mrb[0].mxu0
    %v5436 = vpop.f32.mrb[0].mxu0
    %v5437 = vadd.f32 %v5181, %v5436
    %v5438 = vpop.f32.mrb[0].mxu0
    %5439 = vmatprep.mubr.bf16.mxu0 0
    %5440 = vmatmul.mubr.bf16.gmra.mrb[0].mxu0 %v5156
    %v5441 = vpop.f32.mrb[0].mxu0
    %v5442 = vadd.f32 %v5181, %v5441
    %v5443 = vpop.f32.mrb[0].mxu0
    %v5444 = vpop.f32.mrb[0].mxu0
    %v5445 = vadd.f32 %v5181, %v5444
    %v5446 = vpop.f32.mrb[0].mxu0
    %5447 = vmatprep.mubr.bf16.mxu0 0
    %5448 = vmatmul.mubr.bf16.gmra.mrb[0].mxu0 %v5157
    %v5449 = vpop.f32.mrb[0].mxu0
    %v5450 = vadd.f32 %v5181, %v5449
    %v5451 = vpop.f32.mrb[0].mxu0
    %v5452 = vpop.f32.mrb[0].mxu0
    %v5453 = vadd.f32 %v5181, %v5452
    %v5454 = vpop.f32.mrb[0].mxu0
    %5455 = vdwg.mxu0
    %v5456 = vmul.f32 %v5266, 0.5
    %v5457 = vmul.f32 %v5269, 0.5
    %v5458 = vmul.f32 %v5274, 0.5
    %v5459 = vmul.f32 %v5277, 0.5
    %v5460 = vmul.f32 %v5282, 0.5
    %v5461 = vmul.f32 %v5285, 0.5
    %v5462 = vmul.f32 %v5290, 0.5
    %v5463 = vmul.f32 %v5293, 0.5
    %v5464 = vmul.f32 %v5298, 0.5
    %v5465 = vmul.f32 %v5301, 0.5
    %v5466 = vmul.f32 %v5306, 0.5
    %v5467 = vmul.f32 %v5309, 0.5
    %v5468 = vmul.f32 %v5314, 0.5
    %v5469 = vmul.f32 %v5317, 0.5
    %v5470 = vmul.f32 %v5322, 0.5
    %v5471 = vmul.f32 %v5325, 0.5
    %v5472 = vmul.f32 %v5330, 0.5
    %v5473 = vmul.f32 %v5333, 0.5
    %v5474 = vmul.f32 %v5338, 0.5
    %v5475 = vmul.f32 %v5341, 0.5
    %v5476 = vmul.f32 %v5346, 0.5
    %v5477 = vmul.f32 %v5349, 0.5
    %v5478 = vmul.f32 %v5354, 0.5
    %v5479 = vmul.f32 %v5357, 0.5
    %v5480 = vmul.f32 %v5362, 0.5
    %v5481 = vmul.f32 %v5365, 0.5
    %v5482 = vmul.f32 %v5370, 0.5
    %v5483 = vmul.f32 %v5373, 0.5
    %v5484 = vmul.f32 %v5378, 0.5
    %v5485 = vmul.f32 %v5381, 0.5
    %v5486 = vmul.f32 %v5386, 0.5
    %v5487 = vmul.f32 %v5389, 0.5
    %v5488 = vmul.f32 %v5394, 0.5
    %v5489 = vmul.f32 %v5397, 0.5
    %v5490 = vmul.f32 %v5402, 0.5
    %v5491 = vmul.f32 %v5405, 0.5
    %v5492 = vmul.f32 %v5410, 0.5
    %v5493 = vmul.f32 %v5413, 0.5
    %v5494 = vmul.f32 %v5418, 0.5
    %v5495 = vmul.f32 %v5421, 0.5
    %v5496 = vmul.f32 %v5426, 0.5
    %v5497 = vmul.f32 %v5429, 0.5
    %v5498 = vmul.f32 %v5434, 0.5
    %v5499 = vmul.f32 %v5437, 0.5
    %v5500 = vmul.f32 %v5442, 0.5
    %v5501 = vmul.f32 %v5445, 0.5
    %v5502 = vmul.f32 %v5450, 0.5
    %v5503 = vmul.f32 %v5453, 0.5
    %v5504 = vtanh.pop %v5456
    %v5505 = vtanh.pop %v5457
    %v5506 = vtanh.pop %v5458
    %v5507 = vtanh.pop %v5459
    %v5508 = vtanh.pop %v5460
    %v5509 = vtanh.pop %v5461
    %v5510 = vtanh.pop %v5462
    %v5511 = vtanh.pop %v5463
    %v5512 = vtanh.pop %v5464
    %v5513 = vtanh.pop %v5465
    %v5514 = vtanh.pop %v5466
    %v5515 = vtanh.pop %v5467
    %v5516 = vtanh.pop %v5468
    %v5517 = vtanh.pop %v5469
    %v5518 = vtanh.pop %v5470
    %v5519 = vtanh.pop %v5471
    %v5520 = vtanh.pop %v5472
    %v5521 = vtanh.pop %v5473
    %v5522 = vtanh.pop %v5474
    %v5523 = vtanh.pop %v5475
    %v5524 = vtanh.pop %v5476
    %v5525 = vtanh.pop %v5477
    %v5526 = vtanh.pop %v5478
    %v5527 = vtanh.pop %v5479
    %v5528 = vtanh.pop %v5480
    %v5529 = vtanh.pop %v5481
    %v5530 = vtanh.pop %v5482
    %v5531 = vtanh.pop %v5483
    %v5532 = vtanh.pop %v5484
    %v5533 = vtanh.pop %v5485
    %v5534 = vtanh.pop %v5486
    %v5535 = vtanh.pop %v5487
    %v5536 = vtanh.pop %v5488
    %v5537 = vtanh.pop %v5489
    %v5538 = vtanh.pop %v5490
    %v5539 = vtanh.pop %v5491
    %v5540 = vtanh.pop %v5492
    %v5541 = vtanh.pop %v5493
    %v5542 = vtanh.pop %v5494
    %v5543 = vtanh.pop %v5495
    %v5544 = vtanh.pop %v5496
    %v5545 = vtanh.pop %v5497
    %v5546 = vtanh.pop %v5498
    %v5547 = vtanh.pop %v5499
    %v5548 = vtanh.pop %v5500
    %v5549 = vtanh.pop %v5501
    %v5550 = vtanh.pop %v5502
    %v5551 = vtanh.pop %v5503
    %v5552 = vmul.f32 %v5504, 0.5
    %v5553 = vmul.f32 %v5505, 0.5
    %v5554 = vmul.f32 %v5506, 0.5
    %v5555 = vmul.f32 %v5507, 0.5
    %v5556 = vmul.f32 %v5508, 0.5
    %v5557 = vmul.f32 %v5509, 0.5
    %v5558 = vmul.f32 %v5510, 0.5
    %v5559 = vmul.f32 %v5511, 0.5
    %v5560 = vmul.f32 %v5512, 0.5
    %v5561 = vmul.f32 %v5513, 0.5
    %v5562 = vmul.f32 %v5514, 0.5
    %v5563 = vmul.f32 %v5515, 0.5
    %v5564 = vmul.f32 %v5516, 0.5
    %v5565 = vmul.f32 %v5517, 0.5
    %v5566 = vmul.f32 %v5518, 0.5
    %v5567 = vmul.f32 %v5519, 0.5
    %v5568 = vmul.f32 %v5520, 0.5
    %v5569 = vmul.f32 %v5521, 0.5
    %v5570 = vmul.f32 %v5522, 0.5
    %v5571 = vmul.f32 %v5523, 0.5
    %v5572 = vmul.f32 %v5524, 0.5
    %v5573 = vmul.f32 %v5525, 0.5
    %v5574 = vmul.f32 %v5526, 0.5
    %v5575 = vmul.f32 %v5527, 0.5
    %v5576 = vmul.f32 %v5528, 0.5
    %v5577 = vmul.f32 %v5529, 0.5
    %v5578 = vmul.f32 %v5530, 0.5
    %v5579 = vmul.f32 %v5531, 0.5
    %v5580 = vmul.f32 %v5532, 0.5
    %v5581 = vmul.f32 %v5533, 0.5
    %v5582 = vmul.f32 %v5534, 0.5
    %v5583 = vmul.f32 %v5535, 0.5
    %v5584 = vmul.f32 %v5536, 0.5
    %v5585 = vmul.f32 %v5537, 0.5
    %v5586 = vmul.f32 %v5538, 0.5
    %v5587 = vmul.f32 %v5539, 0.5
    %v5588 = vmul.f32 %v5540, 0.5
    %v5589 = vmul.f32 %v5541, 0.5
    %v5590 = vmul.f32 %v5542, 0.5
    %v5591 = vmul.f32 %v5543, 0.5
    %v5592 = vmul.f32 %v5544, 0.5
    %v5593 = vmul.f32 %v5545, 0.5
    %v5594 = vmul.f32 %v5546, 0.5
    %v5595 = vmul.f32 %v5547, 0.5
    %v5596 = vmul.f32 %v5548, 0.5
    %v5597 = vmul.f32 %v5549, 0.5
    %v5598 = vmul.f32 %v5550, 0.5
    %v5599 = vmul.f32 %v5551, 0.5
    %v5600 = vadd.f32 %v5552, 0.5
    %v5601 = vadd.f32 %v5553, 0.5
    %v5602 = vadd.f32 %v5554, 0.5
    %v5603 = vadd.f32 %v5555, 0.5
    %v5604 = vadd.f32 %v5556, 0.5
    %v5605 = vadd.f32 %v5557, 0.5
    %v5606 = vadd.f32 %v5558, 0.5
    %v5607 = vadd.f32 %v5559, 0.5
    %v5608 = vadd.f32 %v5560, 0.5
    %v5609 = vadd.f32 %v5561, 0.5
    %v5610 = vadd.f32 %v5562, 0.5
    %v5611 = vadd.f32 %v5563, 0.5
    %v5612 = vadd.f32 %v5564, 0.5
    %v5613 = vadd.f32 %v5565, 0.5
    %v5614 = vadd.f32 %v5566, 0.5
    %v5615 = vadd.f32 %v5567, 0.5
    %v5616 = vadd.f32 %v5568, 0.5
    %v5617 = vadd.f32 %v5569, 0.5
    %v5618 = vadd.f32 %v5570, 0.5
    %v5619 = vadd.f32 %v5571, 0.5
    %v5620 = vadd.f32 %v5572, 0.5
    %v5621 = vadd.f32 %v5573, 0.5
    %v5622 = vadd.f32 %v5574, 0.5
    %v5623 = vadd.f32 %v5575, 0.5
    %v5624 = vadd.f32 %v5576, 0.5
    %v5625 = vadd.f32 %v5577, 0.5
    %v5626 = vadd.f32 %v5578, 0.5
    %v5627 = vadd.f32 %v5579, 0.5
    %v5628 = vadd.f32 %v5580, 0.5
    %v5629 = vadd.f32 %v5581, 0.5
    %v5630 = vadd.f32 %v5582, 0.5
    %v5631 = vadd.f32 %v5583, 0.5
    %v5632 = vadd.f32 %v5584, 0.5
    %v5633 = vadd.f32 %v5585, 0.5
    %v5634 = vadd.f32 %v5586, 0.5
    %v5635 = vadd.f32 %v5587, 0.5
    %v5636 = vadd.f32 %v5588, 0.5
    %v5637 = vadd.f32 %v5589, 0.5
    %v5638 = vadd.f32 %v5590, 0.5
    %v5639 = vadd.f32 %v5591, 0.5
    %v5640 = vadd.f32 %v5592, 0.5
    %v5641 = vadd.f32 %v5593, 0.5
    %v5642 = vadd.f32 %v5594, 0.5
    %v5643 = vadd.f32 %v5595, 0.5
    %v5644 = vadd.f32 %v5596, 0.5
    %v5645 = vadd.f32 %v5597, 0.5
    %v5646 = vadd.f32 %v5598, 0.5
    %v5647 = vadd.f32 %v5599, 0.5
    %5648 = vrot.lane.b32.xlu0 %v5600, 64
    %v5649 = vpop.permute.xlu0 %5648
    %5650 = vrot.lane.b32.xlu0 %v5601, 64
    %v5651 = vpop.permute.xlu0 %5650
    %5652 = vrot.lane.b32.xlu0 %v5602, 64
    %v5653 = vpop.permute.xlu0 %5652
    %5654 = vrot.lane.b32.xlu0 %v5603, 64
    %v5655 = vpop.permute.xlu0 %5654
    %5656 = vrot.lane.b32.xlu0 %v5604, 64
    %v5657 = vpop.permute.xlu0 %5656
    %5658 = vrot.lane.b32.xlu0 %v5605, 64
    %v5659 = vpop.permute.xlu0 %5658
    %5660 = vrot.lane.b32.xlu0 %v5606, 64
    %v5661 = vpop.permute.xlu0 %5660
    %5662 = vrot.lane.b32.xlu0 %v5607, 64
    %v5663 = vpop.permute.xlu0 %5662
    %5664 = vrot.lane.b32.xlu0 %v5608, 64
    %v5665 = vpop.permute.xlu0 %5664
    %5666 = vrot.lane.b32.xlu0 %v5609, 64
    %v5667 = vpop.permute.xlu0 %5666
    %5668 = vrot.lane.b32.xlu0 %v5610, 64
    %v5669 = vpop.permute.xlu0 %5668
    %5670 = vrot.lane.b32.xlu0 %v5611, 64
    %v5671 = vpop.permute.xlu0 %5670
    %5672 = vrot.lane.b32.xlu0 %v5612, 64
    %v5673 = vpop.permute.xlu0 %5672
    %5674 = vrot.lane.b32.xlu0 %v5613, 64
    %v5675 = vpop.permute.xlu0 %5674
    %5676 = vrot.lane.b32.xlu0 %v5614, 64
    %v5677 = vpop.permute.xlu0 %5676
    %5678 = vrot.lane.b32.xlu0 %v5615, 64
    %v5679 = vpop.permute.xlu0 %5678
    %5680 = vrot.lane.b32.xlu0 %v5616, 64
    %v5681 = vpop.permute.xlu0 %5680
    %5682 = vrot.lane.b32.xlu0 %v5617, 64
    %v5683 = vpop.permute.xlu0 %5682
    %5684 = vrot.lane.b32.xlu0 %v5618, 64
    %v5685 = vpop.permute.xlu0 %5684
    %5686 = vrot.lane.b32.xlu0 %v5619, 64
    %v5687 = vpop.permute.xlu0 %5686
    %5688 = vrot.lane.b32.xlu0 %v5620, 64
    %v5689 = vpop.permute.xlu0 %5688
    %5690 = vrot.lane.b32.xlu0 %v5621, 64
    %v5691 = vpop.permute.xlu0 %5690
    %5692 = vrot.lane.b32.xlu0 %v5622, 64
    %v5693 = vpop.permute.xlu0 %5692
    %5694 = vrot.lane.b32.xlu0 %v5623, 64
    %v5695 = vpop.permute.xlu0 %5694
    %5696 = vrot.lane.b32.xlu0 %v5624, 64
    %v5697 = vpop.permute.xlu0 %5696
    %5698 = vrot.lane.b32.xlu0 %v5625, 64
    %v5699 = vpop.permute.xlu0 %5698
    %5700 = vrot.lane.b32.xlu0 %v5626, 64
    %v5701 = vpop.permute.xlu0 %5700
    %5702 = vrot.lane.b32.xlu0 %v5627, 64
    %v5703 = vpop.permute.xlu0 %5702
    %5704 = vrot.lane.b32.xlu0 %v5628, 64
    %v5705 = vpop.permute.xlu0 %5704
    %5706 = vrot.lane.b32.xlu0 %v5629, 64
    %v5707 = vpop.permute.xlu0 %5706
    %5708 = vrot.lane.b32.xlu0 %v5630, 64
    %v5709 = vpop.permute.xlu0 %5708
    %5710 = vrot.lane.b32.xlu0 %v5631, 64
    %v5711 = vpop.permute.xlu0 %5710
    %5712 = vrot.lane.b32.xlu0 %v5632, 64
    %v5713 = vpop.permute.xlu0 %5712
    %5714 = vrot.lane.b32.xlu0 %v5633, 64
    %v5715 = vpop.permute.xlu0 %5714
    %5716 = vrot.lane.b32.xlu0 %v5634, 64
    %v5717 = vpop.permute.xlu0 %5716
    %5718 = vrot.lane.b32.xlu0 %v5635, 64
    %v5719 = vpop.permute.xlu0 %5718
    %5720 = vrot.lane.b32.xlu0 %v5636, 64
    %v5721 = vpop.permute.xlu0 %5720
    %5722 = vrot.lane.b32.xlu0 %v5637, 64
    %v5723 = vpop.permute.xlu0 %5722
    %5724 = vrot.lane.b32.xlu0 %v5638, 64
    %v5725 = vpop.permute.xlu0 %5724
    %5726 = vrot.lane.b32.xlu0 %v5639, 64
    %v5727 = vpop.permute.xlu0 %5726
    %5728 = vrot.lane.b32.xlu0 %v5640, 64
    %v5729 = vpop.permute.xlu0 %5728
    %5730 = vrot.lane.b32.xlu0 %v5641, 64
    %v5731 = vpop.permute.xlu0 %5730
    %5732 = vrot.lane.b32.xlu0 %v5642, 64
    %v5733 = vpop.permute.xlu0 %5732
    %5734 = vrot.lane.b32.xlu0 %v5643, 64
    %v5735 = vpop.permute.xlu0 %5734
    %5736 = vrot.lane.b32.xlu0 %v5644, 64
    %v5737 = vpop.permute.xlu0 %5736
    %5738 = vrot.lane.b32.xlu0 %v5645, 64
    %v5739 = vpop.permute.xlu0 %5738
    %5740 = vrot.lane.b32.xlu0 %v5646, 64
    %v5741 = vpop.permute.xlu0 %5740
    %5742 = vrot.lane.b32.xlu0 %v5647, 64
    %v5743 = vpop.permute.xlu0 %5742
    %v5744 = vsub.f32 %v5600, %v5086
    %v5745 = vsub.f32 %v5601, %v5087
    %v5746 = vsub.f32 %v5602, %v5088
    %v5747 = vsub.f32 %v5603, %v5089
    %v5748 = vsub.f32 %v5604, %v5090
    %v5749 = vsub.f32 %v5605, %v5091
    %v5750 = vsub.f32 %v5606, %v5092
    %v5751 = vsub.f32 %v5607, %v5093
    %v5752 = vsub.f32 %v5608, %v5094
    %v5753 = vsub.f32 %v5609, %v5095
    %v5754 = vsub.f32 %v5610, %v5096
    %v5755 = vsub.f32 %v5611, %v5097
    %v5756 = vsub.f32 %v5612, %v5098
    %v5757 = vsub.f32 %v5613, %v5099
    %v5758 = vsub.f32 %v5614, %v5100
    %v5759 = vsub.f32 %v5615, %v5101
    %v5760 = vsub.f32 %v5616, %v5102
    %v5761 = vsub.f32 %v5617, %v5103
    %v5762 = vsub.f32 %v5618, %v5104
    %v5763 = vsub.f32 %v5619, %v5105
    %v5764 = vsub.f32 %v5620, %v5106
    %v5765 = vsub.f32 %v5621, %v5107
    %v5766 = vsub.f32 %v5622, %v5108
    %v5767 = vsub.f32 %v5623, %v5109
    %v5768 = vsub.f32 %v5624, %v5110
    %v5769 = vsub.f32 %v5625, %v5111
    %v5770 = vsub.f32 %v5626, %v5112
    %v5771 = vsub.f32 %v5627, %v5113
    %v5772 = vsub.f32 %v5628, %v5114
    %v5773 = vsub.f32 %v5629, %v5115
    %v5774 = vsub.f32 %v5630, %v5116
    %v5775 = vsub.f32 %v5631, %v5117
    %v5776 = vsub.f32 %v5632, %v5118
    %v5777 = vsub.f32 %v5633, %v5119
    %v5778 = vsub.f32 %v5634, %v5120
    %v5779 = vsub.f32 %v5635, %v5121
    %v5780 = vsub.f32 %v5636, %v5122
    %v5781 = vsub.f32 %v5637, %v5123
    %v5782 = vsub.f32 %v5638, %v5124
    %v5783 = vsub.f32 %v5639, %v5125
    %v5784 = vsub.f32 %v5640, %v5126
    %v5785 = vsub.f32 %v5641, %v5127
    %v5786 = vsub.f32 %v5642, %v5128
    %v5787 = vsub.f32 %v5643, %v5129
    %v5788 = vsub.f32 %v5644, %v5130
    %v5789 = vsub.f32 %v5645, %v5131
    %v5790 = vsub.f32 %v5646, %v5132
    %v5791 = vsub.f32 %v5647, %v5133
    %v5792 = vmul.f32 %v5649, %v5744
    %v5793 = vmul.f32 %v5651, %v5745
    %v5794 = vmul.f32 %v5653, %v5746
    %v5795 = vmul.f32 %v5655, %v5747
    %v5796 = vmul.f32 %v5657, %v5748
    %v5797 = vmul.f32 %v5659, %v5749
    %v5798 = vmul.f32 %v5661, %v5750
    %v5799 = vmul.f32 %v5663, %v5751
    %v5800 = vmul.f32 %v5665, %v5752
    %v5801 = vmul.f32 %v5667, %v5753
    %v5802 = vmul.f32 %v5669, %v5754
    %v5803 = vmul.f32 %v5671, %v5755
    %v5804 = vmul.f32 %v5673, %v5756
    %v5805 = vmul.f32 %v5675, %v5757
    %v5806 = vmul.f32 %v5677, %v5758
    %v5807 = vmul.f32 %v5679, %v5759
    %v5808 = vmul.f32 %v5681, %v5760
    %v5809 = vmul.f32 %v5683, %v5761
    %v5810 = vmul.f32 %v5685, %v5762
    %v5811 = vmul.f32 %v5687, %v5763
    %v5812 = vmul.f32 %v5689, %v5764
    %v5813 = vmul.f32 %v5691, %v5765
    %v5814 = vmul.f32 %v5693, %v5766
    %v5815 = vmul.f32 %v5695, %v5767
    %v5816 = vmul.f32 %v5697, %v5768
    %v5817 = vmul.f32 %v5699, %v5769
    %v5818 = vmul.f32 %v5701, %v5770
    %v5819 = vmul.f32 %v5703, %v5771
    %v5820 = vmul.f32 %v5705, %v5772
    %v5821 = vmul.f32 %v5707, %v5773
    %v5822 = vmul.f32 %v5709, %v5774
    %v5823 = vmul.f32 %v5711, %v5775
    %v5824 = vmul.f32 %v5713, %v5776
    %v5825 = vmul.f32 %v5715, %v5777
    %v5826 = vmul.f32 %v5717, %v5778
    %v5827 = vmul.f32 %v5719, %v5779
    %v5828 = vmul.f32 %v5721, %v5780
    %v5829 = vmul.f32 %v5723, %v5781
    %v5830 = vmul.f32 %v5725, %v5782
    %v5831 = vmul.f32 %v5727, %v5783
    %v5832 = vmul.f32 %v5729, %v5784
    %v5833 = vmul.f32 %v5731, %v5785
    %v5834 = vmul.f32 %v5733, %v5786
    %v5835 = vmul.f32 %v5735, %v5787
    %v5836 = vmul.f32 %v5737, %v5788
    %v5837 = vmul.f32 %v5739, %v5789
    %v5838 = vmul.f32 %v5741, %v5790
    %v5839 = vmul.f32 %v5743, %v5791
    %v5840 = vadd.f32 %v5086, %v5792
    %v5841 = vadd.f32 %v5087, %v5793
    %v5842 = vadd.f32 %v5088, %v5794
    %v5843 = vadd.f32 %v5089, %v5795
    %v5844 = vadd.f32 %v5090, %v5796
    %v5845 = vadd.f32 %v5091, %v5797
    %v5846 = vadd.f32 %v5092, %v5798
    %v5847 = vadd.f32 %v5093, %v5799
    %v5848 = vadd.f32 %v5094, %v5800
    %v5849 = vadd.f32 %v5095, %v5801
    %v5850 = vadd.f32 %v5096, %v5802
    %v5851 = vadd.f32 %v5097, %v5803
    %v5852 = vadd.f32 %v5098, %v5804
    %v5853 = vadd.f32 %v5099, %v5805
    %v5854 = vadd.f32 %v5100, %v5806
    %v5855 = vadd.f32 %v5101, %v5807
    %v5856 = vadd.f32 %v5102, %v5808
    %v5857 = vadd.f32 %v5103, %v5809
    %v5858 = vadd.f32 %v5104, %v5810
    %v5859 = vadd.f32 %v5105, %v5811
    %v5860 = vadd.f32 %v5106, %v5812
    %v5861 = vadd.f32 %v5107, %v5813
    %v5862 = vadd.f32 %v5108, %v5814
    %v5863 = vadd.f32 %v5109, %v5815
    %v5864 = vadd.f32 %v5110, %v5816
    %v5865 = vadd.f32 %v5111, %v5817
    %v5866 = vadd.f32 %v5112, %v5818
    %v5867 = vadd.f32 %v5113, %v5819
    %v5868 = vadd.f32 %v5114, %v5820
    %v5869 = vadd.f32 %v5115, %v5821
    %v5870 = vadd.f32 %v5116, %v5822
    %v5871 = vadd.f32 %v5117, %v5823
    %v5872 = vadd.f32 %v5118, %v5824
    %v5873 = vadd.f32 %v5119, %v5825
    %v5874 = vadd.f32 %v5120, %v5826
    %v5875 = vadd.f32 %v5121, %v5827
    %v5876 = vadd.f32 %v5122, %v5828
    %v5877 = vadd.f32 %v5123, %v5829
    %v5878 = vadd.f32 %v5124, %v5830
    %v5879 = vadd.f32 %v5125, %v5831
    %v5880 = vadd.f32 %v5126, %v5832
    %v5881 = vadd.f32 %v5127, %v5833
    %v5882 = vadd.f32 %v5128, %v5834
    %v5883 = vadd.f32 %v5129, %v5835
    %v5884 = vadd.f32 %v5130, %v5836
    %v5885 = vadd.f32 %v5131, %v5837
    %v5886 = vadd.f32 %v5132, %v5838
    %v5887 = vadd.f32 %v5133, %v5839
    %v5888 = vpack.c.bf16 %v5841, %v5840
    %v5889 = vpack.c.bf16 %v5843, %v5842
    %v5890 = vpack.c.bf16 %v5845, %v5844
    %v5891 = vpack.c.bf16 %v5847, %v5846
    %v5892 = vpack.c.bf16 %v5849, %v5848
    %v5893 = vpack.c.bf16 %v5851, %v5850
    %v5894 = vpack.c.bf16 %v5853, %v5852
    %v5895 = vpack.c.bf16 %v5855, %v5854
    %v5896 = vpack.c.bf16 %v5857, %v5856
    %v5897 = vpack.c.bf16 %v5859, %v5858
    %v5898 = vpack.c.bf16 %v5861, %v5860
    %v5899 = vpack.c.bf16 %v5863, %v5862
    %v5900 = vpack.c.bf16 %v5865, %v5864
    %v5901 = vpack.c.bf16 %v5867, %v5866
    %v5902 = vpack.c.bf16 %v5869, %v5868
    %v5903 = vpack.c.bf16 %v5871, %v5870
    %v5904 = vpack.c.bf16 %v5873, %v5872
    %v5905 = vpack.c.bf16 %v5875, %v5874
    %v5906 = vpack.c.bf16 %v5877, %v5876
    %v5907 = vpack.c.bf16 %v5879, %v5878
    %v5908 = vpack.c.bf16 %v5881, %v5880
    %v5909 = vpack.c.bf16 %v5883, %v5882
    %v5910 = vpack.c.bf16 %v5885, %v5884
    %v5911 = vpack.c.bf16 %v5887, %v5886
    %s5912 = scalar_lea.vmem [#allocation2], 448
    %v5913 = vld [vmem:[%s5912] sm:$0xf]
    %v5914 = vld [vmem:[%s5912 + $0x4] sm:$0xf]
    %v5915 = vld [vmem:[%s5912 + $0x8] sm:$0xf]
    %v5916 = vld [vmem:[%s5912 + $0xc] sm:$0xf]
    %v5917 = vld [vmem:[%s5912 + $0x10] sm:$0xf]
    %v5918 = vld [vmem:[%s5912 + $0x14] sm:$0xf]
    %v5919 = vld [vmem:[%s5912 + $0x18] sm:$0xf]
    %v5920 = vld [vmem:[%s5912 + $0x1c] sm:$0xf]
    %v5921 = vld [vmem:[%s5912 + $0x20] sm:$0xf]
    %v5922 = vld [vmem:[%s5912 + $0x24] sm:$0xf]
    %v5923 = vld [vmem:[%s5912 + $0x28] sm:$0xf]
    %v5924 = vld [vmem:[%s5912 + $0x2c] sm:$0xf]
    %v5925 = vld [vmem:[%s5912 + $0x30] sm:$0xf]
    %v5926 = vld [vmem:[%s5912 + $0x34] sm:$0xf]
    %v5927 = vld [vmem:[%s5912 + $0x38] sm:$0xf]
    %v5928 = vld [vmem:[%s5912 + $0x3c] sm:$0xf]
    %s5929 = scalar_lea.vmem %s4, 7
    %v5930 = vld [vmem:[%s5929] sm:$0x1]
    %v5932 = vlaneseq
    %v5933 = vshrl.u32 %v5932, 7
    %v5934 = vsub.s32 0, %v5933
    %v5935 = vrot.slane %v5930, %v5934
    %v5953 = vunpack.c.l.b16 %v5913
    %v5954 = vunpack.c.l.b16 %v5914
    %v5955 = vunpack.c.l.b16 %v5915
    %v5956 = vunpack.c.l.b16 %v5916
    %v5957 = vunpack.c.l.b16 %v5917
    %v5958 = vunpack.c.l.b16 %v5918
    %v5959 = vunpack.c.l.b16 %v5919
    %v5960 = vunpack.c.l.b16 %v5920
    %v5961 = vunpack.c.l.b16 %v5921
    %v5962 = vunpack.c.l.b16 %v5922
    %v5963 = vunpack.c.l.b16 %v5923
    %v5964 = vunpack.c.l.b16 %v5924
    %v5965 = vunpack.c.l.b16 %v5925
    %v5966 = vunpack.c.l.b16 %v5926
    %v5967 = vunpack.c.l.b16 %v5927
    %v5968 = vunpack.c.l.b16 %v5928
    %v5969 = vpack.c.b16 %v5954, %v5953
    %v5970 = vpack.c.b16 %v5956, %v5955
    %v5971 = vpack.c.b16 %v5958, %v5957
    %v5972 = vpack.c.b16 %v5960, %v5959
    %v5973 = vpack.c.b16 %v5962, %v5961
    %v5974 = vpack.c.b16 %v5964, %v5963
    %v5975 = vpack.c.b16 %v5966, %v5965
    %v5976 = vpack.c.b16 %v5968, %v5967
    %5985 = vmatprep.subr.bf16.mxu0 0
    %5986 = vmatpush1.bf16.msra.mxu0 %v5969
    %5987 = vmatprep.subr.bf16.mxu0 0
    %5988 = vmatpush1.bf16.msra.mxu0 %v5970
    %5989 = vmatprep.subr.bf16.mxu0 0
    %5990 = vmatpush1.bf16.msra.mxu0 %v5971
    %5991 = vmatprep.subr.bf16.mxu0 0
    %5992 = vmatpush1.bf16.msra.mxu0 %v5972
    %5993 = vmatprep.subr.bf16.mxu0 0
    %5994 = vmatpush1.bf16.msra.mxu0 %v5973
    %5995 = vmatprep.subr.bf16.mxu0 0
    %5996 = vmatpush1.bf16.msra.mxu0 %v5974
    %5997 = vmatprep.subr.bf16.mxu0 0
    %5998 = vmatpush1.bf16.msra.mxu0 %v5975
    %5999 = vmatprep.subr.bf16.mxu0 0
    %6000 = vmatpush1.bf16.msra.mxu0 %v5976
    %6001 = vmatprep.subr.bf16.mxu0 0
    %6002 = vmatpush1.bf16.msra.mxu0 0
    %6003 = vmatprep.subr.bf16.mxu0 0
    %6004 = vmatpush1.bf16.msra.mxu0 0
    %6005 = vmatprep.subr.bf16.mxu0 0
    %6006 = vmatpush1.bf16.msra.mxu0 0
    %6007 = vmatprep.subr.bf16.mxu0 0
    %6008 = vmatpush1.bf16.msra.mxu0 0
    %6009 = vmatprep.subr.bf16.mxu0 0
    %6010 = vmatpush1.bf16.msra.mxu0 0
    %6011 = vmatprep.subr.bf16.mxu0 0
    %6012 = vmatpush1.bf16.msra.mxu0 0
    %6013 = vmatprep.subr.bf16.mxu0 0
    %6014 = vmatpush1.bf16.msra.mxu0 0
    %6015 = vmatprep.subr.bf16.mxu0 0
    %6016 = vmatpush1.bf16.msra.mxu0 0
    %6017 = vmatprep.mubr.bf16.mxu0 0
    %6018 = vmatmul.mubr.bf16.gmra.mrb[0].mxu0 %v5888
    %v6019 = vpop.f32.mrb[0].mxu0
    %v6020 = vadd.f32 %v5935, %v6019
    %v6021 = vpop.f32.mrb[0].mxu0
    %v6022 = vpop.f32.mrb[0].mxu0
    %v6023 = vadd.f32 %v5935, %v6022
    %v6024 = vpop.f32.mrb[0].mxu0
    %6025 = vmatprep.mubr.bf16.mxu0 0
    %6026 = vmatmul.mubr.bf16.gmra.mrb[0].mxu0 %v5889
    %v6027 = vpop.f32.mrb[0].mxu0
    %v6028 = vadd.f32 %v5935, %v6027
    %v6029 = vpop.f32.mrb[0].mxu0
    %v6030 = vpop.f32.mrb[0].mxu0
    %v6031 = vadd.f32 %v5935, %v6030
    %v6032 = vpop.f32.mrb[0].mxu0
    %6033 = vmatprep.mubr.bf16.mxu0 0
    %6034 = vmatmul.mubr.bf16.gmra.mrb[0].mxu0 %v5890
    %v6035 = vpop.f32.mrb[0].mxu0
    %v6036 = vadd.f32 %v5935, %v6035
    %v6037 = vpop.f32.mrb[0].mxu0
    %v6038 = vpop.f32.mrb[0].mxu0
    %v6039 = vadd.f32 %v5935, %v6038
    %v6040 = vpop.f32.mrb[0].mxu0
    %6041 = vmatprep.mubr.bf16.mxu0 0
    %6042 = vmatmul.mubr.bf16.gmra.mrb[0].mxu0 %v5891
    %v6043 = vpop.f32.mrb[0].mxu0
    %v6044 = vadd.f32 %v5935, %v6043
    %v6045 = vpop.f32.mrb[0].mxu0
    %v6046 = vpop.f32.mrb[0].mxu0
    %v6047 = vadd.f32 %v5935, %v6046
    %v6048 = vpop.f32.mrb[0].mxu0
    %6049 = vmatprep.mubr.bf16.mxu0 0
    %6050 = vmatmul.mubr.bf16.gmra.mrb[0].mxu0 %v5892
    %v6051 = vpop.f32.mrb[0].mxu0
    %v6052 = vadd.f32 %v5935, %v6051
    %v6053 = vpop.f32.mrb[0].mxu0
    %v6054 = vpop.f32.mrb[0].mxu0
    %v6055 = vadd.f32 %v5935, %v6054
    %v6056 = vpop.f32.mrb[0].mxu0
    %6057 = vmatprep.mubr.bf16.mxu0 0
    %6058 = vmatmul.mubr.bf16.gmra.mrb[0].mxu0 %v5893
    %v6059 = vpop.f32.mrb[0].mxu0
    %v6060 = vadd.f32 %v5935, %v6059
    %v6061 = vpop.f32.mrb[0].mxu0
    %v6062 = vpop.f32.mrb[0].mxu0
    %v6063 = vadd.f32 %v5935, %v6062
    %v6064 = vpop.f32.mrb[0].mxu0
    %6065 = vmatprep.mubr.bf16.mxu0 0
    %6066 = vmatmul.mubr.bf16.gmra.mrb[0].mxu0 %v5894
    %v6067 = vpop.f32.mrb[0].mxu0
    %v6068 = vadd.f32 %v5935, %v6067
    %v6069 = vpop.f32.mrb[0].mxu0
    %v6070 = vpop.f32.mrb[0].mxu0
    %v6071 = vadd.f32 %v5935, %v6070
    %v6072 = vpop.f32.mrb[0].mxu0
    %6073 = vmatprep.mubr.bf16.mxu0 0
    %6074 = vmatmul.mubr.bf16.gmra.mrb[0].mxu0 %v5895
    %v6075 = vpop.f32.mrb[0].mxu0
    %v6076 = vadd.f32 %v5935, %v6075
    %v6077 = vpop.f32.mrb[0].mxu0
    %v6078 = vpop.f32.mrb[0].mxu0
    %v6079 = vadd.f32 %v5935, %v6078
    %v6080 = vpop.f32.mrb[0].mxu0
    %6081 = vmatprep.mubr.bf16.mxu0 0
    %6082 = vmatmul.mubr.bf16.gmra.mrb[0].mxu0 %v5896
    %v6083 = vpop.f32.mrb[0].mxu0
    %v6084 = vadd.f32 %v5935, %v6083
    %v6085 = vpop.f32.mrb[0].mxu0
    %v6086 = vpop.f32.mrb[0].mxu0
    %v6087 = vadd.f32 %v5935, %v6086
    %v6088 = vpop.f32.mrb[0].mxu0
    %6089 = vmatprep.mubr.bf16.mxu0 0
    %6090 = vmatmul.mubr.bf16.gmra.mrb[0].mxu0 %v5897
    %v6091 = vpop.f32.mrb[0].mxu0
    %v6092 = vadd.f32 %v5935, %v6091
    %v6093 = vpop.f32.mrb[0].mxu0
    %v6094 = vpop.f32.mrb[0].mxu0
    %v6095 = vadd.f32 %v5935, %v6094
    %v6096 = vpop.f32.mrb[0].mxu0
    %6097 = vmatprep.mubr.bf16.mxu0 0
    %6098 = vmatmul.mubr.bf16.gmra.mrb[0].mxu0 %v5898
    %v6099 = vpop.f32.mrb[0].mxu0
    %v6100 = vadd.f32 %v5935, %v6099
    %v6101 = vpop.f32.mrb[0].mxu0
    %v6102 = vpop.f32.mrb[0].mxu0
    %v6103 = vadd.f32 %v5935, %v6102
    %v6104 = vpop.f32.mrb[0].mxu0
    %6105 = vmatprep.mubr.bf16.mxu0 0
    %6106 = vmatmul.mubr.bf16.gmra.mrb[0].mxu0 %v5899
    %v6107 = vpop.f32.mrb[0].mxu0
    %v6108 = vadd.f32 %v5935, %v6107
    %v6109 = vpop.f32.mrb[0].mxu0
    %v6110 = vpop.f32.mrb[0].mxu0
    %v6111 = vadd.f32 %v5935, %v6110
    %v6112 = vpop.f32.mrb[0].mxu0
    %6113 = vmatprep.mubr.bf16.mxu0 0
    %6114 = vmatmul.mubr.bf16.gmra.mrb[0].mxu0 %v5900
    %v6115 = vpop.f32.mrb[0].mxu0
    %v6116 = vadd.f32 %v5935, %v6115
    %v6117 = vpop.f32.mrb[0].mxu0
    %v6118 = vpop.f32.mrb[0].mxu0
    %v6119 = vadd.f32 %v5935, %v6118
    %v6120 = vpop.f32.mrb[0].mxu0
    %6121 = vmatprep.mubr.bf16.mxu0 0
    %6122 = vmatmul.mubr.bf16.gmra.mrb[0].mxu0 %v5901
    %v6123 = vpop.f32.mrb[0].mxu0
    %v6124 = vadd.f32 %v5935, %v6123
    %v6125 = vpop.f32.mrb[0].mxu0
    %v6126 = vpop.f32.mrb[0].mxu0
    %v6127 = vadd.f32 %v5935, %v6126
    %v6128 = vpop.f32.mrb[0].mxu0
    %6129 = vmatprep.mubr.bf16.mxu0 0
    %6130 = vmatmul.mubr.bf16.gmra.mrb[0].mxu0 %v5902
    %v6131 = vpop.f32.mrb[0].mxu0
    %v6132 = vadd.f32 %v5935, %v6131
    %v6133 = vpop.f32.mrb[0].mxu0
    %v6134 = vpop.f32.mrb[0].mxu0
    %v6135 = vadd.f32 %v5935, %v6134
    %v6136 = vpop.f32.mrb[0].mxu0
    %6137 = vmatprep.mubr.bf16.mxu0 0
    %6138 = vmatmul.mubr.bf16.gmra.mrb[0].mxu0 %v5903
    %v6139 = vpop.f32.mrb[0].mxu0
    %v6140 = vadd.f32 %v5935, %v6139
    %v6141 = vpop.f32.mrb[0].mxu0
    %v6142 = vpop.f32.mrb[0].mxu0
    %v6143 = vadd.f32 %v5935, %v6142
    %v6144 = vpop.f32.mrb[0].mxu0
    %6145 = vmatprep.mubr.bf16.mxu0 0
    %6146 = vmatmul.mubr.bf16.gmra.mrb[0].mxu0 %v5904
    %v6147 = vpop.f32.mrb[0].mxu0
    %v6148 = vadd.f32 %v5935, %v6147
    %v6149 = vpop.f32.mrb[0].mxu0
    %v6150 = vpop.f32.mrb[0].mxu0
    %v6151 = vadd.f32 %v5935, %v6150
    %v6152 = vpop.f32.mrb[0].mxu0
    %6153 = vmatprep.mubr.bf16.mxu0 0
    %6154 = vmatmul.mubr.bf16.gmra.mrb[0].mxu0 %v5905
    %v6155 = vpop.f32.mrb[0].mxu0
    %v6156 = vadd.f32 %v5935, %v6155
    %v6157 = vpop.f32.mrb[0].mxu0
    %v6158 = vpop.f32.mrb[0].mxu0
    %v6159 = vadd.f32 %v5935, %v6158
    %v6160 = vpop.f32.mrb[0].mxu0
    %6161 = vmatprep.mubr.bf16.mxu0 0
    %6162 = vmatmul.mubr.bf16.gmra.mrb[0].mxu0 %v5906
    %v6163 = vpop.f32.mrb[0].mxu0
    %v6164 = vadd.f32 %v5935, %v6163
    %v6165 = vpop.f32.mrb[0].mxu0
    %v6166 = vpop.f32.mrb[0].mxu0
    %v6167 = vadd.f32 %v5935, %v6166
    %v6168 = vpop.f32.mrb[0].mxu0
    %6169 = vmatprep.mubr.bf16.mxu0 0
    %6170 = vmatmul.mubr.bf16.gmra.mrb[0].mxu0 %v5907
    %v6171 = vpop.f32.mrb[0].mxu0
    %v6172 = vadd.f32 %v5935, %v6171
    %v6173 = vpop.f32.mrb[0].mxu0
    %v6174 = vpop.f32.mrb[0].mxu0
    %v6175 = vadd.f32 %v5935, %v6174
    %v6176 = vpop.f32.mrb[0].mxu0
    %6177 = vmatprep.mubr.bf16.mxu0 0
    %6178 = vmatmul.mubr.bf16.gmra.mrb[0].mxu0 %v5908
    %v6179 = vpop.f32.mrb[0].mxu0
    %v6180 = vadd.f32 %v5935, %v6179
    %v6181 = vpop.f32.mrb[0].mxu0
    %v6182 = vpop.f32.mrb[0].mxu0
    %v6183 = vadd.f32 %v5935, %v6182
    %v6184 = vpop.f32.mrb[0].mxu0
    %6185 = vmatprep.mubr.bf16.mxu0 0
    %6186 = vmatmul.mubr.bf16.gmra.mrb[0].mxu0 %v5909
    %v6187 = vpop.f32.mrb[0].mxu0
    %v6188 = vadd.f32 %v5935, %v6187
    %v6189 = vpop.f32.mrb[0].mxu0
    %v6190 = vpop.f32.mrb[0].mxu0
    %v6191 = vadd.f32 %v5935, %v6190
    %v6192 = vpop.f32.mrb[0].mxu0
    %6193 = vmatprep.mubr.bf16.mxu0 0
    %6194 = vmatmul.mubr.bf16.gmra.mrb[0].mxu0 %v5910
    %v6195 = vpop.f32.mrb[0].mxu0
    %v6196 = vadd.f32 %v5935, %v6195
    %v6197 = vpop.f32.mrb[0].mxu0
    %v6198 = vpop.f32.mrb[0].mxu0
    %v6199 = vadd.f32 %v5935, %v6198
    %v6200 = vpop.f32.mrb[0].mxu0
    %6201 = vmatprep.mubr.bf16.mxu0 0
    %6202 = vmatmul.mubr.bf16.gmra.mrb[0].mxu0 %v5911
    %v6203 = vpop.f32.mrb[0].mxu0
    %v6204 = vadd.f32 %v5935, %v6203
    %v6205 = vpop.f32.mrb[0].mxu0
    %v6206 = vpop.f32.mrb[0].mxu0
    %v6207 = vadd.f32 %v5935, %v6206
    %v6208 = vpop.f32.mrb[0].mxu0
    %6209 = vdwg.mxu0
    %v6210 = vmul.f32 %v6020, 0.5
    %v6211 = vmul.f32 %v6023, 0.5
    %v6212 = vmul.f32 %v6028, 0.5
    %v6213 = vmul.f32 %v6031, 0.5
    %v6214 = vmul.f32 %v6036, 0.5
    %v6215 = vmul.f32 %v6039, 0.5
    %v6216 = vmul.f32 %v6044, 0.5
    %v6217 = vmul.f32 %v6047, 0.5
    %v6218 = vmul.f32 %v6052, 0.5
    %v6219 = vmul.f32 %v6055, 0.5
    %v6220 = vmul.f32 %v6060, 0.5
    %v6221 = vmul.f32 %v6063, 0.5
    %v6222 = vmul.f32 %v6068, 0.5
    %v6223 = vmul.f32 %v6071, 0.5
    %v6224 = vmul.f32 %v6076, 0.5
    %v6225 = vmul.f32 %v6079, 0.5
    %v6226 = vmul.f32 %v6084, 0.5
    %v6227 = vmul.f32 %v6087, 0.5
    %v6228 = vmul.f32 %v6092, 0.5
    %v6229 = vmul.f32 %v6095, 0.5
    %v6230 = vmul.f32 %v6100, 0.5
    %v6231 = vmul.f32 %v6103, 0.5
    %v6232 = vmul.f32 %v6108, 0.5
    %v6233 = vmul.f32 %v6111, 0.5
    %v6234 = vmul.f32 %v6116, 0.5
    %v6235 = vmul.f32 %v6119, 0.5
    %v6236 = vmul.f32 %v6124, 0.5
    %v6237 = vmul.f32 %v6127, 0.5
    %v6238 = vmul.f32 %v6132, 0.5
    %v6239 = vmul.f32 %v6135, 0.5
    %v6240 = vmul.f32 %v6140, 0.5
    %v6241 = vmul.f32 %v6143, 0.5
    %v6242 = vmul.f32 %v6148, 0.5
    %v6243 = vmul.f32 %v6151, 0.5
    %v6244 = vmul.f32 %v6156, 0.5
    %v6245 = vmul.f32 %v6159, 0.5
    %v6246 = vmul.f32 %v6164, 0.5
    %v6247 = vmul.f32 %v6167, 0.5
    %v6248 = vmul.f32 %v6172, 0.5
    %v6249 = vmul.f32 %v6175, 0.5
    %v6250 = vmul.f32 %v6180, 0.5
    %v6251 = vmul.f32 %v6183, 0.5
    %v6252 = vmul.f32 %v6188, 0.5
    %v6253 = vmul.f32 %v6191, 0.5
    %v6254 = vmul.f32 %v6196, 0.5
    %v6255 = vmul.f32 %v6199, 0.5
    %v6256 = vmul.f32 %v6204, 0.5
    %v6257 = vmul.f32 %v6207, 0.5
    %v6258 = vtanh.pop %v6210
    %v6259 = vtanh.pop %v6211
    %v6260 = vtanh.pop %v6212
    %v6261 = vtanh.pop %v6213
    %v6262 = vtanh.pop %v6214
    %v6263 = vtanh.pop %v6215
    %v6264 = vtanh.pop %v6216
    %v6265 = vtanh.pop %v6217
    %v6266 = vtanh.pop %v6218
    %v6267 = vtanh.pop %v6219
    %v6268 = vtanh.pop %v6220
    %v6269 = vtanh.pop %v6221
    %v6270 = vtanh.pop %v6222
    %v6271 = vtanh.pop %v6223
    %v6272 = vtanh.pop %v6224
    %v6273 = vtanh.pop %v6225
    %v6274 = vtanh.pop %v6226
    %v6275 = vtanh.pop %v6227
    %v6276 = vtanh.pop %v6228
    %v6277 = vtanh.pop %v6229
    %v6278 = vtanh.pop %v6230
    %v6279 = vtanh.pop %v6231
    %v6280 = vtanh.pop %v6232
    %v6281 = vtanh.pop %v6233
    %v6282 = vtanh.pop %v6234
    %v6283 = vtanh.pop %v6235
    %v6284 = vtanh.pop %v6236
    %v6285 = vtanh.pop %v6237
    %v6286 = vtanh.pop %v6238
    %v6287 = vtanh.pop %v6239
    %v6288 = vtanh.pop %v6240
    %v6289 = vtanh.pop %v6241
    %v6290 = vtanh.pop %v6242
    %v6291 = vtanh.pop %v6243
    %v6292 = vtanh.pop %v6244
    %v6293 = vtanh.pop %v6245
    %v6294 = vtanh.pop %v6246
    %v6295 = vtanh.pop %v6247
    %v6296 = vtanh.pop %v6248
    %v6297 = vtanh.pop %v6249
    %v6298 = vtanh.pop %v6250
    %v6299 = vtanh.pop %v6251
    %v6300 = vtanh.pop %v6252
    %v6301 = vtanh.pop %v6253
    %v6302 = vtanh.pop %v6254
    %v6303 = vtanh.pop %v6255
    %v6304 = vtanh.pop %v6256
    %v6305 = vtanh.pop %v6257
    %v6306 = vmul.f32 %v6258, 0.5
    %v6307 = vmul.f32 %v6259, 0.5
    %v6308 = vmul.f32 %v6260, 0.5
    %v6309 = vmul.f32 %v6261, 0.5
    %v6310 = vmul.f32 %v6262, 0.5
    %v6311 = vmul.f32 %v6263, 0.5
    %v6312 = vmul.f32 %v6264, 0.5
    %v6313 = vmul.f32 %v6265, 0.5
    %v6314 = vmul.f32 %v6266, 0.5
    %v6315 = vmul.f32 %v6267, 0.5
    %v6316 = vmul.f32 %v6268, 0.5
    %v6317 = vmul.f32 %v6269, 0.5
    %v6318 = vmul.f32 %v6270, 0.5
    %v6319 = vmul.f32 %v6271, 0.5
    %v6320 = vmul.f32 %v6272, 0.5
    %v6321 = vmul.f32 %v6273, 0.5
    %v6322 = vmul.f32 %v6274, 0.5
    %v6323 = vmul.f32 %v6275, 0.5
    %v6324 = vmul.f32 %v6276, 0.5
    %v6325 = vmul.f32 %v6277, 0.5
    %v6326 = vmul.f32 %v6278, 0.5
    %v6327 = vmul.f32 %v6279, 0.5
    %v6328 = vmul.f32 %v6280, 0.5
    %v6329 = vmul.f32 %v6281, 0.5
    %v6330 = vmul.f32 %v6282, 0.5
    %v6331 = vmul.f32 %v6283, 0.5
    %v6332 = vmul.f32 %v6284, 0.5
    %v6333 = vmul.f32 %v6285, 0.5
    %v6334 = vmul.f32 %v6286, 0.5
    %v6335 = vmul.f32 %v6287, 0.5
    %v6336 = vmul.f32 %v6288, 0.5
    %v6337 = vmul.f32 %v6289, 0.5
    %v6338 = vmul.f32 %v6290, 0.5
    %v6339 = vmul.f32 %v6291, 0.5
    %v6340 = vmul.f32 %v6292, 0.5
    %v6341 = vmul.f32 %v6293, 0.5
    %v6342 = vmul.f32 %v6294, 0.5
    %v6343 = vmul.f32 %v6295, 0.5
    %v6344 = vmul.f32 %v6296, 0.5
    %v6345 = vmul.f32 %v6297, 0.5
    %v6346 = vmul.f32 %v6298, 0.5
    %v6347 = vmul.f32 %v6299, 0.5
    %v6348 = vmul.f32 %v6300, 0.5
    %v6349 = vmul.f32 %v6301, 0.5
    %v6350 = vmul.f32 %v6302, 0.5
    %v6351 = vmul.f32 %v6303, 0.5
    %v6352 = vmul.f32 %v6304, 0.5
    %v6353 = vmul.f32 %v6305, 0.5
    %v6354 = vadd.f32 %v6306, 0.5
    %v6355 = vadd.f32 %v6307, 0.5
    %v6356 = vadd.f32 %v6308, 0.5
    %v6357 = vadd.f32 %v6309, 0.5
    %v6358 = vadd.f32 %v6310, 0.5
    %v6359 = vadd.f32 %v6311, 0.5
    %v6360 = vadd.f32 %v6312, 0.5
    %v6361 = vadd.f32 %v6313, 0.5
    %v6362 = vadd.f32 %v6314, 0.5
    %v6363 = vadd.f32 %v6315, 0.5
    %v6364 = vadd.f32 %v6316, 0.5
    %v6365 = vadd.f32 %v6317, 0.5
    %v6366 = vadd.f32 %v6318, 0.5
    %v6367 = vadd.f32 %v6319, 0.5
    %v6368 = vadd.f32 %v6320, 0.5
    %v6369 = vadd.f32 %v6321, 0.5
    %v6370 = vadd.f32 %v6322, 0.5
    %v6371 = vadd.f32 %v6323, 0.5
    %v6372 = vadd.f32 %v6324, 0.5
    %v6373 = vadd.f32 %v6325, 0.5
    %v6374 = vadd.f32 %v6326, 0.5
    %v6375 = vadd.f32 %v6327, 0.5
    %v6376 = vadd.f32 %v6328, 0.5
    %v6377 = vadd.f32 %v6329, 0.5
    %v6378 = vadd.f32 %v6330, 0.5
    %v6379 = vadd.f32 %v6331, 0.5
    %v6380 = vadd.f32 %v6332, 0.5
    %v6381 = vadd.f32 %v6333, 0.5
    %v6382 = vadd.f32 %v6334, 0.5
    %v6383 = vadd.f32 %v6335, 0.5
    %v6384 = vadd.f32 %v6336, 0.5
    %v6385 = vadd.f32 %v6337, 0.5
    %v6386 = vadd.f32 %v6338, 0.5
    %v6387 = vadd.f32 %v6339, 0.5
    %v6388 = vadd.f32 %v6340, 0.5
    %v6389 = vadd.f32 %v6341, 0.5
    %v6390 = vadd.f32 %v6342, 0.5
    %v6391 = vadd.f32 %v6343, 0.5
    %v6392 = vadd.f32 %v6344, 0.5
    %v6393 = vadd.f32 %v6345, 0.5
    %v6394 = vadd.f32 %v6346, 0.5
    %v6395 = vadd.f32 %v6347, 0.5
    %v6396 = vadd.f32 %v6348, 0.5
    %v6397 = vadd.f32 %v6349, 0.5
    %v6398 = vadd.f32 %v6350, 0.5
    %v6399 = vadd.f32 %v6351, 0.5
    %v6400 = vadd.f32 %v6352, 0.5
    %v6401 = vadd.f32 %v6353, 0.5
    %6402 = vrot.lane.b32.xlu0 %v6354, 64
    %v6403 = vpop.permute.xlu0 %6402
    %6404 = vrot.lane.b32.xlu0 %v6355, 64
    %v6405 = vpop.permute.xlu0 %6404
    %6406 = vrot.lane.b32.xlu0 %v6356, 64
    %v6407 = vpop.permute.xlu0 %6406
    %6408 = vrot.lane.b32.xlu0 %v6357, 64
    %v6409 = vpop.permute.xlu0 %6408
    %6410 = vrot.lane.b32.xlu0 %v6358, 64
    %v6411 = vpop.permute.xlu0 %6410
    %6412 = vrot.lane.b32.xlu0 %v6359, 64
    %v6413 = vpop.permute.xlu0 %6412
    %6414 = vrot.lane.b32.xlu0 %v6360, 64
    %v6415 = vpop.permute.xlu0 %6414
    %6416 = vrot.lane.b32.xlu0 %v6361, 64
    %v6417 = vpop.permute.xlu0 %6416
    %6418 = vrot.lane.b32.xlu0 %v6362, 64
    %v6419 = vpop.permute.xlu0 %6418
    %6420 = vrot.lane.b32.xlu0 %v6363, 64
    %v6421 = vpop.permute.xlu0 %6420
    %6422 = vrot.lane.b32.xlu0 %v6364, 64
    %v6423 = vpop.permute.xlu0 %6422
    %6424 = vrot.lane.b32.xlu0 %v6365, 64
    %v6425 = vpop.permute.xlu0 %6424
    %6426 = vrot.lane.b32.xlu0 %v6366, 64
    %v6427 = vpop.permute.xlu0 %6426
    %6428 = vrot.lane.b32.xlu0 %v6367, 64
    %v6429 = vpop.permute.xlu0 %6428
    %6430 = vrot.lane.b32.xlu0 %v6368, 64
    %v6431 = vpop.permute.xlu0 %6430
    %6432 = vrot.lane.b32.xlu0 %v6369, 64
    %v6433 = vpop.permute.xlu0 %6432
    %6434 = vrot.lane.b32.xlu0 %v6370, 64
    %v6435 = vpop.permute.xlu0 %6434
    %6436 = vrot.lane.b32.xlu0 %v6371, 64
    %v6437 = vpop.permute.xlu0 %6436
    %6438 = vrot.lane.b32.xlu0 %v6372, 64
    %v6439 = vpop.permute.xlu0 %6438
    %6440 = vrot.lane.b32.xlu0 %v6373, 64
    %v6441 = vpop.permute.xlu0 %6440
    %6442 = vrot.lane.b32.xlu0 %v6374, 64
    %v6443 = vpop.permute.xlu0 %6442
    %6444 = vrot.lane.b32.xlu0 %v6375, 64
    %v6445 = vpop.permute.xlu0 %6444
    %6446 = vrot.lane.b32.xlu0 %v6376, 64
    %v6447 = vpop.permute.xlu0 %6446
    %6448 = vrot.lane.b32.xlu0 %v6377, 64
    %v6449 = vpop.permute.xlu0 %6448
    %6450 = vrot.lane.b32.xlu0 %v6378, 64
    %v6451 = vpop.permute.xlu0 %6450
    %6452 = vrot.lane.b32.xlu0 %v6379, 64
    %v6453 = vpop.permute.xlu0 %6452
    %6454 = vrot.lane.b32.xlu0 %v6380, 64
    %v6455 = vpop.permute.xlu0 %6454
    %6456 = vrot.lane.b32.xlu0 %v6381, 64
    %v6457 = vpop.permute.xlu0 %6456
    %6458 = vrot.lane.b32.xlu0 %v6382, 64
    %v6459 = vpop.permute.xlu0 %6458
    %6460 = vrot.lane.b32.xlu0 %v6383, 64
    %v6461 = vpop.permute.xlu0 %6460
    %6462 = vrot.lane.b32.xlu0 %v6384, 64
    %v6463 = vpop.permute.xlu0 %6462
    %6464 = vrot.lane.b32.xlu0 %v6385, 64
    %v6465 = vpop.permute.xlu0 %6464
    %6466 = vrot.lane.b32.xlu0 %v6386, 64
    %v6467 = vpop.permute.xlu0 %6466
    %6468 = vrot.lane.b32.xlu0 %v6387, 64
    %v6469 = vpop.permute.xlu0 %6468
    %6470 = vrot.lane.b32.xlu0 %v6388, 64
    %v6471 = vpop.permute.xlu0 %6470
    %6472 = vrot.lane.b32.xlu0 %v6389, 64
    %v6473 = vpop.permute.xlu0 %6472
    %6474 = vrot.lane.b32.xlu0 %v6390, 64
    %v6475 = vpop.permute.xlu0 %6474
    %6476 = vrot.lane.b32.xlu0 %v6391, 64
    %v6477 = vpop.permute.xlu0 %6476
    %6478 = vrot.lane.b32.xlu0 %v6392, 64
    %v6479 = vpop.permute.xlu0 %6478
    %6480 = vrot.lane.b32.xlu0 %v6393, 64
    %v6481 = vpop.permute.xlu0 %6480
    %6482 = vrot.lane.b32.xlu0 %v6394, 64
    %v6483 = vpop.permute.xlu0 %6482
    %6484 = vrot.lane.b32.xlu0 %v6395, 64
    %v6485 = vpop.permute.xlu0 %6484
    %6486 = vrot.lane.b32.xlu0 %v6396, 64
    %v6487 = vpop.permute.xlu0 %6486
    %6488 = vrot.lane.b32.xlu0 %v6397, 64
    %v6489 = vpop.permute.xlu0 %6488
    %6490 = vrot.lane.b32.xlu0 %v6398, 64
    %v6491 = vpop.permute.xlu0 %6490
    %6492 = vrot.lane.b32.xlu0 %v6399, 64
    %v6493 = vpop.permute.xlu0 %6492
    %6494 = vrot.lane.b32.xlu0 %v6400, 64
    %v6495 = vpop.permute.xlu0 %6494
    %6496 = vrot.lane.b32.xlu0 %v6401, 64
    %v6497 = vpop.permute.xlu0 %6496
    %v6498 = vsub.f32 %v6354, %v5840
    %v6499 = vsub.f32 %v6355, %v5841
    %v6500 = vsub.f32 %v6356, %v5842
    %v6501 = vsub.f32 %v6357, %v5843
    %v6502 = vsub.f32 %v6358, %v5844
    %v6503 = vsub.f32 %v6359, %v5845
    %v6504 = vsub.f32 %v6360, %v5846
    %v6505 = vsub.f32 %v6361, %v5847
    %v6506 = vsub.f32 %v6362, %v5848
    %v6507 = vsub.f32 %v6363, %v5849
    %v6508 = vsub.f32 %v6364, %v5850
    %v6509 = vsub.f32 %v6365, %v5851
    %v6510 = vsub.f32 %v6366, %v5852
    %v6511 = vsub.f32 %v6367, %v5853
    %v6512 = vsub.f32 %v6368, %v5854
    %v6513 = vsub.f32 %v6369, %v5855
    %v6514 = vsub.f32 %v6370, %v5856
    %v6515 = vsub.f32 %v6371, %v5857
    %v6516 = vsub.f32 %v6372, %v5858
    %v6517 = vsub.f32 %v6373, %v5859
    %v6518 = vsub.f32 %v6374, %v5860
    %v6519 = vsub.f32 %v6375, %v5861
    %v6520 = vsub.f32 %v6376, %v5862
    %v6521 = vsub.f32 %v6377, %v5863
    %v6522 = vsub.f32 %v6378, %v5864
    %v6523 = vsub.f32 %v6379, %v5865
    %v6524 = vsub.f32 %v6380, %v5866
    %v6525 = vsub.f32 %v6381, %v5867
    %v6526 = vsub.f32 %v6382, %v5868
    %v6527 = vsub.f32 %v6383, %v5869
    %v6528 = vsub.f32 %v6384, %v5870
    %v6529 = vsub.f32 %v6385, %v5871
    %v6530 = vsub.f32 %v6386, %v5872
    %v6531 = vsub.f32 %v6387, %v5873
    %v6532 = vsub.f32 %v6388, %v5874
    %v6533 = vsub.f32 %v6389, %v5875
    %v6534 = vsub.f32 %v6390, %v5876
    %v6535 = vsub.f32 %v6391, %v5877
    %v6536 = vsub.f32 %v6392, %v5878
    %v6537 = vsub.f32 %v6393, %v5879
    %v6538 = vsub.f32 %v6394, %v5880
    %v6539 = vsub.f32 %v6395, %v5881
    %v6540 = vsub.f32 %v6396, %v5882
    %v6541 = vsub.f32 %v6397, %v5883
    %v6542 = vsub.f32 %v6398, %v5884
    %v6543 = vsub.f32 %v6399, %v5885
    %v6544 = vsub.f32 %v6400, %v5886
    %v6545 = vsub.f32 %v6401, %v5887
    %v6546 = vmul.f32 %v6403, %v6498
    %v6547 = vmul.f32 %v6405, %v6499
    %v6548 = vmul.f32 %v6407, %v6500
    %v6549 = vmul.f32 %v6409, %v6501
    %v6550 = vmul.f32 %v6411, %v6502
    %v6551 = vmul.f32 %v6413, %v6503
    %v6552 = vmul.f32 %v6415, %v6504
    %v6553 = vmul.f32 %v6417, %v6505
    %v6554 = vmul.f32 %v6419, %v6506
    %v6555 = vmul.f32 %v6421, %v6507
    %v6556 = vmul.f32 %v6423, %v6508
    %v6557 = vmul.f32 %v6425, %v6509
    %v6558 = vmul.f32 %v6427, %v6510
    %v6559 = vmul.f32 %v6429, %v6511
    %v6560 = vmul.f32 %v6431, %v6512
    %v6561 = vmul.f32 %v6433, %v6513
    %v6562 = vmul.f32 %v6435, %v6514
    %v6563 = vmul.f32 %v6437, %v6515
    %v6564 = vmul.f32 %v6439, %v6516
    %v6565 = vmul.f32 %v6441, %v6517
    %v6566 = vmul.f32 %v6443, %v6518
    %v6567 = vmul.f32 %v6445, %v6519
    %v6568 = vmul.f32 %v6447, %v6520
    %v6569 = vmul.f32 %v6449, %v6521
    %v6570 = vmul.f32 %v6451, %v6522
    %v6571 = vmul.f32 %v6453, %v6523
    %v6572 = vmul.f32 %v6455, %v6524
    %v6573 = vmul.f32 %v6457, %v6525
    %v6574 = vmul.f32 %v6459, %v6526
    %v6575 = vmul.f32 %v6461, %v6527
    %v6576 = vmul.f32 %v6463, %v6528
    %v6577 = vmul.f32 %v6465, %v6529
    %v6578 = vmul.f32 %v6467, %v6530
    %v6579 = vmul.f32 %v6469, %v6531
    %v6580 = vmul.f32 %v6471, %v6532
    %v6581 = vmul.f32 %v6473, %v6533
    %v6582 = vmul.f32 %v6475, %v6534
    %v6583 = vmul.f32 %v6477, %v6535
    %v6584 = vmul.f32 %v6479, %v6536
    %v6585 = vmul.f32 %v6481, %v6537
    %v6586 = vmul.f32 %v6483, %v6538
    %v6587 = vmul.f32 %v6485, %v6539
    %v6588 = vmul.f32 %v6487, %v6540
    %v6589 = vmul.f32 %v6489, %v6541
    %v6590 = vmul.f32 %v6491, %v6542
    %v6591 = vmul.f32 %v6493, %v6543
    %v6592 = vmul.f32 %v6495, %v6544
    %v6593 = vmul.f32 %v6497, %v6545
    %v6594 = vadd.f32 %v5840, %v6546
    %v6595 = vadd.f32 %v5841, %v6547
    %v6596 = vadd.f32 %v5842, %v6548
    %v6597 = vadd.f32 %v5843, %v6549
    %v6598 = vadd.f32 %v5844, %v6550
    %v6599 = vadd.f32 %v5845, %v6551
    %v6600 = vadd.f32 %v5846, %v6552
    %v6601 = vadd.f32 %v5847, %v6553
    %v6602 = vadd.f32 %v5848, %v6554
    %v6603 = vadd.f32 %v5849, %v6555
    %v6604 = vadd.f32 %v5850, %v6556
    %v6605 = vadd.f32 %v5851, %v6557
    %v6606 = vadd.f32 %v5852, %v6558
    %v6607 = vadd.f32 %v5853, %v6559
    %v6608 = vadd.f32 %v5854, %v6560
    %v6609 = vadd.f32 %v5855, %v6561
    %v6610 = vadd.f32 %v5856, %v6562
    %v6611 = vadd.f32 %v5857, %v6563
    %v6612 = vadd.f32 %v5858, %v6564
    %v6613 = vadd.f32 %v5859, %v6565
    %v6614 = vadd.f32 %v5860, %v6566
    %v6615 = vadd.f32 %v5861, %v6567
    %v6616 = vadd.f32 %v5862, %v6568
    %v6617 = vadd.f32 %v5863, %v6569
    %v6618 = vadd.f32 %v5864, %v6570
    %v6619 = vadd.f32 %v5865, %v6571
    %v6620 = vadd.f32 %v5866, %v6572
    %v6621 = vadd.f32 %v5867, %v6573
    %v6622 = vadd.f32 %v5868, %v6574
    %v6623 = vadd.f32 %v5869, %v6575
    %v6624 = vadd.f32 %v5870, %v6576
    %v6625 = vadd.f32 %v5871, %v6577
    %v6626 = vadd.f32 %v5872, %v6578
    %v6627 = vadd.f32 %v5873, %v6579
    %v6628 = vadd.f32 %v5874, %v6580
    %v6629 = vadd.f32 %v5875, %v6581
    %v6630 = vadd.f32 %v5876, %v6582
    %v6631 = vadd.f32 %v5877, %v6583
    %v6632 = vadd.f32 %v5878, %v6584
    %v6633 = vadd.f32 %v5879, %v6585
    %v6634 = vadd.f32 %v5880, %v6586
    %v6635 = vadd.f32 %v5881, %v6587
    %v6636 = vadd.f32 %v5882, %v6588
    %v6637 = vadd.f32 %v5883, %v6589
    %v6638 = vadd.f32 %v5884, %v6590
    %v6639 = vadd.f32 %v5885, %v6591
    %v6640 = vadd.f32 %v5886, %v6592
    %v6641 = vadd.f32 %v5887, %v6593
    %v6642 = vpack.c.bf16 %v6595, %v6594
    %v6643 = vpack.c.bf16 %v6597, %v6596
    %v6644 = vpack.c.bf16 %v6599, %v6598
    %v6645 = vpack.c.bf16 %v6601, %v6600
    %v6646 = vpack.c.bf16 %v6603, %v6602
    %v6647 = vpack.c.bf16 %v6605, %v6604
    %v6648 = vpack.c.bf16 %v6607, %v6606
    %v6649 = vpack.c.bf16 %v6609, %v6608
    %v6650 = vpack.c.bf16 %v6611, %v6610
    %v6651 = vpack.c.bf16 %v6613, %v6612
    %v6652 = vpack.c.bf16 %v6615, %v6614
    %v6653 = vpack.c.bf16 %v6617, %v6616
    %v6654 = vpack.c.bf16 %v6619, %v6618
    %v6655 = vpack.c.bf16 %v6621, %v6620
    %v6656 = vpack.c.bf16 %v6623, %v6622
    %v6657 = vpack.c.bf16 %v6625, %v6624
    %v6658 = vpack.c.bf16 %v6627, %v6626
    %v6659 = vpack.c.bf16 %v6629, %v6628
    %v6660 = vpack.c.bf16 %v6631, %v6630
    %v6661 = vpack.c.bf16 %v6633, %v6632
    %v6662 = vpack.c.bf16 %v6635, %v6634
    %v6663 = vpack.c.bf16 %v6637, %v6636
    %v6664 = vpack.c.bf16 %v6639, %v6638
    %v6665 = vpack.c.bf16 %v6641, %v6640
    %s6666 = scalar_lea.vmem [#allocation2], 512
    %v6667 = vld [vmem:[%s6666] sm:$0xf]
    %v6668 = vld [vmem:[%s6666 + $0x4] sm:$0xf]
    %v6669 = vld [vmem:[%s6666 + $0x8] sm:$0xf]
    %v6670 = vld [vmem:[%s6666 + $0xc] sm:$0xf]
    %v6671 = vld [vmem:[%s6666 + $0x10] sm:$0xf]
    %v6672 = vld [vmem:[%s6666 + $0x14] sm:$0xf]
    %v6673 = vld [vmem:[%s6666 + $0x18] sm:$0xf]
    %v6674 = vld [vmem:[%s6666 + $0x1c] sm:$0xf]
    %v6675 = vld [vmem:[%s6666 + $0x20] sm:$0xf]
    %v6676 = vld [vmem:[%s6666 + $0x24] sm:$0xf]
    %v6677 = vld [vmem:[%s6666 + $0x28] sm:$0xf]
    %v6678 = vld [vmem:[%s6666 + $0x2c] sm:$0xf]
    %v6679 = vld [vmem:[%s6666 + $0x30] sm:$0xf]
    %v6680 = vld [vmem:[%s6666 + $0x34] sm:$0xf]
    %v6681 = vld [vmem:[%s6666 + $0x38] sm:$0xf]
    %v6682 = vld [vmem:[%s6666 + $0x3c] sm:$0xf]
    %s6683 = scalar_lea.vmem %s4, 8
    %v6684 = vld [vmem:[%s6683] sm:$0x1]
    %v6686 = vlaneseq
    %v6687 = vshrl.u32 %v6686, 7
    %v6688 = vsub.s32 0, %v6687
    %v6689 = vrot.slane %v6684, %v6688
    %v6707 = vunpack.c.l.b16 %v6667
    %v6708 = vunpack.c.l.b16 %v6668
    %v6709 = vunpack.c.l.b16 %v6669
    %v6710 = vunpack.c.l.b16 %v6670
    %v6711 = vunpack.c.l.b16 %v6671
    %v6712 = vunpack.c.l.b16 %v6672
    %v6713 = vunpack.c.l.b16 %v6673
    %v6714 = vunpack.c.l.b16 %v6674
    %v6715 = vunpack.c.l.b16 %v6675
    %v6716 = vunpack.c.l.b16 %v6676
    %v6717 = vunpack.c.l.b16 %v6677
    %v6718 = vunpack.c.l.b16 %v6678
    %v6719 = vunpack.c.l.b16 %v6679
    %v6720 = vunpack.c.l.b16 %v6680
    %v6721 = vunpack.c.l.b16 %v6681
    %v6722 = vunpack.c.l.b16 %v6682
    %v6723 = vpack.c.b16 %v6708, %v6707
    %v6724 = vpack.c.b16 %v6710, %v6709
    %v6725 = vpack.c.b16 %v6712, %v6711
    %v6726 = vpack.c.b16 %v6714, %v6713
    %v6727 = vpack.c.b16 %v6716, %v6715
    %v6728 = vpack.c.b16 %v6718, %v6717
    %v6729 = vpack.c.b16 %v6720, %v6719
    %v6730 = vpack.c.b16 %v6722, %v6721
    %6739 = vmatprep.subr.bf16.mxu0 0
    %6740 = vmatpush1.bf16.msra.mxu0 %v6723
    %6741 = vmatprep.subr.bf16.mxu0 0
    %6742 = vmatpush1.bf16.msra.mxu0 %v6724
    %6743 = vmatprep.subr.bf16.mxu0 0
    %6744 = vmatpush1.bf16.msra.mxu0 %v6725
    %6745 = vmatprep.subr.bf16.mxu0 0
    %6746 = vmatpush1.bf16.msra.mxu0 %v6726
    %6747 = vmatprep.subr.bf16.mxu0 0
    %6748 = vmatpush1.bf16.msra.mxu0 %v6727
    %6749 = vmatprep.subr.bf16.mxu0 0
    %6750 = vmatpush1.bf16.msra.mxu0 %v6728
    %6751 = vmatprep.subr.bf16.mxu0 0
    %6752 = vmatpush1.bf16.msra.mxu0 %v6729
    %6753 = vmatprep.subr.bf16.mxu0 0
    %6754 = vmatpush1.bf16.msra.mxu0 %v6730
    %6755 = vmatprep.subr.bf16.mxu0 0
    %6756 = vmatpush1.bf16.msra.mxu0 0
    %6757 = vmatprep.subr.bf16.mxu0 0
    %6758 = vmatpush1.bf16.msra.mxu0 0
    %6759 = vmatprep.subr.bf16.mxu0 0
    %6760 = vmatpush1.bf16.msra.mxu0 0
    %6761 = vmatprep.subr.bf16.mxu0 0
    %6762 = vmatpush1.bf16.msra.mxu0 0
    %6763 = vmatprep.subr.bf16.mxu0 0
    %6764 = vmatpush1.bf16.msra.mxu0 0
    %6765 = vmatprep.subr.bf16.mxu0 0
    %6766 = vmatpush1.bf16.msra.mxu0 0
    %6767 = vmatprep.subr.bf16.mxu0 0
    %6768 = vmatpush1.bf16.msra.mxu0 0
    %6769 = vmatprep.subr.bf16.mxu0 0
    %6770 = vmatpush1.bf16.msra.mxu0 0
    %6771 = vmatprep.mubr.bf16.mxu0 0
    %6772 = vmatmul.mubr.bf16.gmra.mrb[0].mxu0 %v6642
    %v6773 = vpop.f32.mrb[0].mxu0
    %v6774 = vadd.f32 %v6689, %v6773
    %v6775 = vpop.f32.mrb[0].mxu0
    %v6776 = vpop.f32.mrb[0].mxu0
    %v6777 = vadd.f32 %v6689, %v6776
    %v6778 = vpop.f32.mrb[0].mxu0
    %6779 = vmatprep.mubr.bf16.mxu0 0
    %6780 = vmatmul.mubr.bf16.gmra.mrb[0].mxu0 %v6643
    %v6781 = vpop.f32.mrb[0].mxu0
    %v6782 = vadd.f32 %v6689, %v6781
    %v6783 = vpop.f32.mrb[0].mxu0
    %v6784 = vpop.f32.mrb[0].mxu0
    %v6785 = vadd.f32 %v6689, %v6784
    %v6786 = vpop.f32.mrb[0].mxu0
    %6787 = vmatprep.mubr.bf16.mxu0 0
    %6788 = vmatmul.mubr.bf16.gmra.mrb[0].mxu0 %v6644
    %v6789 = vpop.f32.mrb[0].mxu0
    %v6790 = vadd.f32 %v6689, %v6789
    %v6791 = vpop.f32.mrb[0].mxu0
    %v6792 = vpop.f32.mrb[0].mxu0
    %v6793 = vadd.f32 %v6689, %v6792
    %v6794 = vpop.f32.mrb[0].mxu0
    %6795 = vmatprep.mubr.bf16.mxu0 0
    %6796 = vmatmul.mubr.bf16.gmra.mrb[0].mxu0 %v6645
    %v6797 = vpop.f32.mrb[0].mxu0
    %v6798 = vadd.f32 %v6689, %v6797
    %v6799 = vpop.f32.mrb[0].mxu0
    %v6800 = vpop.f32.mrb[0].mxu0
    %v6801 = vadd.f32 %v6689, %v6800
    %v6802 = vpop.f32.mrb[0].mxu0
    %6803 = vmatprep.mubr.bf16.mxu0 0
    %6804 = vmatmul.mubr.bf16.gmra.mrb[0].mxu0 %v6646
    %v6805 = vpop.f32.mrb[0].mxu0
    %v6806 = vadd.f32 %v6689, %v6805
    %v6807 = vpop.f32.mrb[0].mxu0
    %v6808 = vpop.f32.mrb[0].mxu0
    %v6809 = vadd.f32 %v6689, %v6808
    %v6810 = vpop.f32.mrb[0].mxu0
    %6811 = vmatprep.mubr.bf16.mxu0 0
    %6812 = vmatmul.mubr.bf16.gmra.mrb[0].mxu0 %v6647
    %v6813 = vpop.f32.mrb[0].mxu0
    %v6814 = vadd.f32 %v6689, %v6813
    %v6815 = vpop.f32.mrb[0].mxu0
    %v6816 = vpop.f32.mrb[0].mxu0
    %v6817 = vadd.f32 %v6689, %v6816
    %v6818 = vpop.f32.mrb[0].mxu0
    %6819 = vmatprep.mubr.bf16.mxu0 0
    %6820 = vmatmul.mubr.bf16.gmra.mrb[0].mxu0 %v6648
    %v6821 = vpop.f32.mrb[0].mxu0
    %v6822 = vadd.f32 %v6689, %v6821
    %v6823 = vpop.f32.mrb[0].mxu0
    %v6824 = vpop.f32.mrb[0].mxu0
    %v6825 = vadd.f32 %v6689, %v6824
    %v6826 = vpop.f32.mrb[0].mxu0
    %6827 = vmatprep.mubr.bf16.mxu0 0
    %6828 = vmatmul.mubr.bf16.gmra.mrb[0].mxu0 %v6649
    %v6829 = vpop.f32.mrb[0].mxu0
    %v6830 = vadd.f32 %v6689, %v6829
    %v6831 = vpop.f32.mrb[0].mxu0
    %v6832 = vpop.f32.mrb[0].mxu0
    %v6833 = vadd.f32 %v6689, %v6832
    %v6834 = vpop.f32.mrb[0].mxu0
    %6835 = vmatprep.mubr.bf16.mxu0 0
    %6836 = vmatmul.mubr.bf16.gmra.mrb[0].mxu0 %v6650
    %v6837 = vpop.f32.mrb[0].mxu0
    %v6838 = vadd.f32 %v6689, %v6837
    %v6839 = vpop.f32.mrb[0].mxu0
    %v6840 = vpop.f32.mrb[0].mxu0
    %v6841 = vadd.f32 %v6689, %v6840
    %v6842 = vpop.f32.mrb[0].mxu0
    %6843 = vmatprep.mubr.bf16.mxu0 0
    %6844 = vmatmul.mubr.bf16.gmra.mrb[0].mxu0 %v6651
    %v6845 = vpop.f32.mrb[0].mxu0
    %v6846 = vadd.f32 %v6689, %v6845
    %v6847 = vpop.f32.mrb[0].mxu0
    %v6848 = vpop.f32.mrb[0].mxu0
    %v6849 = vadd.f32 %v6689, %v6848
    %v6850 = vpop.f32.mrb[0].mxu0
    %6851 = vmatprep.mubr.bf16.mxu0 0
    %6852 = vmatmul.mubr.bf16.gmra.mrb[0].mxu0 %v6652
    %v6853 = vpop.f32.mrb[0].mxu0
    %v6854 = vadd.f32 %v6689, %v6853
    %v6855 = vpop.f32.mrb[0].mxu0
    %v6856 = vpop.f32.mrb[0].mxu0
    %v6857 = vadd.f32 %v6689, %v6856
    %v6858 = vpop.f32.mrb[0].mxu0
    %6859 = vmatprep.mubr.bf16.mxu0 0
    %6860 = vmatmul.mubr.bf16.gmra.mrb[0].mxu0 %v6653
    %v6861 = vpop.f32.mrb[0].mxu0
    %v6862 = vadd.f32 %v6689, %v6861
    %v6863 = vpop.f32.mrb[0].mxu0
    %v6864 = vpop.f32.mrb[0].mxu0
    %v6865 = vadd.f32 %v6689, %v6864
    %v6866 = vpop.f32.mrb[0].mxu0
    %6867 = vmatprep.mubr.bf16.mxu0 0
    %6868 = vmatmul.mubr.bf16.gmra.mrb[0].mxu0 %v6654
    %v6869 = vpop.f32.mrb[0].mxu0
    %v6870 = vadd.f32 %v6689, %v6869
    %v6871 = vpop.f32.mrb[0].mxu0
    %v6872 = vpop.f32.mrb[0].mxu0
    %v6873 = vadd.f32 %v6689, %v6872
    %v6874 = vpop.f32.mrb[0].mxu0
    %6875 = vmatprep.mubr.bf16.mxu0 0
    %6876 = vmatmul.mubr.bf16.gmra.mrb[0].mxu0 %v6655
    %v6877 = vpop.f32.mrb[0].mxu0
    %v6878 = vadd.f32 %v6689, %v6877
    %v6879 = vpop.f32.mrb[0].mxu0
    %v6880 = vpop.f32.mrb[0].mxu0
    %v6881 = vadd.f32 %v6689, %v6880
    %v6882 = vpop.f32.mrb[0].mxu0
    %6883 = vmatprep.mubr.bf16.mxu0 0
    %6884 = vmatmul.mubr.bf16.gmra.mrb[0].mxu0 %v6656
    %v6885 = vpop.f32.mrb[0].mxu0
    %v6886 = vadd.f32 %v6689, %v6885
    %v6887 = vpop.f32.mrb[0].mxu0
    %v6888 = vpop.f32.mrb[0].mxu0
    %v6889 = vadd.f32 %v6689, %v6888
    %v6890 = vpop.f32.mrb[0].mxu0
    %6891 = vmatprep.mubr.bf16.mxu0 0
    %6892 = vmatmul.mubr.bf16.gmra.mrb[0].mxu0 %v6657
    %v6893 = vpop.f32.mrb[0].mxu0
    %v6894 = vadd.f32 %v6689, %v6893
    %v6895 = vpop.f32.mrb[0].mxu0
    %v6896 = vpop.f32.mrb[0].mxu0
    %v6897 = vadd.f32 %v6689, %v6896
    %v6898 = vpop.f32.mrb[0].mxu0
    %6899 = vmatprep.mubr.bf16.mxu0 0
    %6900 = vmatmul.mubr.bf16.gmra.mrb[0].mxu0 %v6658
    %v6901 = vpop.f32.mrb[0].mxu0
    %v6902 = vadd.f32 %v6689, %v6901
    %v6903 = vpop.f32.mrb[0].mxu0
    %v6904 = vpop.f32.mrb[0].mxu0
    %v6905 = vadd.f32 %v6689, %v6904
    %v6906 = vpop.f32.mrb[0].mxu0
    %6907 = vmatprep.mubr.bf16.mxu0 0
    %6908 = vmatmul.mubr.bf16.gmra.mrb[0].mxu0 %v6659
    %v6909 = vpop.f32.mrb[0].mxu0
    %v6910 = vadd.f32 %v6689, %v6909
    %v6911 = vpop.f32.mrb[0].mxu0
    %v6912 = vpop.f32.mrb[0].mxu0
    %v6913 = vadd.f32 %v6689, %v6912
    %v6914 = vpop.f32.mrb[0].mxu0
    %6915 = vmatprep.mubr.bf16.mxu0 0
    %6916 = vmatmul.mubr.bf16.gmra.mrb[0].mxu0 %v6660
    %v6917 = vpop.f32.mrb[0].mxu0
    %v6918 = vadd.f32 %v6689, %v6917
    %v6919 = vpop.f32.mrb[0].mxu0
    %v6920 = vpop.f32.mrb[0].mxu0
    %v6921 = vadd.f32 %v6689, %v6920
    %v6922 = vpop.f32.mrb[0].mxu0
    %6923 = vmatprep.mubr.bf16.mxu0 0
    %6924 = vmatmul.mubr.bf16.gmra.mrb[0].mxu0 %v6661
    %v6925 = vpop.f32.mrb[0].mxu0
    %v6926 = vadd.f32 %v6689, %v6925
    %v6927 = vpop.f32.mrb[0].mxu0
    %v6928 = vpop.f32.mrb[0].mxu0
    %v6929 = vadd.f32 %v6689, %v6928
    %v6930 = vpop.f32.mrb[0].mxu0
    %6931 = vmatprep.mubr.bf16.mxu0 0
    %6932 = vmatmul.mubr.bf16.gmra.mrb[0].mxu0 %v6662
    %v6933 = vpop.f32.mrb[0].mxu0
    %v6934 = vadd.f32 %v6689, %v6933
    %v6935 = vpop.f32.mrb[0].mxu0
    %v6936 = vpop.f32.mrb[0].mxu0
    %v6937 = vadd.f32 %v6689, %v6936
    %v6938 = vpop.f32.mrb[0].mxu0
    %6939 = vmatprep.mubr.bf16.mxu0 0
    %6940 = vmatmul.mubr.bf16.gmra.mrb[0].mxu0 %v6663
    %v6941 = vpop.f32.mrb[0].mxu0
    %v6942 = vadd.f32 %v6689, %v6941
    %v6943 = vpop.f32.mrb[0].mxu0
    %v6944 = vpop.f32.mrb[0].mxu0
    %v6945 = vadd.f32 %v6689, %v6944
    %v6946 = vpop.f32.mrb[0].mxu0
    %6947 = vmatprep.mubr.bf16.mxu0 0
    %6948 = vmatmul.mubr.bf16.gmra.mrb[0].mxu0 %v6664
    %v6949 = vpop.f32.mrb[0].mxu0
    %v6950 = vadd.f32 %v6689, %v6949
    %v6951 = vpop.f32.mrb[0].mxu0
    %v6952 = vpop.f32.mrb[0].mxu0
    %v6953 = vadd.f32 %v6689, %v6952
    %v6954 = vpop.f32.mrb[0].mxu0
    %6955 = vmatprep.mubr.bf16.mxu0 0
    %6956 = vmatmul.mubr.bf16.gmra.mrb[0].mxu0 %v6665
    %v6957 = vpop.f32.mrb[0].mxu0
    %v6958 = vadd.f32 %v6689, %v6957
    %v6959 = vpop.f32.mrb[0].mxu0
    %v6960 = vpop.f32.mrb[0].mxu0
    %v6961 = vadd.f32 %v6689, %v6960
    %v6962 = vpop.f32.mrb[0].mxu0
    %6963 = vdwg.mxu0
    %v6964 = vmul.f32 %v6774, 0.5
    %v6965 = vmul.f32 %v6777, 0.5
    %v6966 = vmul.f32 %v6782, 0.5
    %v6967 = vmul.f32 %v6785, 0.5
    %v6968 = vmul.f32 %v6790, 0.5
    %v6969 = vmul.f32 %v6793, 0.5
    %v6970 = vmul.f32 %v6798, 0.5
    %v6971 = vmul.f32 %v6801, 0.5
    %v6972 = vmul.f32 %v6806, 0.5
    %v6973 = vmul.f32 %v6809, 0.5
    %v6974 = vmul.f32 %v6814, 0.5
    %v6975 = vmul.f32 %v6817, 0.5
    %v6976 = vmul.f32 %v6822, 0.5
    %v6977 = vmul.f32 %v6825, 0.5
    %v6978 = vmul.f32 %v6830, 0.5
    %v6979 = vmul.f32 %v6833, 0.5
    %v6980 = vmul.f32 %v6838, 0.5
    %v6981 = vmul.f32 %v6841, 0.5
    %v6982 = vmul.f32 %v6846, 0.5
    %v6983 = vmul.f32 %v6849, 0.5
    %v6984 = vmul.f32 %v6854, 0.5
    %v6985 = vmul.f32 %v6857, 0.5
    %v6986 = vmul.f32 %v6862, 0.5
    %v6987 = vmul.f32 %v6865, 0.5
    %v6988 = vmul.f32 %v6870, 0.5
    %v6989 = vmul.f32 %v6873, 0.5
    %v6990 = vmul.f32 %v6878, 0.5
    %v6991 = vmul.f32 %v6881, 0.5
    %v6992 = vmul.f32 %v6886, 0.5
    %v6993 = vmul.f32 %v6889, 0.5
    %v6994 = vmul.f32 %v6894, 0.5
    %v6995 = vmul.f32 %v6897, 0.5
    %v6996 = vmul.f32 %v6902, 0.5
    %v6997 = vmul.f32 %v6905, 0.5
    %v6998 = vmul.f32 %v6910, 0.5
    %v6999 = vmul.f32 %v6913, 0.5
    %v7000 = vmul.f32 %v6918, 0.5
    %v7001 = vmul.f32 %v6921, 0.5
    %v7002 = vmul.f32 %v6926, 0.5
    %v7003 = vmul.f32 %v6929, 0.5
    %v7004 = vmul.f32 %v6934, 0.5
    %v7005 = vmul.f32 %v6937, 0.5
    %v7006 = vmul.f32 %v6942, 0.5
    %v7007 = vmul.f32 %v6945, 0.5
    %v7008 = vmul.f32 %v6950, 0.5
    %v7009 = vmul.f32 %v6953, 0.5
    %v7010 = vmul.f32 %v6958, 0.5
    %v7011 = vmul.f32 %v6961, 0.5
    %v7012 = vtanh.pop %v6964
    %v7013 = vtanh.pop %v6965
    %v7014 = vtanh.pop %v6966
    %v7015 = vtanh.pop %v6967
    %v7016 = vtanh.pop %v6968
    %v7017 = vtanh.pop %v6969
    %v7018 = vtanh.pop %v6970
    %v7019 = vtanh.pop %v6971
    %v7020 = vtanh.pop %v6972
    %v7021 = vtanh.pop %v6973
    %v7022 = vtanh.pop %v6974
    %v7023 = vtanh.pop %v6975
    %v7024 = vtanh.pop %v6976
    %v7025 = vtanh.pop %v6977
    %v7026 = vtanh.pop %v6978
    %v7027 = vtanh.pop %v6979
    %v7028 = vtanh.pop %v6980
    %v7029 = vtanh.pop %v6981
    %v7030 = vtanh.pop %v6982
    %v7031 = vtanh.pop %v6983
    %v7032 = vtanh.pop %v6984
    %v7033 = vtanh.pop %v6985
    %v7034 = vtanh.pop %v6986
    %v7035 = vtanh.pop %v6987
    %v7036 = vtanh.pop %v6988
    %v7037 = vtanh.pop %v6989
    %v7038 = vtanh.pop %v6990
    %v7039 = vtanh.pop %v6991
    %v7040 = vtanh.pop %v6992
    %v7041 = vtanh.pop %v6993
    %v7042 = vtanh.pop %v6994
    %v7043 = vtanh.pop %v6995
    %v7044 = vtanh.pop %v6996
    %v7045 = vtanh.pop %v6997
    %v7046 = vtanh.pop %v6998
    %v7047 = vtanh.pop %v6999
    %v7048 = vtanh.pop %v7000
    %v7049 = vtanh.pop %v7001
    %v7050 = vtanh.pop %v7002
    %v7051 = vtanh.pop %v7003
    %v7052 = vtanh.pop %v7004
    %v7053 = vtanh.pop %v7005
    %v7054 = vtanh.pop %v7006
    %v7055 = vtanh.pop %v7007
    %v7056 = vtanh.pop %v7008
    %v7057 = vtanh.pop %v7009
    %v7058 = vtanh.pop %v7010
    %v7059 = vtanh.pop %v7011
    %v7060 = vmul.f32 %v7012, 0.5
    %v7061 = vmul.f32 %v7013, 0.5
    %v7062 = vmul.f32 %v7014, 0.5
    %v7063 = vmul.f32 %v7015, 0.5
    %v7064 = vmul.f32 %v7016, 0.5
    %v7065 = vmul.f32 %v7017, 0.5
    %v7066 = vmul.f32 %v7018, 0.5
    %v7067 = vmul.f32 %v7019, 0.5
    %v7068 = vmul.f32 %v7020, 0.5
    %v7069 = vmul.f32 %v7021, 0.5
    %v7070 = vmul.f32 %v7022, 0.5
    %v7071 = vmul.f32 %v7023, 0.5
    %v7072 = vmul.f32 %v7024, 0.5
    %v7073 = vmul.f32 %v7025, 0.5
    %v7074 = vmul.f32 %v7026, 0.5
    %v7075 = vmul.f32 %v7027, 0.5
    %v7076 = vmul.f32 %v7028, 0.5
    %v7077 = vmul.f32 %v7029, 0.5
    %v7078 = vmul.f32 %v7030, 0.5
    %v7079 = vmul.f32 %v7031, 0.5
    %v7080 = vmul.f32 %v7032, 0.5
    %v7081 = vmul.f32 %v7033, 0.5
    %v7082 = vmul.f32 %v7034, 0.5
    %v7083 = vmul.f32 %v7035, 0.5
    %v7084 = vmul.f32 %v7036, 0.5
    %v7085 = vmul.f32 %v7037, 0.5
    %v7086 = vmul.f32 %v7038, 0.5
    %v7087 = vmul.f32 %v7039, 0.5
    %v7088 = vmul.f32 %v7040, 0.5
    %v7089 = vmul.f32 %v7041, 0.5
    %v7090 = vmul.f32 %v7042, 0.5
    %v7091 = vmul.f32 %v7043, 0.5
    %v7092 = vmul.f32 %v7044, 0.5
    %v7093 = vmul.f32 %v7045, 0.5
    %v7094 = vmul.f32 %v7046, 0.5
    %v7095 = vmul.f32 %v7047, 0.5
    %v7096 = vmul.f32 %v7048, 0.5
    %v7097 = vmul.f32 %v7049, 0.5
    %v7098 = vmul.f32 %v7050, 0.5
    %v7099 = vmul.f32 %v7051, 0.5
    %v7100 = vmul.f32 %v7052, 0.5
    %v7101 = vmul.f32 %v7053, 0.5
    %v7102 = vmul.f32 %v7054, 0.5
    %v7103 = vmul.f32 %v7055, 0.5
    %v7104 = vmul.f32 %v7056, 0.5
    %v7105 = vmul.f32 %v7057, 0.5
    %v7106 = vmul.f32 %v7058, 0.5
    %v7107 = vmul.f32 %v7059, 0.5
    %v7108 = vadd.f32 %v7060, 0.5
    %v7109 = vadd.f32 %v7061, 0.5
    %v7110 = vadd.f32 %v7062, 0.5
    %v7111 = vadd.f32 %v7063, 0.5
    %v7112 = vadd.f32 %v7064, 0.5
    %v7113 = vadd.f32 %v7065, 0.5
    %v7114 = vadd.f32 %v7066, 0.5
    %v7115 = vadd.f32 %v7067, 0.5
    %v7116 = vadd.f32 %v7068, 0.5
    %v7117 = vadd.f32 %v7069, 0.5
    %v7118 = vadd.f32 %v7070, 0.5
    %v7119 = vadd.f32 %v7071, 0.5
    %v7120 = vadd.f32 %v7072, 0.5
    %v7121 = vadd.f32 %v7073, 0.5
    %v7122 = vadd.f32 %v7074, 0.5
    %v7123 = vadd.f32 %v7075, 0.5
    %v7124 = vadd.f32 %v7076, 0.5
    %v7125 = vadd.f32 %v7077, 0.5
    %v7126 = vadd.f32 %v7078, 0.5
    %v7127 = vadd.f32 %v7079, 0.5
    %v7128 = vadd.f32 %v7080, 0.5
    %v7129 = vadd.f32 %v7081, 0.5
    %v7130 = vadd.f32 %v7082, 0.5
    %v7131 = vadd.f32 %v7083, 0.5
    %v7132 = vadd.f32 %v7084, 0.5
    %v7133 = vadd.f32 %v7085, 0.5
    %v7134 = vadd.f32 %v7086, 0.5
    %v7135 = vadd.f32 %v7087, 0.5
    %v7136 = vadd.f32 %v7088, 0.5
    %v7137 = vadd.f32 %v7089, 0.5
    %v7138 = vadd.f32 %v7090, 0.5
    %v7139 = vadd.f32 %v7091, 0.5
    %v7140 = vadd.f32 %v7092, 0.5
    %v7141 = vadd.f32 %v7093, 0.5
    %v7142 = vadd.f32 %v7094, 0.5
    %v7143 = vadd.f32 %v7095, 0.5
    %v7144 = vadd.f32 %v7096, 0.5
    %v7145 = vadd.f32 %v7097, 0.5
    %v7146 = vadd.f32 %v7098, 0.5
    %v7147 = vadd.f32 %v7099, 0.5
    %v7148 = vadd.f32 %v7100, 0.5
    %v7149 = vadd.f32 %v7101, 0.5
    %v7150 = vadd.f32 %v7102, 0.5
    %v7151 = vadd.f32 %v7103, 0.5
    %v7152 = vadd.f32 %v7104, 0.5
    %v7153 = vadd.f32 %v7105, 0.5
    %v7154 = vadd.f32 %v7106, 0.5
    %v7155 = vadd.f32 %v7107, 0.5
    %7156 = vrot.lane.b32.xlu0 %v7108, 64
    %v7157 = vpop.permute.xlu0 %7156
    %7158 = vrot.lane.b32.xlu0 %v7109, 64
    %v7159 = vpop.permute.xlu0 %7158
    %7160 = vrot.lane.b32.xlu0 %v7110, 64
    %v7161 = vpop.permute.xlu0 %7160
    %7162 = vrot.lane.b32.xlu0 %v7111, 64
    %v7163 = vpop.permute.xlu0 %7162
    %7164 = vrot.lane.b32.xlu0 %v7112, 64
    %v7165 = vpop.permute.xlu0 %7164
    %7166 = vrot.lane.b32.xlu0 %v7113, 64
    %v7167 = vpop.permute.xlu0 %7166
    %7168 = vrot.lane.b32.xlu0 %v7114, 64
    %v7169 = vpop.permute.xlu0 %7168
    %7170 = vrot.lane.b32.xlu0 %v7115, 64
    %v7171 = vpop.permute.xlu0 %7170
    %7172 = vrot.lane.b32.xlu0 %v7116, 64
    %v7173 = vpop.permute.xlu0 %7172
    %7174 = vrot.lane.b32.xlu0 %v7117, 64
    %v7175 = vpop.permute.xlu0 %7174
    %7176 = vrot.lane.b32.xlu0 %v7118, 64
    %v7177 = vpop.permute.xlu0 %7176
    %7178 = vrot.lane.b32.xlu0 %v7119, 64
    %v7179 = vpop.permute.xlu0 %7178
    %7180 = vrot.lane.b32.xlu0 %v7120, 64
    %v7181 = vpop.permute.xlu0 %7180
    %7182 = vrot.lane.b32.xlu0 %v7121, 64
    %v7183 = vpop.permute.xlu0 %7182
    %7184 = vrot.lane.b32.xlu0 %v7122, 64
    %v7185 = vpop.permute.xlu0 %7184
    %7186 = vrot.lane.b32.xlu0 %v7123, 64
    %v7187 = vpop.permute.xlu0 %7186
    %7188 = vrot.lane.b32.xlu0 %v7124, 64
    %v7189 = vpop.permute.xlu0 %7188
    %7190 = vrot.lane.b32.xlu0 %v7125, 64
    %v7191 = vpop.permute.xlu0 %7190
    %7192 = vrot.lane.b32.xlu0 %v7126, 64
    %v7193 = vpop.permute.xlu0 %7192
    %7194 = vrot.lane.b32.xlu0 %v7127, 64
    %v7195 = vpop.permute.xlu0 %7194
    %7196 = vrot.lane.b32.xlu0 %v7128, 64
    %v7197 = vpop.permute.xlu0 %7196
    %7198 = vrot.lane.b32.xlu0 %v7129, 64
    %v7199 = vpop.permute.xlu0 %7198
    %7200 = vrot.lane.b32.xlu0 %v7130, 64
    %v7201 = vpop.permute.xlu0 %7200
    %7202 = vrot.lane.b32.xlu0 %v7131, 64
    %v7203 = vpop.permute.xlu0 %7202
    %7204 = vrot.lane.b32.xlu0 %v7132, 64
    %v7205 = vpop.permute.xlu0 %7204
    %7206 = vrot.lane.b32.xlu0 %v7133, 64
    %v7207 = vpop.permute.xlu0 %7206
    %7208 = vrot.lane.b32.xlu0 %v7134, 64
    %v7209 = vpop.permute.xlu0 %7208
    %7210 = vrot.lane.b32.xlu0 %v7135, 64
    %v7211 = vpop.permute.xlu0 %7210
    %7212 = vrot.lane.b32.xlu0 %v7136, 64
    %v7213 = vpop.permute.xlu0 %7212
    %7214 = vrot.lane.b32.xlu0 %v7137, 64
    %v7215 = vpop.permute.xlu0 %7214
    %7216 = vrot.lane.b32.xlu0 %v7138, 64
    %v7217 = vpop.permute.xlu0 %7216
    %7218 = vrot.lane.b32.xlu0 %v7139, 64
    %v7219 = vpop.permute.xlu0 %7218
    %7220 = vrot.lane.b32.xlu0 %v7140, 64
    %v7221 = vpop.permute.xlu0 %7220
    %7222 = vrot.lane.b32.xlu0 %v7141, 64
    %v7223 = vpop.permute.xlu0 %7222
    %7224 = vrot.lane.b32.xlu0 %v7142, 64
    %v7225 = vpop.permute.xlu0 %7224
    %7226 = vrot.lane.b32.xlu0 %v7143, 64
    %v7227 = vpop.permute.xlu0 %7226
    %7228 = vrot.lane.b32.xlu0 %v7144, 64
    %v7229 = vpop.permute.xlu0 %7228
    %7230 = vrot.lane.b32.xlu0 %v7145, 64
    %v7231 = vpop.permute.xlu0 %7230
    %7232 = vrot.lane.b32.xlu0 %v7146, 64
    %v7233 = vpop.permute.xlu0 %7232
    %7234 = vrot.lane.b32.xlu0 %v7147, 64
    %v7235 = vpop.permute.xlu0 %7234
    %7236 = vrot.lane.b32.xlu0 %v7148, 64
    %v7237 = vpop.permute.xlu0 %7236
    %7238 = vrot.lane.b32.xlu0 %v7149, 64
    %v7239 = vpop.permute.xlu0 %7238
    %7240 = vrot.lane.b32.xlu0 %v7150, 64
    %v7241 = vpop.permute.xlu0 %7240
    %7242 = vrot.lane.b32.xlu0 %v7151, 64
    %v7243 = vpop.permute.xlu0 %7242
    %7244 = vrot.lane.b32.xlu0 %v7152, 64
    %v7245 = vpop.permute.xlu0 %7244
    %7246 = vrot.lane.b32.xlu0 %v7153, 64
    %v7247 = vpop.permute.xlu0 %7246
    %7248 = vrot.lane.b32.xlu0 %v7154, 64
    %v7249 = vpop.permute.xlu0 %7248
    %7250 = vrot.lane.b32.xlu0 %v7155, 64
    %v7251 = vpop.permute.xlu0 %7250
    %v7252 = vsub.f32 %v7108, %v6594
    %v7253 = vsub.f32 %v7109, %v6595
    %v7254 = vsub.f32 %v7110, %v6596
    %v7255 = vsub.f32 %v7111, %v6597
    %v7256 = vsub.f32 %v7112, %v6598
    %v7257 = vsub.f32 %v7113, %v6599
    %v7258 = vsub.f32 %v7114, %v6600
    %v7259 = vsub.f32 %v7115, %v6601
    %v7260 = vsub.f32 %v7116, %v6602
    %v7261 = vsub.f32 %v7117, %v6603
    %v7262 = vsub.f32 %v7118, %v6604
    %v7263 = vsub.f32 %v7119, %v6605
    %v7264 = vsub.f32 %v7120, %v6606
    %v7265 = vsub.f32 %v7121, %v6607
    %v7266 = vsub.f32 %v7122, %v6608
    %v7267 = vsub.f32 %v7123, %v6609
    %v7268 = vsub.f32 %v7124, %v6610
    %v7269 = vsub.f32 %v7125, %v6611
    %v7270 = vsub.f32 %v7126, %v6612
    %v7271 = vsub.f32 %v7127, %v6613
    %v7272 = vsub.f32 %v7128, %v6614
    %v7273 = vsub.f32 %v7129, %v6615
    %v7274 = vsub.f32 %v7130, %v6616
    %v7275 = vsub.f32 %v7131, %v6617
    %v7276 = vsub.f32 %v7132, %v6618
    %v7277 = vsub.f32 %v7133, %v6619
    %v7278 = vsub.f32 %v7134, %v6620
    %v7279 = vsub.f32 %v7135, %v6621
    %v7280 = vsub.f32 %v7136, %v6622
    %v7281 = vsub.f32 %v7137, %v6623
    %v7282 = vsub.f32 %v7138, %v6624
    %v7283 = vsub.f32 %v7139, %v6625
    %v7284 = vsub.f32 %v7140, %v6626
    %v7285 = vsub.f32 %v7141, %v6627
    %v7286 = vsub.f32 %v7142, %v6628
    %v7287 = vsub.f32 %v7143, %v6629
    %v7288 = vsub.f32 %v7144, %v6630
    %v7289 = vsub.f32 %v7145, %v6631
    %v7290 = vsub.f32 %v7146, %v6632
    %v7291 = vsub.f32 %v7147, %v6633
    %v7292 = vsub.f32 %v7148, %v6634
    %v7293 = vsub.f32 %v7149, %v6635
    %v7294 = vsub.f32 %v7150, %v6636
    %v7295 = vsub.f32 %v7151, %v6637
    %v7296 = vsub.f32 %v7152, %v6638
    %v7297 = vsub.f32 %v7153, %v6639
    %v7298 = vsub.f32 %v7154, %v6640
    %v7299 = vsub.f32 %v7155, %v6641
    %v7300 = vmul.f32 %v7157, %v7252
    %v7301 = vmul.f32 %v7159, %v7253
    %v7302 = vmul.f32 %v7161, %v7254
    %v7303 = vmul.f32 %v7163, %v7255
    %v7304 = vmul.f32 %v7165, %v7256
    %v7305 = vmul.f32 %v7167, %v7257
    %v7306 = vmul.f32 %v7169, %v7258
    %v7307 = vmul.f32 %v7171, %v7259
    %v7308 = vmul.f32 %v7173, %v7260
    %v7309 = vmul.f32 %v7175, %v7261
    %v7310 = vmul.f32 %v7177, %v7262
    %v7311 = vmul.f32 %v7179, %v7263
    %v7312 = vmul.f32 %v7181, %v7264
    %v7313 = vmul.f32 %v7183, %v7265
    %v7314 = vmul.f32 %v7185, %v7266
    %v7315 = vmul.f32 %v7187, %v7267
    %v7316 = vmul.f32 %v7189, %v7268
    %v7317 = vmul.f32 %v7191, %v7269
    %v7318 = vmul.f32 %v7193, %v7270
    %v7319 = vmul.f32 %v7195, %v7271
    %v7320 = vmul.f32 %v7197, %v7272
    %v7321 = vmul.f32 %v7199, %v7273
    %v7322 = vmul.f32 %v7201, %v7274
    %v7323 = vmul.f32 %v7203, %v7275
    %v7324 = vmul.f32 %v7205, %v7276
    %v7325 = vmul.f32 %v7207, %v7277
    %v7326 = vmul.f32 %v7209, %v7278
    %v7327 = vmul.f32 %v7211, %v7279
    %v7328 = vmul.f32 %v7213, %v7280
    %v7329 = vmul.f32 %v7215, %v7281
    %v7330 = vmul.f32 %v7217, %v7282
    %v7331 = vmul.f32 %v7219, %v7283
    %v7332 = vmul.f32 %v7221, %v7284
    %v7333 = vmul.f32 %v7223, %v7285
    %v7334 = vmul.f32 %v7225, %v7286
    %v7335 = vmul.f32 %v7227, %v7287
    %v7336 = vmul.f32 %v7229, %v7288
    %v7337 = vmul.f32 %v7231, %v7289
    %v7338 = vmul.f32 %v7233, %v7290
    %v7339 = vmul.f32 %v7235, %v7291
    %v7340 = vmul.f32 %v7237, %v7292
    %v7341 = vmul.f32 %v7239, %v7293
    %v7342 = vmul.f32 %v7241, %v7294
    %v7343 = vmul.f32 %v7243, %v7295
    %v7344 = vmul.f32 %v7245, %v7296
    %v7345 = vmul.f32 %v7247, %v7297
    %v7346 = vmul.f32 %v7249, %v7298
    %v7347 = vmul.f32 %v7251, %v7299
    %v7348 = vadd.f32 %v6594, %v7300
    %v7349 = vadd.f32 %v6595, %v7301
    %v7350 = vadd.f32 %v6596, %v7302
    %v7351 = vadd.f32 %v6597, %v7303
    %v7352 = vadd.f32 %v6598, %v7304
    %v7353 = vadd.f32 %v6599, %v7305
    %v7354 = vadd.f32 %v6600, %v7306
    %v7355 = vadd.f32 %v6601, %v7307
    %v7356 = vadd.f32 %v6602, %v7308
    %v7357 = vadd.f32 %v6603, %v7309
    %v7358 = vadd.f32 %v6604, %v7310
    %v7359 = vadd.f32 %v6605, %v7311
    %v7360 = vadd.f32 %v6606, %v7312
    %v7361 = vadd.f32 %v6607, %v7313
    %v7362 = vadd.f32 %v6608, %v7314
    %v7363 = vadd.f32 %v6609, %v7315
    %v7364 = vadd.f32 %v6610, %v7316
    %v7365 = vadd.f32 %v6611, %v7317
    %v7366 = vadd.f32 %v6612, %v7318
    %v7367 = vadd.f32 %v6613, %v7319
    %v7368 = vadd.f32 %v6614, %v7320
    %v7369 = vadd.f32 %v6615, %v7321
    %v7370 = vadd.f32 %v6616, %v7322
    %v7371 = vadd.f32 %v6617, %v7323
    %v7372 = vadd.f32 %v6618, %v7324
    %v7373 = vadd.f32 %v6619, %v7325
    %v7374 = vadd.f32 %v6620, %v7326
    %v7375 = vadd.f32 %v6621, %v7327
    %v7376 = vadd.f32 %v6622, %v7328
    %v7377 = vadd.f32 %v6623, %v7329
    %v7378 = vadd.f32 %v6624, %v7330
    %v7379 = vadd.f32 %v6625, %v7331
    %v7380 = vadd.f32 %v6626, %v7332
    %v7381 = vadd.f32 %v6627, %v7333
    %v7382 = vadd.f32 %v6628, %v7334
    %v7383 = vadd.f32 %v6629, %v7335
    %v7384 = vadd.f32 %v6630, %v7336
    %v7385 = vadd.f32 %v6631, %v7337
    %v7386 = vadd.f32 %v6632, %v7338
    %v7387 = vadd.f32 %v6633, %v7339
    %v7388 = vadd.f32 %v6634, %v7340
    %v7389 = vadd.f32 %v6635, %v7341
    %v7390 = vadd.f32 %v6636, %v7342
    %v7391 = vadd.f32 %v6637, %v7343
    %v7392 = vadd.f32 %v6638, %v7344
    %v7393 = vadd.f32 %v6639, %v7345
    %v7394 = vadd.f32 %v6640, %v7346
    %v7395 = vadd.f32 %v6641, %v7347
    %v7396 = vpack.c.bf16 %v7349, %v7348
    %v7397 = vpack.c.bf16 %v7351, %v7350
    %v7398 = vpack.c.bf16 %v7353, %v7352
    %v7399 = vpack.c.bf16 %v7355, %v7354
    %v7400 = vpack.c.bf16 %v7357, %v7356
    %v7401 = vpack.c.bf16 %v7359, %v7358
    %v7402 = vpack.c.bf16 %v7361, %v7360
    %v7403 = vpack.c.bf16 %v7363, %v7362
    %v7404 = vpack.c.bf16 %v7365, %v7364
    %v7405 = vpack.c.bf16 %v7367, %v7366
    %v7406 = vpack.c.bf16 %v7369, %v7368
    %v7407 = vpack.c.bf16 %v7371, %v7370
    %v7408 = vpack.c.bf16 %v7373, %v7372
    %v7409 = vpack.c.bf16 %v7375, %v7374
    %v7410 = vpack.c.bf16 %v7377, %v7376
    %v7411 = vpack.c.bf16 %v7379, %v7378
    %v7412 = vpack.c.bf16 %v7381, %v7380
    %v7413 = vpack.c.bf16 %v7383, %v7382
    %v7414 = vpack.c.bf16 %v7385, %v7384
    %v7415 = vpack.c.bf16 %v7387, %v7386
    %v7416 = vpack.c.bf16 %v7389, %v7388
    %v7417 = vpack.c.bf16 %v7391, %v7390
    %v7418 = vpack.c.bf16 %v7393, %v7392
    %v7419 = vpack.c.bf16 %v7395, %v7394
    %s7420 = scalar_lea.vmem [#allocation2], 576
    %v7421 = vld [vmem:[%s7420] sm:$0xf]
    %v7422 = vld [vmem:[%s7420 + $0x4] sm:$0xf]
    %v7423 = vld [vmem:[%s7420 + $0x8] sm:$0xf]
    %v7424 = vld [vmem:[%s7420 + $0xc] sm:$0xf]
    %v7425 = vld [vmem:[%s7420 + $0x10] sm:$0xf]
    %v7426 = vld [vmem:[%s7420 + $0x14] sm:$0xf]
    %v7427 = vld [vmem:[%s7420 + $0x18] sm:$0xf]
    %v7428 = vld [vmem:[%s7420 + $0x1c] sm:$0xf]
    %v7429 = vld [vmem:[%s7420 + $0x20] sm:$0xf]
    %v7430 = vld [vmem:[%s7420 + $0x24] sm:$0xf]
    %v7431 = vld [vmem:[%s7420 + $0x28] sm:$0xf]
    %v7432 = vld [vmem:[%s7420 + $0x2c] sm:$0xf]
    %v7433 = vld [vmem:[%s7420 + $0x30] sm:$0xf]
    %v7434 = vld [vmem:[%s7420 + $0x34] sm:$0xf]
    %v7435 = vld [vmem:[%s7420 + $0x38] sm:$0xf]
    %v7436 = vld [vmem:[%s7420 + $0x3c] sm:$0xf]
    %s7437 = scalar_lea.vmem %s4, 9
    %v7438 = vld [vmem:[%s7437] sm:$0x1]
    %v7440 = vlaneseq
    %v7441 = vshrl.u32 %v7440, 7
    %v7442 = vsub.s32 0, %v7441
    %v7443 = vrot.slane %v7438, %v7442
    %v7461 = vunpack.c.l.b16 %v7421
    %v7462 = vunpack.c.l.b16 %v7422
    %v7463 = vunpack.c.l.b16 %v7423
    %v7464 = vunpack.c.l.b16 %v7424
    %v7465 = vunpack.c.l.b16 %v7425
    %v7466 = vunpack.c.l.b16 %v7426
    %v7467 = vunpack.c.l.b16 %v7427
    %v7468 = vunpack.c.l.b16 %v7428
    %v7469 = vunpack.c.l.b16 %v7429
    %v7470 = vunpack.c.l.b16 %v7430
    %v7471 = vunpack.c.l.b16 %v7431
    %v7472 = vunpack.c.l.b16 %v7432
    %v7473 = vunpack.c.l.b16 %v7433
    %v7474 = vunpack.c.l.b16 %v7434
    %v7475 = vunpack.c.l.b16 %v7435
    %v7476 = vunpack.c.l.b16 %v7436
    %v7477 = vpack.c.b16 %v7462, %v7461
    %v7478 = vpack.c.b16 %v7464, %v7463
    %v7479 = vpack.c.b16 %v7466, %v7465
    %v7480 = vpack.c.b16 %v7468, %v7467
    %v7481 = vpack.c.b16 %v7470, %v7469
    %v7482 = vpack.c.b16 %v7472, %v7471
    %v7483 = vpack.c.b16 %v7474, %v7473
    %v7484 = vpack.c.b16 %v7476, %v7475
    %7493 = vmatprep.subr.bf16.mxu0 0
    %7494 = vmatpush1.bf16.msra.mxu0 %v7477
    %7495 = vmatprep.subr.bf16.mxu0 0
    %7496 = vmatpush1.bf16.msra.mxu0 %v7478
    %7497 = vmatprep.subr.bf16.mxu0 0
    %7498 = vmatpush1.bf16.msra.mxu0 %v7479
    %7499 = vmatprep.subr.bf16.mxu0 0
    %7500 = vmatpush1.bf16.msra.mxu0 %v7480
    %7501 = vmatprep.subr.bf16.mxu0 0
    %7502 = vmatpush1.bf16.msra.mxu0 %v7481
    %7503 = vmatprep.subr.bf16.mxu0 0
    %7504 = vmatpush1.bf16.msra.mxu0 %v7482
    %7505 = vmatprep.subr.bf16.mxu0 0
    %7506 = vmatpush1.bf16.msra.mxu0 %v7483
    %7507 = vmatprep.subr.bf16.mxu0 0
    %7508 = vmatpush1.bf16.msra.mxu0 %v7484
    %7509 = vmatprep.subr.bf16.mxu0 0
    %7510 = vmatpush1.bf16.msra.mxu0 0
    %7511 = vmatprep.subr.bf16.mxu0 0
    %7512 = vmatpush1.bf16.msra.mxu0 0
    %7513 = vmatprep.subr.bf16.mxu0 0
    %7514 = vmatpush1.bf16.msra.mxu0 0
    %7515 = vmatprep.subr.bf16.mxu0 0
    %7516 = vmatpush1.bf16.msra.mxu0 0
    %7517 = vmatprep.subr.bf16.mxu0 0
    %7518 = vmatpush1.bf16.msra.mxu0 0
    %7519 = vmatprep.subr.bf16.mxu0 0
    %7520 = vmatpush1.bf16.msra.mxu0 0
    %7521 = vmatprep.subr.bf16.mxu0 0
    %7522 = vmatpush1.bf16.msra.mxu0 0
    %7523 = vmatprep.subr.bf16.mxu0 0
    %7524 = vmatpush1.bf16.msra.mxu0 0
    %7525 = vmatprep.mubr.bf16.mxu0 0
    %7526 = vmatmul.mubr.bf16.gmra.mrb[0].mxu0 %v7396
    %v7527 = vpop.f32.mrb[0].mxu0
    %v7528 = vadd.f32 %v7443, %v7527
    %v7529 = vpop.f32.mrb[0].mxu0
    %v7530 = vpop.f32.mrb[0].mxu0
    %v7531 = vadd.f32 %v7443, %v7530
    %v7532 = vpop.f32.mrb[0].mxu0
    %7533 = vmatprep.mubr.bf16.mxu0 0
    %7534 = vmatmul.mubr.bf16.gmra.mrb[0].mxu0 %v7397
    %v7535 = vpop.f32.mrb[0].mxu0
    %v7536 = vadd.f32 %v7443, %v7535
    %v7537 = vpop.f32.mrb[0].mxu0
    %v7538 = vpop.f32.mrb[0].mxu0
    %v7539 = vadd.f32 %v7443, %v7538
    %v7540 = vpop.f32.mrb[0].mxu0
    %7541 = vmatprep.mubr.bf16.mxu0 0
    %7542 = vmatmul.mubr.bf16.gmra.mrb[0].mxu0 %v7398
    %v7543 = vpop.f32.mrb[0].mxu0
    %v7544 = vadd.f32 %v7443, %v7543
    %v7545 = vpop.f32.mrb[0].mxu0
    %v7546 = vpop.f32.mrb[0].mxu0
    %v7547 = vadd.f32 %v7443, %v7546
    %v7548 = vpop.f32.mrb[0].mxu0
    %7549 = vmatprep.mubr.bf16.mxu0 0
    %7550 = vmatmul.mubr.bf16.gmra.mrb[0].mxu0 %v7399
    %v7551 = vpop.f32.mrb[0].mxu0
    %v7552 = vadd.f32 %v7443, %v7551
    %v7553 = vpop.f32.mrb[0].mxu0
    %v7554 = vpop.f32.mrb[0].mxu0
    %v7555 = vadd.f32 %v7443, %v7554
    %v7556 = vpop.f32.mrb[0].mxu0
    %7557 = vmatprep.mubr.bf16.mxu0 0
    %7558 = vmatmul.mubr.bf16.gmra.mrb[0].mxu0 %v7400
    %v7559 = vpop.f32.mrb[0].mxu0
    %v7560 = vadd.f32 %v7443, %v7559
    %v7561 = vpop.f32.mrb[0].mxu0
    %v7562 = vpop.f32.mrb[0].mxu0
    %v7563 = vadd.f32 %v7443, %v7562
    %v7564 = vpop.f32.mrb[0].mxu0
    %7565 = vmatprep.mubr.bf16.mxu0 0
    %7566 = vmatmul.mubr.bf16.gmra.mrb[0].mxu0 %v7401
    %v7567 = vpop.f32.mrb[0].mxu0
    %v7568 = vadd.f32 %v7443, %v7567
    %v7569 = vpop.f32.mrb[0].mxu0
    %v7570 = vpop.f32.mrb[0].mxu0
    %v7571 = vadd.f32 %v7443, %v7570
    %v7572 = vpop.f32.mrb[0].mxu0
    %7573 = vmatprep.mubr.bf16.mxu0 0
    %7574 = vmatmul.mubr.bf16.gmra.mrb[0].mxu0 %v7402
    %v7575 = vpop.f32.mrb[0].mxu0
    %v7576 = vadd.f32 %v7443, %v7575
    %v7577 = vpop.f32.mrb[0].mxu0
    %v7578 = vpop.f32.mrb[0].mxu0
    %v7579 = vadd.f32 %v7443, %v7578
    %v7580 = vpop.f32.mrb[0].mxu0
    %7581 = vmatprep.mubr.bf16.mxu0 0
    %7582 = vmatmul.mubr.bf16.gmra.mrb[0].mxu0 %v7403
    %v7583 = vpop.f32.mrb[0].mxu0
    %v7584 = vadd.f32 %v7443, %v7583
    %v7585 = vpop.f32.mrb[0].mxu0
    %v7586 = vpop.f32.mrb[0].mxu0
    %v7587 = vadd.f32 %v7443, %v7586
    %v7588 = vpop.f32.mrb[0].mxu0
    %7589 = vmatprep.mubr.bf16.mxu0 0
    %7590 = vmatmul.mubr.bf16.gmra.mrb[0].mxu0 %v7404
    %v7591 = vpop.f32.mrb[0].mxu0
    %v7592 = vadd.f32 %v7443, %v7591
    %v7593 = vpop.f32.mrb[0].mxu0
    %v7594 = vpop.f32.mrb[0].mxu0
    %v7595 = vadd.f32 %v7443, %v7594
    %v7596 = vpop.f32.mrb[0].mxu0
    %7597 = vmatprep.mubr.bf16.mxu0 0
    %7598 = vmatmul.mubr.bf16.gmra.mrb[0].mxu0 %v7405
    %v7599 = vpop.f32.mrb[0].mxu0
    %v7600 = vadd.f32 %v7443, %v7599
    %v7601 = vpop.f32.mrb[0].mxu0
    %v7602 = vpop.f32.mrb[0].mxu0
    %v7603 = vadd.f32 %v7443, %v7602
    %v7604 = vpop.f32.mrb[0].mxu0
    %7605 = vmatprep.mubr.bf16.mxu0 0
    %7606 = vmatmul.mubr.bf16.gmra.mrb[0].mxu0 %v7406
    %v7607 = vpop.f32.mrb[0].mxu0
    %v7608 = vadd.f32 %v7443, %v7607
    %v7609 = vpop.f32.mrb[0].mxu0
    %v7610 = vpop.f32.mrb[0].mxu0
    %v7611 = vadd.f32 %v7443, %v7610
    %v7612 = vpop.f32.mrb[0].mxu0
    %7613 = vmatprep.mubr.bf16.mxu0 0
    %7614 = vmatmul.mubr.bf16.gmra.mrb[0].mxu0 %v7407
    %v7615 = vpop.f32.mrb[0].mxu0
    %v7616 = vadd.f32 %v7443, %v7615
    %v7617 = vpop.f32.mrb[0].mxu0
    %v7618 = vpop.f32.mrb[0].mxu0
    %v7619 = vadd.f32 %v7443, %v7618
    %v7620 = vpop.f32.mrb[0].mxu0
    %7621 = vmatprep.mubr.bf16.mxu0 0
    %7622 = vmatmul.mubr.bf16.gmra.mrb[0].mxu0 %v7408
    %v7623 = vpop.f32.mrb[0].mxu0
    %v7624 = vadd.f32 %v7443, %v7623
    %v7625 = vpop.f32.mrb[0].mxu0
    %v7626 = vpop.f32.mrb[0].mxu0
    %v7627 = vadd.f32 %v7443, %v7626
    %v7628 = vpop.f32.mrb[0].mxu0
    %7629 = vmatprep.mubr.bf16.mxu0 0
    %7630 = vmatmul.mubr.bf16.gmra.mrb[0].mxu0 %v7409
    %v7631 = vpop.f32.mrb[0].mxu0
    %v7632 = vadd.f32 %v7443, %v7631
    %v7633 = vpop.f32.mrb[0].mxu0
    %v7634 = vpop.f32.mrb[0].mxu0
    %v7635 = vadd.f32 %v7443, %v7634
    %v7636 = vpop.f32.mrb[0].mxu0
    %7637 = vmatprep.mubr.bf16.mxu0 0
    %7638 = vmatmul.mubr.bf16.gmra.mrb[0].mxu0 %v7410
    %v7639 = vpop.f32.mrb[0].mxu0
    %v7640 = vadd.f32 %v7443, %v7639
    %v7641 = vpop.f32.mrb[0].mxu0
    %v7642 = vpop.f32.mrb[0].mxu0
    %v7643 = vadd.f32 %v7443, %v7642
    %v7644 = vpop.f32.mrb[0].mxu0
    %7645 = vmatprep.mubr.bf16.mxu0 0
    %7646 = vmatmul.mubr.bf16.gmra.mrb[0].mxu0 %v7411
    %v7647 = vpop.f32.mrb[0].mxu0
    %v7648 = vadd.f32 %v7443, %v7647
    %v7649 = vpop.f32.mrb[0].mxu0
    %v7650 = vpop.f32.mrb[0].mxu0
    %v7651 = vadd.f32 %v7443, %v7650
    %v7652 = vpop.f32.mrb[0].mxu0
    %7653 = vmatprep.mubr.bf16.mxu0 0
    %7654 = vmatmul.mubr.bf16.gmra.mrb[0].mxu0 %v7412
    %v7655 = vpop.f32.mrb[0].mxu0
    %v7656 = vadd.f32 %v7443, %v7655
    %v7657 = vpop.f32.mrb[0].mxu0
    %v7658 = vpop.f32.mrb[0].mxu0
    %v7659 = vadd.f32 %v7443, %v7658
    %v7660 = vpop.f32.mrb[0].mxu0
    %7661 = vmatprep.mubr.bf16.mxu0 0
    %7662 = vmatmul.mubr.bf16.gmra.mrb[0].mxu0 %v7413
    %v7663 = vpop.f32.mrb[0].mxu0
    %v7664 = vadd.f32 %v7443, %v7663
    %v7665 = vpop.f32.mrb[0].mxu0
    %v7666 = vpop.f32.mrb[0].mxu0
    %v7667 = vadd.f32 %v7443, %v7666
    %v7668 = vpop.f32.mrb[0].mxu0
    %7669 = vmatprep.mubr.bf16.mxu0 0
    %7670 = vmatmul.mubr.bf16.gmra.mrb[0].mxu0 %v7414
    %v7671 = vpop.f32.mrb[0].mxu0
    %v7672 = vadd.f32 %v7443, %v7671
    %v7673 = vpop.f32.mrb[0].mxu0
    %v7674 = vpop.f32.mrb[0].mxu0
    %v7675 = vadd.f32 %v7443, %v7674
    %v7676 = vpop.f32.mrb[0].mxu0
    %7677 = vmatprep.mubr.bf16.mxu0 0
    %7678 = vmatmul.mubr.bf16.gmra.mrb[0].mxu0 %v7415
    %v7679 = vpop.f32.mrb[0].mxu0
    %v7680 = vadd.f32 %v7443, %v7679
    %v7681 = vpop.f32.mrb[0].mxu0
    %v7682 = vpop.f32.mrb[0].mxu0
    %v7683 = vadd.f32 %v7443, %v7682
    %v7684 = vpop.f32.mrb[0].mxu0
    %7685 = vmatprep.mubr.bf16.mxu0 0
    %7686 = vmatmul.mubr.bf16.gmra.mrb[0].mxu0 %v7416
    %v7687 = vpop.f32.mrb[0].mxu0
    %v7688 = vadd.f32 %v7443, %v7687
    %v7689 = vpop.f32.mrb[0].mxu0
    %v7690 = vpop.f32.mrb[0].mxu0
    %v7691 = vadd.f32 %v7443, %v7690
    %v7692 = vpop.f32.mrb[0].mxu0
    %7693 = vmatprep.mubr.bf16.mxu0 0
    %7694 = vmatmul.mubr.bf16.gmra.mrb[0].mxu0 %v7417
    %v7695 = vpop.f32.mrb[0].mxu0
    %v7696 = vadd.f32 %v7443, %v7695
    %v7697 = vpop.f32.mrb[0].mxu0
    %v7698 = vpop.f32.mrb[0].mxu0
    %v7699 = vadd.f32 %v7443, %v7698
    %v7700 = vpop.f32.mrb[0].mxu0
    %7701 = vmatprep.mubr.bf16.mxu0 0
    %7702 = vmatmul.mubr.bf16.gmra.mrb[0].mxu0 %v7418
    %v7703 = vpop.f32.mrb[0].mxu0
    %v7704 = vadd.f32 %v7443, %v7703
    %v7705 = vpop.f32.mrb[0].mxu0
    %v7706 = vpop.f32.mrb[0].mxu0
    %v7707 = vadd.f32 %v7443, %v7706
    %v7708 = vpop.f32.mrb[0].mxu0
    %7709 = vmatprep.mubr.bf16.mxu0 0
    %7710 = vmatmul.mubr.bf16.gmra.mrb[0].mxu0 %v7419
    %v7711 = vpop.f32.mrb[0].mxu0
    %v7712 = vadd.f32 %v7443, %v7711
    %v7713 = vpop.f32.mrb[0].mxu0
    %v7714 = vpop.f32.mrb[0].mxu0
    %v7715 = vadd.f32 %v7443, %v7714
    %v7716 = vpop.f32.mrb[0].mxu0
    %7717 = vdwg.mxu0
    %v7718 = vmul.f32 %v7528, 0.5
    %v7719 = vmul.f32 %v7531, 0.5
    %v7720 = vmul.f32 %v7536, 0.5
    %v7721 = vmul.f32 %v7539, 0.5
    %v7722 = vmul.f32 %v7544, 0.5
    %v7723 = vmul.f32 %v7547, 0.5
    %v7724 = vmul.f32 %v7552, 0.5
    %v7725 = vmul.f32 %v7555, 0.5
    %v7726 = vmul.f32 %v7560, 0.5
    %v7727 = vmul.f32 %v7563, 0.5
    %v7728 = vmul.f32 %v7568, 0.5
    %v7729 = vmul.f32 %v7571, 0.5
    %v7730 = vmul.f32 %v7576, 0.5
    %v7731 = vmul.f32 %v7579, 0.5
    %v7732 = vmul.f32 %v7584, 0.5
    %v7733 = vmul.f32 %v7587, 0.5
    %v7734 = vmul.f32 %v7592, 0.5
    %v7735 = vmul.f32 %v7595, 0.5
    %v7736 = vmul.f32 %v7600, 0.5
    %v7737 = vmul.f32 %v7603, 0.5
    %v7738 = vmul.f32 %v7608, 0.5
    %v7739 = vmul.f32 %v7611, 0.5
    %v7740 = vmul.f32 %v7616, 0.5
    %v7741 = vmul.f32 %v7619, 0.5
    %v7742 = vmul.f32 %v7624, 0.5
    %v7743 = vmul.f32 %v7627, 0.5
    %v7744 = vmul.f32 %v7632, 0.5
    %v7745 = vmul.f32 %v7635, 0.5
    %v7746 = vmul.f32 %v7640, 0.5
    %v7747 = vmul.f32 %v7643, 0.5
    %v7748 = vmul.f32 %v7648, 0.5
    %v7749 = vmul.f32 %v7651, 0.5
    %v7750 = vmul.f32 %v7656, 0.5
    %v7751 = vmul.f32 %v7659, 0.5
    %v7752 = vmul.f32 %v7664, 0.5
    %v7753 = vmul.f32 %v7667, 0.5
    %v7754 = vmul.f32 %v7672, 0.5
    %v7755 = vmul.f32 %v7675, 0.5
    %v7756 = vmul.f32 %v7680, 0.5
    %v7757 = vmul.f32 %v7683, 0.5
    %v7758 = vmul.f32 %v7688, 0.5
    %v7759 = vmul.f32 %v7691, 0.5
    %v7760 = vmul.f32 %v7696, 0.5
    %v7761 = vmul.f32 %v7699, 0.5
    %v7762 = vmul.f32 %v7704, 0.5
    %v7763 = vmul.f32 %v7707, 0.5
    %v7764 = vmul.f32 %v7712, 0.5
    %v7765 = vmul.f32 %v7715, 0.5
    %v7766 = vtanh.pop %v7718
    %v7767 = vtanh.pop %v7719
    %v7768 = vtanh.pop %v7720
    %v7769 = vtanh.pop %v7721
    %v7770 = vtanh.pop %v7722
    %v7771 = vtanh.pop %v7723
    %v7772 = vtanh.pop %v7724
    %v7773 = vtanh.pop %v7725
    %v7774 = vtanh.pop %v7726
    %v7775 = vtanh.pop %v7727
    %v7776 = vtanh.pop %v7728
    %v7777 = vtanh.pop %v7729
    %v7778 = vtanh.pop %v7730
    %v7779 = vtanh.pop %v7731
    %v7780 = vtanh.pop %v7732
    %v7781 = vtanh.pop %v7733
    %v7782 = vtanh.pop %v7734
    %v7783 = vtanh.pop %v7735
    %v7784 = vtanh.pop %v7736
    %v7785 = vtanh.pop %v7737
    %v7786 = vtanh.pop %v7738
    %v7787 = vtanh.pop %v7739
    %v7788 = vtanh.pop %v7740
    %v7789 = vtanh.pop %v7741
    %v7790 = vtanh.pop %v7742
    %v7791 = vtanh.pop %v7743
    %v7792 = vtanh.pop %v7744
    %v7793 = vtanh.pop %v7745
    %v7794 = vtanh.pop %v7746
    %v7795 = vtanh.pop %v7747
    %v7796 = vtanh.pop %v7748
    %v7797 = vtanh.pop %v7749
    %v7798 = vtanh.pop %v7750
    %v7799 = vtanh.pop %v7751
    %v7800 = vtanh.pop %v7752
    %v7801 = vtanh.pop %v7753
    %v7802 = vtanh.pop %v7754
    %v7803 = vtanh.pop %v7755
    %v7804 = vtanh.pop %v7756
    %v7805 = vtanh.pop %v7757
    %v7806 = vtanh.pop %v7758
    %v7807 = vtanh.pop %v7759
    %v7808 = vtanh.pop %v7760
    %v7809 = vtanh.pop %v7761
    %v7810 = vtanh.pop %v7762
    %v7811 = vtanh.pop %v7763
    %v7812 = vtanh.pop %v7764
    %v7813 = vtanh.pop %v7765
    %v7814 = vmul.f32 %v7766, 0.5
    %v7815 = vmul.f32 %v7767, 0.5
    %v7816 = vmul.f32 %v7768, 0.5
    %v7817 = vmul.f32 %v7769, 0.5
    %v7818 = vmul.f32 %v7770, 0.5
    %v7819 = vmul.f32 %v7771, 0.5
    %v7820 = vmul.f32 %v7772, 0.5
    %v7821 = vmul.f32 %v7773, 0.5
    %v7822 = vmul.f32 %v7774, 0.5
    %v7823 = vmul.f32 %v7775, 0.5
    %v7824 = vmul.f32 %v7776, 0.5
    %v7825 = vmul.f32 %v7777, 0.5
    %v7826 = vmul.f32 %v7778, 0.5
    %v7827 = vmul.f32 %v7779, 0.5
    %v7828 = vmul.f32 %v7780, 0.5
    %v7829 = vmul.f32 %v7781, 0.5
    %v7830 = vmul.f32 %v7782, 0.5
    %v7831 = vmul.f32 %v7783, 0.5
    %v7832 = vmul.f32 %v7784, 0.5
    %v7833 = vmul.f32 %v7785, 0.5
    %v7834 = vmul.f32 %v7786, 0.5
    %v7835 = vmul.f32 %v7787, 0.5
    %v7836 = vmul.f32 %v7788, 0.5
    %v7837 = vmul.f32 %v7789, 0.5
    %v7838 = vmul.f32 %v7790, 0.5
    %v7839 = vmul.f32 %v7791, 0.5
    %v7840 = vmul.f32 %v7792, 0.5
    %v7841 = vmul.f32 %v7793, 0.5
    %v7842 = vmul.f32 %v7794, 0.5
    %v7843 = vmul.f32 %v7795, 0.5
    %v7844 = vmul.f32 %v7796, 0.5
    %v7845 = vmul.f32 %v7797, 0.5
    %v7846 = vmul.f32 %v7798, 0.5
    %v7847 = vmul.f32 %v7799, 0.5
    %v7848 = vmul.f32 %v7800, 0.5
    %v7849 = vmul.f32 %v7801, 0.5
    %v7850 = vmul.f32 %v7802, 0.5
    %v7851 = vmul.f32 %v7803, 0.5
    %v7852 = vmul.f32 %v7804, 0.5
    %v7853 = vmul.f32 %v7805, 0.5
    %v7854 = vmul.f32 %v7806, 0.5
    %v7855 = vmul.f32 %v7807, 0.5
    %v7856 = vmul.f32 %v7808, 0.5
    %v7857 = vmul.f32 %v7809, 0.5
    %v7858 = vmul.f32 %v7810, 0.5
    %v7859 = vmul.f32 %v7811, 0.5
    %v7860 = vmul.f32 %v7812, 0.5
    %v7861 = vmul.f32 %v7813, 0.5
    %v7862 = vadd.f32 %v7814, 0.5
    %v7863 = vadd.f32 %v7815, 0.5
    %v7864 = vadd.f32 %v7816, 0.5
    %v7865 = vadd.f32 %v7817, 0.5
    %v7866 = vadd.f32 %v7818, 0.5
    %v7867 = vadd.f32 %v7819, 0.5
    %v7868 = vadd.f32 %v7820, 0.5
    %v7869 = vadd.f32 %v7821, 0.5
    %v7870 = vadd.f32 %v7822, 0.5
    %v7871 = vadd.f32 %v7823, 0.5
    %v7872 = vadd.f32 %v7824, 0.5
    %v7873 = vadd.f32 %v7825, 0.5
    %v7874 = vadd.f32 %v7826, 0.5
    %v7875 = vadd.f32 %v7827, 0.5
    %v7876 = vadd.f32 %v7828, 0.5
    %v7877 = vadd.f32 %v7829, 0.5
    %v7878 = vadd.f32 %v7830, 0.5
    %v7879 = vadd.f32 %v7831, 0.5
    %v7880 = vadd.f32 %v7832, 0.5
    %v7881 = vadd.f32 %v7833, 0.5
    %v7882 = vadd.f32 %v7834, 0.5
    %v7883 = vadd.f32 %v7835, 0.5
    %v7884 = vadd.f32 %v7836, 0.5
    %v7885 = vadd.f32 %v7837, 0.5
    %v7886 = vadd.f32 %v7838, 0.5
    %v7887 = vadd.f32 %v7839, 0.5
    %v7888 = vadd.f32 %v7840, 0.5
    %v7889 = vadd.f32 %v7841, 0.5
    %v7890 = vadd.f32 %v7842, 0.5
    %v7891 = vadd.f32 %v7843, 0.5
    %v7892 = vadd.f32 %v7844, 0.5
    %v7893 = vadd.f32 %v7845, 0.5
    %v7894 = vadd.f32 %v7846, 0.5
    %v7895 = vadd.f32 %v7847, 0.5
    %v7896 = vadd.f32 %v7848, 0.5
    %v7897 = vadd.f32 %v7849, 0.5
    %v7898 = vadd.f32 %v7850, 0.5
    %v7899 = vadd.f32 %v7851, 0.5
    %v7900 = vadd.f32 %v7852, 0.5
    %v7901 = vadd.f32 %v7853, 0.5
    %v7902 = vadd.f32 %v7854, 0.5
    %v7903 = vadd.f32 %v7855, 0.5
    %v7904 = vadd.f32 %v7856, 0.5
    %v7905 = vadd.f32 %v7857, 0.5
    %v7906 = vadd.f32 %v7858, 0.5
    %v7907 = vadd.f32 %v7859, 0.5
    %v7908 = vadd.f32 %v7860, 0.5
    %v7909 = vadd.f32 %v7861, 0.5
    %7910 = vrot.lane.b32.xlu0 %v7862, 64
    %v7911 = vpop.permute.xlu0 %7910
    %7912 = vrot.lane.b32.xlu0 %v7863, 64
    %v7913 = vpop.permute.xlu0 %7912
    %7914 = vrot.lane.b32.xlu0 %v7864, 64
    %v7915 = vpop.permute.xlu0 %7914
    %7916 = vrot.lane.b32.xlu0 %v7865, 64
    %v7917 = vpop.permute.xlu0 %7916
    %7918 = vrot.lane.b32.xlu0 %v7866, 64
    %v7919 = vpop.permute.xlu0 %7918
    %7920 = vrot.lane.b32.xlu0 %v7867, 64
    %v7921 = vpop.permute.xlu0 %7920
    %7922 = vrot.lane.b32.xlu0 %v7868, 64
    %v7923 = vpop.permute.xlu0 %7922
    %7924 = vrot.lane.b32.xlu0 %v7869, 64
    %v7925 = vpop.permute.xlu0 %7924
    %7926 = vrot.lane.b32.xlu0 %v7870, 64
    %v7927 = vpop.permute.xlu0 %7926
    %7928 = vrot.lane.b32.xlu0 %v7871, 64
    %v7929 = vpop.permute.xlu0 %7928
    %7930 = vrot.lane.b32.xlu0 %v7872, 64
    %v7931 = vpop.permute.xlu0 %7930
    %7932 = vrot.lane.b32.xlu0 %v7873, 64
    %v7933 = vpop.permute.xlu0 %7932
    %7934 = vrot.lane.b32.xlu0 %v7874, 64
    %v7935 = vpop.permute.xlu0 %7934
    %7936 = vrot.lane.b32.xlu0 %v7875, 64
    %v7937 = vpop.permute.xlu0 %7936
    %7938 = vrot.lane.b32.xlu0 %v7876, 64
    %v7939 = vpop.permute.xlu0 %7938
    %7940 = vrot.lane.b32.xlu0 %v7877, 64
    %v7941 = vpop.permute.xlu0 %7940
    %7942 = vrot.lane.b32.xlu0 %v7878, 64
    %v7943 = vpop.permute.xlu0 %7942
    %7944 = vrot.lane.b32.xlu0 %v7879, 64
    %v7945 = vpop.permute.xlu0 %7944
    %7946 = vrot.lane.b32.xlu0 %v7880, 64
    %v7947 = vpop.permute.xlu0 %7946
    %7948 = vrot.lane.b32.xlu0 %v7881, 64
    %v7949 = vpop.permute.xlu0 %7948
    %7950 = vrot.lane.b32.xlu0 %v7882, 64
    %v7951 = vpop.permute.xlu0 %7950
    %7952 = vrot.lane.b32.xlu0 %v7883, 64
    %v7953 = vpop.permute.xlu0 %7952
    %7954 = vrot.lane.b32.xlu0 %v7884, 64
    %v7955 = vpop.permute.xlu0 %7954
    %7956 = vrot.lane.b32.xlu0 %v7885, 64
    %v7957 = vpop.permute.xlu0 %7956
    %7958 = vrot.lane.b32.xlu0 %v7886, 64
    %v7959 = vpop.permute.xlu0 %7958
    %7960 = vrot.lane.b32.xlu0 %v7887, 64
    %v7961 = vpop.permute.xlu0 %7960
    %7962 = vrot.lane.b32.xlu0 %v7888, 64
    %v7963 = vpop.permute.xlu0 %7962
    %7964 = vrot.lane.b32.xlu0 %v7889, 64
    %v7965 = vpop.permute.xlu0 %7964
    %7966 = vrot.lane.b32.xlu0 %v7890, 64
    %v7967 = vpop.permute.xlu0 %7966
    %7968 = vrot.lane.b32.xlu0 %v7891, 64
    %v7969 = vpop.permute.xlu0 %7968
    %7970 = vrot.lane.b32.xlu0 %v7892, 64
    %v7971 = vpop.permute.xlu0 %7970
    %7972 = vrot.lane.b32.xlu0 %v7893, 64
    %v7973 = vpop.permute.xlu0 %7972
    %7974 = vrot.lane.b32.xlu0 %v7894, 64
    %v7975 = vpop.permute.xlu0 %7974
    %7976 = vrot.lane.b32.xlu0 %v7895, 64
    %v7977 = vpop.permute.xlu0 %7976
    %7978 = vrot.lane.b32.xlu0 %v7896, 64
    %v7979 = vpop.permute.xlu0 %7978
    %7980 = vrot.lane.b32.xlu0 %v7897, 64
    %v7981 = vpop.permute.xlu0 %7980
    %7982 = vrot.lane.b32.xlu0 %v7898, 64
    %v7983 = vpop.permute.xlu0 %7982
    %7984 = vrot.lane.b32.xlu0 %v7899, 64
    %v7985 = vpop.permute.xlu0 %7984
    %7986 = vrot.lane.b32.xlu0 %v7900, 64
    %v7987 = vpop.permute.xlu0 %7986
    %7988 = vrot.lane.b32.xlu0 %v7901, 64
    %v7989 = vpop.permute.xlu0 %7988
    %7990 = vrot.lane.b32.xlu0 %v7902, 64
    %v7991 = vpop.permute.xlu0 %7990
    %7992 = vrot.lane.b32.xlu0 %v7903, 64
    %v7993 = vpop.permute.xlu0 %7992
    %7994 = vrot.lane.b32.xlu0 %v7904, 64
    %v7995 = vpop.permute.xlu0 %7994
    %7996 = vrot.lane.b32.xlu0 %v7905, 64
    %v7997 = vpop.permute.xlu0 %7996
    %7998 = vrot.lane.b32.xlu0 %v7906, 64
    %v7999 = vpop.permute.xlu0 %7998
    %8000 = vrot.lane.b32.xlu0 %v7907, 64
    %v8001 = vpop.permute.xlu0 %8000
    %8002 = vrot.lane.b32.xlu0 %v7908, 64
    %v8003 = vpop.permute.xlu0 %8002
    %8004 = vrot.lane.b32.xlu0 %v7909, 64
    %v8005 = vpop.permute.xlu0 %8004
    %v8006 = vsub.f32 %v7862, %v7348
    %v8007 = vsub.f32 %v7863, %v7349
    %v8008 = vsub.f32 %v7864, %v7350
    %v8009 = vsub.f32 %v7865, %v7351
    %v8010 = vsub.f32 %v7866, %v7352
    %v8011 = vsub.f32 %v7867, %v7353
    %v8012 = vsub.f32 %v7868, %v7354
    %v8013 = vsub.f32 %v7869, %v7355
    %v8014 = vsub.f32 %v7870, %v7356
    %v8015 = vsub.f32 %v7871, %v7357
    %v8016 = vsub.f32 %v7872, %v7358
    %v8017 = vsub.f32 %v7873, %v7359
    %v8018 = vsub.f32 %v7874, %v7360
    %v8019 = vsub.f32 %v7875, %v7361
    %v8020 = vsub.f32 %v7876, %v7362
    %v8021 = vsub.f32 %v7877, %v7363
    %v8022 = vsub.f32 %v7878, %v7364
    %v8023 = vsub.f32 %v7879, %v7365
    %v8024 = vsub.f32 %v7880, %v7366
    %v8025 = vsub.f32 %v7881, %v7367
    %v8026 = vsub.f32 %v7882, %v7368
    %v8027 = vsub.f32 %v7883, %v7369
    %v8028 = vsub.f32 %v7884, %v7370
    %v8029 = vsub.f32 %v7885, %v7371
    %v8030 = vsub.f32 %v7886, %v7372
    %v8031 = vsub.f32 %v7887, %v7373
    %v8032 = vsub.f32 %v7888, %v7374
    %v8033 = vsub.f32 %v7889, %v7375
    %v8034 = vsub.f32 %v7890, %v7376
    %v8035 = vsub.f32 %v7891, %v7377
    %v8036 = vsub.f32 %v7892, %v7378
    %v8037 = vsub.f32 %v7893, %v7379
    %v8038 = vsub.f32 %v7894, %v7380
    %v8039 = vsub.f32 %v7895, %v7381
    %v8040 = vsub.f32 %v7896, %v7382
    %v8041 = vsub.f32 %v7897, %v7383
    %v8042 = vsub.f32 %v7898, %v7384
    %v8043 = vsub.f32 %v7899, %v7385
    %v8044 = vsub.f32 %v7900, %v7386
    %v8045 = vsub.f32 %v7901, %v7387
    %v8046 = vsub.f32 %v7902, %v7388
    %v8047 = vsub.f32 %v7903, %v7389
    %v8048 = vsub.f32 %v7904, %v7390
    %v8049 = vsub.f32 %v7905, %v7391
    %v8050 = vsub.f32 %v7906, %v7392
    %v8051 = vsub.f32 %v7907, %v7393
    %v8052 = vsub.f32 %v7908, %v7394
    %v8053 = vsub.f32 %v7909, %v7395
    %v8054 = vmul.f32 %v7911, %v8006
    %v8055 = vmul.f32 %v7913, %v8007
    %v8056 = vmul.f32 %v7915, %v8008
    %v8057 = vmul.f32 %v7917, %v8009
    %v8058 = vmul.f32 %v7919, %v8010
    %v8059 = vmul.f32 %v7921, %v8011
    %v8060 = vmul.f32 %v7923, %v8012
    %v8061 = vmul.f32 %v7925, %v8013
    %v8062 = vmul.f32 %v7927, %v8014
    %v8063 = vmul.f32 %v7929, %v8015
    %v8064 = vmul.f32 %v7931, %v8016
    %v8065 = vmul.f32 %v7933, %v8017
    %v8066 = vmul.f32 %v7935, %v8018
    %v8067 = vmul.f32 %v7937, %v8019
    %v8068 = vmul.f32 %v7939, %v8020
    %v8069 = vmul.f32 %v7941, %v8021
    %v8070 = vmul.f32 %v7943, %v8022
    %v8071 = vmul.f32 %v7945, %v8023
    %v8072 = vmul.f32 %v7947, %v8024
    %v8073 = vmul.f32 %v7949, %v8025
    %v8074 = vmul.f32 %v7951, %v8026
    %v8075 = vmul.f32 %v7953, %v8027
    %v8076 = vmul.f32 %v7955, %v8028
    %v8077 = vmul.f32 %v7957, %v8029
    %v8078 = vmul.f32 %v7959, %v8030
    %v8079 = vmul.f32 %v7961, %v8031
    %v8080 = vmul.f32 %v7963, %v8032
    %v8081 = vmul.f32 %v7965, %v8033
    %v8082 = vmul.f32 %v7967, %v8034
    %v8083 = vmul.f32 %v7969, %v8035
    %v8084 = vmul.f32 %v7971, %v8036
    %v8085 = vmul.f32 %v7973, %v8037
    %v8086 = vmul.f32 %v7975, %v8038
    %v8087 = vmul.f32 %v7977, %v8039
    %v8088 = vmul.f32 %v7979, %v8040
    %v8089 = vmul.f32 %v7981, %v8041
    %v8090 = vmul.f32 %v7983, %v8042
    %v8091 = vmul.f32 %v7985, %v8043
    %v8092 = vmul.f32 %v7987, %v8044
    %v8093 = vmul.f32 %v7989, %v8045
    %v8094 = vmul.f32 %v7991, %v8046
    %v8095 = vmul.f32 %v7993, %v8047
    %v8096 = vmul.f32 %v7995, %v8048
    %v8097 = vmul.f32 %v7997, %v8049
    %v8098 = vmul.f32 %v7999, %v8050
    %v8099 = vmul.f32 %v8001, %v8051
    %v8100 = vmul.f32 %v8003, %v8052
    %v8101 = vmul.f32 %v8005, %v8053
    %v8102 = vadd.f32 %v7348, %v8054
    %v8103 = vadd.f32 %v7349, %v8055
    %v8104 = vadd.f32 %v7350, %v8056
    %v8105 = vadd.f32 %v7351, %v8057
    %v8106 = vadd.f32 %v7352, %v8058
    %v8107 = vadd.f32 %v7353, %v8059
    %v8108 = vadd.f32 %v7354, %v8060
    %v8109 = vadd.f32 %v7355, %v8061
    %v8110 = vadd.f32 %v7356, %v8062
    %v8111 = vadd.f32 %v7357, %v8063
    %v8112 = vadd.f32 %v7358, %v8064
    %v8113 = vadd.f32 %v7359, %v8065
    %v8114 = vadd.f32 %v7360, %v8066
    %v8115 = vadd.f32 %v7361, %v8067
    %v8116 = vadd.f32 %v7362, %v8068
    %v8117 = vadd.f32 %v7363, %v8069
    %v8118 = vadd.f32 %v7364, %v8070
    %v8119 = vadd.f32 %v7365, %v8071
    %v8120 = vadd.f32 %v7366, %v8072
    %v8121 = vadd.f32 %v7367, %v8073
    %v8122 = vadd.f32 %v7368, %v8074
    %v8123 = vadd.f32 %v7369, %v8075
    %v8124 = vadd.f32 %v7370, %v8076
    %v8125 = vadd.f32 %v7371, %v8077
    %v8126 = vadd.f32 %v7372, %v8078
    %v8127 = vadd.f32 %v7373, %v8079
    %v8128 = vadd.f32 %v7374, %v8080
    %v8129 = vadd.f32 %v7375, %v8081
    %v8130 = vadd.f32 %v7376, %v8082
    %v8131 = vadd.f32 %v7377, %v8083
    %v8132 = vadd.f32 %v7378, %v8084
    %v8133 = vadd.f32 %v7379, %v8085
    %v8134 = vadd.f32 %v7380, %v8086
    %v8135 = vadd.f32 %v7381, %v8087
    %v8136 = vadd.f32 %v7382, %v8088
    %v8137 = vadd.f32 %v7383, %v8089
    %v8138 = vadd.f32 %v7384, %v8090
    %v8139 = vadd.f32 %v7385, %v8091
    %v8140 = vadd.f32 %v7386, %v8092
    %v8141 = vadd.f32 %v7387, %v8093
    %v8142 = vadd.f32 %v7388, %v8094
    %v8143 = vadd.f32 %v7389, %v8095
    %v8144 = vadd.f32 %v7390, %v8096
    %v8145 = vadd.f32 %v7391, %v8097
    %v8146 = vadd.f32 %v7392, %v8098
    %v8147 = vadd.f32 %v7393, %v8099
    %v8148 = vadd.f32 %v7394, %v8100
    %v8149 = vadd.f32 %v7395, %v8101
    %8150 = vst [vmem:[%s5] sm:$0xff] %v8102
    %8151 = vst [vmem:[%s5 + $0x8] sm:$0xff] %v8103
    %8152 = vst [vmem:[%s5 + $0x10] sm:$0xff] %v8104
    %8153 = vst [vmem:[%s5 + $0x18] sm:$0xff] %v8105
    %8154 = vst [vmem:[%s5 + $0x20] sm:$0xff] %v8106
    %8155 = vst [vmem:[%s5 + $0x28] sm:$0xff] %v8107
    %8156 = vst [vmem:[%s5 + $0x30] sm:$0xff] %v8108
    %8157 = vst [vmem:[%s5 + $0x38] sm:$0xff] %v8109
    %8158 = vst [vmem:[%s5 + $0x40] sm:$0xff] %v8110
    %8159 = vst [vmem:[%s5 + $0x48] sm:$0xff] %v8111
    %8160 = vst [vmem:[%s5 + $0x50] sm:$0xff] %v8112
    %8161 = vst [vmem:[%s5 + $0x58] sm:$0xff] %v8113
    %8162 = vst [vmem:[%s5 + $0x60] sm:$0xff] %v8114
    %8163 = vst [vmem:[%s5 + $0x68] sm:$0xff] %v8115
    %8164 = vst [vmem:[%s5 + $0x70] sm:$0xff] %v8116
    %8165 = vst [vmem:[%s5 + $0x78] sm:$0xff] %v8117
    %8166 = vst [vmem:[%s5 + $0x80] sm:$0xff] %v8118
    %8167 = vst [vmem:[%s5 + $0x88] sm:$0xff] %v8119
    %8168 = vst [vmem:[%s5 + $0x90] sm:$0xff] %v8120
    %8169 = vst [vmem:[%s5 + $0x98] sm:$0xff] %v8121
    %8170 = vst [vmem:[%s5 + $0xa0] sm:$0xff] %v8122
    %8171 = vst [vmem:[%s5 + $0xa8] sm:$0xff] %v8123
    %8172 = vst [vmem:[%s5 + $0xb0] sm:$0xff] %v8124
    %8173 = vst [vmem:[%s5 + $0xb8] sm:$0xff] %v8125
    %8174 = vst [vmem:[%s5 + $0xc0] sm:$0xff] %v8126
    %8175 = vst [vmem:[%s5 + $0xc8] sm:$0xff] %v8127
    %8176 = vst [vmem:[%s5 + $0xd0] sm:$0xff] %v8128
    %8177 = vst [vmem:[%s5 + $0xd8] sm:$0xff] %v8129
    %8178 = vst [vmem:[%s5 + $0xe0] sm:$0xff] %v8130
    %8179 = vst [vmem:[%s5 + $0xe8] sm:$0xff] %v8131
    %8180 = vst [vmem:[%s5 + $0xf0] sm:$0xff] %v8132
    %8181 = vst [vmem:[%s5 + $0xf8] sm:$0xff] %v8133
    %8182 = vst [vmem:[%s5 + $0x100] sm:$0xff] %v8134
    %8183 = vst [vmem:[%s5 + $0x108] sm:$0xff] %v8135
    %8184 = vst [vmem:[%s5 + $0x110] sm:$0xff] %v8136
    %8185 = vst [vmem:[%s5 + $0x118] sm:$0xff] %v8137
    %8186 = vst [vmem:[%s5 + $0x120] sm:$0xff] %v8138
    %8187 = vst [vmem:[%s5 + $0x128] sm:$0xff] %v8139
    %8188 = vst [vmem:[%s5 + $0x130] sm:$0xff] %v8140
    %8189 = vst [vmem:[%s5 + $0x138] sm:$0xff] %v8141
    %8190 = vst [vmem:[%s5 + $0x140] sm:$0xff] %v8142
    %8191 = vst [vmem:[%s5 + $0x148] sm:$0xff] %v8143
    %8192 = vst [vmem:[%s5 + $0x150] sm:$0xff] %v8144
    %8193 = vst [vmem:[%s5 + $0x158] sm:$0xff] %v8145
    %8194 = vst [vmem:[%s5 + $0x160] sm:$0xff] %v8146
    %8195 = vst [vmem:[%s5 + $0x168] sm:$0xff] %v8147
    %8196 = vst [vmem:[%s5 + $0x170] sm:$0xff] %v8148
    %8197 = vst [vmem:[%s5 + $0x178] sm:$0xff] %v8149
    // Predicated region
    $region26: #{highway_forward.1} parent=1 // pred_check
      _
    $region27: #{highway_forward.1} parent=1 // pred_check_branch
      %8199 = sbr.rel (0) target = $region29
    $region28: #{highway_forward.1} parent=1 // pred_region
      _
    $region29: #{highway_forward.1} parent=1 // pred_fallthru
      _
    // Predicated region
    $region30: #{highway_forward.1} parent=1 // pred_check
      _
    $region31: #{highway_forward.1} parent=1 // pred_check_branch
      %8201 = sbr.rel (0) target = $region33
    $region32: #{highway_forward.1} parent=1 // pred_region
      _
    $region33: #{highway_forward.1} parent=1 // pred_fallthru
      _
    %8202 = vsyncpa [#allocation3], 1

</llo_original>
